<compile_context>
chip_gen: v7x
topology: tpu7x:2x2x1
jax: 0.10.0
libtpu: 0.0.40
codegen_flags: <defaults>
</compile_context>

<pallas_src>
import math

import jax
import jax.numpy as jnp
from jax.experimental import pallas as pl
from jax.experimental.pallas import tpu as pltpu

B_TILE = 8           # one sublane group; keeps all per-timestep slices (8, lane)-aligned
N_LAYER_PARAMS = 12  # w_ir, w_iz, w_in, b_ir, b_iz, b_in, w_hr, w_hz, w_hn, b_hr, b_hz, b_hn


def make_gru_disc_kernel(n_layers, seq_len, input_dim, hidden):
    T = seq_len

    def kernel(x_ref, *refs):
        out_ref = refs[-1]
        prefs = refs[:-1]

        # Layer-0 input for this batch tile, timestep-major rows: (T*B_TILE, input_dim).
        inp = x_ref[...]

        h = None
        for l in range(n_layers):
            (w_ir_r, w_iz_r, w_in_r, b_ir_r, b_iz_r, b_in_r,
             w_hr_r, w_hz_r, w_hn_r, b_hr_r, b_hz_r, b_hn_r) = (
                prefs[l * N_LAYER_PARAMS:(l + 1) * N_LAYER_PARAMS])

            # Input->gate projections for every timestep at once (M = T*B_TILE).
            gxr = jnp.dot(inp, w_ir_r[...], preferred_element_type=jnp.float32) + b_ir_r[...]
            gxz = jnp.dot(inp, w_iz_r[...], preferred_element_type=jnp.float32) + b_iz_r[...]
            gxn = jnp.dot(inp, w_in_r[...], preferred_element_type=jnp.float32) + b_in_r[...]

            # Hoist recurrent weights/biases into values once per layer.
            w_hr = w_hr_r[...]; w_hz = w_hz_r[...]; w_hn = w_hn_r[...]
            b_hr = b_hr_r[...]; b_hz = b_hz_r[...]; b_hn = b_hn_r[...]

            h = jnp.zeros((B_TILE, hidden), jnp.float32)
            outs = []
            for t in range(T):  # unrolled: small static trip count
                lo = t * B_TILE
                hi = lo + B_TILE
                ghr = jnp.dot(h, w_hr, preferred_element_type=jnp.float32) + b_hr
                ghz = jnp.dot(h, w_hz, preferred_element_type=jnp.float32) + b_hz
                ghn = jnp.dot(h, w_hn, preferred_element_type=jnp.float32) + b_hn
                r = jax.nn.sigmoid(gxr[lo:hi, :] + ghr)
                z = jax.nn.sigmoid(gxz[lo:hi, :] + ghz)
                n = jnp.tanh(gxn[lo:hi, :] + r * ghn)   # PyTorch: b_hn sits inside r*(...)
                h = (1.0 - z) * n + z * h
                if l < n_layers - 1:
                    outs.append(h)

            if l < n_layers - 1:
                # Next layer's input: full output sequence, still timestep-major.
                inp = jnp.concatenate(outs, axis=0)      # (T*B_TILE, hidden)

        # features = top-layer output at the last timestep (== h after the loop)
        w_dc_r = prefs[n_layers * N_LAYER_PARAMS]
        b_dc_r = prefs[n_layers * N_LAYER_PARAMS + 1]
        logits = jnp.dot(h, w_dc_r[...], preferred_element_type=jnp.float32) + b_dc_r[...]
        out_ref[...] = logits                            # (B_TILE, 1), written once per tile

    return kernel


def discriminator_ar_forward(x, params, *, input_dim, hidden, n_layers):
    """Replicates Discriminator_AR.forward: view(B,-1,input_dim) -> GRU -> last step -> DC."""
    B = x.shape[0]
    xr = jnp.reshape(x, (B, -1, input_dim)).astype(jnp.float32)   # same as torch .view
    T = xr.shape[1]

    # Pad batch to a multiple of the 8-row tile; lay out batch-tile-major and
    # timestep-major inside a tile: (n_btiles, T*B_TILE, input_dim).
    n_btiles = max(1, -(-B // B_TILE))
    Bp = n_btiles * B_TILE
    if Bp != B:
        xr = jnp.pad(xr, ((0, Bp - B), (0, 0), (0, 0)))
    x_tiles = xr.reshape(n_btiles, B_TILE, T, input_dim).transpose(0, 2, 1, 3)
    x_tiles = x_tiles.reshape(n_btiles, T * B_TILE, input_dim)

    param_list = []
    for l in range(n_layers):
        p = params["layers"][l]
        param_list += [p["w_ir"], p["w_iz"], p["w_in"], p["b_ir"], p["b_iz"], p["b_in"],
                       p["w_hr"], p["w_hz"], p["w_hn"], p["b_hr"], p["b_hz"], p["b_hn"]]
    param_list += [params["w_dc"], params["b_dc"]]

    kernel = make_gru_disc_kernel(n_layers, T, input_dim, hidden)

    def full_spec(arr):
        nd = arr.ndim
        return pl.BlockSpec(arr.shape, lambda b, _nd=nd: (0,) * _nd)

    out = pl.pallas_call(
        kernel,
        out_shape=jax.ShapeDtypeStruct((Bp, 1), jnp.float32),
        grid_spec=pltpu.PrefetchScalarGridSpec(
            num_scalar_prefetch=0,
            grid=(n_btiles,),
            in_specs=[pl.BlockSpec((None, T * B_TILE, input_dim),   # leading dim squeezed
                                   lambda b: (b, 0, 0))]
                     + [full_spec(p) for p in param_list],
            out_specs=pl.BlockSpec((B_TILE, 1), lambda b: (b, 0)),
        ),
        compiler_params=pltpu.CompilerParams(
            dimension_semantics=("parallel",)),   # independent batch tiles (v7x: 2 TCs)
    )(x_tiles, *param_list)
    return out[:B]


def init_params(key, *, input_dim, hidden, n_layers):
    """PyTorch-style GRU init: uniform(-1/sqrt(H), 1/sqrt(H)); gate order r, z, n."""
    stdv = 1.0 / math.sqrt(hidden)
    keys = jax.random.split(key, n_layers * N_LAYER_PARAMS + 2)
    ki = 0

    def u(shape):
        nonlocal ki
        k = keys[ki]; ki += 1
        return jax.random.uniform(k, shape, jnp.float32, -stdv, stdv)

    layers = []
    for l in range(n_layers):
        d_in = input_dim if l == 0 else hidden
        layers.append({
            "w_ir": u((d_in, hidden)), "w_iz": u((d_in, hidden)), "w_in": u((d_in, hidden)),
            "b_ir": u((1, hidden)), "b_iz": u((1, hidden)), "b_in": u((1, hidden)),
            "w_hr": u((hidden, hidden)), "w_hz": u((hidden, hidden)), "w_hn": u((hidden, hidden)),
            "b_hr": u((1, hidden)), "b_hz": u((1, hidden)), "b_hn": u((1, hidden)),
        })
    w_dc = u((hidden, 1))
    b_dc = u((1, 1))
    return {"layers": layers, "w_dc": w_dc, "b_dc": b_dc}


def discriminator_ar_reference(x, params, *, input_dim, hidden, n_layers):
    """Pure-JAX reference (same math, per-timestep) for a correctness check."""
    B = x.shape[0]
    xr = jnp.reshape(x, (B, -1, input_dim)).astype(jnp.float32)
    T = xr.shape[1]
    hp = jax.lax.Precision.HIGHEST
    seq = xr
    h = None
    for l in range(n_layers):
        p = params["layers"][l]
        h = jnp.zeros((B, hidden), jnp.float32)
        outs = []
        for t in range(T):
            xt = seq[:, t, :]
            r = jax.nn.sigmoid(jnp.dot(xt, p["w_ir"], precision=hp) + p["b_ir"]
                               + jnp.dot(h, p["w_hr"], precision=hp) + p["b_hr"])
            z = jax.nn.sigmoid(jnp.dot(xt, p["w_iz"], precision=hp) + p["b_iz"]
                               + jnp.dot(h, p["w_hz"], precision=hp) + p["b_hz"])
            n = jnp.tanh(jnp.dot(xt, p["w_in"], precision=hp) + p["b_in"]
                         + r * (jnp.dot(h, p["w_hn"], precision=hp) + p["b_hn"]))
            h = (1.0 - z) * n + z * h
            outs.append(h)
        seq = jnp.stack(outs, axis=1)
    feats = seq[:, -1, :]
    return jnp.dot(feats, params["w_dc"], precision=hp) + params["b_dc"]


if __name__ == "__main__":
    # configs: out_channels (GRU input_size)=8, disc_AR_hid=32, disc_n_layers=2, disc_AR_bid=False.
    # Input = encoder feature map (B, out_channels, L) = (2, 8, 16); the module's
    # .view(B, -1, 8) turns it into 16 "timesteps" of width 8.
    input_dim, hidden, n_layers = 8, 32, 2
    B, C, L = 2, 8, 16

    key = jax.random.PRNGKey(0)
    kx, kp = jax.random.split(key)
    x = jax.random.normal(kx, (B, C, L), jnp.float32)
    params = init_params(kp, input_dim=input_dim, hidden=hidden, n_layers=n_layers)

    out = discriminator_ar_forward(x, params, input_dim=input_dim, hidden=hidden,
                                   n_layers=n_layers)
    out = jax.block_until_ready(out)

    ref = discriminator_ar_reference(x, params, input_dim=input_dim, hidden=hidden,
                                     n_layers=n_layers)

    assert out.shape == (B, 1)
    assert bool(jnp.all(jnp.isfinite(out)))
    assert bool(jnp.max(jnp.abs(out - ref)) < 5e-2)
    print("KERNEL_OK")
</pallas_src>

<mosaic_0001>
module attributes {stable_mosaic.version = 11 : i64} {
  func.func @kernel(%arg0: i32, %arg1: memref<1x128x8xf32, #tpu.memory_space<vmem>>, %arg2: memref<8x32xf32, #tpu.memory_space<vmem>>, %arg3: memref<8x32xf32, #tpu.memory_space<vmem>>, %arg4: memref<8x32xf32, #tpu.memory_space<vmem>>, %arg5: memref<1x32xf32, #tpu.memory_space<vmem>>, %arg6: memref<1x32xf32, #tpu.memory_space<vmem>>, %arg7: memref<1x32xf32, #tpu.memory_space<vmem>>, %arg8: memref<32x32xf32, #tpu.memory_space<vmem>>, %arg9: memref<32x32xf32, #tpu.memory_space<vmem>>, %arg10: memref<32x32xf32, #tpu.memory_space<vmem>>, %arg11: memref<1x32xf32, #tpu.memory_space<vmem>>, %arg12: memref<1x32xf32, #tpu.memory_space<vmem>>, %arg13: memref<1x32xf32, #tpu.memory_space<vmem>>, %arg14: memref<32x32xf32, #tpu.memory_space<vmem>>, %arg15: memref<32x32xf32, #tpu.memory_space<vmem>>, %arg16: memref<32x32xf32, #tpu.memory_space<vmem>>, %arg17: memref<1x32xf32, #tpu.memory_space<vmem>>, %arg18: memref<1x32xf32, #tpu.memory_space<vmem>>, %arg19: memref<1x32xf32, #tpu.memory_space<vmem>>, %arg20: memref<32x32xf32, #tpu.memory_space<vmem>>, %arg21: memref<32x32xf32, #tpu.memory_space<vmem>>, %arg22: memref<32x32xf32, #tpu.memory_space<vmem>>, %arg23: memref<1x32xf32, #tpu.memory_space<vmem>>, %arg24: memref<1x32xf32, #tpu.memory_space<vmem>>, %arg25: memref<1x32xf32, #tpu.memory_space<vmem>>, %arg26: memref<32x1xf32, #tpu.memory_space<vmem>>, %arg27: memref<1x1xf32, #tpu.memory_space<vmem>>, %arg28: memref<8x1xf32, #tpu.memory_space<vmem>>) attributes {dimension_semantics = [#tpu.dimension_semantics<parallel>], iteration_bounds = array<i64: 1>, scalar_prefetch = 0 : i64, scratch_operands = 0 : i64, tpu.core_type = #tpu.core_type<tc>, window_params = [{transform_indices = @transform_0, window_bounds = array<i64: 1, 128, 8>}, {pipeline_mode = #tpu.pipeline_mode<synchronous>, transform_indices = @transform_1, window_bounds = array<i64: 8, 32>}, {pipeline_mode = #tpu.pipeline_mode<synchronous>, transform_indices = @transform_2, window_bounds = array<i64: 8, 32>}, {pipeline_mode = #tpu.pipeline_mode<synchronous>, transform_indices = @transform_3, window_bounds = array<i64: 8, 32>}, {pipeline_mode = #tpu.pipeline_mode<synchronous>, transform_indices = @transform_4, window_bounds = array<i64: 1, 32>}, {pipeline_mode = #tpu.pipeline_mode<synchronous>, transform_indices = @transform_5, window_bounds = array<i64: 1, 32>}, {pipeline_mode = #tpu.pipeline_mode<synchronous>, transform_indices = @transform_6, window_bounds = array<i64: 1, 32>}, {pipeline_mode = #tpu.pipeline_mode<synchronous>, transform_indices = @transform_7, window_bounds = array<i64: 32, 32>}, {pipeline_mode = #tpu.pipeline_mode<synchronous>, transform_indices = @transform_8, window_bounds = array<i64: 32, 32>}, {pipeline_mode = #tpu.pipeline_mode<synchronous>, transform_indices = @transform_9, window_bounds = array<i64: 32, 32>}, {pipeline_mode = #tpu.pipeline_mode<synchronous>, transform_indices = @transform_10, window_bounds = array<i64: 1, 32>}, {pipeline_mode = #tpu.pipeline_mode<synchronous>, transform_indices = @transform_11, window_bounds = array<i64: 1, 32>}, {pipeline_mode = #tpu.pipeline_mode<synchronous>, transform_indices = @transform_12, window_bounds = array<i64: 1, 32>}, {pipeline_mode = #tpu.pipeline_mode<synchronous>, transform_indices = @transform_13, window_bounds = array<i64: 32, 32>}, {pipeline_mode = #tpu.pipeline_mode<synchronous>, transform_indices = @transform_14, window_bounds = array<i64: 32, 32>}, {pipeline_mode = #tpu.pipeline_mode<synchronous>, transform_indices = @transform_15, window_bounds = array<i64: 32, 32>}, {pipeline_mode = #tpu.pipeline_mode<synchronous>, transform_indices = @transform_16, window_bounds = array<i64: 1, 32>}, {pipeline_mode = #tpu.pipeline_mode<synchronous>, transform_indices = @transform_17, window_bounds = array<i64: 1, 32>}, {pipeline_mode = #tpu.pipeline_mode<synchronous>, transform_indices = @transform_18, window_bounds = array<i64: 1, 32>}, {pipeline_mode = #tpu.pipeline_mode<synchronous>, transform_indices = @transform_19, window_bounds = array<i64: 32, 32>}, {pipeline_mode = #tpu.pipeline_mode<synchronous>, transform_indices = @transform_20, window_bounds = array<i64: 32, 32>}, {pipeline_mode = #tpu.pipeline_mode<synchronous>, transform_indices = @transform_21, window_bounds = array<i64: 32, 32>}, {pipeline_mode = #tpu.pipeline_mode<synchronous>, transform_indices = @transform_22, window_bounds = array<i64: 1, 32>}, {pipeline_mode = #tpu.pipeline_mode<synchronous>, transform_indices = @transform_23, window_bounds = array<i64: 1, 32>}, {pipeline_mode = #tpu.pipeline_mode<synchronous>, transform_indices = @transform_24, window_bounds = array<i64: 1, 32>}, {pipeline_mode = #tpu.pipeline_mode<synchronous>, transform_indices = @transform_25, window_bounds = array<i64: 32, 1>}, {pipeline_mode = #tpu.pipeline_mode<synchronous>, transform_indices = @transform_26, window_bounds = array<i64: 1, 1>}, {transform_indices = @transform_27, window_bounds = array<i64: 8, 1>}]} {
    %c0 = arith.constant 0 : index
    %c0_0 = arith.constant 0 : index
    %c0_1 = arith.constant 0 : index
    %0 = vector.load %arg1[%c0, %c0_0, %c0_1] : memref<1x128x8xf32, #tpu.memory_space<vmem>>, vector<1x128x8xf32>
    %1 = vector.shape_cast %0 : vector<1x128x8xf32> to vector<128x8xf32>
    %c0_2 = arith.constant 0 : index
    %c0_3 = arith.constant 0 : index
    %2 = vector.load %arg2[%c0_2, %c0_3] : memref<8x32xf32, #tpu.memory_space<vmem>>, vector<8x32xf32>
    %cst = arith.constant dense<0.000000e+00> : vector<128x32xf32>
    %3 = tpu.matmul %1, %2, %cst {dimension_numbers = #tpu.dot_dimension_numbers<[1], [0], [0], [1], [0, 0, 1, 1], [], []>} : vector<128x8xf32>, vector<8x32xf32>, vector<128x32xf32> -> vector<128x32xf32>
    %c0_4 = arith.constant 0 : index
    %c0_5 = arith.constant 0 : index
    %4 = vector.load %arg5[%c0_4, %c0_5] : memref<1x32xf32, #tpu.memory_space<vmem>>, vector<1x32xf32>
    %5 = vector.broadcast %4 : vector<1x32xf32> to vector<128x32xf32>
    %6 = arith.addf %3, %5 : vector<128x32xf32>
    %c0_6 = arith.constant 0 : index
    %c0_7 = arith.constant 0 : index
    %7 = vector.load %arg3[%c0_6, %c0_7] : memref<8x32xf32, #tpu.memory_space<vmem>>, vector<8x32xf32>
    %cst_8 = arith.constant dense<0.000000e+00> : vector<128x32xf32>
    %8 = tpu.matmul %1, %7, %cst_8 {dimension_numbers = #tpu.dot_dimension_numbers<[1], [0], [0], [1], [0, 0, 1, 1], [], []>} : vector<128x8xf32>, vector<8x32xf32>, vector<128x32xf32> -> vector<128x32xf32>
    %c0_9 = arith.constant 0 : index
    %c0_10 = arith.constant 0 : index
    %9 = vector.load %arg6[%c0_9, %c0_10] : memref<1x32xf32, #tpu.memory_space<vmem>>, vector<1x32xf32>
    %10 = vector.broadcast %9 : vector<1x32xf32> to vector<128x32xf32>
    %11 = arith.addf %8, %10 : vector<128x32xf32>
    %c0_11 = arith.constant 0 : index
    %c0_12 = arith.constant 0 : index
    %12 = vector.load %arg4[%c0_11, %c0_12] : memref<8x32xf32, #tpu.memory_space<vmem>>, vector<8x32xf32>
    %cst_13 = arith.constant dense<0.000000e+00> : vector<128x32xf32>
    %13 = tpu.matmul %1, %12, %cst_13 {dimension_numbers = #tpu.dot_dimension_numbers<[1], [0], [0], [1], [0, 0, 1, 1], [], []>} : vector<128x8xf32>, vector<8x32xf32>, vector<128x32xf32> -> vector<128x32xf32>
    %c0_14 = arith.constant 0 : index
    %c0_15 = arith.constant 0 : index
    %14 = vector.load %arg7[%c0_14, %c0_15] : memref<1x32xf32, #tpu.memory_space<vmem>>, vector<1x32xf32>
    %15 = vector.broadcast %14 : vector<1x32xf32> to vector<128x32xf32>
    %16 = arith.addf %13, %15 : vector<128x32xf32>
    %c0_16 = arith.constant 0 : index
    %c0_17 = arith.constant 0 : index
    %17 = vector.load %arg8[%c0_16, %c0_17] : memref<32x32xf32, #tpu.memory_space<vmem>>, vector<32x32xf32>
    %c0_18 = arith.constant 0 : index
    %c0_19 = arith.constant 0 : index
    %18 = vector.load %arg9[%c0_18, %c0_19] : memref<32x32xf32, #tpu.memory_space<vmem>>, vector<32x32xf32>
    %c0_20 = arith.constant 0 : index
    %c0_21 = arith.constant 0 : index
    %19 = vector.load %arg10[%c0_20, %c0_21] : memref<32x32xf32, #tpu.memory_space<vmem>>, vector<32x32xf32>
    %c0_22 = arith.constant 0 : index
    %c0_23 = arith.constant 0 : index
    %20 = vector.load %arg11[%c0_22, %c0_23] : memref<1x32xf32, #tpu.memory_space<vmem>>, vector<1x32xf32>
    %c0_24 = arith.constant 0 : index
    %c0_25 = arith.constant 0 : index
    %21 = vector.load %arg12[%c0_24, %c0_25] : memref<1x32xf32, #tpu.memory_space<vmem>>, vector<1x32xf32>
    %c0_26 = arith.constant 0 : index
    %c0_27 = arith.constant 0 : index
    %22 = vector.load %arg13[%c0_26, %c0_27] : memref<1x32xf32, #tpu.memory_space<vmem>>, vector<1x32xf32>
    %cst_28 = arith.constant 0.000000e+00 : f32
    %23 = vector.broadcast %cst_28 : f32 to vector<8x32xf32>
    %cst_29 = arith.constant dense<0.000000e+00> : vector<8x32xf32>
    %24 = tpu.matmul %23, %17, %cst_29 {dimension_numbers = #tpu.dot_dimension_numbers<[1], [0], [0], [1], [0, 0, 1, 1], [], []>} : vector<8x32xf32>, vector<32x32xf32>, vector<8x32xf32> -> vector<8x32xf32>
    %25 = vector.broadcast %20 : vector<1x32xf32> to vector<8x32xf32>
    %26 = arith.addf %24, %25 : vector<8x32xf32>
    %cst_30 = arith.constant dense<0.000000e+00> : vector<8x32xf32>
    %27 = tpu.matmul %23, %18, %cst_30 {dimension_numbers = #tpu.dot_dimension_numbers<[1], [0], [0], [1], [0, 0, 1, 1], [], []>} : vector<8x32xf32>, vector<32x32xf32>, vector<8x32xf32> -> vector<8x32xf32>
    %28 = vector.broadcast %21 : vector<1x32xf32> to vector<8x32xf32>
    %29 = arith.addf %27, %28 : vector<8x32xf32>
    %cst_31 = arith.constant dense<0.000000e+00> : vector<8x32xf32>
    %30 = tpu.matmul %23, %19, %cst_31 {dimension_numbers = #tpu.dot_dimension_numbers<[1], [0], [0], [1], [0, 0, 1, 1], [], []>} : vector<8x32xf32>, vector<32x32xf32>, vector<8x32xf32> -> vector<8x32xf32>
    %31 = vector.broadcast %22 : vector<1x32xf32> to vector<8x32xf32>
    %32 = arith.addf %30, %31 : vector<8x32xf32>
    %33 = vector.extract_strided_slice %6 {offsets = [0, 0], sizes = [8, 32], strides = [1, 1]} : vector<128x32xf32> to vector<8x32xf32>
    %34 = arith.addf %33, %26 : vector<8x32xf32>
    %35 = arith.negf %34 : vector<8x32xf32>
    %36 = math.exp %35 : vector<8x32xf32>
    %cst_32 = arith.constant 1.000000e+00 : f32
    %37 = vector.broadcast %cst_32 : f32 to vector<8x32xf32>
    %38 = arith.addf %37, %36 : vector<8x32xf32>
    %39 = arith.divf %37, %38 : vector<8x32xf32>
    %40 = vector.extract_strided_slice %11 {offsets = [0, 0], sizes = [8, 32], strides = [1, 1]} : vector<128x32xf32> to vector<8x32xf32>
    %41 = arith.addf %40, %29 : vector<8x32xf32>
    %42 = arith.negf %41 : vector<8x32xf32>
    %43 = math.exp %42 : vector<8x32xf32>
    %cst_33 = arith.constant 1.000000e+00 : f32
    %44 = vector.broadcast %cst_33 : f32 to vector<8x32xf32>
    %45 = arith.addf %44, %43 : vector<8x32xf32>
    %46 = arith.divf %44, %45 : vector<8x32xf32>
    %47 = vector.extract_strided_slice %16 {offsets = [0, 0], sizes = [8, 32], strides = [1, 1]} : vector<128x32xf32> to vector<8x32xf32>
    %48 = arith.mulf %39, %32 : vector<8x32xf32>
    %49 = arith.addf %47, %48 : vector<8x32xf32>
    %50 = math.tanh %49 : vector<8x32xf32>
    %cst_34 = arith.constant 1.000000e+00 : f32
    %51 = vector.broadcast %cst_34 : f32 to vector<8x32xf32>
    %52 = arith.subf %51, %46 : vector<8x32xf32>
    %53 = arith.mulf %52, %50 : vector<8x32xf32>
    %54 = arith.mulf %46, %23 : vector<8x32xf32>
    %55 = arith.addf %53, %54 : vector<8x32xf32>
    %cst_35 = arith.constant dense<0.000000e+00> : vector<8x32xf32>
    %56 = tpu.matmul %55, %17, %cst_35 {dimension_numbers = #tpu.dot_dimension_numbers<[1], [0], [0], [1], [0, 0, 1, 1], [], []>} : vector<8x32xf32>, vector<32x32xf32>, vector<8x32xf32> -> vector<8x32xf32>
    %57 = vector.broadcast %20 : vector<1x32xf32> to vector<8x32xf32>
    %58 = arith.addf %56, %57 : vector<8x32xf32>
    %cst_36 = arith.constant dense<0.000000e+00> : vector<8x32xf32>
    %59 = tpu.matmul %55, %18, %cst_36 {dimension_numbers = #tpu.dot_dimension_numbers<[1], [0], [0], [1], [0, 0, 1, 1], [], []>} : vector<8x32xf32>, vector<32x32xf32>, vector<8x32xf32> -> vector<8x32xf32>
    %60 = vector.broadcast %21 : vector<1x32xf32> to vector<8x32xf32>
    %61 = arith.addf %59, %60 : vector<8x32xf32>
    %cst_37 = arith.constant dense<0.000000e+00> : vector<8x32xf32>
    %62 = tpu.matmul %55, %19, %cst_37 {dimension_numbers = #tpu.dot_dimension_numbers<[1], [0], [0], [1], [0, 0, 1, 1], [], []>} : vector<8x32xf32>, vector<32x32xf32>, vector<8x32xf32> -> vector<8x32xf32>
    %63 = vector.broadcast %22 : vector<1x32xf32> to vector<8x32xf32>
    %64 = arith.addf %62, %63 : vector<8x32xf32>
    %65 = vector.extract_strided_slice %6 {offsets = [8, 0], sizes = [8, 32], strides = [1, 1]} : vector<128x32xf32> to vector<8x32xf32>
    %66 = arith.addf %65, %58 : vector<8x32xf32>
    %67 = arith.negf %66 : vector<8x32xf32>
    %68 = math.exp %67 : vector<8x32xf32>
    %cst_38 = arith.constant 1.000000e+00 : f32
    %69 = vector.broadcast %cst_38 : f32 to vector<8x32xf32>
    %70 = arith.addf %69, %68 : vector<8x32xf32>
    %71 = arith.divf %69, %70 : vector<8x32xf32>
    %72 = vector.extract_strided_slice %11 {offsets = [8, 0], sizes = [8, 32], strides = [1, 1]} : vector<128x32xf32> to vector<8x32xf32>
    %73 = arith.addf %72, %61 : vector<8x32xf32>
    %74 = arith.negf %73 : vector<8x32xf32>
    %75 = math.exp %74 : vector<8x32xf32>
    %cst_39 = arith.constant 1.000000e+00 : f32
    %76 = vector.broadcast %cst_39 : f32 to vector<8x32xf32>
    %77 = arith.addf %76, %75 : vector<8x32xf32>
    %78 = arith.divf %76, %77 : vector<8x32xf32>
    %79 = vector.extract_strided_slice %16 {offsets = [8, 0], sizes = [8, 32], strides = [1, 1]} : vector<128x32xf32> to vector<8x32xf32>
    %80 = arith.mulf %71, %64 : vector<8x32xf32>
    %81 = arith.addf %79, %80 : vector<8x32xf32>
    %82 = math.tanh %81 : vector<8x32xf32>
    %cst_40 = arith.constant 1.000000e+00 : f32
    %83 = vector.broadcast %cst_40 : f32 to vector<8x32xf32>
    %84 = arith.subf %83, %78 : vector<8x32xf32>
    %85 = arith.mulf %84, %82 : vector<8x32xf32>
    %86 = arith.mulf %78, %55 : vector<8x32xf32>
    %87 = arith.addf %85, %86 : vector<8x32xf32>
    %cst_41 = arith.constant dense<0.000000e+00> : vector<8x32xf32>
    %88 = tpu.matmul %87, %17, %cst_41 {dimension_numbers = #tpu.dot_dimension_numbers<[1], [0], [0], [1], [0, 0, 1, 1], [], []>} : vector<8x32xf32>, vector<32x32xf32>, vector<8x32xf32> -> vector<8x32xf32>
    %89 = vector.broadcast %20 : vector<1x32xf32> to vector<8x32xf32>
    %90 = arith.addf %88, %89 : vector<8x32xf32>
    %cst_42 = arith.constant dense<0.000000e+00> : vector<8x32xf32>
    %91 = tpu.matmul %87, %18, %cst_42 {dimension_numbers = #tpu.dot_dimension_numbers<[1], [0], [0], [1], [0, 0, 1, 1], [], []>} : vector<8x32xf32>, vector<32x32xf32>, vector<8x32xf32> -> vector<8x32xf32>
    %92 = vector.broadcast %21 : vector<1x32xf32> to vector<8x32xf32>
    %93 = arith.addf %91, %92 : vector<8x32xf32>
    %cst_43 = arith.constant dense<0.000000e+00> : vector<8x32xf32>
    %94 = tpu.matmul %87, %19, %cst_43 {dimension_numbers = #tpu.dot_dimension_numbers<[1], [0], [0], [1], [0, 0, 1, 1], [], []>} : vector<8x32xf32>, vector<32x32xf32>, vector<8x32xf32> -> vector<8x32xf32>
    %95 = vector.broadcast %22 : vector<1x32xf32> to vector<8x32xf32>
    %96 = arith.addf %94, %95 : vector<8x32xf32>
    %97 = vector.extract_strided_slice %6 {offsets = [16, 0], sizes = [8, 32], strides = [1, 1]} : vector<128x32xf32> to vector<8x32xf32>
    %98 = arith.addf %97, %90 : vector<8x32xf32>
    %99 = arith.negf %98 : vector<8x32xf32>
    %100 = math.exp %99 : vector<8x32xf32>
    %cst_44 = arith.constant 1.000000e+00 : f32
    %101 = vector.broadcast %cst_44 : f32 to vector<8x32xf32>
    %102 = arith.addf %101, %100 : vector<8x32xf32>
    %103 = arith.divf %101, %102 : vector<8x32xf32>
    %104 = vector.extract_strided_slice %11 {offsets = [16, 0], sizes = [8, 32], strides = [1, 1]} : vector<128x32xf32> to vector<8x32xf32>
    %105 = arith.addf %104, %93 : vector<8x32xf32>
    %106 = arith.negf %105 : vector<8x32xf32>
    %107 = math.exp %106 : vector<8x32xf32>
    %cst_45 = arith.constant 1.000000e+00 : f32
    %108 = vector.broadcast %cst_45 : f32 to vector<8x32xf32>
    %109 = arith.addf %108, %107 : vector<8x32xf32>
    %110 = arith.divf %108, %109 : vector<8x32xf32>
    %111 = vector.extract_strided_slice %16 {offsets = [16, 0], sizes = [8, 32], strides = [1, 1]} : vector<128x32xf32> to vector<8x32xf32>
    %112 = arith.mulf %103, %96 : vector<8x32xf32>
    %113 = arith.addf %111, %112 : vector<8x32xf32>
    %114 = math.tanh %113 : vector<8x32xf32>
    %cst_46 = arith.constant 1.000000e+00 : f32
    %115 = vector.broadcast %cst_46 : f32 to vector<8x32xf32>
    %116 = arith.subf %115, %110 : vector<8x32xf32>
    %117 = arith.mulf %116, %114 : vector<8x32xf32>
    %118 = arith.mulf %110, %87 : vector<8x32xf32>
    %119 = arith.addf %117, %118 : vector<8x32xf32>
    %cst_47 = arith.constant dense<0.000000e+00> : vector<8x32xf32>
    %120 = tpu.matmul %119, %17, %cst_47 {dimension_numbers = #tpu.dot_dimension_numbers<[1], [0], [0], [1], [0, 0, 1, 1], [], []>} : vector<8x32xf32>, vector<32x32xf32>, vector<8x32xf32> -> vector<8x32xf32>
    %121 = vector.broadcast %20 : vector<1x32xf32> to vector<8x32xf32>
    %122 = arith.addf %120, %121 : vector<8x32xf32>
    %cst_48 = arith.constant dense<0.000000e+00> : vector<8x32xf32>
    %123 = tpu.matmul %119, %18, %cst_48 {dimension_numbers = #tpu.dot_dimension_numbers<[1], [0], [0], [1], [0, 0, 1, 1], [], []>} : vector<8x32xf32>, vector<32x32xf32>, vector<8x32xf32> -> vector<8x32xf32>
    %124 = vector.broadcast %21 : vector<1x32xf32> to vector<8x32xf32>
    %125 = arith.addf %123, %124 : vector<8x32xf32>
    %cst_49 = arith.constant dense<0.000000e+00> : vector<8x32xf32>
    %126 = tpu.matmul %119, %19, %cst_49 {dimension_numbers = #tpu.dot_dimension_numbers<[1], [0], [0], [1], [0, 0, 1, 1], [], []>} : vector<8x32xf32>, vector<32x32xf32>, vector<8x32xf32> -> vector<8x32xf32>
    %127 = vector.broadcast %22 : vector<1x32xf32> to vector<8x32xf32>
    %128 = arith.addf %126, %127 : vector<8x32xf32>
    %129 = vector.extract_strided_slice %6 {offsets = [24, 0], sizes = [8, 32], strides = [1, 1]} : vector<128x32xf32> to vector<8x32xf32>
    %130 = arith.addf %129, %122 : vector<8x32xf32>
    %131 = arith.negf %130 : vector<8x32xf32>
    %132 = math.exp %131 : vector<8x32xf32>
    %cst_50 = arith.constant 1.000000e+00 : f32
    %133 = vector.broadcast %cst_50 : f32 to vector<8x32xf32>
    %134 = arith.addf %133, %132 : vector<8x32xf32>
    %135 = arith.divf %133, %134 : vector<8x32xf32>
    %136 = vector.extract_strided_slice %11 {offsets = [24, 0], sizes = [8, 32], strides = [1, 1]} : vector<128x32xf32> to vector<8x32xf32>
    %137 = arith.addf %136, %125 : vector<8x32xf32>
    %138 = arith.negf %137 : vector<8x32xf32>
    %139 = math.exp %138 : vector<8x32xf32>
    %cst_51 = arith.constant 1.000000e+00 : f32
    %140 = vector.broadcast %cst_51 : f32 to vector<8x32xf32>
    %141 = arith.addf %140, %139 : vector<8x32xf32>
    %142 = arith.divf %140, %141 : vector<8x32xf32>
    %143 = vector.extract_strided_slice %16 {offsets = [24, 0], sizes = [8, 32], strides = [1, 1]} : vector<128x32xf32> to vector<8x32xf32>
    %144 = arith.mulf %135, %128 : vector<8x32xf32>
    %145 = arith.addf %143, %144 : vector<8x32xf32>
    %146 = math.tanh %145 : vector<8x32xf32>
    %cst_52 = arith.constant 1.000000e+00 : f32
    %147 = vector.broadcast %cst_52 : f32 to vector<8x32xf32>
    %148 = arith.subf %147, %142 : vector<8x32xf32>
    %149 = arith.mulf %148, %146 : vector<8x32xf32>
    %150 = arith.mulf %142, %119 : vector<8x32xf32>
    %151 = arith.addf %149, %150 : vector<8x32xf32>
    %cst_53 = arith.constant dense<0.000000e+00> : vector<8x32xf32>
    %152 = tpu.matmul %151, %17, %cst_53 {dimension_numbers = #tpu.dot_dimension_numbers<[1], [0], [0], [1], [0, 0, 1, 1], [], []>} : vector<8x32xf32>, vector<32x32xf32>, vector<8x32xf32> -> vector<8x32xf32>
    %153 = vector.broadcast %20 : vector<1x32xf32> to vector<8x32xf32>
    %154 = arith.addf %152, %153 : vector<8x32xf32>
    %cst_54 = arith.constant dense<0.000000e+00> : vector<8x32xf32>
    %155 = tpu.matmul %151, %18, %cst_54 {dimension_numbers = #tpu.dot_dimension_numbers<[1], [0], [0], [1], [0, 0, 1, 1], [], []>} : vector<8x32xf32>, vector<32x32xf32>, vector<8x32xf32> -> vector<8x32xf32>
    %156 = vector.broadcast %21 : vector<1x32xf32> to vector<8x32xf32>
    %157 = arith.addf %155, %156 : vector<8x32xf32>
    %cst_55 = arith.constant dense<0.000000e+00> : vector<8x32xf32>
    %158 = tpu.matmul %151, %19, %cst_55 {dimension_numbers = #tpu.dot_dimension_numbers<[1], [0], [0], [1], [0, 0, 1, 1], [], []>} : vector<8x32xf32>, vector<32x32xf32>, vector<8x32xf32> -> vector<8x32xf32>
    %159 = vector.broadcast %22 : vector<1x32xf32> to vector<8x32xf32>
    %160 = arith.addf %158, %159 : vector<8x32xf32>
    %161 = vector.extract_strided_slice %6 {offsets = [32, 0], sizes = [8, 32], strides = [1, 1]} : vector<128x32xf32> to vector<8x32xf32>
    %162 = arith.addf %161, %154 : vector<8x32xf32>
    %163 = arith.negf %162 : vector<8x32xf32>
    %164 = math.exp %163 : vector<8x32xf32>
    %cst_56 = arith.constant 1.000000e+00 : f32
    %165 = vector.broadcast %cst_56 : f32 to vector<8x32xf32>
    %166 = arith.addf %165, %164 : vector<8x32xf32>
    %167 = arith.divf %165, %166 : vector<8x32xf32>
    %168 = vector.extract_strided_slice %11 {offsets = [32, 0], sizes = [8, 32], strides = [1, 1]} : vector<128x32xf32> to vector<8x32xf32>
    %169 = arith.addf %168, %157 : vector<8x32xf32>
    %170 = arith.negf %169 : vector<8x32xf32>
    %171 = math.exp %170 : vector<8x32xf32>
    %cst_57 = arith.constant 1.000000e+00 : f32
    %172 = vector.broadcast %cst_57 : f32 to vector<8x32xf32>
    %173 = arith.addf %172, %171 : vector<8x32xf32>
    %174 = arith.divf %172, %173 : vector<8x32xf32>
    %175 = vector.extract_strided_slice %16 {offsets = [32, 0], sizes = [8, 32], strides = [1, 1]} : vector<128x32xf32> to vector<8x32xf32>
    %176 = arith.mulf %167, %160 : vector<8x32xf32>
    %177 = arith.addf %175, %176 : vector<8x32xf32>
    %178 = math.tanh %177 : vector<8x32xf32>
    %cst_58 = arith.constant 1.000000e+00 : f32
    %179 = vector.broadcast %cst_58 : f32 to vector<8x32xf32>
    %180 = arith.subf %179, %174 : vector<8x32xf32>
    %181 = arith.mulf %180, %178 : vector<8x32xf32>
    %182 = arith.mulf %174, %151 : vector<8x32xf32>
    %183 = arith.addf %181, %182 : vector<8x32xf32>
    %cst_59 = arith.constant dense<0.000000e+00> : vector<8x32xf32>
    %184 = tpu.matmul %183, %17, %cst_59 {dimension_numbers = #tpu.dot_dimension_numbers<[1], [0], [0], [1], [0, 0, 1, 1], [], []>} : vector<8x32xf32>, vector<32x32xf32>, vector<8x32xf32> -> vector<8x32xf32>
    %185 = vector.broadcast %20 : vector<1x32xf32> to vector<8x32xf32>
    %186 = arith.addf %184, %185 : vector<8x32xf32>
    %cst_60 = arith.constant dense<0.000000e+00> : vector<8x32xf32>
    %187 = tpu.matmul %183, %18, %cst_60 {dimension_numbers = #tpu.dot_dimension_numbers<[1], [0], [0], [1], [0, 0, 1, 1], [], []>} : vector<8x32xf32>, vector<32x32xf32>, vector<8x32xf32> -> vector<8x32xf32>
    %188 = vector.broadcast %21 : vector<1x32xf32> to vector<8x32xf32>
    %189 = arith.addf %187, %188 : vector<8x32xf32>
    %cst_61 = arith.constant dense<0.000000e+00> : vector<8x32xf32>
    %190 = tpu.matmul %183, %19, %cst_61 {dimension_numbers = #tpu.dot_dimension_numbers<[1], [0], [0], [1], [0, 0, 1, 1], [], []>} : vector<8x32xf32>, vector<32x32xf32>, vector<8x32xf32> -> vector<8x32xf32>
    %191 = vector.broadcast %22 : vector<1x32xf32> to vector<8x32xf32>
    %192 = arith.addf %190, %191 : vector<8x32xf32>
    %193 = vector.extract_strided_slice %6 {offsets = [40, 0], sizes = [8, 32], strides = [1, 1]} : vector<128x32xf32> to vector<8x32xf32>
    %194 = arith.addf %193, %186 : vector<8x32xf32>
    %195 = arith.negf %194 : vector<8x32xf32>
    %196 = math.exp %195 : vector<8x32xf32>
    %cst_62 = arith.constant 1.000000e+00 : f32
    %197 = vector.broadcast %cst_62 : f32 to vector<8x32xf32>
    %198 = arith.addf %197, %196 : vector<8x32xf32>
    %199 = arith.divf %197, %198 : vector<8x32xf32>
    %200 = vector.extract_strided_slice %11 {offsets = [40, 0], sizes = [8, 32], strides = [1, 1]} : vector<128x32xf32> to vector<8x32xf32>
    %201 = arith.addf %200, %189 : vector<8x32xf32>
    %202 = arith.negf %201 : vector<8x32xf32>
    %203 = math.exp %202 : vector<8x32xf32>
    %cst_63 = arith.constant 1.000000e+00 : f32
    %204 = vector.broadcast %cst_63 : f32 to vector<8x32xf32>
    %205 = arith.addf %204, %203 : vector<8x32xf32>
    %206 = arith.divf %204, %205 : vector<8x32xf32>
    %207 = vector.extract_strided_slice %16 {offsets = [40, 0], sizes = [8, 32], strides = [1, 1]} : vector<128x32xf32> to vector<8x32xf32>
    %208 = arith.mulf %199, %192 : vector<8x32xf32>
    %209 = arith.addf %207, %208 : vector<8x32xf32>
    %210 = math.tanh %209 : vector<8x32xf32>
    %cst_64 = arith.constant 1.000000e+00 : f32
    %211 = vector.broadcast %cst_64 : f32 to vector<8x32xf32>
    %212 = arith.subf %211, %206 : vector<8x32xf32>
    %213 = arith.mulf %212, %210 : vector<8x32xf32>
    %214 = arith.mulf %206, %183 : vector<8x32xf32>
    %215 = arith.addf %213, %214 : vector<8x32xf32>
    %cst_65 = arith.constant dense<0.000000e+00> : vector<8x32xf32>
    %216 = tpu.matmul %215, %17, %cst_65 {dimension_numbers = #tpu.dot_dimension_numbers<[1], [0], [0], [1], [0, 0, 1, 1], [], []>} : vector<8x32xf32>, vector<32x32xf32>, vector<8x32xf32> -> vector<8x32xf32>
    %217 = vector.broadcast %20 : vector<1x32xf32> to vector<8x32xf32>
    %218 = arith.addf %216, %217 : vector<8x32xf32>
    %cst_66 = arith.constant dense<0.000000e+00> : vector<8x32xf32>
    %219 = tpu.matmul %215, %18, %cst_66 {dimension_numbers = #tpu.dot_dimension_numbers<[1], [0], [0], [1], [0, 0, 1, 1], [], []>} : vector<8x32xf32>, vector<32x32xf32>, vector<8x32xf32> -> vector<8x32xf32>
    %220 = vector.broadcast %21 : vector<1x32xf32> to vector<8x32xf32>
    %221 = arith.addf %219, %220 : vector<8x32xf32>
    %cst_67 = arith.constant dense<0.000000e+00> : vector<8x32xf32>
    %222 = tpu.matmul %215, %19, %cst_67 {dimension_numbers = #tpu.dot_dimension_numbers<[1], [0], [0], [1], [0, 0, 1, 1], [], []>} : vector<8x32xf32>, vector<32x32xf32>, vector<8x32xf32> -> vector<8x32xf32>
    %223 = vector.broadcast %22 : vector<1x32xf32> to vector<8x32xf32>
    %224 = arith.addf %222, %223 : vector<8x32xf32>
    %225 = vector.extract_strided_slice %6 {offsets = [48, 0], sizes = [8, 32], strides = [1, 1]} : vector<128x32xf32> to vector<8x32xf32>
    %226 = arith.addf %225, %218 : vector<8x32xf32>
    %227 = arith.negf %226 : vector<8x32xf32>
    %228 = math.exp %227 : vector<8x32xf32>
    %cst_68 = arith.constant 1.000000e+00 : f32
    %229 = vector.broadcast %cst_68 : f32 to vector<8x32xf32>
    %230 = arith.addf %229, %228 : vector<8x32xf32>
    %231 = arith.divf %229, %230 : vector<8x32xf32>
    %232 = vector.extract_strided_slice %11 {offsets = [48, 0], sizes = [8, 32], strides = [1, 1]} : vector<128x32xf32> to vector<8x32xf32>
    %233 = arith.addf %232, %221 : vector<8x32xf32>
    %234 = arith.negf %233 : vector<8x32xf32>
    %235 = math.exp %234 : vector<8x32xf32>
    %cst_69 = arith.constant 1.000000e+00 : f32
    %236 = vector.broadcast %cst_69 : f32 to vector<8x32xf32>
    %237 = arith.addf %236, %235 : vector<8x32xf32>
    %238 = arith.divf %236, %237 : vector<8x32xf32>
    %239 = vector.extract_strided_slice %16 {offsets = [48, 0], sizes = [8, 32], strides = [1, 1]} : vector<128x32xf32> to vector<8x32xf32>
    %240 = arith.mulf %231, %224 : vector<8x32xf32>
    %241 = arith.addf %239, %240 : vector<8x32xf32>
    %242 = math.tanh %241 : vector<8x32xf32>
    %cst_70 = arith.constant 1.000000e+00 : f32
    %243 = vector.broadcast %cst_70 : f32 to vector<8x32xf32>
    %244 = arith.subf %243, %238 : vector<8x32xf32>
    %245 = arith.mulf %244, %242 : vector<8x32xf32>
    %246 = arith.mulf %238, %215 : vector<8x32xf32>
    %247 = arith.addf %245, %246 : vector<8x32xf32>
    %cst_71 = arith.constant dense<0.000000e+00> : vector<8x32xf32>
    %248 = tpu.matmul %247, %17, %cst_71 {dimension_numbers = #tpu.dot_dimension_numbers<[1], [0], [0], [1], [0, 0, 1, 1], [], []>} : vector<8x32xf32>, vector<32x32xf32>, vector<8x32xf32> -> vector<8x32xf32>
    %249 = vector.broadcast %20 : vector<1x32xf32> to vector<8x32xf32>
    %250 = arith.addf %248, %249 : vector<8x32xf32>
    %cst_72 = arith.constant dense<0.000000e+00> : vector<8x32xf32>
    %251 = tpu.matmul %247, %18, %cst_72 {dimension_numbers = #tpu.dot_dimension_numbers<[1], [0], [0], [1], [0, 0, 1, 1], [], []>} : vector<8x32xf32>, vector<32x32xf32>, vector<8x32xf32> -> vector<8x32xf32>
    %252 = vector.broadcast %21 : vector<1x32xf32> to vector<8x32xf32>
    %253 = arith.addf %251, %252 : vector<8x32xf32>
    %cst_73 = arith.constant dense<0.000000e+00> : vector<8x32xf32>
    %254 = tpu.matmul %247, %19, %cst_73 {dimension_numbers = #tpu.dot_dimension_numbers<[1], [0], [0], [1], [0, 0, 1, 1], [], []>} : vector<8x32xf32>, vector<32x32xf32>, vector<8x32xf32> -> vector<8x32xf32>
    %255 = vector.broadcast %22 : vector<1x32xf32> to vector<8x32xf32>
    %256 = arith.addf %254, %255 : vector<8x32xf32>
    %257 = vector.extract_strided_slice %6 {offsets = [56, 0], sizes = [8, 32], strides = [1, 1]} : vector<128x32xf32> to vector<8x32xf32>
    %258 = arith.addf %257, %250 : vector<8x32xf32>
    %259 = arith.negf %258 : vector<8x32xf32>
    %260 = math.exp %259 : vector<8x32xf32>
    %cst_74 = arith.constant 1.000000e+00 : f32
    %261 = vector.broadcast %cst_74 : f32 to vector<8x32xf32>
    %262 = arith.addf %261, %260 : vector<8x32xf32>
    %263 = arith.divf %261, %262 : vector<8x32xf32>
    %264 = vector.extract_strided_slice %11 {offsets = [56, 0], sizes = [8, 32], strides = [1, 1]} : vector<128x32xf32> to vector<8x32xf32>
    %265 = arith.addf %264, %253 : vector<8x32xf32>
    %266 = arith.negf %265 : vector<8x32xf32>
    %267 = math.exp %266 : vector<8x32xf32>
    %cst_75 = arith.constant 1.000000e+00 : f32
    %268 = vector.broadcast %cst_75 : f32 to vector<8x32xf32>
    %269 = arith.addf %268, %267 : vector<8x32xf32>
    %270 = arith.divf %268, %269 : vector<8x32xf32>
    %271 = vector.extract_strided_slice %16 {offsets = [56, 0], sizes = [8, 32], strides = [1, 1]} : vector<128x32xf32> to vector<8x32xf32>
    %272 = arith.mulf %263, %256 : vector<8x32xf32>
    %273 = arith.addf %271, %272 : vector<8x32xf32>
    %274 = math.tanh %273 : vector<8x32xf32>
    %cst_76 = arith.constant 1.000000e+00 : f32
    %275 = vector.broadcast %cst_76 : f32 to vector<8x32xf32>
    %276 = arith.subf %275, %270 : vector<8x32xf32>
    %277 = arith.mulf %276, %274 : vector<8x32xf32>
    %278 = arith.mulf %270, %247 : vector<8x32xf32>
    %279 = arith.addf %277, %278 : vector<8x32xf32>
    %cst_77 = arith.constant dense<0.000000e+00> : vector<8x32xf32>
    %280 = tpu.matmul %279, %17, %cst_77 {dimension_numbers = #tpu.dot_dimension_numbers<[1], [0], [0], [1], [0, 0, 1, 1], [], []>} : vector<8x32xf32>, vector<32x32xf32>, vector<8x32xf32> -> vector<8x32xf32>
    %281 = vector.broadcast %20 : vector<1x32xf32> to vector<8x32xf32>
    %282 = arith.addf %280, %281 : vector<8x32xf32>
    %cst_78 = arith.constant dense<0.000000e+00> : vector<8x32xf32>
    %283 = tpu.matmul %279, %18, %cst_78 {dimension_numbers = #tpu.dot_dimension_numbers<[1], [0], [0], [1], [0, 0, 1, 1], [], []>} : vector<8x32xf32>, vector<32x32xf32>, vector<8x32xf32> -> vector<8x32xf32>
    %284 = vector.broadcast %21 : vector<1x32xf32> to vector<8x32xf32>
    %285 = arith.addf %283, %284 : vector<8x32xf32>
    %cst_79 = arith.constant dense<0.000000e+00> : vector<8x32xf32>
    %286 = tpu.matmul %279, %19, %cst_79 {dimension_numbers = #tpu.dot_dimension_numbers<[1], [0], [0], [1], [0, 0, 1, 1], [], []>} : vector<8x32xf32>, vector<32x32xf32>, vector<8x32xf32> -> vector<8x32xf32>
    %287 = vector.broadcast %22 : vector<1x32xf32> to vector<8x32xf32>
    %288 = arith.addf %286, %287 : vector<8x32xf32>
    %289 = vector.extract_strided_slice %6 {offsets = [64, 0], sizes = [8, 32], strides = [1, 1]} : vector<128x32xf32> to vector<8x32xf32>
    %290 = arith.addf %289, %282 : vector<8x32xf32>
    %291 = arith.negf %290 : vector<8x32xf32>
    %292 = math.exp %291 : vector<8x32xf32>
    %cst_80 = arith.constant 1.000000e+00 : f32
    %293 = vector.broadcast %cst_80 : f32 to vector<8x32xf32>
    %294 = arith.addf %293, %292 : vector<8x32xf32>
    %295 = arith.divf %293, %294 : vector<8x32xf32>
    %296 = vector.extract_strided_slice %11 {offsets = [64, 0], sizes = [8, 32], strides = [1, 1]} : vector<128x32xf32> to vector<8x32xf32>
    %297 = arith.addf %296, %285 : vector<8x32xf32>
    %298 = arith.negf %297 : vector<8x32xf32>
    %299 = math.exp %298 : vector<8x32xf32>
    %cst_81 = arith.constant 1.000000e+00 : f32
    %300 = vector.broadcast %cst_81 : f32 to vector<8x32xf32>
    %301 = arith.addf %300, %299 : vector<8x32xf32>
    %302 = arith.divf %300, %301 : vector<8x32xf32>
    %303 = vector.extract_strided_slice %16 {offsets = [64, 0], sizes = [8, 32], strides = [1, 1]} : vector<128x32xf32> to vector<8x32xf32>
    %304 = arith.mulf %295, %288 : vector<8x32xf32>
    %305 = arith.addf %303, %304 : vector<8x32xf32>
    %306 = math.tanh %305 : vector<8x32xf32>
    %cst_82 = arith.constant 1.000000e+00 : f32
    %307 = vector.broadcast %cst_82 : f32 to vector<8x32xf32>
    %308 = arith.subf %307, %302 : vector<8x32xf32>
    %309 = arith.mulf %308, %306 : vector<8x32xf32>
    %310 = arith.mulf %302, %279 : vector<8x32xf32>
    %311 = arith.addf %309, %310 : vector<8x32xf32>
    %cst_83 = arith.constant dense<0.000000e+00> : vector<8x32xf32>
    %312 = tpu.matmul %311, %17, %cst_83 {dimension_numbers = #tpu.dot_dimension_numbers<[1], [0], [0], [1], [0, 0, 1, 1], [], []>} : vector<8x32xf32>, vector<32x32xf32>, vector<8x32xf32> -> vector<8x32xf32>
    %313 = vector.broadcast %20 : vector<1x32xf32> to vector<8x32xf32>
    %314 = arith.addf %312, %313 : vector<8x32xf32>
    %cst_84 = arith.constant dense<0.000000e+00> : vector<8x32xf32>
    %315 = tpu.matmul %311, %18, %cst_84 {dimension_numbers = #tpu.dot_dimension_numbers<[1], [0], [0], [1], [0, 0, 1, 1], [], []>} : vector<8x32xf32>, vector<32x32xf32>, vector<8x32xf32> -> vector<8x32xf32>
    %316 = vector.broadcast %21 : vector<1x32xf32> to vector<8x32xf32>
    %317 = arith.addf %315, %316 : vector<8x32xf32>
    %cst_85 = arith.constant dense<0.000000e+00> : vector<8x32xf32>
    %318 = tpu.matmul %311, %19, %cst_85 {dimension_numbers = #tpu.dot_dimension_numbers<[1], [0], [0], [1], [0, 0, 1, 1], [], []>} : vector<8x32xf32>, vector<32x32xf32>, vector<8x32xf32> -> vector<8x32xf32>
    %319 = vector.broadcast %22 : vector<1x32xf32> to vector<8x32xf32>
    %320 = arith.addf %318, %319 : vector<8x32xf32>
    %321 = vector.extract_strided_slice %6 {offsets = [72, 0], sizes = [8, 32], strides = [1, 1]} : vector<128x32xf32> to vector<8x32xf32>
    %322 = arith.addf %321, %314 : vector<8x32xf32>
    %323 = arith.negf %322 : vector<8x32xf32>
    %324 = math.exp %323 : vector<8x32xf32>
    %cst_86 = arith.constant 1.000000e+00 : f32
    %325 = vector.broadcast %cst_86 : f32 to vector<8x32xf32>
    %326 = arith.addf %325, %324 : vector<8x32xf32>
    %327 = arith.divf %325, %326 : vector<8x32xf32>
    %328 = vector.extract_strided_slice %11 {offsets = [72, 0], sizes = [8, 32], strides = [1, 1]} : vector<128x32xf32> to vector<8x32xf32>
    %329 = arith.addf %328, %317 : vector<8x32xf32>
    %330 = arith.negf %329 : vector<8x32xf32>
    %331 = math.exp %330 : vector<8x32xf32>
    %cst_87 = arith.constant 1.000000e+00 : f32
    %332 = vector.broadcast %cst_87 : f32 to vector<8x32xf32>
    %333 = arith.addf %332, %331 : vector<8x32xf32>
    %334 = arith.divf %332, %333 : vector<8x32xf32>
    %335 = vector.extract_strided_slice %16 {offsets = [72, 0], sizes = [8, 32], strides = [1, 1]} : vector<128x32xf32> to vector<8x32xf32>
    %336 = arith.mulf %327, %320 : vector<8x32xf32>
    %337 = arith.addf %335, %336 : vector<8x32xf32>
    %338 = math.tanh %337 : vector<8x32xf32>
    %cst_88 = arith.constant 1.000000e+00 : f32
    %339 = vector.broadcast %cst_88 : f32 to vector<8x32xf32>
    %340 = arith.subf %339, %334 : vector<8x32xf32>
    %341 = arith.mulf %340, %338 : vector<8x32xf32>
    %342 = arith.mulf %334, %311 : vector<8x32xf32>
    %343 = arith.addf %341, %342 : vector<8x32xf32>
    %cst_89 = arith.constant dense<0.000000e+00> : vector<8x32xf32>
    %344 = tpu.matmul %343, %17, %cst_89 {dimension_numbers = #tpu.dot_dimension_numbers<[1], [0], [0], [1], [0, 0, 1, 1], [], []>} : vector<8x32xf32>, vector<32x32xf32>, vector<8x32xf32> -> vector<8x32xf32>
    %345 = vector.broadcast %20 : vector<1x32xf32> to vector<8x32xf32>
    %346 = arith.addf %344, %345 : vector<8x32xf32>
    %cst_90 = arith.constant dense<0.000000e+00> : vector<8x32xf32>
    %347 = tpu.matmul %343, %18, %cst_90 {dimension_numbers = #tpu.dot_dimension_numbers<[1], [0], [0], [1], [0, 0, 1, 1], [], []>} : vector<8x32xf32>, vector<32x32xf32>, vector<8x32xf32> -> vector<8x32xf32>
    %348 = vector.broadcast %21 : vector<1x32xf32> to vector<8x32xf32>
    %349 = arith.addf %347, %348 : vector<8x32xf32>
    %cst_91 = arith.constant dense<0.000000e+00> : vector<8x32xf32>
    %350 = tpu.matmul %343, %19, %cst_91 {dimension_numbers = #tpu.dot_dimension_numbers<[1], [0], [0], [1], [0, 0, 1, 1], [], []>} : vector<8x32xf32>, vector<32x32xf32>, vector<8x32xf32> -> vector<8x32xf32>
    %351 = vector.broadcast %22 : vector<1x32xf32> to vector<8x32xf32>
    %352 = arith.addf %350, %351 : vector<8x32xf32>
    %353 = vector.extract_strided_slice %6 {offsets = [80, 0], sizes = [8, 32], strides = [1, 1]} : vector<128x32xf32> to vector<8x32xf32>
    %354 = arith.addf %353, %346 : vector<8x32xf32>
    %355 = arith.negf %354 : vector<8x32xf32>
    %356 = math.exp %355 : vector<8x32xf32>
    %cst_92 = arith.constant 1.000000e+00 : f32
    %357 = vector.broadcast %cst_92 : f32 to vector<8x32xf32>
    %358 = arith.addf %357, %356 : vector<8x32xf32>
    %359 = arith.divf %357, %358 : vector<8x32xf32>
    %360 = vector.extract_strided_slice %11 {offsets = [80, 0], sizes = [8, 32], strides = [1, 1]} : vector<128x32xf32> to vector<8x32xf32>
    %361 = arith.addf %360, %349 : vector<8x32xf32>
    %362 = arith.negf %361 : vector<8x32xf32>
    %363 = math.exp %362 : vector<8x32xf32>
    %cst_93 = arith.constant 1.000000e+00 : f32
    %364 = vector.broadcast %cst_93 : f32 to vector<8x32xf32>
    %365 = arith.addf %364, %363 : vector<8x32xf32>
    %366 = arith.divf %364, %365 : vector<8x32xf32>
    %367 = vector.extract_strided_slice %16 {offsets = [80, 0], sizes = [8, 32], strides = [1, 1]} : vector<128x32xf32> to vector<8x32xf32>
    %368 = arith.mulf %359, %352 : vector<8x32xf32>
    %369 = arith.addf %367, %368 : vector<8x32xf32>
    %370 = math.tanh %369 : vector<8x32xf32>
    %cst_94 = arith.constant 1.000000e+00 : f32
    %371 = vector.broadcast %cst_94 : f32 to vector<8x32xf32>
    %372 = arith.subf %371, %366 : vector<8x32xf32>
    %373 = arith.mulf %372, %370 : vector<8x32xf32>
    %374 = arith.mulf %366, %343 : vector<8x32xf32>
    %375 = arith.addf %373, %374 : vector<8x32xf32>
    %cst_95 = arith.constant dense<0.000000e+00> : vector<8x32xf32>
    %376 = tpu.matmul %375, %17, %cst_95 {dimension_numbers = #tpu.dot_dimension_numbers<[1], [0], [0], [1], [0, 0, 1, 1], [], []>} : vector<8x32xf32>, vector<32x32xf32>, vector<8x32xf32> -> vector<8x32xf32>
    %377 = vector.broadcast %20 : vector<1x32xf32> to vector<8x32xf32>
    %378 = arith.addf %376, %377 : vector<8x32xf32>
    %cst_96 = arith.constant dense<0.000000e+00> : vector<8x32xf32>
    %379 = tpu.matmul %375, %18, %cst_96 {dimension_numbers = #tpu.dot_dimension_numbers<[1], [0], [0], [1], [0, 0, 1, 1], [], []>} : vector<8x32xf32>, vector<32x32xf32>, vector<8x32xf32> -> vector<8x32xf32>
    %380 = vector.broadcast %21 : vector<1x32xf32> to vector<8x32xf32>
    %381 = arith.addf %379, %380 : vector<8x32xf32>
    %cst_97 = arith.constant dense<0.000000e+00> : vector<8x32xf32>
    %382 = tpu.matmul %375, %19, %cst_97 {dimension_numbers = #tpu.dot_dimension_numbers<[1], [0], [0], [1], [0, 0, 1, 1], [], []>} : vector<8x32xf32>, vector<32x32xf32>, vector<8x32xf32> -> vector<8x32xf32>
    %383 = vector.broadcast %22 : vector<1x32xf32> to vector<8x32xf32>
    %384 = arith.addf %382, %383 : vector<8x32xf32>
    %385 = vector.extract_strided_slice %6 {offsets = [88, 0], sizes = [8, 32], strides = [1, 1]} : vector<128x32xf32> to vector<8x32xf32>
    %386 = arith.addf %385, %378 : vector<8x32xf32>
    %387 = arith.negf %386 : vector<8x32xf32>
    %388 = math.exp %387 : vector<8x32xf32>
    %cst_98 = arith.constant 1.000000e+00 : f32
    %389 = vector.broadcast %cst_98 : f32 to vector<8x32xf32>
    %390 = arith.addf %389, %388 : vector<8x32xf32>
    %391 = arith.divf %389, %390 : vector<8x32xf32>
    %392 = vector.extract_strided_slice %11 {offsets = [88, 0], sizes = [8, 32], strides = [1, 1]} : vector<128x32xf32> to vector<8x32xf32>
    %393 = arith.addf %392, %381 : vector<8x32xf32>
    %394 = arith.negf %393 : vector<8x32xf32>
    %395 = math.exp %394 : vector<8x32xf32>
    %cst_99 = arith.constant 1.000000e+00 : f32
    %396 = vector.broadcast %cst_99 : f32 to vector<8x32xf32>
    %397 = arith.addf %396, %395 : vector<8x32xf32>
    %398 = arith.divf %396, %397 : vector<8x32xf32>
    %399 = vector.extract_strided_slice %16 {offsets = [88, 0], sizes = [8, 32], strides = [1, 1]} : vector<128x32xf32> to vector<8x32xf32>
    %400 = arith.mulf %391, %384 : vector<8x32xf32>
    %401 = arith.addf %399, %400 : vector<8x32xf32>
    %402 = math.tanh %401 : vector<8x32xf32>
    %cst_100 = arith.constant 1.000000e+00 : f32
    %403 = vector.broadcast %cst_100 : f32 to vector<8x32xf32>
    %404 = arith.subf %403, %398 : vector<8x32xf32>
    %405 = arith.mulf %404, %402 : vector<8x32xf32>
    %406 = arith.mulf %398, %375 : vector<8x32xf32>
    %407 = arith.addf %405, %406 : vector<8x32xf32>
    %cst_101 = arith.constant dense<0.000000e+00> : vector<8x32xf32>
    %408 = tpu.matmul %407, %17, %cst_101 {dimension_numbers = #tpu.dot_dimension_numbers<[1], [0], [0], [1], [0, 0, 1, 1], [], []>} : vector<8x32xf32>, vector<32x32xf32>, vector<8x32xf32> -> vector<8x32xf32>
    %409 = vector.broadcast %20 : vector<1x32xf32> to vector<8x32xf32>
    %410 = arith.addf %408, %409 : vector<8x32xf32>
    %cst_102 = arith.constant dense<0.000000e+00> : vector<8x32xf32>
    %411 = tpu.matmul %407, %18, %cst_102 {dimension_numbers = #tpu.dot_dimension_numbers<[1], [0], [0], [1], [0, 0, 1, 1], [], []>} : vector<8x32xf32>, vector<32x32xf32>, vector<8x32xf32> -> vector<8x32xf32>
    %412 = vector.broadcast %21 : vector<1x32xf32> to vector<8x32xf32>
    %413 = arith.addf %411, %412 : vector<8x32xf32>
    %cst_103 = arith.constant dense<0.000000e+00> : vector<8x32xf32>
    %414 = tpu.matmul %407, %19, %cst_103 {dimension_numbers = #tpu.dot_dimension_numbers<[1], [0], [0], [1], [0, 0, 1, 1], [], []>} : vector<8x32xf32>, vector<32x32xf32>, vector<8x32xf32> -> vector<8x32xf32>
    %415 = vector.broadcast %22 : vector<1x32xf32> to vector<8x32xf32>
    %416 = arith.addf %414, %415 : vector<8x32xf32>
    %417 = vector.extract_strided_slice %6 {offsets = [96, 0], sizes = [8, 32], strides = [1, 1]} : vector<128x32xf32> to vector<8x32xf32>
    %418 = arith.addf %417, %410 : vector<8x32xf32>
    %419 = arith.negf %418 : vector<8x32xf32>
    %420 = math.exp %419 : vector<8x32xf32>
    %cst_104 = arith.constant 1.000000e+00 : f32
    %421 = vector.broadcast %cst_104 : f32 to vector<8x32xf32>
    %422 = arith.addf %421, %420 : vector<8x32xf32>
    %423 = arith.divf %421, %422 : vector<8x32xf32>
    %424 = vector.extract_strided_slice %11 {offsets = [96, 0], sizes = [8, 32], strides = [1, 1]} : vector<128x32xf32> to vector<8x32xf32>
    %425 = arith.addf %424, %413 : vector<8x32xf32>
    %426 = arith.negf %425 : vector<8x32xf32>
    %427 = math.exp %426 : vector<8x32xf32>
    %cst_105 = arith.constant 1.000000e+00 : f32
    %428 = vector.broadcast %cst_105 : f32 to vector<8x32xf32>
    %429 = arith.addf %428, %427 : vector<8x32xf32>
    %430 = arith.divf %428, %429 : vector<8x32xf32>
    %431 = vector.extract_strided_slice %16 {offsets = [96, 0], sizes = [8, 32], strides = [1, 1]} : vector<128x32xf32> to vector<8x32xf32>
    %432 = arith.mulf %423, %416 : vector<8x32xf32>
    %433 = arith.addf %431, %432 : vector<8x32xf32>
    %434 = math.tanh %433 : vector<8x32xf32>
    %cst_106 = arith.constant 1.000000e+00 : f32
    %435 = vector.broadcast %cst_106 : f32 to vector<8x32xf32>
    %436 = arith.subf %435, %430 : vector<8x32xf32>
    %437 = arith.mulf %436, %434 : vector<8x32xf32>
    %438 = arith.mulf %430, %407 : vector<8x32xf32>
    %439 = arith.addf %437, %438 : vector<8x32xf32>
    %cst_107 = arith.constant dense<0.000000e+00> : vector<8x32xf32>
    %440 = tpu.matmul %439, %17, %cst_107 {dimension_numbers = #tpu.dot_dimension_numbers<[1], [0], [0], [1], [0, 0, 1, 1], [], []>} : vector<8x32xf32>, vector<32x32xf32>, vector<8x32xf32> -> vector<8x32xf32>
    %441 = vector.broadcast %20 : vector<1x32xf32> to vector<8x32xf32>
    %442 = arith.addf %440, %441 : vector<8x32xf32>
    %cst_108 = arith.constant dense<0.000000e+00> : vector<8x32xf32>
    %443 = tpu.matmul %439, %18, %cst_108 {dimension_numbers = #tpu.dot_dimension_numbers<[1], [0], [0], [1], [0, 0, 1, 1], [], []>} : vector<8x32xf32>, vector<32x32xf32>, vector<8x32xf32> -> vector<8x32xf32>
    %444 = vector.broadcast %21 : vector<1x32xf32> to vector<8x32xf32>
    %445 = arith.addf %443, %444 : vector<8x32xf32>
    %cst_109 = arith.constant dense<0.000000e+00> : vector<8x32xf32>
    %446 = tpu.matmul %439, %19, %cst_109 {dimension_numbers = #tpu.dot_dimension_numbers<[1], [0], [0], [1], [0, 0, 1, 1], [], []>} : vector<8x32xf32>, vector<32x32xf32>, vector<8x32xf32> -> vector<8x32xf32>
    %447 = vector.broadcast %22 : vector<1x32xf32> to vector<8x32xf32>
    %448 = arith.addf %446, %447 : vector<8x32xf32>
    %449 = vector.extract_strided_slice %6 {offsets = [104, 0], sizes = [8, 32], strides = [1, 1]} : vector<128x32xf32> to vector<8x32xf32>
    %450 = arith.addf %449, %442 : vector<8x32xf32>
    %451 = arith.negf %450 : vector<8x32xf32>
    %452 = math.exp %451 : vector<8x32xf32>
    %cst_110 = arith.constant 1.000000e+00 : f32
    %453 = vector.broadcast %cst_110 : f32 to vector<8x32xf32>
    %454 = arith.addf %453, %452 : vector<8x32xf32>
    %455 = arith.divf %453, %454 : vector<8x32xf32>
    %456 = vector.extract_strided_slice %11 {offsets = [104, 0], sizes = [8, 32], strides = [1, 1]} : vector<128x32xf32> to vector<8x32xf32>
    %457 = arith.addf %456, %445 : vector<8x32xf32>
    %458 = arith.negf %457 : vector<8x32xf32>
    %459 = math.exp %458 : vector<8x32xf32>
    %cst_111 = arith.constant 1.000000e+00 : f32
    %460 = vector.broadcast %cst_111 : f32 to vector<8x32xf32>
    %461 = arith.addf %460, %459 : vector<8x32xf32>
    %462 = arith.divf %460, %461 : vector<8x32xf32>
    %463 = vector.extract_strided_slice %16 {offsets = [104, 0], sizes = [8, 32], strides = [1, 1]} : vector<128x32xf32> to vector<8x32xf32>
    %464 = arith.mulf %455, %448 : vector<8x32xf32>
    %465 = arith.addf %463, %464 : vector<8x32xf32>
    %466 = math.tanh %465 : vector<8x32xf32>
    %cst_112 = arith.constant 1.000000e+00 : f32
    %467 = vector.broadcast %cst_112 : f32 to vector<8x32xf32>
    %468 = arith.subf %467, %462 : vector<8x32xf32>
    %469 = arith.mulf %468, %466 : vector<8x32xf32>
    %470 = arith.mulf %462, %439 : vector<8x32xf32>
    %471 = arith.addf %469, %470 : vector<8x32xf32>
    %cst_113 = arith.constant dense<0.000000e+00> : vector<8x32xf32>
    %472 = tpu.matmul %471, %17, %cst_113 {dimension_numbers = #tpu.dot_dimension_numbers<[1], [0], [0], [1], [0, 0, 1, 1], [], []>} : vector<8x32xf32>, vector<32x32xf32>, vector<8x32xf32> -> vector<8x32xf32>
    %473 = vector.broadcast %20 : vector<1x32xf32> to vector<8x32xf32>
    %474 = arith.addf %472, %473 : vector<8x32xf32>
    %cst_114 = arith.constant dense<0.000000e+00> : vector<8x32xf32>
    %475 = tpu.matmul %471, %18, %cst_114 {dimension_numbers = #tpu.dot_dimension_numbers<[1], [0], [0], [1], [0, 0, 1, 1], [], []>} : vector<8x32xf32>, vector<32x32xf32>, vector<8x32xf32> -> vector<8x32xf32>
    %476 = vector.broadcast %21 : vector<1x32xf32> to vector<8x32xf32>
    %477 = arith.addf %475, %476 : vector<8x32xf32>
    %cst_115 = arith.constant dense<0.000000e+00> : vector<8x32xf32>
    %478 = tpu.matmul %471, %19, %cst_115 {dimension_numbers = #tpu.dot_dimension_numbers<[1], [0], [0], [1], [0, 0, 1, 1], [], []>} : vector<8x32xf32>, vector<32x32xf32>, vector<8x32xf32> -> vector<8x32xf32>
    %479 = vector.broadcast %22 : vector<1x32xf32> to vector<8x32xf32>
    %480 = arith.addf %478, %479 : vector<8x32xf32>
    %481 = vector.extract_strided_slice %6 {offsets = [112, 0], sizes = [8, 32], strides = [1, 1]} : vector<128x32xf32> to vector<8x32xf32>
    %482 = arith.addf %481, %474 : vector<8x32xf32>
    %483 = arith.negf %482 : vector<8x32xf32>
    %484 = math.exp %483 : vector<8x32xf32>
    %cst_116 = arith.constant 1.000000e+00 : f32
    %485 = vector.broadcast %cst_116 : f32 to vector<8x32xf32>
    %486 = arith.addf %485, %484 : vector<8x32xf32>
    %487 = arith.divf %485, %486 : vector<8x32xf32>
    %488 = vector.extract_strided_slice %11 {offsets = [112, 0], sizes = [8, 32], strides = [1, 1]} : vector<128x32xf32> to vector<8x32xf32>
    %489 = arith.addf %488, %477 : vector<8x32xf32>
    %490 = arith.negf %489 : vector<8x32xf32>
    %491 = math.exp %490 : vector<8x32xf32>
    %cst_117 = arith.constant 1.000000e+00 : f32
    %492 = vector.broadcast %cst_117 : f32 to vector<8x32xf32>
    %493 = arith.addf %492, %491 : vector<8x32xf32>
    %494 = arith.divf %492, %493 : vector<8x32xf32>
    %495 = vector.extract_strided_slice %16 {offsets = [112, 0], sizes = [8, 32], strides = [1, 1]} : vector<128x32xf32> to vector<8x32xf32>
    %496 = arith.mulf %487, %480 : vector<8x32xf32>
    %497 = arith.addf %495, %496 : vector<8x32xf32>
    %498 = math.tanh %497 : vector<8x32xf32>
    %cst_118 = arith.constant 1.000000e+00 : f32
    %499 = vector.broadcast %cst_118 : f32 to vector<8x32xf32>
    %500 = arith.subf %499, %494 : vector<8x32xf32>
    %501 = arith.mulf %500, %498 : vector<8x32xf32>
    %502 = arith.mulf %494, %471 : vector<8x32xf32>
    %503 = arith.addf %501, %502 : vector<8x32xf32>
    %cst_119 = arith.constant dense<0.000000e+00> : vector<8x32xf32>
    %504 = tpu.matmul %503, %17, %cst_119 {dimension_numbers = #tpu.dot_dimension_numbers<[1], [0], [0], [1], [0, 0, 1, 1], [], []>} : vector<8x32xf32>, vector<32x32xf32>, vector<8x32xf32> -> vector<8x32xf32>
    %505 = vector.broadcast %20 : vector<1x32xf32> to vector<8x32xf32>
    %506 = arith.addf %504, %505 : vector<8x32xf32>
    %cst_120 = arith.constant dense<0.000000e+00> : vector<8x32xf32>
    %507 = tpu.matmul %503, %18, %cst_120 {dimension_numbers = #tpu.dot_dimension_numbers<[1], [0], [0], [1], [0, 0, 1, 1], [], []>} : vector<8x32xf32>, vector<32x32xf32>, vector<8x32xf32> -> vector<8x32xf32>
    %508 = vector.broadcast %21 : vector<1x32xf32> to vector<8x32xf32>
    %509 = arith.addf %507, %508 : vector<8x32xf32>
    %cst_121 = arith.constant dense<0.000000e+00> : vector<8x32xf32>
    %510 = tpu.matmul %503, %19, %cst_121 {dimension_numbers = #tpu.dot_dimension_numbers<[1], [0], [0], [1], [0, 0, 1, 1], [], []>} : vector<8x32xf32>, vector<32x32xf32>, vector<8x32xf32> -> vector<8x32xf32>
    %511 = vector.broadcast %22 : vector<1x32xf32> to vector<8x32xf32>
    %512 = arith.addf %510, %511 : vector<8x32xf32>
    %513 = vector.extract_strided_slice %6 {offsets = [120, 0], sizes = [8, 32], strides = [1, 1]} : vector<128x32xf32> to vector<8x32xf32>
    %514 = arith.addf %513, %506 : vector<8x32xf32>
    %515 = arith.negf %514 : vector<8x32xf32>
    %516 = math.exp %515 : vector<8x32xf32>
    %cst_122 = arith.constant 1.000000e+00 : f32
    %517 = vector.broadcast %cst_122 : f32 to vector<8x32xf32>
    %518 = arith.addf %517, %516 : vector<8x32xf32>
    %519 = arith.divf %517, %518 : vector<8x32xf32>
    %520 = vector.extract_strided_slice %11 {offsets = [120, 0], sizes = [8, 32], strides = [1, 1]} : vector<128x32xf32> to vector<8x32xf32>
    %521 = arith.addf %520, %509 : vector<8x32xf32>
    %522 = arith.negf %521 : vector<8x32xf32>
    %523 = math.exp %522 : vector<8x32xf32>
    %cst_123 = arith.constant 1.000000e+00 : f32
    %524 = vector.broadcast %cst_123 : f32 to vector<8x32xf32>
    %525 = arith.addf %524, %523 : vector<8x32xf32>
    %526 = arith.divf %524, %525 : vector<8x32xf32>
    %527 = vector.extract_strided_slice %16 {offsets = [120, 0], sizes = [8, 32], strides = [1, 1]} : vector<128x32xf32> to vector<8x32xf32>
    %528 = arith.mulf %519, %512 : vector<8x32xf32>
    %529 = arith.addf %527, %528 : vector<8x32xf32>
    %530 = math.tanh %529 : vector<8x32xf32>
    %cst_124 = arith.constant 1.000000e+00 : f32
    %531 = vector.broadcast %cst_124 : f32 to vector<8x32xf32>
    %532 = arith.subf %531, %526 : vector<8x32xf32>
    %533 = arith.mulf %532, %530 : vector<8x32xf32>
    %534 = arith.mulf %526, %503 : vector<8x32xf32>
    %535 = arith.addf %533, %534 : vector<8x32xf32>
    %536 = tpu.concatenate %55, %87, %119, %151, %183, %215, %247, %279, %311, %343, %375, %407, %439, %471, %503, %535 in 0 : vector<8x32xf32>, vector<8x32xf32>, vector<8x32xf32>, vector<8x32xf32>, vector<8x32xf32>, vector<8x32xf32>, vector<8x32xf32>, vector<8x32xf32>, vector<8x32xf32>, vector<8x32xf32>, vector<8x32xf32>, vector<8x32xf32>, vector<8x32xf32>, vector<8x32xf32>, vector<8x32xf32>, vector<8x32xf32> -> vector<128x32xf32>
    %c0_125 = arith.constant 0 : index
    %c0_126 = arith.constant 0 : index
    %537 = vector.load %arg14[%c0_125, %c0_126] : memref<32x32xf32, #tpu.memory_space<vmem>>, vector<32x32xf32>
    %cst_127 = arith.constant dense<0.000000e+00> : vector<128x32xf32>
    %538 = tpu.matmul %536, %537, %cst_127 {dimension_numbers = #tpu.dot_dimension_numbers<[1], [0], [0], [1], [0, 0, 1, 1], [], []>} : vector<128x32xf32>, vector<32x32xf32>, vector<128x32xf32> -> vector<128x32xf32>
    %c0_128 = arith.constant 0 : index
    %c0_129 = arith.constant 0 : index
    %539 = vector.load %arg17[%c0_128, %c0_129] : memref<1x32xf32, #tpu.memory_space<vmem>>, vector<1x32xf32>
    %540 = vector.broadcast %539 : vector<1x32xf32> to vector<128x32xf32>
    %541 = arith.addf %538, %540 : vector<128x32xf32>
    %c0_130 = arith.constant 0 : index
    %c0_131 = arith.constant 0 : index
    %542 = vector.load %arg15[%c0_130, %c0_131] : memref<32x32xf32, #tpu.memory_space<vmem>>, vector<32x32xf32>
    %cst_132 = arith.constant dense<0.000000e+00> : vector<128x32xf32>
    %543 = tpu.matmul %536, %542, %cst_132 {dimension_numbers = #tpu.dot_dimension_numbers<[1], [0], [0], [1], [0, 0, 1, 1], [], []>} : vector<128x32xf32>, vector<32x32xf32>, vector<128x32xf32> -> vector<128x32xf32>
    %c0_133 = arith.constant 0 : index
    %c0_134 = arith.constant 0 : index
    %544 = vector.load %arg18[%c0_133, %c0_134] : memref<1x32xf32, #tpu.memory_space<vmem>>, vector<1x32xf32>
    %545 = vector.broadcast %544 : vector<1x32xf32> to vector<128x32xf32>
    %546 = arith.addf %543, %545 : vector<128x32xf32>
    %c0_135 = arith.constant 0 : index
    %c0_136 = arith.constant 0 : index
    %547 = vector.load %arg16[%c0_135, %c0_136] : memref<32x32xf32, #tpu.memory_space<vmem>>, vector<32x32xf32>
    %cst_137 = arith.constant dense<0.000000e+00> : vector<128x32xf32>
    %548 = tpu.matmul %536, %547, %cst_137 {dimension_numbers = #tpu.dot_dimension_numbers<[1], [0], [0], [1], [0, 0, 1, 1], [], []>} : vector<128x32xf32>, vector<32x32xf32>, vector<128x32xf32> -> vector<128x32xf32>
    %c0_138 = arith.constant 0 : index
    %c0_139 = arith.constant 0 : index
    %549 = vector.load %arg19[%c0_138, %c0_139] : memref<1x32xf32, #tpu.memory_space<vmem>>, vector<1x32xf32>
    %550 = vector.broadcast %549 : vector<1x32xf32> to vector<128x32xf32>
    %551 = arith.addf %548, %550 : vector<128x32xf32>
    %c0_140 = arith.constant 0 : index
    %c0_141 = arith.constant 0 : index
    %552 = vector.load %arg20[%c0_140, %c0_141] : memref<32x32xf32, #tpu.memory_space<vmem>>, vector<32x32xf32>
    %c0_142 = arith.constant 0 : index
    %c0_143 = arith.constant 0 : index
    %553 = vector.load %arg21[%c0_142, %c0_143] : memref<32x32xf32, #tpu.memory_space<vmem>>, vector<32x32xf32>
    %c0_144 = arith.constant 0 : index
    %c0_145 = arith.constant 0 : index
    %554 = vector.load %arg22[%c0_144, %c0_145] : memref<32x32xf32, #tpu.memory_space<vmem>>, vector<32x32xf32>
    %c0_146 = arith.constant 0 : index
    %c0_147 = arith.constant 0 : index
    %555 = vector.load %arg23[%c0_146, %c0_147] : memref<1x32xf32, #tpu.memory_space<vmem>>, vector<1x32xf32>
    %c0_148 = arith.constant 0 : index
    %c0_149 = arith.constant 0 : index
    %556 = vector.load %arg24[%c0_148, %c0_149] : memref<1x32xf32, #tpu.memory_space<vmem>>, vector<1x32xf32>
    %c0_150 = arith.constant 0 : index
    %c0_151 = arith.constant 0 : index
    %557 = vector.load %arg25[%c0_150, %c0_151] : memref<1x32xf32, #tpu.memory_space<vmem>>, vector<1x32xf32>
    %cst_152 = arith.constant 0.000000e+00 : f32
    %558 = vector.broadcast %cst_152 : f32 to vector<8x32xf32>
    %cst_153 = arith.constant dense<0.000000e+00> : vector<8x32xf32>
    %559 = tpu.matmul %558, %552, %cst_153 {dimension_numbers = #tpu.dot_dimension_numbers<[1], [0], [0], [1], [0, 0, 1, 1], [], []>} : vector<8x32xf32>, vector<32x32xf32>, vector<8x32xf32> -> vector<8x32xf32>
    %560 = vector.broadcast %555 : vector<1x32xf32> to vector<8x32xf32>
    %561 = arith.addf %559, %560 : vector<8x32xf32>
    %cst_154 = arith.constant dense<0.000000e+00> : vector<8x32xf32>
    %562 = tpu.matmul %558, %553, %cst_154 {dimension_numbers = #tpu.dot_dimension_numbers<[1], [0], [0], [1], [0, 0, 1, 1], [], []>} : vector<8x32xf32>, vector<32x32xf32>, vector<8x32xf32> -> vector<8x32xf32>
    %563 = vector.broadcast %556 : vector<1x32xf32> to vector<8x32xf32>
    %564 = arith.addf %562, %563 : vector<8x32xf32>
    %cst_155 = arith.constant dense<0.000000e+00> : vector<8x32xf32>
    %565 = tpu.matmul %558, %554, %cst_155 {dimension_numbers = #tpu.dot_dimension_numbers<[1], [0], [0], [1], [0, 0, 1, 1], [], []>} : vector<8x32xf32>, vector<32x32xf32>, vector<8x32xf32> -> vector<8x32xf32>
    %566 = vector.broadcast %557 : vector<1x32xf32> to vector<8x32xf32>
    %567 = arith.addf %565, %566 : vector<8x32xf32>
    %568 = vector.extract_strided_slice %541 {offsets = [0, 0], sizes = [8, 32], strides = [1, 1]} : vector<128x32xf32> to vector<8x32xf32>
    %569 = arith.addf %568, %561 : vector<8x32xf32>
    %570 = arith.negf %569 : vector<8x32xf32>
    %571 = math.exp %570 : vector<8x32xf32>
    %cst_156 = arith.constant 1.000000e+00 : f32
    %572 = vector.broadcast %cst_156 : f32 to vector<8x32xf32>
    %573 = arith.addf %572, %571 : vector<8x32xf32>
    %574 = arith.divf %572, %573 : vector<8x32xf32>
    %575 = vector.extract_strided_slice %546 {offsets = [0, 0], sizes = [8, 32], strides = [1, 1]} : vector<128x32xf32> to vector<8x32xf32>
    %576 = arith.addf %575, %564 : vector<8x32xf32>
    %577 = arith.negf %576 : vector<8x32xf32>
    %578 = math.exp %577 : vector<8x32xf32>
    %cst_157 = arith.constant 1.000000e+00 : f32
    %579 = vector.broadcast %cst_157 : f32 to vector<8x32xf32>
    %580 = arith.addf %579, %578 : vector<8x32xf32>
    %581 = arith.divf %579, %580 : vector<8x32xf32>
    %582 = vector.extract_strided_slice %551 {offsets = [0, 0], sizes = [8, 32], strides = [1, 1]} : vector<128x32xf32> to vector<8x32xf32>
    %583 = arith.mulf %574, %567 : vector<8x32xf32>
    %584 = arith.addf %582, %583 : vector<8x32xf32>
    %585 = math.tanh %584 : vector<8x32xf32>
    %cst_158 = arith.constant 1.000000e+00 : f32
    %586 = vector.broadcast %cst_158 : f32 to vector<8x32xf32>
    %587 = arith.subf %586, %581 : vector<8x32xf32>
    %588 = arith.mulf %587, %585 : vector<8x32xf32>
    %589 = arith.mulf %581, %558 : vector<8x32xf32>
    %590 = arith.addf %588, %589 : vector<8x32xf32>
    %cst_159 = arith.constant dense<0.000000e+00> : vector<8x32xf32>
    %591 = tpu.matmul %590, %552, %cst_159 {dimension_numbers = #tpu.dot_dimension_numbers<[1], [0], [0], [1], [0, 0, 1, 1], [], []>} : vector<8x32xf32>, vector<32x32xf32>, vector<8x32xf32> -> vector<8x32xf32>
    %592 = vector.broadcast %555 : vector<1x32xf32> to vector<8x32xf32>
    %593 = arith.addf %591, %592 : vector<8x32xf32>
    %cst_160 = arith.constant dense<0.000000e+00> : vector<8x32xf32>
    %594 = tpu.matmul %590, %553, %cst_160 {dimension_numbers = #tpu.dot_dimension_numbers<[1], [0], [0], [1], [0, 0, 1, 1], [], []>} : vector<8x32xf32>, vector<32x32xf32>, vector<8x32xf32> -> vector<8x32xf32>
    %595 = vector.broadcast %556 : vector<1x32xf32> to vector<8x32xf32>
    %596 = arith.addf %594, %595 : vector<8x32xf32>
    %cst_161 = arith.constant dense<0.000000e+00> : vector<8x32xf32>
    %597 = tpu.matmul %590, %554, %cst_161 {dimension_numbers = #tpu.dot_dimension_numbers<[1], [0], [0], [1], [0, 0, 1, 1], [], []>} : vector<8x32xf32>, vector<32x32xf32>, vector<8x32xf32> -> vector<8x32xf32>
    %598 = vector.broadcast %557 : vector<1x32xf32> to vector<8x32xf32>
    %599 = arith.addf %597, %598 : vector<8x32xf32>
    %600 = vector.extract_strided_slice %541 {offsets = [8, 0], sizes = [8, 32], strides = [1, 1]} : vector<128x32xf32> to vector<8x32xf32>
    %601 = arith.addf %600, %593 : vector<8x32xf32>
    %602 = arith.negf %601 : vector<8x32xf32>
    %603 = math.exp %602 : vector<8x32xf32>
    %cst_162 = arith.constant 1.000000e+00 : f32
    %604 = vector.broadcast %cst_162 : f32 to vector<8x32xf32>
    %605 = arith.addf %604, %603 : vector<8x32xf32>
    %606 = arith.divf %604, %605 : vector<8x32xf32>
    %607 = vector.extract_strided_slice %546 {offsets = [8, 0], sizes = [8, 32], strides = [1, 1]} : vector<128x32xf32> to vector<8x32xf32>
    %608 = arith.addf %607, %596 : vector<8x32xf32>
    %609 = arith.negf %608 : vector<8x32xf32>
    %610 = math.exp %609 : vector<8x32xf32>
    %cst_163 = arith.constant 1.000000e+00 : f32
    %611 = vector.broadcast %cst_163 : f32 to vector<8x32xf32>
    %612 = arith.addf %611, %610 : vector<8x32xf32>
    %613 = arith.divf %611, %612 : vector<8x32xf32>
    %614 = vector.extract_strided_slice %551 {offsets = [8, 0], sizes = [8, 32], strides = [1, 1]} : vector<128x32xf32> to vector<8x32xf32>
    %615 = arith.mulf %606, %599 : vector<8x32xf32>
    %616 = arith.addf %614, %615 : vector<8x32xf32>
    %617 = math.tanh %616 : vector<8x32xf32>
    %cst_164 = arith.constant 1.000000e+00 : f32
    %618 = vector.broadcast %cst_164 : f32 to vector<8x32xf32>
    %619 = arith.subf %618, %613 : vector<8x32xf32>
    %620 = arith.mulf %619, %617 : vector<8x32xf32>
    %621 = arith.mulf %613, %590 : vector<8x32xf32>
    %622 = arith.addf %620, %621 : vector<8x32xf32>
    %cst_165 = arith.constant dense<0.000000e+00> : vector<8x32xf32>
    %623 = tpu.matmul %622, %552, %cst_165 {dimension_numbers = #tpu.dot_dimension_numbers<[1], [0], [0], [1], [0, 0, 1, 1], [], []>} : vector<8x32xf32>, vector<32x32xf32>, vector<8x32xf32> -> vector<8x32xf32>
    %624 = vector.broadcast %555 : vector<1x32xf32> to vector<8x32xf32>
    %625 = arith.addf %623, %624 : vector<8x32xf32>
    %cst_166 = arith.constant dense<0.000000e+00> : vector<8x32xf32>
    %626 = tpu.matmul %622, %553, %cst_166 {dimension_numbers = #tpu.dot_dimension_numbers<[1], [0], [0], [1], [0, 0, 1, 1], [], []>} : vector<8x32xf32>, vector<32x32xf32>, vector<8x32xf32> -> vector<8x32xf32>
    %627 = vector.broadcast %556 : vector<1x32xf32> to vector<8x32xf32>
    %628 = arith.addf %626, %627 : vector<8x32xf32>
    %cst_167 = arith.constant dense<0.000000e+00> : vector<8x32xf32>
    %629 = tpu.matmul %622, %554, %cst_167 {dimension_numbers = #tpu.dot_dimension_numbers<[1], [0], [0], [1], [0, 0, 1, 1], [], []>} : vector<8x32xf32>, vector<32x32xf32>, vector<8x32xf32> -> vector<8x32xf32>
    %630 = vector.broadcast %557 : vector<1x32xf32> to vector<8x32xf32>
    %631 = arith.addf %629, %630 : vector<8x32xf32>
    %632 = vector.extract_strided_slice %541 {offsets = [16, 0], sizes = [8, 32], strides = [1, 1]} : vector<128x32xf32> to vector<8x32xf32>
    %633 = arith.addf %632, %625 : vector<8x32xf32>
    %634 = arith.negf %633 : vector<8x32xf32>
    %635 = math.exp %634 : vector<8x32xf32>
    %cst_168 = arith.constant 1.000000e+00 : f32
    %636 = vector.broadcast %cst_168 : f32 to vector<8x32xf32>
    %637 = arith.addf %636, %635 : vector<8x32xf32>
    %638 = arith.divf %636, %637 : vector<8x32xf32>
    %639 = vector.extract_strided_slice %546 {offsets = [16, 0], sizes = [8, 32], strides = [1, 1]} : vector<128x32xf32> to vector<8x32xf32>
    %640 = arith.addf %639, %628 : vector<8x32xf32>
    %641 = arith.negf %640 : vector<8x32xf32>
    %642 = math.exp %641 : vector<8x32xf32>
    %cst_169 = arith.constant 1.000000e+00 : f32
    %643 = vector.broadcast %cst_169 : f32 to vector<8x32xf32>
    %644 = arith.addf %643, %642 : vector<8x32xf32>
    %645 = arith.divf %643, %644 : vector<8x32xf32>
    %646 = vector.extract_strided_slice %551 {offsets = [16, 0], sizes = [8, 32], strides = [1, 1]} : vector<128x32xf32> to vector<8x32xf32>
    %647 = arith.mulf %638, %631 : vector<8x32xf32>
    %648 = arith.addf %646, %647 : vector<8x32xf32>
    %649 = math.tanh %648 : vector<8x32xf32>
    %cst_170 = arith.constant 1.000000e+00 : f32
    %650 = vector.broadcast %cst_170 : f32 to vector<8x32xf32>
    %651 = arith.subf %650, %645 : vector<8x32xf32>
    %652 = arith.mulf %651, %649 : vector<8x32xf32>
    %653 = arith.mulf %645, %622 : vector<8x32xf32>
    %654 = arith.addf %652, %653 : vector<8x32xf32>
    %cst_171 = arith.constant dense<0.000000e+00> : vector<8x32xf32>
    %655 = tpu.matmul %654, %552, %cst_171 {dimension_numbers = #tpu.dot_dimension_numbers<[1], [0], [0], [1], [0, 0, 1, 1], [], []>} : vector<8x32xf32>, vector<32x32xf32>, vector<8x32xf32> -> vector<8x32xf32>
    %656 = vector.broadcast %555 : vector<1x32xf32> to vector<8x32xf32>
    %657 = arith.addf %655, %656 : vector<8x32xf32>
    %cst_172 = arith.constant dense<0.000000e+00> : vector<8x32xf32>
    %658 = tpu.matmul %654, %553, %cst_172 {dimension_numbers = #tpu.dot_dimension_numbers<[1], [0], [0], [1], [0, 0, 1, 1], [], []>} : vector<8x32xf32>, vector<32x32xf32>, vector<8x32xf32> -> vector<8x32xf32>
    %659 = vector.broadcast %556 : vector<1x32xf32> to vector<8x32xf32>
    %660 = arith.addf %658, %659 : vector<8x32xf32>
    %cst_173 = arith.constant dense<0.000000e+00> : vector<8x32xf32>
    %661 = tpu.matmul %654, %554, %cst_173 {dimension_numbers = #tpu.dot_dimension_numbers<[1], [0], [0], [1], [0, 0, 1, 1], [], []>} : vector<8x32xf32>, vector<32x32xf32>, vector<8x32xf32> -> vector<8x32xf32>
    %662 = vector.broadcast %557 : vector<1x32xf32> to vector<8x32xf32>
    %663 = arith.addf %661, %662 : vector<8x32xf32>
    %664 = vector.extract_strided_slice %541 {offsets = [24, 0], sizes = [8, 32], strides = [1, 1]} : vector<128x32xf32> to vector<8x32xf32>
    %665 = arith.addf %664, %657 : vector<8x32xf32>
    %666 = arith.negf %665 : vector<8x32xf32>
    %667 = math.exp %666 : vector<8x32xf32>
    %cst_174 = arith.constant 1.000000e+00 : f32
    %668 = vector.broadcast %cst_174 : f32 to vector<8x32xf32>
    %669 = arith.addf %668, %667 : vector<8x32xf32>
    %670 = arith.divf %668, %669 : vector<8x32xf32>
    %671 = vector.extract_strided_slice %546 {offsets = [24, 0], sizes = [8, 32], strides = [1, 1]} : vector<128x32xf32> to vector<8x32xf32>
    %672 = arith.addf %671, %660 : vector<8x32xf32>
    %673 = arith.negf %672 : vector<8x32xf32>
    %674 = math.exp %673 : vector<8x32xf32>
    %cst_175 = arith.constant 1.000000e+00 : f32
    %675 = vector.broadcast %cst_175 : f32 to vector<8x32xf32>
    %676 = arith.addf %675, %674 : vector<8x32xf32>
    %677 = arith.divf %675, %676 : vector<8x32xf32>
    %678 = vector.extract_strided_slice %551 {offsets = [24, 0], sizes = [8, 32], strides = [1, 1]} : vector<128x32xf32> to vector<8x32xf32>
    %679 = arith.mulf %670, %663 : vector<8x32xf32>
    %680 = arith.addf %678, %679 : vector<8x32xf32>
    %681 = math.tanh %680 : vector<8x32xf32>
    %cst_176 = arith.constant 1.000000e+00 : f32
    %682 = vector.broadcast %cst_176 : f32 to vector<8x32xf32>
    %683 = arith.subf %682, %677 : vector<8x32xf32>
    %684 = arith.mulf %683, %681 : vector<8x32xf32>
    %685 = arith.mulf %677, %654 : vector<8x32xf32>
    %686 = arith.addf %684, %685 : vector<8x32xf32>
    %cst_177 = arith.constant dense<0.000000e+00> : vector<8x32xf32>
    %687 = tpu.matmul %686, %552, %cst_177 {dimension_numbers = #tpu.dot_dimension_numbers<[1], [0], [0], [1], [0, 0, 1, 1], [], []>} : vector<8x32xf32>, vector<32x32xf32>, vector<8x32xf32> -> vector<8x32xf32>
    %688 = vector.broadcast %555 : vector<1x32xf32> to vector<8x32xf32>
    %689 = arith.addf %687, %688 : vector<8x32xf32>
    %cst_178 = arith.constant dense<0.000000e+00> : vector<8x32xf32>
    %690 = tpu.matmul %686, %553, %cst_178 {dimension_numbers = #tpu.dot_dimension_numbers<[1], [0], [0], [1], [0, 0, 1, 1], [], []>} : vector<8x32xf32>, vector<32x32xf32>, vector<8x32xf32> -> vector<8x32xf32>
    %691 = vector.broadcast %556 : vector<1x32xf32> to vector<8x32xf32>
    %692 = arith.addf %690, %691 : vector<8x32xf32>
    %cst_179 = arith.constant dense<0.000000e+00> : vector<8x32xf32>
    %693 = tpu.matmul %686, %554, %cst_179 {dimension_numbers = #tpu.dot_dimension_numbers<[1], [0], [0], [1], [0, 0, 1, 1], [], []>} : vector<8x32xf32>, vector<32x32xf32>, vector<8x32xf32> -> vector<8x32xf32>
    %694 = vector.broadcast %557 : vector<1x32xf32> to vector<8x32xf32>
    %695 = arith.addf %693, %694 : vector<8x32xf32>
    %696 = vector.extract_strided_slice %541 {offsets = [32, 0], sizes = [8, 32], strides = [1, 1]} : vector<128x32xf32> to vector<8x32xf32>
    %697 = arith.addf %696, %689 : vector<8x32xf32>
    %698 = arith.negf %697 : vector<8x32xf32>
    %699 = math.exp %698 : vector<8x32xf32>
    %cst_180 = arith.constant 1.000000e+00 : f32
    %700 = vector.broadcast %cst_180 : f32 to vector<8x32xf32>
    %701 = arith.addf %700, %699 : vector<8x32xf32>
    %702 = arith.divf %700, %701 : vector<8x32xf32>
    %703 = vector.extract_strided_slice %546 {offsets = [32, 0], sizes = [8, 32], strides = [1, 1]} : vector<128x32xf32> to vector<8x32xf32>
    %704 = arith.addf %703, %692 : vector<8x32xf32>
    %705 = arith.negf %704 : vector<8x32xf32>
    %706 = math.exp %705 : vector<8x32xf32>
    %cst_181 = arith.constant 1.000000e+00 : f32
    %707 = vector.broadcast %cst_181 : f32 to vector<8x32xf32>
    %708 = arith.addf %707, %706 : vector<8x32xf32>
    %709 = arith.divf %707, %708 : vector<8x32xf32>
    %710 = vector.extract_strided_slice %551 {offsets = [32, 0], sizes = [8, 32], strides = [1, 1]} : vector<128x32xf32> to vector<8x32xf32>
    %711 = arith.mulf %702, %695 : vector<8x32xf32>
    %712 = arith.addf %710, %711 : vector<8x32xf32>
    %713 = math.tanh %712 : vector<8x32xf32>
    %cst_182 = arith.constant 1.000000e+00 : f32
    %714 = vector.broadcast %cst_182 : f32 to vector<8x32xf32>
    %715 = arith.subf %714, %709 : vector<8x32xf32>
    %716 = arith.mulf %715, %713 : vector<8x32xf32>
    %717 = arith.mulf %709, %686 : vector<8x32xf32>
    %718 = arith.addf %716, %717 : vector<8x32xf32>
    %cst_183 = arith.constant dense<0.000000e+00> : vector<8x32xf32>
    %719 = tpu.matmul %718, %552, %cst_183 {dimension_numbers = #tpu.dot_dimension_numbers<[1], [0], [0], [1], [0, 0, 1, 1], [], []>} : vector<8x32xf32>, vector<32x32xf32>, vector<8x32xf32> -> vector<8x32xf32>
    %720 = vector.broadcast %555 : vector<1x32xf32> to vector<8x32xf32>
    %721 = arith.addf %719, %720 : vector<8x32xf32>
    %cst_184 = arith.constant dense<0.000000e+00> : vector<8x32xf32>
    %722 = tpu.matmul %718, %553, %cst_184 {dimension_numbers = #tpu.dot_dimension_numbers<[1], [0], [0], [1], [0, 0, 1, 1], [], []>} : vector<8x32xf32>, vector<32x32xf32>, vector<8x32xf32> -> vector<8x32xf32>
    %723 = vector.broadcast %556 : vector<1x32xf32> to vector<8x32xf32>
    %724 = arith.addf %722, %723 : vector<8x32xf32>
    %cst_185 = arith.constant dense<0.000000e+00> : vector<8x32xf32>
    %725 = tpu.matmul %718, %554, %cst_185 {dimension_numbers = #tpu.dot_dimension_numbers<[1], [0], [0], [1], [0, 0, 1, 1], [], []>} : vector<8x32xf32>, vector<32x32xf32>, vector<8x32xf32> -> vector<8x32xf32>
    %726 = vector.broadcast %557 : vector<1x32xf32> to vector<8x32xf32>
    %727 = arith.addf %725, %726 : vector<8x32xf32>
    %728 = vector.extract_strided_slice %541 {offsets = [40, 0], sizes = [8, 32], strides = [1, 1]} : vector<128x32xf32> to vector<8x32xf32>
    %729 = arith.addf %728, %721 : vector<8x32xf32>
    %730 = arith.negf %729 : vector<8x32xf32>
    %731 = math.exp %730 : vector<8x32xf32>
    %cst_186 = arith.constant 1.000000e+00 : f32
    %732 = vector.broadcast %cst_186 : f32 to vector<8x32xf32>
    %733 = arith.addf %732, %731 : vector<8x32xf32>
    %734 = arith.divf %732, %733 : vector<8x32xf32>
    %735 = vector.extract_strided_slice %546 {offsets = [40, 0], sizes = [8, 32], strides = [1, 1]} : vector<128x32xf32> to vector<8x32xf32>
    %736 = arith.addf %735, %724 : vector<8x32xf32>
    %737 = arith.negf %736 : vector<8x32xf32>
    %738 = math.exp %737 : vector<8x32xf32>
    %cst_187 = arith.constant 1.000000e+00 : f32
    %739 = vector.broadcast %cst_187 : f32 to vector<8x32xf32>
    %740 = arith.addf %739, %738 : vector<8x32xf32>
    %741 = arith.divf %739, %740 : vector<8x32xf32>
    %742 = vector.extract_strided_slice %551 {offsets = [40, 0], sizes = [8, 32], strides = [1, 1]} : vector<128x32xf32> to vector<8x32xf32>
    %743 = arith.mulf %734, %727 : vector<8x32xf32>
    %744 = arith.addf %742, %743 : vector<8x32xf32>
    %745 = math.tanh %744 : vector<8x32xf32>
    %cst_188 = arith.constant 1.000000e+00 : f32
    %746 = vector.broadcast %cst_188 : f32 to vector<8x32xf32>
    %747 = arith.subf %746, %741 : vector<8x32xf32>
    %748 = arith.mulf %747, %745 : vector<8x32xf32>
    %749 = arith.mulf %741, %718 : vector<8x32xf32>
    %750 = arith.addf %748, %749 : vector<8x32xf32>
    %cst_189 = arith.constant dense<0.000000e+00> : vector<8x32xf32>
    %751 = tpu.matmul %750, %552, %cst_189 {dimension_numbers = #tpu.dot_dimension_numbers<[1], [0], [0], [1], [0, 0, 1, 1], [], []>} : vector<8x32xf32>, vector<32x32xf32>, vector<8x32xf32> -> vector<8x32xf32>
    %752 = vector.broadcast %555 : vector<1x32xf32> to vector<8x32xf32>
    %753 = arith.addf %751, %752 : vector<8x32xf32>
    %cst_190 = arith.constant dense<0.000000e+00> : vector<8x32xf32>
    %754 = tpu.matmul %750, %553, %cst_190 {dimension_numbers = #tpu.dot_dimension_numbers<[1], [0], [0], [1], [0, 0, 1, 1], [], []>} : vector<8x32xf32>, vector<32x32xf32>, vector<8x32xf32> -> vector<8x32xf32>
    %755 = vector.broadcast %556 : vector<1x32xf32> to vector<8x32xf32>
    %756 = arith.addf %754, %755 : vector<8x32xf32>
    %cst_191 = arith.constant dense<0.000000e+00> : vector<8x32xf32>
    %757 = tpu.matmul %750, %554, %cst_191 {dimension_numbers = #tpu.dot_dimension_numbers<[1], [0], [0], [1], [0, 0, 1, 1], [], []>} : vector<8x32xf32>, vector<32x32xf32>, vector<8x32xf32> -> vector<8x32xf32>
    %758 = vector.broadcast %557 : vector<1x32xf32> to vector<8x32xf32>
    %759 = arith.addf %757, %758 : vector<8x32xf32>
    %760 = vector.extract_strided_slice %541 {offsets = [48, 0], sizes = [8, 32], strides = [1, 1]} : vector<128x32xf32> to vector<8x32xf32>
    %761 = arith.addf %760, %753 : vector<8x32xf32>
    %762 = arith.negf %761 : vector<8x32xf32>
    %763 = math.exp %762 : vector<8x32xf32>
    %cst_192 = arith.constant 1.000000e+00 : f32
    %764 = vector.broadcast %cst_192 : f32 to vector<8x32xf32>
    %765 = arith.addf %764, %763 : vector<8x32xf32>
    %766 = arith.divf %764, %765 : vector<8x32xf32>
    %767 = vector.extract_strided_slice %546 {offsets = [48, 0], sizes = [8, 32], strides = [1, 1]} : vector<128x32xf32> to vector<8x32xf32>
    %768 = arith.addf %767, %756 : vector<8x32xf32>
    %769 = arith.negf %768 : vector<8x32xf32>
    %770 = math.exp %769 : vector<8x32xf32>
    %cst_193 = arith.constant 1.000000e+00 : f32
    %771 = vector.broadcast %cst_193 : f32 to vector<8x32xf32>
    %772 = arith.addf %771, %770 : vector<8x32xf32>
    %773 = arith.divf %771, %772 : vector<8x32xf32>
    %774 = vector.extract_strided_slice %551 {offsets = [48, 0], sizes = [8, 32], strides = [1, 1]} : vector<128x32xf32> to vector<8x32xf32>
    %775 = arith.mulf %766, %759 : vector<8x32xf32>
    %776 = arith.addf %774, %775 : vector<8x32xf32>
    %777 = math.tanh %776 : vector<8x32xf32>
    %cst_194 = arith.constant 1.000000e+00 : f32
    %778 = vector.broadcast %cst_194 : f32 to vector<8x32xf32>
    %779 = arith.subf %778, %773 : vector<8x32xf32>
    %780 = arith.mulf %779, %777 : vector<8x32xf32>
    %781 = arith.mulf %773, %750 : vector<8x32xf32>
    %782 = arith.addf %780, %781 : vector<8x32xf32>
    %cst_195 = arith.constant dense<0.000000e+00> : vector<8x32xf32>
    %783 = tpu.matmul %782, %552, %cst_195 {dimension_numbers = #tpu.dot_dimension_numbers<[1], [0], [0], [1], [0, 0, 1, 1], [], []>} : vector<8x32xf32>, vector<32x32xf32>, vector<8x32xf32> -> vector<8x32xf32>
    %784 = vector.broadcast %555 : vector<1x32xf32> to vector<8x32xf32>
    %785 = arith.addf %783, %784 : vector<8x32xf32>
    %cst_196 = arith.constant dense<0.000000e+00> : vector<8x32xf32>
    %786 = tpu.matmul %782, %553, %cst_196 {dimension_numbers = #tpu.dot_dimension_numbers<[1], [0], [0], [1], [0, 0, 1, 1], [], []>} : vector<8x32xf32>, vector<32x32xf32>, vector<8x32xf32> -> vector<8x32xf32>
    %787 = vector.broadcast %556 : vector<1x32xf32> to vector<8x32xf32>
    %788 = arith.addf %786, %787 : vector<8x32xf32>
    %cst_197 = arith.constant dense<0.000000e+00> : vector<8x32xf32>
    %789 = tpu.matmul %782, %554, %cst_197 {dimension_numbers = #tpu.dot_dimension_numbers<[1], [0], [0], [1], [0, 0, 1, 1], [], []>} : vector<8x32xf32>, vector<32x32xf32>, vector<8x32xf32> -> vector<8x32xf32>
    %790 = vector.broadcast %557 : vector<1x32xf32> to vector<8x32xf32>
    %791 = arith.addf %789, %790 : vector<8x32xf32>
    %792 = vector.extract_strided_slice %541 {offsets = [56, 0], sizes = [8, 32], strides = [1, 1]} : vector<128x32xf32> to vector<8x32xf32>
    %793 = arith.addf %792, %785 : vector<8x32xf32>
    %794 = arith.negf %793 : vector<8x32xf32>
    %795 = math.exp %794 : vector<8x32xf32>
    %cst_198 = arith.constant 1.000000e+00 : f32
    %796 = vector.broadcast %cst_198 : f32 to vector<8x32xf32>
    %797 = arith.addf %796, %795 : vector<8x32xf32>
    %798 = arith.divf %796, %797 : vector<8x32xf32>
    %799 = vector.extract_strided_slice %546 {offsets = [56, 0], sizes = [8, 32], strides = [1, 1]} : vector<128x32xf32> to vector<8x32xf32>
    %800 = arith.addf %799, %788 : vector<8x32xf32>
    %801 = arith.negf %800 : vector<8x32xf32>
    %802 = math.exp %801 : vector<8x32xf32>
    %cst_199 = arith.constant 1.000000e+00 : f32
    %803 = vector.broadcast %cst_199 : f32 to vector<8x32xf32>
    %804 = arith.addf %803, %802 : vector<8x32xf32>
    %805 = arith.divf %803, %804 : vector<8x32xf32>
    %806 = vector.extract_strided_slice %551 {offsets = [56, 0], sizes = [8, 32], strides = [1, 1]} : vector<128x32xf32> to vector<8x32xf32>
    %807 = arith.mulf %798, %791 : vector<8x32xf32>
    %808 = arith.addf %806, %807 : vector<8x32xf32>
    %809 = math.tanh %808 : vector<8x32xf32>
    %cst_200 = arith.constant 1.000000e+00 : f32
    %810 = vector.broadcast %cst_200 : f32 to vector<8x32xf32>
    %811 = arith.subf %810, %805 : vector<8x32xf32>
    %812 = arith.mulf %811, %809 : vector<8x32xf32>
    %813 = arith.mulf %805, %782 : vector<8x32xf32>
    %814 = arith.addf %812, %813 : vector<8x32xf32>
    %cst_201 = arith.constant dense<0.000000e+00> : vector<8x32xf32>
    %815 = tpu.matmul %814, %552, %cst_201 {dimension_numbers = #tpu.dot_dimension_numbers<[1], [0], [0], [1], [0, 0, 1, 1], [], []>} : vector<8x32xf32>, vector<32x32xf32>, vector<8x32xf32> -> vector<8x32xf32>
    %816 = vector.broadcast %555 : vector<1x32xf32> to vector<8x32xf32>
    %817 = arith.addf %815, %816 : vector<8x32xf32>
    %cst_202 = arith.constant dense<0.000000e+00> : vector<8x32xf32>
    %818 = tpu.matmul %814, %553, %cst_202 {dimension_numbers = #tpu.dot_dimension_numbers<[1], [0], [0], [1], [0, 0, 1, 1], [], []>} : vector<8x32xf32>, vector<32x32xf32>, vector<8x32xf32> -> vector<8x32xf32>
    %819 = vector.broadcast %556 : vector<1x32xf32> to vector<8x32xf32>
    %820 = arith.addf %818, %819 : vector<8x32xf32>
    %cst_203 = arith.constant dense<0.000000e+00> : vector<8x32xf32>
    %821 = tpu.matmul %814, %554, %cst_203 {dimension_numbers = #tpu.dot_dimension_numbers<[1], [0], [0], [1], [0, 0, 1, 1], [], []>} : vector<8x32xf32>, vector<32x32xf32>, vector<8x32xf32> -> vector<8x32xf32>
    %822 = vector.broadcast %557 : vector<1x32xf32> to vector<8x32xf32>
    %823 = arith.addf %821, %822 : vector<8x32xf32>
    %824 = vector.extract_strided_slice %541 {offsets = [64, 0], sizes = [8, 32], strides = [1, 1]} : vector<128x32xf32> to vector<8x32xf32>
    %825 = arith.addf %824, %817 : vector<8x32xf32>
    %826 = arith.negf %825 : vector<8x32xf32>
    %827 = math.exp %826 : vector<8x32xf32>
    %cst_204 = arith.constant 1.000000e+00 : f32
    %828 = vector.broadcast %cst_204 : f32 to vector<8x32xf32>
    %829 = arith.addf %828, %827 : vector<8x32xf32>
    %830 = arith.divf %828, %829 : vector<8x32xf32>
    %831 = vector.extract_strided_slice %546 {offsets = [64, 0], sizes = [8, 32], strides = [1, 1]} : vector<128x32xf32> to vector<8x32xf32>
    %832 = arith.addf %831, %820 : vector<8x32xf32>
    %833 = arith.negf %832 : vector<8x32xf32>
    %834 = math.exp %833 : vector<8x32xf32>
    %cst_205 = arith.constant 1.000000e+00 : f32
    %835 = vector.broadcast %cst_205 : f32 to vector<8x32xf32>
    %836 = arith.addf %835, %834 : vector<8x32xf32>
    %837 = arith.divf %835, %836 : vector<8x32xf32>
    %838 = vector.extract_strided_slice %551 {offsets = [64, 0], sizes = [8, 32], strides = [1, 1]} : vector<128x32xf32> to vector<8x32xf32>
    %839 = arith.mulf %830, %823 : vector<8x32xf32>
    %840 = arith.addf %838, %839 : vector<8x32xf32>
    %841 = math.tanh %840 : vector<8x32xf32>
    %cst_206 = arith.constant 1.000000e+00 : f32
    %842 = vector.broadcast %cst_206 : f32 to vector<8x32xf32>
    %843 = arith.subf %842, %837 : vector<8x32xf32>
    %844 = arith.mulf %843, %841 : vector<8x32xf32>
    %845 = arith.mulf %837, %814 : vector<8x32xf32>
    %846 = arith.addf %844, %845 : vector<8x32xf32>
    %cst_207 = arith.constant dense<0.000000e+00> : vector<8x32xf32>
    %847 = tpu.matmul %846, %552, %cst_207 {dimension_numbers = #tpu.dot_dimension_numbers<[1], [0], [0], [1], [0, 0, 1, 1], [], []>} : vector<8x32xf32>, vector<32x32xf32>, vector<8x32xf32> -> vector<8x32xf32>
    %848 = vector.broadcast %555 : vector<1x32xf32> to vector<8x32xf32>
    %849 = arith.addf %847, %848 : vector<8x32xf32>
    %cst_208 = arith.constant dense<0.000000e+00> : vector<8x32xf32>
    %850 = tpu.matmul %846, %553, %cst_208 {dimension_numbers = #tpu.dot_dimension_numbers<[1], [0], [0], [1], [0, 0, 1, 1], [], []>} : vector<8x32xf32>, vector<32x32xf32>, vector<8x32xf32> -> vector<8x32xf32>
    %851 = vector.broadcast %556 : vector<1x32xf32> to vector<8x32xf32>
    %852 = arith.addf %850, %851 : vector<8x32xf32>
    %cst_209 = arith.constant dense<0.000000e+00> : vector<8x32xf32>
    %853 = tpu.matmul %846, %554, %cst_209 {dimension_numbers = #tpu.dot_dimension_numbers<[1], [0], [0], [1], [0, 0, 1, 1], [], []>} : vector<8x32xf32>, vector<32x32xf32>, vector<8x32xf32> -> vector<8x32xf32>
    %854 = vector.broadcast %557 : vector<1x32xf32> to vector<8x32xf32>
    %855 = arith.addf %853, %854 : vector<8x32xf32>
    %856 = vector.extract_strided_slice %541 {offsets = [72, 0], sizes = [8, 32], strides = [1, 1]} : vector<128x32xf32> to vector<8x32xf32>
    %857 = arith.addf %856, %849 : vector<8x32xf32>
    %858 = arith.negf %857 : vector<8x32xf32>
    %859 = math.exp %858 : vector<8x32xf32>
    %cst_210 = arith.constant 1.000000e+00 : f32
    %860 = vector.broadcast %cst_210 : f32 to vector<8x32xf32>
    %861 = arith.addf %860, %859 : vector<8x32xf32>
    %862 = arith.divf %860, %861 : vector<8x32xf32>
    %863 = vector.extract_strided_slice %546 {offsets = [72, 0], sizes = [8, 32], strides = [1, 1]} : vector<128x32xf32> to vector<8x32xf32>
    %864 = arith.addf %863, %852 : vector<8x32xf32>
    %865 = arith.negf %864 : vector<8x32xf32>
    %866 = math.exp %865 : vector<8x32xf32>
    %cst_211 = arith.constant 1.000000e+00 : f32
    %867 = vector.broadcast %cst_211 : f32 to vector<8x32xf32>
    %868 = arith.addf %867, %866 : vector<8x32xf32>
    %869 = arith.divf %867, %868 : vector<8x32xf32>
    %870 = vector.extract_strided_slice %551 {offsets = [72, 0], sizes = [8, 32], strides = [1, 1]} : vector<128x32xf32> to vector<8x32xf32>
    %871 = arith.mulf %862, %855 : vector<8x32xf32>
    %872 = arith.addf %870, %871 : vector<8x32xf32>
    %873 = math.tanh %872 : vector<8x32xf32>
    %cst_212 = arith.constant 1.000000e+00 : f32
    %874 = vector.broadcast %cst_212 : f32 to vector<8x32xf32>
    %875 = arith.subf %874, %869 : vector<8x32xf32>
    %876 = arith.mulf %875, %873 : vector<8x32xf32>
    %877 = arith.mulf %869, %846 : vector<8x32xf32>
    %878 = arith.addf %876, %877 : vector<8x32xf32>
    %cst_213 = arith.constant dense<0.000000e+00> : vector<8x32xf32>
    %879 = tpu.matmul %878, %552, %cst_213 {dimension_numbers = #tpu.dot_dimension_numbers<[1], [0], [0], [1], [0, 0, 1, 1], [], []>} : vector<8x32xf32>, vector<32x32xf32>, vector<8x32xf32> -> vector<8x32xf32>
    %880 = vector.broadcast %555 : vector<1x32xf32> to vector<8x32xf32>
    %881 = arith.addf %879, %880 : vector<8x32xf32>
    %cst_214 = arith.constant dense<0.000000e+00> : vector<8x32xf32>
    %882 = tpu.matmul %878, %553, %cst_214 {dimension_numbers = #tpu.dot_dimension_numbers<[1], [0], [0], [1], [0, 0, 1, 1], [], []>} : vector<8x32xf32>, vector<32x32xf32>, vector<8x32xf32> -> vector<8x32xf32>
    %883 = vector.broadcast %556 : vector<1x32xf32> to vector<8x32xf32>
    %884 = arith.addf %882, %883 : vector<8x32xf32>
    %cst_215 = arith.constant dense<0.000000e+00> : vector<8x32xf32>
    %885 = tpu.matmul %878, %554, %cst_215 {dimension_numbers = #tpu.dot_dimension_numbers<[1], [0], [0], [1], [0, 0, 1, 1], [], []>} : vector<8x32xf32>, vector<32x32xf32>, vector<8x32xf32> -> vector<8x32xf32>
    %886 = vector.broadcast %557 : vector<1x32xf32> to vector<8x32xf32>
    %887 = arith.addf %885, %886 : vector<8x32xf32>
    %888 = vector.extract_strided_slice %541 {offsets = [80, 0], sizes = [8, 32], strides = [1, 1]} : vector<128x32xf32> to vector<8x32xf32>
    %889 = arith.addf %888, %881 : vector<8x32xf32>
    %890 = arith.negf %889 : vector<8x32xf32>
    %891 = math.exp %890 : vector<8x32xf32>
    %cst_216 = arith.constant 1.000000e+00 : f32
    %892 = vector.broadcast %cst_216 : f32 to vector<8x32xf32>
    %893 = arith.addf %892, %891 : vector<8x32xf32>
    %894 = arith.divf %892, %893 : vector<8x32xf32>
    %895 = vector.extract_strided_slice %546 {offsets = [80, 0], sizes = [8, 32], strides = [1, 1]} : vector<128x32xf32> to vector<8x32xf32>
    %896 = arith.addf %895, %884 : vector<8x32xf32>
    %897 = arith.negf %896 : vector<8x32xf32>
    %898 = math.exp %897 : vector<8x32xf32>
    %cst_217 = arith.constant 1.000000e+00 : f32
    %899 = vector.broadcast %cst_217 : f32 to vector<8x32xf32>
    %900 = arith.addf %899, %898 : vector<8x32xf32>
    %901 = arith.divf %899, %900 : vector<8x32xf32>
    %902 = vector.extract_strided_slice %551 {offsets = [80, 0], sizes = [8, 32], strides = [1, 1]} : vector<128x32xf32> to vector<8x32xf32>
    %903 = arith.mulf %894, %887 : vector<8x32xf32>
    %904 = arith.addf %902, %903 : vector<8x32xf32>
    %905 = math.tanh %904 : vector<8x32xf32>
    %cst_218 = arith.constant 1.000000e+00 : f32
    %906 = vector.broadcast %cst_218 : f32 to vector<8x32xf32>
    %907 = arith.subf %906, %901 : vector<8x32xf32>
    %908 = arith.mulf %907, %905 : vector<8x32xf32>
    %909 = arith.mulf %901, %878 : vector<8x32xf32>
    %910 = arith.addf %908, %909 : vector<8x32xf32>
    %cst_219 = arith.constant dense<0.000000e+00> : vector<8x32xf32>
    %911 = tpu.matmul %910, %552, %cst_219 {dimension_numbers = #tpu.dot_dimension_numbers<[1], [0], [0], [1], [0, 0, 1, 1], [], []>} : vector<8x32xf32>, vector<32x32xf32>, vector<8x32xf32> -> vector<8x32xf32>
    %912 = vector.broadcast %555 : vector<1x32xf32> to vector<8x32xf32>
    %913 = arith.addf %911, %912 : vector<8x32xf32>
    %cst_220 = arith.constant dense<0.000000e+00> : vector<8x32xf32>
    %914 = tpu.matmul %910, %553, %cst_220 {dimension_numbers = #tpu.dot_dimension_numbers<[1], [0], [0], [1], [0, 0, 1, 1], [], []>} : vector<8x32xf32>, vector<32x32xf32>, vector<8x32xf32> -> vector<8x32xf32>
    %915 = vector.broadcast %556 : vector<1x32xf32> to vector<8x32xf32>
    %916 = arith.addf %914, %915 : vector<8x32xf32>
    %cst_221 = arith.constant dense<0.000000e+00> : vector<8x32xf32>
    %917 = tpu.matmul %910, %554, %cst_221 {dimension_numbers = #tpu.dot_dimension_numbers<[1], [0], [0], [1], [0, 0, 1, 1], [], []>} : vector<8x32xf32>, vector<32x32xf32>, vector<8x32xf32> -> vector<8x32xf32>
    %918 = vector.broadcast %557 : vector<1x32xf32> to vector<8x32xf32>
    %919 = arith.addf %917, %918 : vector<8x32xf32>
    %920 = vector.extract_strided_slice %541 {offsets = [88, 0], sizes = [8, 32], strides = [1, 1]} : vector<128x32xf32> to vector<8x32xf32>
    %921 = arith.addf %920, %913 : vector<8x32xf32>
    %922 = arith.negf %921 : vector<8x32xf32>
    %923 = math.exp %922 : vector<8x32xf32>
    %cst_222 = arith.constant 1.000000e+00 : f32
    %924 = vector.broadcast %cst_222 : f32 to vector<8x32xf32>
    %925 = arith.addf %924, %923 : vector<8x32xf32>
    %926 = arith.divf %924, %925 : vector<8x32xf32>
    %927 = vector.extract_strided_slice %546 {offsets = [88, 0], sizes = [8, 32], strides = [1, 1]} : vector<128x32xf32> to vector<8x32xf32>
    %928 = arith.addf %927, %916 : vector<8x32xf32>
    %929 = arith.negf %928 : vector<8x32xf32>
    %930 = math.exp %929 : vector<8x32xf32>
    %cst_223 = arith.constant 1.000000e+00 : f32
    %931 = vector.broadcast %cst_223 : f32 to vector<8x32xf32>
    %932 = arith.addf %931, %930 : vector<8x32xf32>
    %933 = arith.divf %931, %932 : vector<8x32xf32>
    %934 = vector.extract_strided_slice %551 {offsets = [88, 0], sizes = [8, 32], strides = [1, 1]} : vector<128x32xf32> to vector<8x32xf32>
    %935 = arith.mulf %926, %919 : vector<8x32xf32>
    %936 = arith.addf %934, %935 : vector<8x32xf32>
    %937 = math.tanh %936 : vector<8x32xf32>
    %cst_224 = arith.constant 1.000000e+00 : f32
    %938 = vector.broadcast %cst_224 : f32 to vector<8x32xf32>
    %939 = arith.subf %938, %933 : vector<8x32xf32>
    %940 = arith.mulf %939, %937 : vector<8x32xf32>
    %941 = arith.mulf %933, %910 : vector<8x32xf32>
    %942 = arith.addf %940, %941 : vector<8x32xf32>
    %cst_225 = arith.constant dense<0.000000e+00> : vector<8x32xf32>
    %943 = tpu.matmul %942, %552, %cst_225 {dimension_numbers = #tpu.dot_dimension_numbers<[1], [0], [0], [1], [0, 0, 1, 1], [], []>} : vector<8x32xf32>, vector<32x32xf32>, vector<8x32xf32> -> vector<8x32xf32>
    %944 = vector.broadcast %555 : vector<1x32xf32> to vector<8x32xf32>
    %945 = arith.addf %943, %944 : vector<8x32xf32>
    %cst_226 = arith.constant dense<0.000000e+00> : vector<8x32xf32>
    %946 = tpu.matmul %942, %553, %cst_226 {dimension_numbers = #tpu.dot_dimension_numbers<[1], [0], [0], [1], [0, 0, 1, 1], [], []>} : vector<8x32xf32>, vector<32x32xf32>, vector<8x32xf32> -> vector<8x32xf32>
    %947 = vector.broadcast %556 : vector<1x32xf32> to vector<8x32xf32>
    %948 = arith.addf %946, %947 : vector<8x32xf32>
    %cst_227 = arith.constant dense<0.000000e+00> : vector<8x32xf32>
    %949 = tpu.matmul %942, %554, %cst_227 {dimension_numbers = #tpu.dot_dimension_numbers<[1], [0], [0], [1], [0, 0, 1, 1], [], []>} : vector<8x32xf32>, vector<32x32xf32>, vector<8x32xf32> -> vector<8x32xf32>
    %950 = vector.broadcast %557 : vector<1x32xf32> to vector<8x32xf32>
    %951 = arith.addf %949, %950 : vector<8x32xf32>
    %952 = vector.extract_strided_slice %541 {offsets = [96, 0], sizes = [8, 32], strides = [1, 1]} : vector<128x32xf32> to vector<8x32xf32>
    %953 = arith.addf %952, %945 : vector<8x32xf32>
    %954 = arith.negf %953 : vector<8x32xf32>
    %955 = math.exp %954 : vector<8x32xf32>
    %cst_228 = arith.constant 1.000000e+00 : f32
    %956 = vector.broadcast %cst_228 : f32 to vector<8x32xf32>
    %957 = arith.addf %956, %955 : vector<8x32xf32>
    %958 = arith.divf %956, %957 : vector<8x32xf32>
    %959 = vector.extract_strided_slice %546 {offsets = [96, 0], sizes = [8, 32], strides = [1, 1]} : vector<128x32xf32> to vector<8x32xf32>
    %960 = arith.addf %959, %948 : vector<8x32xf32>
    %961 = arith.negf %960 : vector<8x32xf32>
    %962 = math.exp %961 : vector<8x32xf32>
    %cst_229 = arith.constant 1.000000e+00 : f32
    %963 = vector.broadcast %cst_229 : f32 to vector<8x32xf32>
    %964 = arith.addf %963, %962 : vector<8x32xf32>
    %965 = arith.divf %963, %964 : vector<8x32xf32>
    %966 = vector.extract_strided_slice %551 {offsets = [96, 0], sizes = [8, 32], strides = [1, 1]} : vector<128x32xf32> to vector<8x32xf32>
    %967 = arith.mulf %958, %951 : vector<8x32xf32>
    %968 = arith.addf %966, %967 : vector<8x32xf32>
    %969 = math.tanh %968 : vector<8x32xf32>
    %cst_230 = arith.constant 1.000000e+00 : f32
    %970 = vector.broadcast %cst_230 : f32 to vector<8x32xf32>
    %971 = arith.subf %970, %965 : vector<8x32xf32>
    %972 = arith.mulf %971, %969 : vector<8x32xf32>
    %973 = arith.mulf %965, %942 : vector<8x32xf32>
    %974 = arith.addf %972, %973 : vector<8x32xf32>
    %cst_231 = arith.constant dense<0.000000e+00> : vector<8x32xf32>
    %975 = tpu.matmul %974, %552, %cst_231 {dimension_numbers = #tpu.dot_dimension_numbers<[1], [0], [0], [1], [0, 0, 1, 1], [], []>} : vector<8x32xf32>, vector<32x32xf32>, vector<8x32xf32> -> vector<8x32xf32>
    %976 = vector.broadcast %555 : vector<1x32xf32> to vector<8x32xf32>
    %977 = arith.addf %975, %976 : vector<8x32xf32>
    %cst_232 = arith.constant dense<0.000000e+00> : vector<8x32xf32>
    %978 = tpu.matmul %974, %553, %cst_232 {dimension_numbers = #tpu.dot_dimension_numbers<[1], [0], [0], [1], [0, 0, 1, 1], [], []>} : vector<8x32xf32>, vector<32x32xf32>, vector<8x32xf32> -> vector<8x32xf32>
    %979 = vector.broadcast %556 : vector<1x32xf32> to vector<8x32xf32>
    %980 = arith.addf %978, %979 : vector<8x32xf32>
    %cst_233 = arith.constant dense<0.000000e+00> : vector<8x32xf32>
    %981 = tpu.matmul %974, %554, %cst_233 {dimension_numbers = #tpu.dot_dimension_numbers<[1], [0], [0], [1], [0, 0, 1, 1], [], []>} : vector<8x32xf32>, vector<32x32xf32>, vector<8x32xf32> -> vector<8x32xf32>
    %982 = vector.broadcast %557 : vector<1x32xf32> to vector<8x32xf32>
    %983 = arith.addf %981, %982 : vector<8x32xf32>
    %984 = vector.extract_strided_slice %541 {offsets = [104, 0], sizes = [8, 32], strides = [1, 1]} : vector<128x32xf32> to vector<8x32xf32>
    %985 = arith.addf %984, %977 : vector<8x32xf32>
    %986 = arith.negf %985 : vector<8x32xf32>
    %987 = math.exp %986 : vector<8x32xf32>
    %cst_234 = arith.constant 1.000000e+00 : f32
    %988 = vector.broadcast %cst_234 : f32 to vector<8x32xf32>
    %989 = arith.addf %988, %987 : vector<8x32xf32>
    %990 = arith.divf %988, %989 : vector<8x32xf32>
    %991 = vector.extract_strided_slice %546 {offsets = [104, 0], sizes = [8, 32], strides = [1, 1]} : vector<128x32xf32> to vector<8x32xf32>
    %992 = arith.addf %991, %980 : vector<8x32xf32>
    %993 = arith.negf %992 : vector<8x32xf32>
    %994 = math.exp %993 : vector<8x32xf32>
    %cst_235 = arith.constant 1.000000e+00 : f32
    %995 = vector.broadcast %cst_235 : f32 to vector<8x32xf32>
    %996 = arith.addf %995, %994 : vector<8x32xf32>
    %997 = arith.divf %995, %996 : vector<8x32xf32>
    %998 = vector.extract_strided_slice %551 {offsets = [104, 0], sizes = [8, 32], strides = [1, 1]} : vector<128x32xf32> to vector<8x32xf32>
    %999 = arith.mulf %990, %983 : vector<8x32xf32>
    %1000 = arith.addf %998, %999 : vector<8x32xf32>
    %1001 = math.tanh %1000 : vector<8x32xf32>
    %cst_236 = arith.constant 1.000000e+00 : f32
    %1002 = vector.broadcast %cst_236 : f32 to vector<8x32xf32>
    %1003 = arith.subf %1002, %997 : vector<8x32xf32>
    %1004 = arith.mulf %1003, %1001 : vector<8x32xf32>
    %1005 = arith.mulf %997, %974 : vector<8x32xf32>
    %1006 = arith.addf %1004, %1005 : vector<8x32xf32>
    %cst_237 = arith.constant dense<0.000000e+00> : vector<8x32xf32>
    %1007 = tpu.matmul %1006, %552, %cst_237 {dimension_numbers = #tpu.dot_dimension_numbers<[1], [0], [0], [1], [0, 0, 1, 1], [], []>} : vector<8x32xf32>, vector<32x32xf32>, vector<8x32xf32> -> vector<8x32xf32>
    %1008 = vector.broadcast %555 : vector<1x32xf32> to vector<8x32xf32>
    %1009 = arith.addf %1007, %1008 : vector<8x32xf32>
    %cst_238 = arith.constant dense<0.000000e+00> : vector<8x32xf32>
    %1010 = tpu.matmul %1006, %553, %cst_238 {dimension_numbers = #tpu.dot_dimension_numbers<[1], [0], [0], [1], [0, 0, 1, 1], [], []>} : vector<8x32xf32>, vector<32x32xf32>, vector<8x32xf32> -> vector<8x32xf32>
    %1011 = vector.broadcast %556 : vector<1x32xf32> to vector<8x32xf32>
    %1012 = arith.addf %1010, %1011 : vector<8x32xf32>
    %cst_239 = arith.constant dense<0.000000e+00> : vector<8x32xf32>
    %1013 = tpu.matmul %1006, %554, %cst_239 {dimension_numbers = #tpu.dot_dimension_numbers<[1], [0], [0], [1], [0, 0, 1, 1], [], []>} : vector<8x32xf32>, vector<32x32xf32>, vector<8x32xf32> -> vector<8x32xf32>
    %1014 = vector.broadcast %557 : vector<1x32xf32> to vector<8x32xf32>
    %1015 = arith.addf %1013, %1014 : vector<8x32xf32>
    %1016 = vector.extract_strided_slice %541 {offsets = [112, 0], sizes = [8, 32], strides = [1, 1]} : vector<128x32xf32> to vector<8x32xf32>
    %1017 = arith.addf %1016, %1009 : vector<8x32xf32>
    %1018 = arith.negf %1017 : vector<8x32xf32>
    %1019 = math.exp %1018 : vector<8x32xf32>
    %cst_240 = arith.constant 1.000000e+00 : f32
    %1020 = vector.broadcast %cst_240 : f32 to vector<8x32xf32>
    %1021 = arith.addf %1020, %1019 : vector<8x32xf32>
    %1022 = arith.divf %1020, %1021 : vector<8x32xf32>
    %1023 = vector.extract_strided_slice %546 {offsets = [112, 0], sizes = [8, 32], strides = [1, 1]} : vector<128x32xf32> to vector<8x32xf32>
    %1024 = arith.addf %1023, %1012 : vector<8x32xf32>
    %1025 = arith.negf %1024 : vector<8x32xf32>
    %1026 = math.exp %1025 : vector<8x32xf32>
    %cst_241 = arith.constant 1.000000e+00 : f32
    %1027 = vector.broadcast %cst_241 : f32 to vector<8x32xf32>
    %1028 = arith.addf %1027, %1026 : vector<8x32xf32>
    %1029 = arith.divf %1027, %1028 : vector<8x32xf32>
    %1030 = vector.extract_strided_slice %551 {offsets = [112, 0], sizes = [8, 32], strides = [1, 1]} : vector<128x32xf32> to vector<8x32xf32>
    %1031 = arith.mulf %1022, %1015 : vector<8x32xf32>
    %1032 = arith.addf %1030, %1031 : vector<8x32xf32>
    %1033 = math.tanh %1032 : vector<8x32xf32>
    %cst_242 = arith.constant 1.000000e+00 : f32
    %1034 = vector.broadcast %cst_242 : f32 to vector<8x32xf32>
    %1035 = arith.subf %1034, %1029 : vector<8x32xf32>
    %1036 = arith.mulf %1035, %1033 : vector<8x32xf32>
    %1037 = arith.mulf %1029, %1006 : vector<8x32xf32>
    %1038 = arith.addf %1036, %1037 : vector<8x32xf32>
    %cst_243 = arith.constant dense<0.000000e+00> : vector<8x32xf32>
    %1039 = tpu.matmul %1038, %552, %cst_243 {dimension_numbers = #tpu.dot_dimension_numbers<[1], [0], [0], [1], [0, 0, 1, 1], [], []>} : vector<8x32xf32>, vector<32x32xf32>, vector<8x32xf32> -> vector<8x32xf32>
    %1040 = vector.broadcast %555 : vector<1x32xf32> to vector<8x32xf32>
    %1041 = arith.addf %1039, %1040 : vector<8x32xf32>
    %cst_244 = arith.constant dense<0.000000e+00> : vector<8x32xf32>
    %1042 = tpu.matmul %1038, %553, %cst_244 {dimension_numbers = #tpu.dot_dimension_numbers<[1], [0], [0], [1], [0, 0, 1, 1], [], []>} : vector<8x32xf32>, vector<32x32xf32>, vector<8x32xf32> -> vector<8x32xf32>
    %1043 = vector.broadcast %556 : vector<1x32xf32> to vector<8x32xf32>
    %1044 = arith.addf %1042, %1043 : vector<8x32xf32>
    %cst_245 = arith.constant dense<0.000000e+00> : vector<8x32xf32>
    %1045 = tpu.matmul %1038, %554, %cst_245 {dimension_numbers = #tpu.dot_dimension_numbers<[1], [0], [0], [1], [0, 0, 1, 1], [], []>} : vector<8x32xf32>, vector<32x32xf32>, vector<8x32xf32> -> vector<8x32xf32>
    %1046 = vector.broadcast %557 : vector<1x32xf32> to vector<8x32xf32>
    %1047 = arith.addf %1045, %1046 : vector<8x32xf32>
    %1048 = vector.extract_strided_slice %541 {offsets = [120, 0], sizes = [8, 32], strides = [1, 1]} : vector<128x32xf32> to vector<8x32xf32>
    %1049 = arith.addf %1048, %1041 : vector<8x32xf32>
    %1050 = arith.negf %1049 : vector<8x32xf32>
    %1051 = math.exp %1050 : vector<8x32xf32>
    %cst_246 = arith.constant 1.000000e+00 : f32
    %1052 = vector.broadcast %cst_246 : f32 to vector<8x32xf32>
    %1053 = arith.addf %1052, %1051 : vector<8x32xf32>
    %1054 = arith.divf %1052, %1053 : vector<8x32xf32>
    %1055 = vector.extract_strided_slice %546 {offsets = [120, 0], sizes = [8, 32], strides = [1, 1]} : vector<128x32xf32> to vector<8x32xf32>
    %1056 = arith.addf %1055, %1044 : vector<8x32xf32>
    %1057 = arith.negf %1056 : vector<8x32xf32>
    %1058 = math.exp %1057 : vector<8x32xf32>
    %cst_247 = arith.constant 1.000000e+00 : f32
    %1059 = vector.broadcast %cst_247 : f32 to vector<8x32xf32>
    %1060 = arith.addf %1059, %1058 : vector<8x32xf32>
    %1061 = arith.divf %1059, %1060 : vector<8x32xf32>
    %1062 = vector.extract_strided_slice %551 {offsets = [120, 0], sizes = [8, 32], strides = [1, 1]} : vector<128x32xf32> to vector<8x32xf32>
    %1063 = arith.mulf %1054, %1047 : vector<8x32xf32>
    %1064 = arith.addf %1062, %1063 : vector<8x32xf32>
    %1065 = math.tanh %1064 : vector<8x32xf32>
    %cst_248 = arith.constant 1.000000e+00 : f32
    %1066 = vector.broadcast %cst_248 : f32 to vector<8x32xf32>
    %1067 = arith.subf %1066, %1061 : vector<8x32xf32>
    %1068 = arith.mulf %1067, %1065 : vector<8x32xf32>
    %1069 = arith.mulf %1061, %1038 : vector<8x32xf32>
    %1070 = arith.addf %1068, %1069 : vector<8x32xf32>
    %c0_249 = arith.constant 0 : index
    %c0_250 = arith.constant 0 : index
    %1071 = vector.load %arg26[%c0_249, %c0_250] : memref<32x1xf32, #tpu.memory_space<vmem>>, vector<32x1xf32>
    %cst_251 = arith.constant dense<0.000000e+00> : vector<8x1xf32>
    %1072 = tpu.matmul %1070, %1071, %cst_251 {dimension_numbers = #tpu.dot_dimension_numbers<[1], [0], [0], [1], [0, 0, 1, 1], [], []>} : vector<8x32xf32>, vector<32x1xf32>, vector<8x1xf32> -> vector<8x1xf32>
    %c0_252 = arith.constant 0 : index
    %c0_253 = arith.constant 0 : index
    %1073 = vector.load %arg27[%c0_252, %c0_253] : memref<1x1xf32, #tpu.memory_space<vmem>>, vector<1x1xf32>
    %1074 = vector.broadcast %1073 : vector<1x1xf32> to vector<8x1xf32>
    %1075 = arith.addf %1072, %1074 : vector<8x1xf32>
    %c0_254 = arith.constant 0 : index
    %c0_255 = arith.constant 0 : index
    %1076 = vector.load %arg28[%c0_254, %c0_255] : memref<8x1xf32, #tpu.memory_space<vmem>>, vector<8x1xf32>
    tpu.vector_store %arg28[%c0_254, %c0_255], %1075 {strides = array<i32>} : memref<8x1xf32, #tpu.memory_space<vmem>>, vector<8x1xf32>,
    return
  }
  func.func @transform_0(%arg0: i32) -> (i32, i32, i32) {
    %c0_i32 = arith.constant 0 : i32
    %c0_i32_0 = arith.constant 0 : i32
    %c0_i32_1 = arith.constant 0 : i32
    return %arg0, %c0_i32, %c0_i32_0 : i32, i32, i32
  }
  func.func @transform_1(%arg0: i32) -> (i32, i32) {
    %c0_i32 = arith.constant 0 : i32
    %c0_i32_0 = arith.constant 0 : i32
    %c0_i32_1 = arith.constant 0 : i32
    return %c0_i32, %c0_i32_0 : i32, i32
  }
  func.func @transform_2(%arg0: i32) -> (i32, i32) {
    %c0_i32 = arith.constant 0 : i32
    %c0_i32_0 = arith.constant 0 : i32
    %c0_i32_1 = arith.constant 0 : i32
    return %c0_i32, %c0_i32_0 : i32, i32
  }
  func.func @transform_3(%arg0: i32) -> (i32, i32) {
    %c0_i32 = arith.constant 0 : i32
    %c0_i32_0 = arith.constant 0 : i32
    %c0_i32_1 = arith.constant 0 : i32
    return %c0_i32, %c0_i32_0 : i32, i32
  }
  func.func @transform_4(%arg0: i32) -> (i32, i32) {
    %c0_i32 = arith.constant 0 : i32
    %c0_i32_0 = arith.constant 0 : i32
    %c0_i32_1 = arith.constant 0 : i32
    return %c0_i32, %c0_i32_0 : i32, i32
  }
  func.func @transform_5(%arg0: i32) -> (i32, i32) {
    %c0_i32 = arith.constant 0 : i32
    %c0_i32_0 = arith.constant 0 : i32
    %c0_i32_1 = arith.constant 0 : i32
    return %c0_i32, %c0_i32_0 : i32, i32
  }
  func.func @transform_6(%arg0: i32) -> (i32, i32) {
    %c0_i32 = arith.constant 0 : i32
    %c0_i32_0 = arith.constant 0 : i32
    %c0_i32_1 = arith.constant 0 : i32
    return %c0_i32, %c0_i32_0 : i32, i32
  }
  func.func @transform_7(%arg0: i32) -> (i32, i32) {
    %c0_i32 = arith.constant 0 : i32
    %c0_i32_0 = arith.constant 0 : i32
    %c0_i32_1 = arith.constant 0 : i32
    return %c0_i32, %c0_i32_0 : i32, i32
  }
  func.func @transform_8(%arg0: i32) -> (i32, i32) {
    %c0_i32 = arith.constant 0 : i32
    %c0_i32_0 = arith.constant 0 : i32
    %c0_i32_1 = arith.constant 0 : i32
    return %c0_i32, %c0_i32_0 : i32, i32
  }
  func.func @transform_9(%arg0: i32) -> (i32, i32) {
    %c0_i32 = arith.constant 0 : i32
    %c0_i32_0 = arith.constant 0 : i32
    %c0_i32_1 = arith.constant 0 : i32
    return %c0_i32, %c0_i32_0 : i32, i32
  }
  func.func @transform_10(%arg0: i32) -> (i32, i32) {
    %c0_i32 = arith.constant 0 : i32
    %c0_i32_0 = arith.constant 0 : i32
    %c0_i32_1 = arith.constant 0 : i32
    return %c0_i32, %c0_i32_0 : i32, i32
  }
  func.func @transform_11(%arg0: i32) -> (i32, i32) {
    %c0_i32 = arith.constant 0 : i32
    %c0_i32_0 = arith.constant 0 : i32
    %c0_i32_1 = arith.constant 0 : i32
    return %c0_i32, %c0_i32_0 : i32, i32
  }
  func.func @transform_12(%arg0: i32) -> (i32, i32) {
    %c0_i32 = arith.constant 0 : i32
    %c0_i32_0 = arith.constant 0 : i32
    %c0_i32_1 = arith.constant 0 : i32
    return %c0_i32, %c0_i32_0 : i32, i32
  }
  func.func @transform_13(%arg0: i32) -> (i32, i32) {
    %c0_i32 = arith.constant 0 : i32
    %c0_i32_0 = arith.constant 0 : i32
    %c0_i32_1 = arith.constant 0 : i32
    return %c0_i32, %c0_i32_0 : i32, i32
  }
  func.func @transform_14(%arg0: i32) -> (i32, i32) {
    %c0_i32 = arith.constant 0 : i32
    %c0_i32_0 = arith.constant 0 : i32
    %c0_i32_1 = arith.constant 0 : i32
    return %c0_i32, %c0_i32_0 : i32, i32
  }
  func.func @transform_15(%arg0: i32) -> (i32, i32) {
    %c0_i32 = arith.constant 0 : i32
    %c0_i32_0 = arith.constant 0 : i32
    %c0_i32_1 = arith.constant 0 : i32
    return %c0_i32, %c0_i32_0 : i32, i32
  }
  func.func @transform_16(%arg0: i32) -> (i32, i32) {
    %c0_i32 = arith.constant 0 : i32
    %c0_i32_0 = arith.constant 0 : i32
    %c0_i32_1 = arith.constant 0 : i32
    return %c0_i32, %c0_i32_0 : i32, i32
  }
  func.func @transform_17(%arg0: i32) -> (i32, i32) {
    %c0_i32 = arith.constant 0 : i32
    %c0_i32_0 = arith.constant 0 : i32
    %c0_i32_1 = arith.constant 0 : i32
    return %c0_i32, %c0_i32_0 : i32, i32
  }
  func.func @transform_18(%arg0: i32) -> (i32, i32) {
    %c0_i32 = arith.constant 0 : i32
    %c0_i32_0 = arith.constant 0 : i32
    %c0_i32_1 = arith.constant 0 : i32
    return %c0_i32, %c0_i32_0 : i32, i32
  }
  func.func @transform_19(%arg0: i32) -> (i32, i32) {
    %c0_i32 = arith.constant 0 : i32
    %c0_i32_0 = arith.constant 0 : i32
    %c0_i32_1 = arith.constant 0 : i32
    return %c0_i32, %c0_i32_0 : i32, i32
  }
  func.func @transform_20(%arg0: i32) -> (i32, i32) {
    %c0_i32 = arith.constant 0 : i32
    %c0_i32_0 = arith.constant 0 : i32
    %c0_i32_1 = arith.constant 0 : i32
    return %c0_i32, %c0_i32_0 : i32, i32
  }
  func.func @transform_21(%arg0: i32) -> (i32, i32) {
    %c0_i32 = arith.constant 0 : i32
    %c0_i32_0 = arith.constant 0 : i32
    %c0_i32_1 = arith.constant 0 : i32
    return %c0_i32, %c0_i32_0 : i32, i32
  }
  func.func @transform_22(%arg0: i32) -> (i32, i32) {
    %c0_i32 = arith.constant 0 : i32
    %c0_i32_0 = arith.constant 0 : i32
    %c0_i32_1 = arith.constant 0 : i32
    return %c0_i32, %c0_i32_0 : i32, i32
  }
  func.func @transform_23(%arg0: i32) -> (i32, i32) {
    %c0_i32 = arith.constant 0 : i32
    %c0_i32_0 = arith.constant 0 : i32
    %c0_i32_1 = arith.constant 0 : i32
    return %c0_i32, %c0_i32_0 : i32, i32
  }
  func.func @transform_24(%arg0: i32) -> (i32, i32) {
    %c0_i32 = arith.constant 0 : i32
    %c0_i32_0 = arith.constant 0 : i32
    %c0_i32_1 = arith.constant 0 : i32
    return %c0_i32, %c0_i32_0 : i32, i32
  }
  func.func @transform_25(%arg0: i32) -> (i32, i32) {
    %c0_i32 = arith.constant 0 : i32
    %c0_i32_0 = arith.constant 0 : i32
    %c0_i32_1 = arith.constant 0 : i32
    return %c0_i32, %c0_i32_0 : i32, i32
  }
  func.func @transform_26(%arg0: i32) -> (i32, i32) {
    %c0_i32 = arith.constant 0 : i32
    %c0_i32_0 = arith.constant 0 : i32
    %c0_i32_1 = arith.constant 0 : i32
    return %c0_i32, %c0_i32_0 : i32, i32
  }
  func.func @transform_27(%arg0: i32) -> (i32, i32) {
    %c0_i32 = arith.constant 0 : i32
    %c0_i32_0 = arith.constant 0 : i32
    return %arg0, %c0_i32 : i32, i32
  }
}

</mosaic_0001>

<llo_original>
// kernel: tpu_custom_call.1
$region0: #{tpu_custom_call.1}
  #allocation0 [shape = 'u32[]', space=smem, size = 0x4, offset = 0x4, fixed_abs, tag = 'smem constant byte address 0x4 - core index']
  #allocation1 [shape = 'u32[144,128]{1,0:T(1,128)}', space=vmem, size = 0x12000, scoped, tag = 'internal scratch']
  #allocation2 [shape = 'f32[1,1]{1,0:T(1,128)S(1)}', space=vmem, size = 0x200, scoped, tag = 'scoped memory for tpu_custom_call.1']
  %s0 = inlined_call_operand.vmem [shape: f32[1,128,8], index: 0, kind: input, shape index: {}]
  %s1 = inlined_call_operand.hbm [shape: f32[8,32], index: 1, kind: input, shape index: {}]
  %s2 = inlined_call_operand.hbm [shape: f32[8,32], index: 2, kind: input, shape index: {}]
  %s3 = inlined_call_operand.hbm [shape: f32[8,32], index: 3, kind: input, shape index: {}]
  %s4 = inlined_call_operand.vmem [shape: f32[1,32], index: 4, kind: input, shape index: {}]
  %s5 = inlined_call_operand.hbm [shape: f32[1,32], index: 5, kind: input, shape index: {}]
  %s6 = inlined_call_operand.hbm [shape: f32[1,32], index: 6, kind: input, shape index: {}]
  %s7 = inlined_call_operand.vmem [shape: f32[32,32], index: 7, kind: input, shape index: {}]
  %s8 = inlined_call_operand.vmem [shape: f32[32,32], index: 8, kind: input, shape index: {}]
  %s9 = inlined_call_operand.vmem [shape: f32[32,32], index: 9, kind: input, shape index: {}]
  %s10 = inlined_call_operand.hbm [shape: f32[1,32], index: 10, kind: input, shape index: {}]
  %s11 = inlined_call_operand.hbm [shape: f32[1,32], index: 11, kind: input, shape index: {}]
  %s12 = inlined_call_operand.hbm [shape: f32[1,32], index: 12, kind: input, shape index: {}]
  %s13 = inlined_call_operand.vmem [shape: f32[32,32], index: 13, kind: input, shape index: {}]
  %s14 = inlined_call_operand.vmem [shape: f32[32,32], index: 14, kind: input, shape index: {}]
  %s15 = inlined_call_operand.vmem [shape: f32[32,32], index: 15, kind: input, shape index: {}]
  %s16 = inlined_call_operand.vmem [shape: f32[1,32], index: 16, kind: input, shape index: {}]
  %s17 = inlined_call_operand.vmem [shape: f32[1,32], index: 17, kind: input, shape index: {}]
  %s18 = inlined_call_operand.vmem [shape: f32[1,32], index: 18, kind: input, shape index: {}]
  %s19 = inlined_call_operand.vmem [shape: f32[32,32], index: 19, kind: input, shape index: {}]
  %s20 = inlined_call_operand.hbm [shape: f32[32,32], index: 20, kind: input, shape index: {}]
  %s21 = inlined_call_operand.hbm [shape: f32[32,32], index: 21, kind: input, shape index: {}]
  %s22 = inlined_call_operand.vmem [shape: f32[1,32], index: 22, kind: input, shape index: {}]
  %s23 = inlined_call_operand.vmem [shape: f32[1,32], index: 23, kind: input, shape index: {}]
  %s24 = inlined_call_operand.vmem [shape: f32[1,32], index: 24, kind: input, shape index: {}]
  %s25 = inlined_call_operand.vmem [shape: f32[32,1], index: 25, kind: input, shape index: {}]
  %s26 = inlined_call_operand.<no memory space> [shape: f32[1,1], index: 26, kind: input, shape index: {}]
  %s27 = inlined_call_operand.vmem [shape: f32[8,1], index: 27, kind: output, shape index: {}]
  %s28 = sld [smem:[#allocation0]]
  $region158: #{tpu_custom_call.1} parent=0
    _
  %s30 = ssub.s32 1, %s28
  %s31 = scalar_select 0, %s30, %s28
  %v32 = vstv %s26
  %33 = vst [vmem:[#allocation2] sm:$0x1] %v32
  $region1: #{tpu_custom_call.1} parent=0
    #allocation3 [shape = 'u8[4096]{0}', space=vmem, size = 0x1000, scoped, tag = 'input window, operand 1, single buffered']
    #allocation4 [shape = 's32[1]{0}', space=sflag, size = 0x4, scoped, tag = 'scoped memory for tpu_custom_call.1']
    #allocation5 [shape = 'u8[4096]{0}', space=vmem, size = 0x1000, scoped, tag = 'input window, operand 2, single buffered']
    #allocation6 [shape = 's32[1]{0}', space=sflag, size = 0x4, scoped, tag = 'scoped memory for tpu_custom_call.1']
    #allocation7 [shape = 'u8[4096]{0}', space=vmem, size = 0x1000, scoped, tag = 'input window, operand 3, single buffered']
    #allocation8 [shape = 'u8[512]{0}', space=vmem, size = 0x400, scoped, tag = 'input window, operand 5, single buffered']
    #allocation9 [shape = 's32[1]{0}', space=sflag, size = 0x4, scoped, tag = 'scoped memory for tpu_custom_call.1']
    #allocation10 [shape = 'u8[512]{0}', space=vmem, size = 0x400, scoped, tag = 'input window, operand 6, single buffered']
    #allocation11 [shape = 'u8[512]{0}', space=vmem, size = 0x400, scoped, tag = 'input window, operand 10, single buffered']
    #allocation12 [shape = 's32[1]{0}', space=sflag, size = 0x4, scoped, tag = 'scoped memory for tpu_custom_call.1']
    #allocation13 [shape = 'u8[512]{0}', space=vmem, size = 0x400, scoped, tag = 'input window, operand 11, single buffered']
    #allocation14 [shape = 'u8[512]{0}', space=vmem, size = 0x400, scoped, tag = 'input window, operand 12, single buffered']
    #allocation15 [shape = 's32[1]{0}', space=sflag, size = 0x4, scoped, tag = 'scoped memory for tpu_custom_call.1']
    #allocation16 [shape = 'u8[16384]{0}', space=vmem, size = 0x4000, scoped, tag = 'input window, operand 20, single buffered']
    #allocation17 [shape = 'u8[16384]{0}', space=vmem, size = 0x4000, scoped, tag = 'input window, operand 21, single buffered']
    #allocation18 [shape = 's32[1]{0}', space=sflag, size = 0x4, scoped, tag = 'scoped memory for tpu_custom_call.1']
    %34 = vsyncpa [#allocation4], 0
    %35 = vsyncpa [#allocation6], 0
    %36 = vsyncpa [#allocation9], 0
    %37 = vsyncpa [#allocation12], 0
    %38 = vsyncpa [#allocation15], 0
    %39 = vsyncpa [#allocation18], 0
    // Predicated region
    $region2: #{tpu_custom_call.1} parent=1 // pred_check
      _
    $region3: #{tpu_custom_call.1} parent=1 // pred_check_branch
      %41 = sbr.rel (0) target = $region5
    $region4: #{tpu_custom_call.1} parent=1 // pred_region
      _
    $region5: #{tpu_custom_call.1} parent=1 // pred_fallthru
      _
    // Predicated region
    $region6: #{tpu_custom_call.1} parent=1 // pred_check
      _
    $region7: #{tpu_custom_call.1} parent=1 // pred_check_branch
      %43 = sbr.rel (0) target = $region9
    $region8: #{tpu_custom_call.1} parent=1 // pred_region
      %s45 = ssub.s32 128, 128
      %46 = vsyncadd [#allocation4], %s45
      %s48 = sshll.u32 [#allocation3], 4
      %s49 = int_to_ptr.vmem [resolvable:$true] %s48
      %51 = dma.hbm_to_vmem [thread:$0]  %s1, 128, %s49, [#allocation4]
    $region9: #{tpu_custom_call.1} parent=1 // pred_fallthru
      _
    // Predicated region
    $region10: #{tpu_custom_call.1} parent=1 // pred_check
      _
    $region11: #{tpu_custom_call.1} parent=1 // pred_check_branch
      %53 = sbr.rel (0) target = $region13
    $region12: #{tpu_custom_call.1} parent=1 // pred_region
      %s55 = ssub.s32 128, 128
      %56 = vsyncadd [#allocation6], %s55
      %s58 = sshll.u32 [#allocation5], 4
      %s59 = int_to_ptr.vmem [resolvable:$true] %s58
      %61 = dma.hbm_to_vmem [thread:$0]  %s2, 128, %s59, [#allocation6]
    $region13: #{tpu_custom_call.1} parent=1 // pred_fallthru
      _
    // Predicated region
    $region14: #{tpu_custom_call.1} parent=1 // pred_check
      _
    $region15: #{tpu_custom_call.1} parent=1 // pred_check_branch
      %63 = sbr.rel (0) target = $region17
    $region16: #{tpu_custom_call.1} parent=1 // pred_region
      %s65 = ssub.s32 128, 128
      %66 = vsyncadd [#allocation6], %s65
      %s68 = sshll.u32 [#allocation7], 4
      %s69 = int_to_ptr.vmem [resolvable:$true] %s68
      %71 = dma.hbm_to_vmem [thread:$0]  %s3, 128, %s69, [#allocation6]
    $region17: #{tpu_custom_call.1} parent=1 // pred_fallthru
      _
    // Predicated region
    $region18: #{tpu_custom_call.1} parent=1 // pred_check
      _
    $region19: #{tpu_custom_call.1} parent=1 // pred_check_branch
      %73 = sbr.rel (0) target = $region21
    $region20: #{tpu_custom_call.1} parent=1 // pred_region
      _
    $region21: #{tpu_custom_call.1} parent=1 // pred_fallthru
      _
    // Predicated region
    $region22: #{tpu_custom_call.1} parent=1 // pred_check
      _
    $region23: #{tpu_custom_call.1} parent=1 // pred_check_branch
      %75 = sbr.rel (0) target = $region25
    $region24: #{tpu_custom_call.1} parent=1 // pred_region
      %s77 = ssub.s32 16, 16
      %78 = vsyncadd [#allocation9], %s77
      %s80 = sshll.u32 [#allocation8], 4
      %s81 = int_to_ptr.vmem [resolvable:$true] %s80
      %83 = dma.hbm_to_vmem [thread:$0]  %s5, 16, %s81, [#allocation9]
    $region25: #{tpu_custom_call.1} parent=1 // pred_fallthru
      _
    // Predicated region
    $region26: #{tpu_custom_call.1} parent=1 // pred_check
      _
    $region27: #{tpu_custom_call.1} parent=1 // pred_check_branch
      %85 = sbr.rel (0) target = $region29
    $region28: #{tpu_custom_call.1} parent=1 // pred_region
      %s87 = ssub.s32 16, 16
      %88 = vsyncadd [#allocation9], %s87
      %s90 = sshll.u32 [#allocation10], 4
      %s91 = int_to_ptr.vmem [resolvable:$true] %s90
      %93 = dma.hbm_to_vmem [thread:$0]  %s6, 16, %s91, [#allocation9]
    $region29: #{tpu_custom_call.1} parent=1 // pred_fallthru
      _
    // Predicated region
    $region30: #{tpu_custom_call.1} parent=1 // pred_check
      _
    $region31: #{tpu_custom_call.1} parent=1 // pred_check_branch
      %95 = sbr.rel (0) target = $region33
    $region32: #{tpu_custom_call.1} parent=1 // pred_region
      _
    $region33: #{tpu_custom_call.1} parent=1 // pred_fallthru
      _
    // Predicated region
    $region34: #{tpu_custom_call.1} parent=1 // pred_check
      _
    $region35: #{tpu_custom_call.1} parent=1 // pred_check_branch
      %97 = sbr.rel (0) target = $region37
    $region36: #{tpu_custom_call.1} parent=1 // pred_region
      _
    $region37: #{tpu_custom_call.1} parent=1 // pred_fallthru
      _
    // Predicated region
    $region38: #{tpu_custom_call.1} parent=1 // pred_check
      _
    $region39: #{tpu_custom_call.1} parent=1 // pred_check_branch
      %99 = sbr.rel (0) target = $region41
    $region40: #{tpu_custom_call.1} parent=1 // pred_region
      _
    $region41: #{tpu_custom_call.1} parent=1 // pred_fallthru
      _
    // Predicated region
    $region42: #{tpu_custom_call.1} parent=1 // pred_check
      _
    $region43: #{tpu_custom_call.1} parent=1 // pred_check_branch
      %101 = sbr.rel (0) target = $region45
    $region44: #{tpu_custom_call.1} parent=1 // pred_region
      %s103 = ssub.s32 16, 16
      %104 = vsyncadd [#allocation12], %s103
      %s106 = sshll.u32 [#allocation11], 4
      %s107 = int_to_ptr.vmem [resolvable:$true] %s106
      %109 = dma.hbm_to_vmem [thread:$0]  %s10, 16, %s107, [#allocation12]
    $region45: #{tpu_custom_call.1} parent=1 // pred_fallthru
      _
    // Predicated region
    $region46: #{tpu_custom_call.1} parent=1 // pred_check
      _
    $region47: #{tpu_custom_call.1} parent=1 // pred_check_branch
      %111 = sbr.rel (0) target = $region49
    $region48: #{tpu_custom_call.1} parent=1 // pred_region
      %s113 = ssub.s32 16, 16
      %114 = vsyncadd [#allocation12], %s113
      %s116 = sshll.u32 [#allocation13], 4
      %s117 = int_to_ptr.vmem [resolvable:$true] %s116
      %119 = dma.hbm_to_vmem [thread:$0]  %s11, 16, %s117, [#allocation12]
    $region49: #{tpu_custom_call.1} parent=1 // pred_fallthru
      _
    // Predicated region
    $region50: #{tpu_custom_call.1} parent=1 // pred_check
      _
    $region51: #{tpu_custom_call.1} parent=1 // pred_check_branch
      %121 = sbr.rel (0) target = $region53
    $region52: #{tpu_custom_call.1} parent=1 // pred_region
      %s123 = ssub.s32 16, 16
      %124 = vsyncadd [#allocation15], %s123
      %s126 = sshll.u32 [#allocation14], 4
      %s127 = int_to_ptr.vmem [resolvable:$true] %s126
      %129 = dma.hbm_to_vmem [thread:$0]  %s12, 16, %s127, [#allocation15]
    $region53: #{tpu_custom_call.1} parent=1 // pred_fallthru
      _
    // Predicated region
    $region54: #{tpu_custom_call.1} parent=1 // pred_check
      _
    $region55: #{tpu_custom_call.1} parent=1 // pred_check_branch
      %131 = sbr.rel (0) target = $region57
    $region56: #{tpu_custom_call.1} parent=1 // pred_region
      _
    $region57: #{tpu_custom_call.1} parent=1 // pred_fallthru
      _
    // Predicated region
    $region58: #{tpu_custom_call.1} parent=1 // pred_check
      _
    $region59: #{tpu_custom_call.1} parent=1 // pred_check_branch
      %133 = sbr.rel (0) target = $region61
    $region60: #{tpu_custom_call.1} parent=1 // pred_region
      _
    $region61: #{tpu_custom_call.1} parent=1 // pred_fallthru
      _
    // Predicated region
    $region62: #{tpu_custom_call.1} parent=1 // pred_check
      _
    $region63: #{tpu_custom_call.1} parent=1 // pred_check_branch
      %135 = sbr.rel (0) target = $region65
    $region64: #{tpu_custom_call.1} parent=1 // pred_region
      _
    $region65: #{tpu_custom_call.1} parent=1 // pred_fallthru
      _
    // Predicated region
    $region66: #{tpu_custom_call.1} parent=1 // pred_check
      _
    $region67: #{tpu_custom_call.1} parent=1 // pred_check_branch
      %137 = sbr.rel (0) target = $region69
    $region68: #{tpu_custom_call.1} parent=1 // pred_region
      _
    $region69: #{tpu_custom_call.1} parent=1 // pred_fallthru
      _
    // Predicated region
    $region70: #{tpu_custom_call.1} parent=1 // pred_check
      _
    $region71: #{tpu_custom_call.1} parent=1 // pred_check_branch
      %139 = sbr.rel (0) target = $region73
    $region72: #{tpu_custom_call.1} parent=1 // pred_region
      _
    $region73: #{tpu_custom_call.1} parent=1 // pred_fallthru
      _
    // Predicated region
    $region74: #{tpu_custom_call.1} parent=1 // pred_check
      _
    $region75: #{tpu_custom_call.1} parent=1 // pred_check_branch
      %141 = sbr.rel (0) target = $region77
    $region76: #{tpu_custom_call.1} parent=1 // pred_region
      _
    $region77: #{tpu_custom_call.1} parent=1 // pred_fallthru
      _
    // Predicated region
    $region78: #{tpu_custom_call.1} parent=1 // pred_check
      _
    $region79: #{tpu_custom_call.1} parent=1 // pred_check_branch
      %143 = sbr.rel (0) target = $region81
    $region80: #{tpu_custom_call.1} parent=1 // pred_region
      _
    $region81: #{tpu_custom_call.1} parent=1 // pred_fallthru
      _
    // Predicated region
    $region82: #{tpu_custom_call.1} parent=1 // pred_check
      _
    $region83: #{tpu_custom_call.1} parent=1 // pred_check_branch
      %145 = sbr.rel (0) target = $region85
    $region84: #{tpu_custom_call.1} parent=1 // pred_region
      %s147 = ssub.s32 512, 512
      %148 = vsyncadd [#allocation15], %s147
      %s149 = sshll.u32 [#allocation16], 4
      %s150 = int_to_ptr.vmem [resolvable:$true] %s149
      %155 = dma.hbm_to_vmem [thread:$0]  %s20, 512, %s150, [#allocation15], 128, 128, 8
    $region85: #{tpu_custom_call.1} parent=1 // pred_fallthru
      _
    // Predicated region
    $region86: #{tpu_custom_call.1} parent=1 // pred_check
      _
    $region87: #{tpu_custom_call.1} parent=1 // pred_check_branch
      %157 = sbr.rel (0) target = $region89
    $region88: #{tpu_custom_call.1} parent=1 // pred_region
      %s159 = ssub.s32 512, 512
      %160 = vsyncadd [#allocation18], %s159
      %s161 = sshll.u32 [#allocation17], 4
      %s162 = int_to_ptr.vmem [resolvable:$true] %s161
      %167 = dma.hbm_to_vmem [thread:$0]  %s21, 512, %s162, [#allocation18], 128, 128, 8
    $region89: #{tpu_custom_call.1} parent=1 // pred_fallthru
      _
    // Predicated region
    $region90: #{tpu_custom_call.1} parent=1 // pred_check
      _
    $region91: #{tpu_custom_call.1} parent=1 // pred_check_branch
      %169 = sbr.rel (0) target = $region93
    $region92: #{tpu_custom_call.1} parent=1 // pred_region
      _
    $region93: #{tpu_custom_call.1} parent=1 // pred_fallthru
      _
    // Predicated region
    $region94: #{tpu_custom_call.1} parent=1 // pred_check
      _
    $region95: #{tpu_custom_call.1} parent=1 // pred_check_branch
      %171 = sbr.rel (0) target = $region97
    $region96: #{tpu_custom_call.1} parent=1 // pred_region
      _
    $region97: #{tpu_custom_call.1} parent=1 // pred_fallthru
      _
    // Predicated region
    $region98: #{tpu_custom_call.1} parent=1 // pred_check
      _
    $region99: #{tpu_custom_call.1} parent=1 // pred_check_branch
      %173 = sbr.rel (0) target = $region101
    $region100: #{tpu_custom_call.1} parent=1 // pred_region
      _
    $region101: #{tpu_custom_call.1} parent=1 // pred_fallthru
      _
    // Predicated region
    $region102: #{tpu_custom_call.1} parent=1 // pred_check
      _
    $region103: #{tpu_custom_call.1} parent=1 // pred_check_branch
      %175 = sbr.rel (0) target = $region105
    $region104: #{tpu_custom_call.1} parent=1 // pred_region
      _
    $region105: #{tpu_custom_call.1} parent=1 // pred_fallthru
      _
    // Predicated region
    $region106: #{tpu_custom_call.1} parent=1 // pred_check
      _
    $region107: #{tpu_custom_call.1} parent=1 // pred_check_branch
      %177 = sbr.rel (0) target = $region109
    $region108: #{tpu_custom_call.1} parent=1 // pred_region
      _
    $region109: #{tpu_custom_call.1} parent=1 // pred_fallthru
      _
    // Predicated region
    $region110: #{tpu_custom_call.1} parent=1 // pred_check
      _
    $region111: #{tpu_custom_call.1} parent=1 // pred_check_branch
      %179 = sbr.rel (0) target = $region113
    $region112: #{tpu_custom_call.1} parent=1 // pred_region
      %180 = dma.done [#allocation4], 128
    $region113: #{tpu_custom_call.1} parent=1 // pred_fallthru
      _
    // Predicated region
    $region114: #{tpu_custom_call.1} parent=1 // pred_check
      _
    $region115: #{tpu_custom_call.1} parent=1 // pred_check_branch
      %182 = sbr.rel (0) target = $region117
    $region116: #{tpu_custom_call.1} parent=1 // pred_region
      %183 = dma.done [#allocation6], 128
    $region117: #{tpu_custom_call.1} parent=1 // pred_fallthru
      _
    // Predicated region
    $region118: #{tpu_custom_call.1} parent=1 // pred_check
      _
    $region119: #{tpu_custom_call.1} parent=1 // pred_check_branch
      %185 = sbr.rel (0) target = $region121
    $region120: #{tpu_custom_call.1} parent=1 // pred_region
      %186 = dma.done [#allocation6], 128
    $region121: #{tpu_custom_call.1} parent=1 // pred_fallthru
      _
    // Predicated region
    $region122: #{tpu_custom_call.1} parent=1 // pred_check
      _
    $region123: #{tpu_custom_call.1} parent=1 // pred_check_branch
      %188 = sbr.rel (0) target = $region125
    $region124: #{tpu_custom_call.1} parent=1 // pred_region
      %189 = dma.done [#allocation9], 16
    $region125: #{tpu_custom_call.1} parent=1 // pred_fallthru
      _
    // Predicated region
    $region126: #{tpu_custom_call.1} parent=1 // pred_check
      _
    $region127: #{tpu_custom_call.1} parent=1 // pred_check_branch
      %191 = sbr.rel (0) target = $region129
    $region128: #{tpu_custom_call.1} parent=1 // pred_region
      %192 = dma.done [#allocation9], 16
    $region129: #{tpu_custom_call.1} parent=1 // pred_fallthru
      _
    // Predicated region
    $region130: #{tpu_custom_call.1} parent=1 // pred_check
      _
    $region131: #{tpu_custom_call.1} parent=1 // pred_check_branch
      %194 = sbr.rel (0) target = $region133
    $region132: #{tpu_custom_call.1} parent=1 // pred_region
      %195 = dma.done [#allocation12], 16
    $region133: #{tpu_custom_call.1} parent=1 // pred_fallthru
      _
    // Predicated region
    $region134: #{tpu_custom_call.1} parent=1 // pred_check
      _
    $region135: #{tpu_custom_call.1} parent=1 // pred_check_branch
      %197 = sbr.rel (0) target = $region137
    $region136: #{tpu_custom_call.1} parent=1 // pred_region
      %198 = dma.done [#allocation12], 16
    $region137: #{tpu_custom_call.1} parent=1 // pred_fallthru
      _
    // Predicated region
    $region138: #{tpu_custom_call.1} parent=1 // pred_check
      _
    $region139: #{tpu_custom_call.1} parent=1 // pred_check_branch
      %200 = sbr.rel (0) target = $region141
    $region140: #{tpu_custom_call.1} parent=1 // pred_region
      %201 = dma.done [#allocation15], 16
    $region141: #{tpu_custom_call.1} parent=1 // pred_fallthru
      _
    // Predicated region
    $region142: #{tpu_custom_call.1} parent=1 // pred_check
      _
    $region143: #{tpu_custom_call.1} parent=1 // pred_check_branch
      %203 = sbr.rel (0) target = $region145
    $region144: #{tpu_custom_call.1} parent=1 // pred_region
      %204 = dma.done [#allocation15], 512
    $region145: #{tpu_custom_call.1} parent=1 // pred_fallthru
      _
    // Predicated region
    $region146: #{tpu_custom_call.1} parent=1 // pred_check
      _
    $region147: #{tpu_custom_call.1} parent=1 // pred_check_branch
      %206 = sbr.rel (0) target = $region149
    $region148: #{tpu_custom_call.1} parent=1 // pred_region
      %207 = dma.done [#allocation18], 512
    $region149: #{tpu_custom_call.1} parent=1 // pred_fallthru
      _
    %v208 = vld [vmem:[%s0] sm:$0xff]
    %v209 = vld [vmem:[%s0 + $0x8] sm:$0xff]
    %v210 = vld [vmem:[%s0 + $0x10] sm:$0xff]
    %v211 = vld [vmem:[%s0 + $0x18] sm:$0xff]
    %v212 = vld [vmem:[%s0 + $0x20] sm:$0xff]
    %v213 = vld [vmem:[%s0 + $0x28] sm:$0xff]
    %v214 = vld [vmem:[%s0 + $0x30] sm:$0xff]
    %v215 = vld [vmem:[%s0 + $0x38] sm:$0xff]
    %v216 = vld [vmem:[%s0 + $0x40] sm:$0xff]
    %v217 = vld [vmem:[%s0 + $0x48] sm:$0xff]
    %v218 = vld [vmem:[%s0 + $0x50] sm:$0xff]
    %v219 = vld [vmem:[%s0 + $0x58] sm:$0xff]
    %v220 = vld [vmem:[%s0 + $0x60] sm:$0xff]
    %v221 = vld [vmem:[%s0 + $0x68] sm:$0xff]
    %v222 = vld [vmem:[%s0 + $0x70] sm:$0xff]
    %v223 = vld [vmem:[%s0 + $0x78] sm:$0xff]
    %v224 = vld [vmem:[#allocation3] sm:$0xff]
    %v225 = vld [vmem:[%s4] sm:$0x1]
    %v227 = vlaneseq
    %v228 = vshrl.u32 %v227, 7
    %v229 = vsub.s32 0, %v228
    %v230 = vrot.slane %v225, %v229
    %vm232 = vcmask 64512
    %v234 = vsel %vm232, %v208, 0
    %v237 = vsel %vm232, %v209, 0
    %v240 = vsel %vm232, %v210, 0
    %v243 = vsel %vm232, %v211, 0
    %v246 = vsel %vm232, %v212, 0
    %v249 = vsel %vm232, %v213, 0
    %v252 = vsel %vm232, %v214, 0
    %v255 = vsel %vm232, %v215, 0
    %v258 = vsel %vm232, %v216, 0
    %v261 = vsel %vm232, %v217, 0
    %v264 = vsel %vm232, %v218, 0
    %v267 = vsel %vm232, %v219, 0
    %v270 = vsel %vm232, %v220, 0
    %v273 = vsel %vm232, %v221, 0
    %v276 = vsel %vm232, %v222, 0
    %v279 = vsel %vm232, %v223, 0
    %281 = vmatprep.subr.mxu0 0.0
    %282 = vmatpush1.msra.mxu0 %v224
    %283 = vmatprep.subr.mxu0 0.0
    %284 = vmatpush1.msra.mxu0 0.0
    %285 = vmatprep.subr.mxu0 0.0
    %286 = vmatpush1.msra.mxu0 0.0
    %287 = vmatprep.subr.mxu0 0.0
    %288 = vmatpush1.msra.mxu0 0.0
    %289 = vmatprep.subr.mxu0 0.0
    %290 = vmatpush1.msra.mxu0 0.0
    %291 = vmatprep.subr.mxu0 0.0
    %292 = vmatpush1.msra.mxu0 0.0
    %293 = vmatprep.subr.mxu0 0.0
    %294 = vmatpush1.msra.mxu0 0.0
    %295 = vmatprep.subr.mxu0 0.0
    %296 = vmatpush1.msra.mxu0 0.0
    %297 = vmatprep.subr.mxu0 0.0
    %298 = vmatpush1.msra.mxu0 0.0
    %299 = vmatprep.subr.mxu0 0.0
    %300 = vmatpush1.msra.mxu0 0.0
    %301 = vmatprep.subr.mxu0 0.0
    %302 = vmatpush1.msra.mxu0 0.0
    %303 = vmatprep.subr.mxu0 0.0
    %304 = vmatpush1.msra.mxu0 0.0
    %305 = vmatprep.subr.mxu0 0.0
    %306 = vmatpush1.msra.mxu0 0.0
    %307 = vmatprep.subr.mxu0 0.0
    %308 = vmatpush1.msra.mxu0 0.0
    %309 = vmatprep.subr.mxu0 0.0
    %310 = vmatpush1.msra.mxu0 0.0
    %311 = vmatprep.subr.mxu0 0.0
    %312 = vmatpush1.msra.mxu0 0.0
    %313 = vmatprep.subr.mxu0 0.0
    %314 = vmatpush1.msra.mxu0 0.0
    %315 = vmatprep.subr.mxu0 0.0
    %316 = vmatpush1.msra.mxu0 0.0
    %317 = vmatprep.subr.mxu0 0.0
    %318 = vmatpush1.msra.mxu0 0.0
    %319 = vmatprep.subr.mxu0 0.0
    %320 = vmatpush1.msra.mxu0 0.0
    %321 = vmatprep.subr.mxu0 0.0
    %322 = vmatpush1.msra.mxu0 0.0
    %323 = vmatprep.subr.mxu0 0.0
    %324 = vmatpush1.msra.mxu0 0.0
    %325 = vmatprep.subr.mxu0 0.0
    %326 = vmatpush1.msra.mxu0 0.0
    %327 = vmatprep.subr.mxu0 0.0
    %328 = vmatpush1.msra.mxu0 0.0
    %329 = vmatprep.subr.mxu0 0.0
    %330 = vmatpush1.msra.mxu0 0.0
    %331 = vmatprep.subr.mxu0 0.0
    %332 = vmatpush1.msra.mxu0 0.0
    %333 = vmatprep.subr.mxu0 0.0
    %334 = vmatpush1.msra.mxu0 0.0
    %335 = vmatprep.subr.mxu0 0.0
    %336 = vmatpush1.msra.mxu0 0.0
    %337 = vmatprep.subr.mxu0 0.0
    %338 = vmatpush1.msra.mxu0 0.0
    %339 = vmatprep.subr.mxu0 0.0
    %340 = vmatpush1.msra.mxu0 0.0
    %341 = vmatprep.subr.mxu0 0.0
    %342 = vmatpush1.msra.mxu0 0.0
    %343 = vmatprep.subr.mxu0 0.0
    %344 = vmatpush1.msra.mxu0 0.0
    %345 = vmatprep.mubr.f32.mxu0 0.0
    %346 = vmatmul.mubr.f32.gmra.mrb[0].mxu0 %v234
    %v347 = vpop.f32.mrb[0].mxu0
    %v348 = vadd.f32 %v230, %v347
    %v349 = vpop.f32.mrb[0].mxu0
    %350 = vmatprep.mubr.f32.mxu0 0.0
    %351 = vmatmul.mubr.f32.gmra.mrb[0].mxu0 %v237
    %v352 = vpop.f32.mrb[0].mxu0
    %v353 = vadd.f32 %v230, %v352
    %v354 = vpop.f32.mrb[0].mxu0
    %355 = vmatprep.mubr.f32.mxu0 0.0
    %356 = vmatmul.mubr.f32.gmra.mrb[0].mxu0 %v240
    %v357 = vpop.f32.mrb[0].mxu0
    %v358 = vadd.f32 %v230, %v357
    %v359 = vpop.f32.mrb[0].mxu0
    %360 = vmatprep.mubr.f32.mxu0 0.0
    %361 = vmatmul.mubr.f32.gmra.mrb[0].mxu0 %v243
    %v362 = vpop.f32.mrb[0].mxu0
    %v363 = vadd.f32 %v230, %v362
    %v364 = vpop.f32.mrb[0].mxu0
    %365 = vmatprep.mubr.f32.mxu0 0.0
    %366 = vmatmul.mubr.f32.gmra.mrb[0].mxu0 %v246
    %v367 = vpop.f32.mrb[0].mxu0
    %v368 = vadd.f32 %v230, %v367
    %v369 = vpop.f32.mrb[0].mxu0
    %370 = vmatprep.mubr.f32.mxu0 0.0
    %371 = vmatmul.mubr.f32.gmra.mrb[0].mxu0 %v249
    %v372 = vpop.f32.mrb[0].mxu0
    %v373 = vadd.f32 %v230, %v372
    %v374 = vpop.f32.mrb[0].mxu0
    %375 = vmatprep.mubr.f32.mxu0 0.0
    %376 = vmatmul.mubr.f32.gmra.mrb[0].mxu0 %v252
    %v377 = vpop.f32.mrb[0].mxu0
    %v378 = vadd.f32 %v230, %v377
    %v379 = vpop.f32.mrb[0].mxu0
    %380 = vmatprep.mubr.f32.mxu0 0.0
    %381 = vmatmul.mubr.f32.gmra.mrb[0].mxu0 %v255
    %v382 = vpop.f32.mrb[0].mxu0
    %v383 = vadd.f32 %v230, %v382
    %v384 = vpop.f32.mrb[0].mxu0
    %385 = vmatprep.mubr.f32.mxu0 0.0
    %386 = vmatmul.mubr.f32.gmra.mrb[0].mxu0 %v258
    %v387 = vpop.f32.mrb[0].mxu0
    %v388 = vadd.f32 %v230, %v387
    %v389 = vpop.f32.mrb[0].mxu0
    %390 = vmatprep.mubr.f32.mxu0 0.0
    %391 = vmatmul.mubr.f32.gmra.mrb[0].mxu0 %v261
    %v392 = vpop.f32.mrb[0].mxu0
    %v393 = vadd.f32 %v230, %v392
    %v394 = vpop.f32.mrb[0].mxu0
    %395 = vmatprep.mubr.f32.mxu0 0.0
    %396 = vmatmul.mubr.f32.gmra.mrb[0].mxu0 %v264
    %v397 = vpop.f32.mrb[0].mxu0
    %v398 = vadd.f32 %v230, %v397
    %v399 = vpop.f32.mrb[0].mxu0
    %400 = vmatprep.mubr.f32.mxu0 0.0
    %401 = vmatmul.mubr.f32.gmra.mrb[0].mxu0 %v267
    %v402 = vpop.f32.mrb[0].mxu0
    %v403 = vadd.f32 %v230, %v402
    %v404 = vpop.f32.mrb[0].mxu0
    %405 = vmatprep.mubr.f32.mxu0 0.0
    %406 = vmatmul.mubr.f32.gmra.mrb[0].mxu0 %v270
    %v407 = vpop.f32.mrb[0].mxu0
    %v408 = vadd.f32 %v230, %v407
    %v409 = vpop.f32.mrb[0].mxu0
    %410 = vmatprep.mubr.f32.mxu0 0.0
    %411 = vmatmul.mubr.f32.gmra.mrb[0].mxu0 %v273
    %v412 = vpop.f32.mrb[0].mxu0
    %v413 = vadd.f32 %v230, %v412
    %v414 = vpop.f32.mrb[0].mxu0
    %415 = vmatprep.mubr.f32.mxu0 0.0
    %416 = vmatmul.mubr.f32.gmra.mrb[0].mxu0 %v276
    %v417 = vpop.f32.mrb[0].mxu0
    %v418 = vadd.f32 %v230, %v417
    %v419 = vpop.f32.mrb[0].mxu0
    %420 = vmatprep.mubr.f32.mxu0 0.0
    %421 = vmatmul.mubr.f32.gmra.mrb[0].mxu0 %v279
    %v422 = vpop.f32.mrb[0].mxu0
    %v423 = vadd.f32 %v230, %v422
    %v424 = vpop.f32.mrb[0].mxu0
    %425 = vdwg.mxu0
    %v426 = vld [vmem:[#allocation5] sm:$0xff]
    %v427 = vld [vmem:[#allocation8] sm:$0x1]
    %v429 = vlaneseq
    %v430 = vshrl.u32 %v429, 7
    %v431 = vsub.s32 0, %v430
    %v432 = vrot.slane %v427, %v431
    %434 = vmatprep.subr.mxu0 0.0
    %435 = vmatpush1.msra.mxu0 %v426
    %436 = vmatprep.subr.mxu0 0.0
    %437 = vmatpush1.msra.mxu0 0.0
    %438 = vmatprep.subr.mxu0 0.0
    %439 = vmatpush1.msra.mxu0 0.0
    %440 = vmatprep.subr.mxu0 0.0
    %441 = vmatpush1.msra.mxu0 0.0
    %442 = vmatprep.subr.mxu0 0.0
    %443 = vmatpush1.msra.mxu0 0.0
    %444 = vmatprep.subr.mxu0 0.0
    %445 = vmatpush1.msra.mxu0 0.0
    %446 = vmatprep.subr.mxu0 0.0
    %447 = vmatpush1.msra.mxu0 0.0
    %448 = vmatprep.subr.mxu0 0.0
    %449 = vmatpush1.msra.mxu0 0.0
    %450 = vmatprep.subr.mxu0 0.0
    %451 = vmatpush1.msra.mxu0 0.0
    %452 = vmatprep.subr.mxu0 0.0
    %453 = vmatpush1.msra.mxu0 0.0
    %454 = vmatprep.subr.mxu0 0.0
    %455 = vmatpush1.msra.mxu0 0.0
    %456 = vmatprep.subr.mxu0 0.0
    %457 = vmatpush1.msra.mxu0 0.0
    %458 = vmatprep.subr.mxu0 0.0
    %459 = vmatpush1.msra.mxu0 0.0
    %460 = vmatprep.subr.mxu0 0.0
    %461 = vmatpush1.msra.mxu0 0.0
    %462 = vmatprep.subr.mxu0 0.0
    %463 = vmatpush1.msra.mxu0 0.0
    %464 = vmatprep.subr.mxu0 0.0
    %465 = vmatpush1.msra.mxu0 0.0
    %466 = vmatprep.subr.mxu0 0.0
    %467 = vmatpush1.msra.mxu0 0.0
    %468 = vmatprep.subr.mxu0 0.0
    %469 = vmatpush1.msra.mxu0 0.0
    %470 = vmatprep.subr.mxu0 0.0
    %471 = vmatpush1.msra.mxu0 0.0
    %472 = vmatprep.subr.mxu0 0.0
    %473 = vmatpush1.msra.mxu0 0.0
    %474 = vmatprep.subr.mxu0 0.0
    %475 = vmatpush1.msra.mxu0 0.0
    %476 = vmatprep.subr.mxu0 0.0
    %477 = vmatpush1.msra.mxu0 0.0
    %478 = vmatprep.subr.mxu0 0.0
    %479 = vmatpush1.msra.mxu0 0.0
    %480 = vmatprep.subr.mxu0 0.0
    %481 = vmatpush1.msra.mxu0 0.0
    %482 = vmatprep.subr.mxu0 0.0
    %483 = vmatpush1.msra.mxu0 0.0
    %484 = vmatprep.subr.mxu0 0.0
    %485 = vmatpush1.msra.mxu0 0.0
    %486 = vmatprep.subr.mxu0 0.0
    %487 = vmatpush1.msra.mxu0 0.0
    %488 = vmatprep.subr.mxu0 0.0
    %489 = vmatpush1.msra.mxu0 0.0
    %490 = vmatprep.subr.mxu0 0.0
    %491 = vmatpush1.msra.mxu0 0.0
    %492 = vmatprep.subr.mxu0 0.0
    %493 = vmatpush1.msra.mxu0 0.0
    %494 = vmatprep.subr.mxu0 0.0
    %495 = vmatpush1.msra.mxu0 0.0
    %496 = vmatprep.subr.mxu0 0.0
    %497 = vmatpush1.msra.mxu0 0.0
    %498 = vmatprep.mubr.f32.mxu0 0.0
    %499 = vmatmul.mubr.f32.gmra.mrb[0].mxu0 %v234
    %v500 = vpop.f32.mrb[0].mxu0
    %v501 = vadd.f32 %v432, %v500
    %v502 = vpop.f32.mrb[0].mxu0
    %503 = vmatprep.mubr.f32.mxu0 0.0
    %504 = vmatmul.mubr.f32.gmra.mrb[0].mxu0 %v237
    %v505 = vpop.f32.mrb[0].mxu0
    %v506 = vadd.f32 %v432, %v505
    %v507 = vpop.f32.mrb[0].mxu0
    %508 = vmatprep.mubr.f32.mxu0 0.0
    %509 = vmatmul.mubr.f32.gmra.mrb[0].mxu0 %v240
    %v510 = vpop.f32.mrb[0].mxu0
    %v511 = vadd.f32 %v432, %v510
    %v512 = vpop.f32.mrb[0].mxu0
    %513 = vmatprep.mubr.f32.mxu0 0.0
    %514 = vmatmul.mubr.f32.gmra.mrb[0].mxu0 %v243
    %v515 = vpop.f32.mrb[0].mxu0
    %v516 = vadd.f32 %v432, %v515
    %v517 = vpop.f32.mrb[0].mxu0
    %518 = vmatprep.mubr.f32.mxu0 0.0
    %519 = vmatmul.mubr.f32.gmra.mrb[0].mxu0 %v246
    %v520 = vpop.f32.mrb[0].mxu0
    %v521 = vadd.f32 %v432, %v520
    %v522 = vpop.f32.mrb[0].mxu0
    %523 = vmatprep.mubr.f32.mxu0 0.0
    %524 = vmatmul.mubr.f32.gmra.mrb[0].mxu0 %v249
    %v525 = vpop.f32.mrb[0].mxu0
    %v526 = vadd.f32 %v432, %v525
    %v527 = vpop.f32.mrb[0].mxu0
    %528 = vmatprep.mubr.f32.mxu0 0.0
    %529 = vmatmul.mubr.f32.gmra.mrb[0].mxu0 %v252
    %v530 = vpop.f32.mrb[0].mxu0
    %v531 = vadd.f32 %v432, %v530
    %v532 = vpop.f32.mrb[0].mxu0
    %533 = vmatprep.mubr.f32.mxu0 0.0
    %534 = vmatmul.mubr.f32.gmra.mrb[0].mxu0 %v255
    %v535 = vpop.f32.mrb[0].mxu0
    %v536 = vadd.f32 %v432, %v535
    %v537 = vpop.f32.mrb[0].mxu0
    %538 = vmatprep.mubr.f32.mxu0 0.0
    %539 = vmatmul.mubr.f32.gmra.mrb[0].mxu0 %v258
    %v540 = vpop.f32.mrb[0].mxu0
    %v541 = vadd.f32 %v432, %v540
    %v542 = vpop.f32.mrb[0].mxu0
    %543 = vmatprep.mubr.f32.mxu0 0.0
    %544 = vmatmul.mubr.f32.gmra.mrb[0].mxu0 %v261
    %v545 = vpop.f32.mrb[0].mxu0
    %v546 = vadd.f32 %v432, %v545
    %v547 = vpop.f32.mrb[0].mxu0
    %548 = vmatprep.mubr.f32.mxu0 0.0
    %549 = vmatmul.mubr.f32.gmra.mrb[0].mxu0 %v264
    %v550 = vpop.f32.mrb[0].mxu0
    %v551 = vadd.f32 %v432, %v550
    %v552 = vpop.f32.mrb[0].mxu0
    %553 = vmatprep.mubr.f32.mxu0 0.0
    %554 = vmatmul.mubr.f32.gmra.mrb[0].mxu0 %v267
    %v555 = vpop.f32.mrb[0].mxu0
    %v556 = vadd.f32 %v432, %v555
    %v557 = vpop.f32.mrb[0].mxu0
    %558 = vmatprep.mubr.f32.mxu0 0.0
    %559 = vmatmul.mubr.f32.gmra.mrb[0].mxu0 %v270
    %v560 = vpop.f32.mrb[0].mxu0
    %v561 = vadd.f32 %v432, %v560
    %v562 = vpop.f32.mrb[0].mxu0
    %563 = vmatprep.mubr.f32.mxu0 0.0
    %564 = vmatmul.mubr.f32.gmra.mrb[0].mxu0 %v273
    %v565 = vpop.f32.mrb[0].mxu0
    %v566 = vadd.f32 %v432, %v565
    %v567 = vpop.f32.mrb[0].mxu0
    %568 = vmatprep.mubr.f32.mxu0 0.0
    %569 = vmatmul.mubr.f32.gmra.mrb[0].mxu0 %v276
    %v570 = vpop.f32.mrb[0].mxu0
    %v571 = vadd.f32 %v432, %v570
    %v572 = vpop.f32.mrb[0].mxu0
    %573 = vmatprep.mubr.f32.mxu0 0.0
    %574 = vmatmul.mubr.f32.gmra.mrb[0].mxu0 %v279
    %v575 = vpop.f32.mrb[0].mxu0
    %v576 = vadd.f32 %v432, %v575
    %v577 = vpop.f32.mrb[0].mxu0
    %578 = vdwg.mxu0
    %v579 = vld [vmem:[#allocation7] sm:$0xff]
    %v580 = vld [vmem:[#allocation10] sm:$0x1]
    %v582 = vlaneseq
    %v583 = vshrl.u32 %v582, 7
    %v584 = vsub.s32 0, %v583
    %v585 = vrot.slane %v580, %v584
    %587 = vmatprep.subr.mxu0 0.0
    %588 = vmatpush1.msra.mxu0 %v579
    %589 = vmatprep.subr.mxu0 0.0
    %590 = vmatpush1.msra.mxu0 0.0
    %591 = vmatprep.subr.mxu0 0.0
    %592 = vmatpush1.msra.mxu0 0.0
    %593 = vmatprep.subr.mxu0 0.0
    %594 = vmatpush1.msra.mxu0 0.0
    %595 = vmatprep.subr.mxu0 0.0
    %596 = vmatpush1.msra.mxu0 0.0
    %597 = vmatprep.subr.mxu0 0.0
    %598 = vmatpush1.msra.mxu0 0.0
    %599 = vmatprep.subr.mxu0 0.0
    %600 = vmatpush1.msra.mxu0 0.0
    %601 = vmatprep.subr.mxu0 0.0
    %602 = vmatpush1.msra.mxu0 0.0
    %603 = vmatprep.subr.mxu0 0.0
    %604 = vmatpush1.msra.mxu0 0.0
    %605 = vmatprep.subr.mxu0 0.0
    %606 = vmatpush1.msra.mxu0 0.0
    %607 = vmatprep.subr.mxu0 0.0
    %608 = vmatpush1.msra.mxu0 0.0
    %609 = vmatprep.subr.mxu0 0.0
    %610 = vmatpush1.msra.mxu0 0.0
    %611 = vmatprep.subr.mxu0 0.0
    %612 = vmatpush1.msra.mxu0 0.0
    %613 = vmatprep.subr.mxu0 0.0
    %614 = vmatpush1.msra.mxu0 0.0
    %615 = vmatprep.subr.mxu0 0.0
    %616 = vmatpush1.msra.mxu0 0.0
    %617 = vmatprep.subr.mxu0 0.0
    %618 = vmatpush1.msra.mxu0 0.0
    %619 = vmatprep.subr.mxu0 0.0
    %620 = vmatpush1.msra.mxu0 0.0
    %621 = vmatprep.subr.mxu0 0.0
    %622 = vmatpush1.msra.mxu0 0.0
    %623 = vmatprep.subr.mxu0 0.0
    %624 = vmatpush1.msra.mxu0 0.0
    %625 = vmatprep.subr.mxu0 0.0
    %626 = vmatpush1.msra.mxu0 0.0
    %627 = vmatprep.subr.mxu0 0.0
    %628 = vmatpush1.msra.mxu0 0.0
    %629 = vmatprep.subr.mxu0 0.0
    %630 = vmatpush1.msra.mxu0 0.0
    %631 = vmatprep.subr.mxu0 0.0
    %632 = vmatpush1.msra.mxu0 0.0
    %633 = vmatprep.subr.mxu0 0.0
    %634 = vmatpush1.msra.mxu0 0.0
    %635 = vmatprep.subr.mxu0 0.0
    %636 = vmatpush1.msra.mxu0 0.0
    %637 = vmatprep.subr.mxu0 0.0
    %638 = vmatpush1.msra.mxu0 0.0
    %639 = vmatprep.subr.mxu0 0.0
    %640 = vmatpush1.msra.mxu0 0.0
    %641 = vmatprep.subr.mxu0 0.0
    %642 = vmatpush1.msra.mxu0 0.0
    %643 = vmatprep.subr.mxu0 0.0
    %644 = vmatpush1.msra.mxu0 0.0
    %645 = vmatprep.subr.mxu0 0.0
    %646 = vmatpush1.msra.mxu0 0.0
    %647 = vmatprep.subr.mxu0 0.0
    %648 = vmatpush1.msra.mxu0 0.0
    %649 = vmatprep.subr.mxu0 0.0
    %650 = vmatpush1.msra.mxu0 0.0
    %651 = vmatprep.mubr.f32.mxu0 0.0
    %652 = vmatmul.mubr.f32.gmra.mrb[0].mxu0 %v234
    %v653 = vpop.f32.mrb[0].mxu0
    %v654 = vadd.f32 %v585, %v653
    %v655 = vpop.f32.mrb[0].mxu0
    %656 = vmatprep.mubr.f32.mxu0 0.0
    %657 = vmatmul.mubr.f32.gmra.mrb[0].mxu0 %v237
    %v658 = vpop.f32.mrb[0].mxu0
    %v659 = vadd.f32 %v585, %v658
    %v660 = vpop.f32.mrb[0].mxu0
    %661 = vmatprep.mubr.f32.mxu0 0.0
    %662 = vmatmul.mubr.f32.gmra.mrb[0].mxu0 %v240
    %v663 = vpop.f32.mrb[0].mxu0
    %v664 = vadd.f32 %v585, %v663
    %v665 = vpop.f32.mrb[0].mxu0
    %666 = vmatprep.mubr.f32.mxu0 0.0
    %667 = vmatmul.mubr.f32.gmra.mrb[0].mxu0 %v243
    %v668 = vpop.f32.mrb[0].mxu0
    %v669 = vadd.f32 %v585, %v668
    %v670 = vpop.f32.mrb[0].mxu0
    %671 = vmatprep.mubr.f32.mxu0 0.0
    %672 = vmatmul.mubr.f32.gmra.mrb[0].mxu0 %v246
    %v673 = vpop.f32.mrb[0].mxu0
    %v674 = vadd.f32 %v585, %v673
    %v675 = vpop.f32.mrb[0].mxu0
    %676 = vmatprep.mubr.f32.mxu0 0.0
    %677 = vmatmul.mubr.f32.gmra.mrb[0].mxu0 %v249
    %v678 = vpop.f32.mrb[0].mxu0
    %v679 = vadd.f32 %v585, %v678
    %v680 = vpop.f32.mrb[0].mxu0
    %681 = vmatprep.mubr.f32.mxu0 0.0
    %682 = vmatmul.mubr.f32.gmra.mrb[0].mxu0 %v252
    %v683 = vpop.f32.mrb[0].mxu0
    %v684 = vadd.f32 %v585, %v683
    %v685 = vpop.f32.mrb[0].mxu0
    %686 = vmatprep.mubr.f32.mxu0 0.0
    %687 = vmatmul.mubr.f32.gmra.mrb[0].mxu0 %v255
    %v688 = vpop.f32.mrb[0].mxu0
    %v689 = vadd.f32 %v585, %v688
    %v690 = vpop.f32.mrb[0].mxu0
    %691 = vmatprep.mubr.f32.mxu0 0.0
    %692 = vmatmul.mubr.f32.gmra.mrb[0].mxu0 %v258
    %v693 = vpop.f32.mrb[0].mxu0
    %v694 = vadd.f32 %v585, %v693
    %v695 = vpop.f32.mrb[0].mxu0
    %696 = vmatprep.mubr.f32.mxu0 0.0
    %697 = vmatmul.mubr.f32.gmra.mrb[0].mxu0 %v261
    %v698 = vpop.f32.mrb[0].mxu0
    %v699 = vadd.f32 %v585, %v698
    %v700 = vpop.f32.mrb[0].mxu0
    %701 = vmatprep.mubr.f32.mxu0 0.0
    %702 = vmatmul.mubr.f32.gmra.mrb[0].mxu0 %v264
    %v703 = vpop.f32.mrb[0].mxu0
    %v704 = vadd.f32 %v585, %v703
    %v705 = vpop.f32.mrb[0].mxu0
    %706 = vmatprep.mubr.f32.mxu0 0.0
    %707 = vmatmul.mubr.f32.gmra.mrb[0].mxu0 %v267
    %v708 = vpop.f32.mrb[0].mxu0
    %v709 = vadd.f32 %v585, %v708
    %v710 = vpop.f32.mrb[0].mxu0
    %711 = vmatprep.mubr.f32.mxu0 0.0
    %712 = vmatmul.mubr.f32.gmra.mrb[0].mxu0 %v270
    %v713 = vpop.f32.mrb[0].mxu0
    %v714 = vadd.f32 %v585, %v713
    %v715 = vpop.f32.mrb[0].mxu0
    %716 = vmatprep.mubr.f32.mxu0 0.0
    %717 = vmatmul.mubr.f32.gmra.mrb[0].mxu0 %v273
    %v718 = vpop.f32.mrb[0].mxu0
    %v719 = vadd.f32 %v585, %v718
    %v720 = vpop.f32.mrb[0].mxu0
    %721 = vmatprep.mubr.f32.mxu0 0.0
    %722 = vmatmul.mubr.f32.gmra.mrb[0].mxu0 %v276
    %v723 = vpop.f32.mrb[0].mxu0
    %v724 = vadd.f32 %v585, %v723
    %v725 = vpop.f32.mrb[0].mxu0
    %726 = vmatprep.mubr.f32.mxu0 0.0
    %727 = vmatmul.mubr.f32.gmra.mrb[0].mxu0 %v279
    %v728 = vpop.f32.mrb[0].mxu0
    %v729 = vadd.f32 %v585, %v728
    %v730 = vpop.f32.mrb[0].mxu0
    %731 = vdwg.mxu0
    %v732 = vld [vmem:[%s7] sm:$0xff]
    %v733 = vld [vmem:[%s7 + $0x8] sm:$0xff]
    %v734 = vld [vmem:[%s7 + $0x10] sm:$0xff]
    %v735 = vld [vmem:[%s7 + $0x18] sm:$0xff]
    %v736 = vld [vmem:[%s8] sm:$0xff]
    %v737 = vld [vmem:[%s8 + $0x8] sm:$0xff]
    %v738 = vld [vmem:[%s8 + $0x10] sm:$0xff]
    %v739 = vld [vmem:[%s8 + $0x18] sm:$0xff]
    %v740 = vld [vmem:[%s9] sm:$0xff]
    %v741 = vld [vmem:[%s9 + $0x8] sm:$0xff]
    %v742 = vld [vmem:[%s9 + $0x10] sm:$0xff]
    %v743 = vld [vmem:[%s9 + $0x18] sm:$0xff]
    %v744 = vld [vmem:[#allocation11] sm:$0x1]
    %v745 = vld [vmem:[#allocation13] sm:$0x1]
    %v746 = vld [vmem:[#allocation14] sm:$0x1]
    %v748 = vlaneseq
    %v749 = vshrl.u32 %v748, 7
    %v750 = vsub.s32 0, %v749
    %v751 = vrot.slane %v744, %v750
    %vm753 = vcmask 261120
    %v755 = vsel %vm753, 0.0, 0
    %757 = vmatprep.subr.mxu0 0.0
    %758 = vmatpush1.msra.mxu0 %v732
    %759 = vmatprep.subr.mxu0 0.0
    %760 = vmatpush1.msra.mxu0 %v733
    %761 = vmatprep.subr.mxu0 0.0
    %762 = vmatpush1.msra.mxu0 %v734
    %763 = vmatprep.subr.mxu0 0.0
    %764 = vmatpush1.msra.mxu0 %v735
    %765 = vmatprep.subr.mxu0 0.0
    %766 = vmatpush1.msra.mxu0 0.0
    %767 = vmatprep.subr.mxu0 0.0
    %768 = vmatpush1.msra.mxu0 0.0
    %769 = vmatprep.subr.mxu0 0.0
    %770 = vmatpush1.msra.mxu0 0.0
    %771 = vmatprep.subr.mxu0 0.0
    %772 = vmatpush1.msra.mxu0 0.0
    %773 = vmatprep.subr.mxu0 0.0
    %774 = vmatpush1.msra.mxu0 0.0
    %775 = vmatprep.subr.mxu0 0.0
    %776 = vmatpush1.msra.mxu0 0.0
    %777 = vmatprep.subr.mxu0 0.0
    %778 = vmatpush1.msra.mxu0 0.0
    %779 = vmatprep.subr.mxu0 0.0
    %780 = vmatpush1.msra.mxu0 0.0
    %781 = vmatprep.subr.mxu0 0.0
    %782 = vmatpush1.msra.mxu0 0.0
    %783 = vmatprep.subr.mxu0 0.0
    %784 = vmatpush1.msra.mxu0 0.0
    %785 = vmatprep.subr.mxu0 0.0
    %786 = vmatpush1.msra.mxu0 0.0
    %787 = vmatprep.subr.mxu0 0.0
    %788 = vmatpush1.msra.mxu0 0.0
    %789 = vmatprep.subr.mxu0 0.0
    %790 = vmatpush1.msra.mxu0 0.0
    %791 = vmatprep.subr.mxu0 0.0
    %792 = vmatpush1.msra.mxu0 0.0
    %793 = vmatprep.subr.mxu0 0.0
    %794 = vmatpush1.msra.mxu0 0.0
    %795 = vmatprep.subr.mxu0 0.0
    %796 = vmatpush1.msra.mxu0 0.0
    %797 = vmatprep.subr.mxu0 0.0
    %798 = vmatpush1.msra.mxu0 0.0
    %799 = vmatprep.subr.mxu0 0.0
    %800 = vmatpush1.msra.mxu0 0.0
    %801 = vmatprep.subr.mxu0 0.0
    %802 = vmatpush1.msra.mxu0 0.0
    %803 = vmatprep.subr.mxu0 0.0
    %804 = vmatpush1.msra.mxu0 0.0
    %805 = vmatprep.subr.mxu0 0.0
    %806 = vmatpush1.msra.mxu0 0.0
    %807 = vmatprep.subr.mxu0 0.0
    %808 = vmatpush1.msra.mxu0 0.0
    %809 = vmatprep.subr.mxu0 0.0
    %810 = vmatpush1.msra.mxu0 0.0
    %811 = vmatprep.subr.mxu0 0.0
    %812 = vmatpush1.msra.mxu0 0.0
    %813 = vmatprep.subr.mxu0 0.0
    %814 = vmatpush1.msra.mxu0 0.0
    %815 = vmatprep.subr.mxu0 0.0
    %816 = vmatpush1.msra.mxu0 0.0
    %817 = vmatprep.subr.mxu0 0.0
    %818 = vmatpush1.msra.mxu0 0.0
    %819 = vmatprep.subr.mxu0 0.0
    %820 = vmatpush1.msra.mxu0 0.0
    %821 = vmatprep.mubr.f32.mxu0 0.0
    %822 = vmatmul.mubr.f32.gmra.mrb[0].mxu0 %v755
    %v823 = vpop.f32.mrb[0].mxu0
    %v824 = vadd.f32 %v751, %v823
    %v825 = vpop.f32.mrb[0].mxu0
    %826 = vdwg.mxu0
    %v828 = vlaneseq
    %v829 = vshrl.u32 %v828, 7
    %v830 = vsub.s32 0, %v829
    %v831 = vrot.slane %v745, %v830
    %833 = vmatprep.subr.mxu0 0.0
    %834 = vmatpush1.msra.mxu0 %v736
    %835 = vmatprep.subr.mxu0 0.0
    %836 = vmatpush1.msra.mxu0 %v737
    %837 = vmatprep.subr.mxu0 0.0
    %838 = vmatpush1.msra.mxu0 %v738
    %839 = vmatprep.subr.mxu0 0.0
    %840 = vmatpush1.msra.mxu0 %v739
    %841 = vmatprep.subr.mxu0 0.0
    %842 = vmatpush1.msra.mxu0 0.0
    %843 = vmatprep.subr.mxu0 0.0
    %844 = vmatpush1.msra.mxu0 0.0
    %845 = vmatprep.subr.mxu0 0.0
    %846 = vmatpush1.msra.mxu0 0.0
    %847 = vmatprep.subr.mxu0 0.0
    %848 = vmatpush1.msra.mxu0 0.0
    %849 = vmatprep.subr.mxu0 0.0
    %850 = vmatpush1.msra.mxu0 0.0
    %851 = vmatprep.subr.mxu0 0.0
    %852 = vmatpush1.msra.mxu0 0.0
    %853 = vmatprep.subr.mxu0 0.0
    %854 = vmatpush1.msra.mxu0 0.0
    %855 = vmatprep.subr.mxu0 0.0
    %856 = vmatpush1.msra.mxu0 0.0
    %857 = vmatprep.subr.mxu0 0.0
    %858 = vmatpush1.msra.mxu0 0.0
    %859 = vmatprep.subr.mxu0 0.0
    %860 = vmatpush1.msra.mxu0 0.0
    %861 = vmatprep.subr.mxu0 0.0
    %862 = vmatpush1.msra.mxu0 0.0
    %863 = vmatprep.subr.mxu0 0.0
    %864 = vmatpush1.msra.mxu0 0.0
    %865 = vmatprep.subr.mxu0 0.0
    %866 = vmatpush1.msra.mxu0 0.0
    %867 = vmatprep.subr.mxu0 0.0
    %868 = vmatpush1.msra.mxu0 0.0
    %869 = vmatprep.subr.mxu0 0.0
    %870 = vmatpush1.msra.mxu0 0.0
    %871 = vmatprep.subr.mxu0 0.0
    %872 = vmatpush1.msra.mxu0 0.0
    %873 = vmatprep.subr.mxu0 0.0
    %874 = vmatpush1.msra.mxu0 0.0
    %875 = vmatprep.subr.mxu0 0.0
    %876 = vmatpush1.msra.mxu0 0.0
    %877 = vmatprep.subr.mxu0 0.0
    %878 = vmatpush1.msra.mxu0 0.0
    %879 = vmatprep.subr.mxu0 0.0
    %880 = vmatpush1.msra.mxu0 0.0
    %881 = vmatprep.subr.mxu0 0.0
    %882 = vmatpush1.msra.mxu0 0.0
    %883 = vmatprep.subr.mxu0 0.0
    %884 = vmatpush1.msra.mxu0 0.0
    %885 = vmatprep.subr.mxu0 0.0
    %886 = vmatpush1.msra.mxu0 0.0
    %887 = vmatprep.subr.mxu0 0.0
    %888 = vmatpush1.msra.mxu0 0.0
    %889 = vmatprep.subr.mxu0 0.0
    %890 = vmatpush1.msra.mxu0 0.0
    %891 = vmatprep.subr.mxu0 0.0
    %892 = vmatpush1.msra.mxu0 0.0
    %893 = vmatprep.subr.mxu0 0.0
    %894 = vmatpush1.msra.mxu0 0.0
    %895 = vmatprep.subr.mxu0 0.0
    %896 = vmatpush1.msra.mxu0 0.0
    %897 = vmatprep.mubr.f32.mxu0 0.0
    %898 = vmatmul.mubr.f32.gmra.mrb[0].mxu0 %v755
    %v899 = vpop.f32.mrb[0].mxu0
    %v900 = vadd.f32 %v831, %v899
    %v901 = vpop.f32.mrb[0].mxu0
    %902 = vdwg.mxu0
    %v904 = vlaneseq
    %v905 = vshrl.u32 %v904, 7
    %v906 = vsub.s32 0, %v905
    %v907 = vrot.slane %v746, %v906
    %909 = vmatprep.subr.mxu0 0.0
    %910 = vmatpush1.msra.mxu0 %v740
    %911 = vmatprep.subr.mxu0 0.0
    %912 = vmatpush1.msra.mxu0 %v741
    %913 = vmatprep.subr.mxu0 0.0
    %914 = vmatpush1.msra.mxu0 %v742
    %915 = vmatprep.subr.mxu0 0.0
    %916 = vmatpush1.msra.mxu0 %v743
    %917 = vmatprep.subr.mxu0 0.0
    %918 = vmatpush1.msra.mxu0 0.0
    %919 = vmatprep.subr.mxu0 0.0
    %920 = vmatpush1.msra.mxu0 0.0
    %921 = vmatprep.subr.mxu0 0.0
    %922 = vmatpush1.msra.mxu0 0.0
    %923 = vmatprep.subr.mxu0 0.0
    %924 = vmatpush1.msra.mxu0 0.0
    %925 = vmatprep.subr.mxu0 0.0
    %926 = vmatpush1.msra.mxu0 0.0
    %927 = vmatprep.subr.mxu0 0.0
    %928 = vmatpush1.msra.mxu0 0.0
    %929 = vmatprep.subr.mxu0 0.0
    %930 = vmatpush1.msra.mxu0 0.0
    %931 = vmatprep.subr.mxu0 0.0
    %932 = vmatpush1.msra.mxu0 0.0
    %933 = vmatprep.subr.mxu0 0.0
    %934 = vmatpush1.msra.mxu0 0.0
    %935 = vmatprep.subr.mxu0 0.0
    %936 = vmatpush1.msra.mxu0 0.0
    %937 = vmatprep.subr.mxu0 0.0
    %938 = vmatpush1.msra.mxu0 0.0
    %939 = vmatprep.subr.mxu0 0.0
    %940 = vmatpush1.msra.mxu0 0.0
    %941 = vmatprep.subr.mxu0 0.0
    %942 = vmatpush1.msra.mxu0 0.0
    %943 = vmatprep.subr.mxu0 0.0
    %944 = vmatpush1.msra.mxu0 0.0
    %945 = vmatprep.subr.mxu0 0.0
    %946 = vmatpush1.msra.mxu0 0.0
    %947 = vmatprep.subr.mxu0 0.0
    %948 = vmatpush1.msra.mxu0 0.0
    %949 = vmatprep.subr.mxu0 0.0
    %950 = vmatpush1.msra.mxu0 0.0
    %951 = vmatprep.subr.mxu0 0.0
    %952 = vmatpush1.msra.mxu0 0.0
    %953 = vmatprep.subr.mxu0 0.0
    %954 = vmatpush1.msra.mxu0 0.0
    %955 = vmatprep.subr.mxu0 0.0
    %956 = vmatpush1.msra.mxu0 0.0
    %957 = vmatprep.subr.mxu0 0.0
    %958 = vmatpush1.msra.mxu0 0.0
    %959 = vmatprep.subr.mxu0 0.0
    %960 = vmatpush1.msra.mxu0 0.0
    %961 = vmatprep.subr.mxu0 0.0
    %962 = vmatpush1.msra.mxu0 0.0
    %963 = vmatprep.subr.mxu0 0.0
    %964 = vmatpush1.msra.mxu0 0.0
    %965 = vmatprep.subr.mxu0 0.0
    %966 = vmatpush1.msra.mxu0 0.0
    %967 = vmatprep.subr.mxu0 0.0
    %968 = vmatpush1.msra.mxu0 0.0
    %969 = vmatprep.subr.mxu0 0.0
    %970 = vmatpush1.msra.mxu0 0.0
    %971 = vmatprep.subr.mxu0 0.0
    %972 = vmatpush1.msra.mxu0 0.0
    %973 = vmatprep.mubr.f32.mxu0 0.0
    %974 = vmatmul.mubr.f32.gmra.mrb[0].mxu0 %v755
    %v975 = vpop.f32.mrb[0].mxu0
    %v976 = vadd.f32 %v907, %v975
    %v977 = vpop.f32.mrb[0].mxu0
    %978 = vdwg.mxu0
    %v979 = vadd.f32 %v348, %v824
    %v980 = vxor.u32 %v979, 2147483648
    %v981 = vmul.f32 %v980, 1.442695
    %v982 = vpow.pop %v981
    %v983 = vadd.f32 %v982, 1.0
    %v984 = vrcp.pop %v983
    %v985 = vmul.f32 1.0, %v984
    %v986 = vadd.f32 %v501, %v900
    %v987 = vxor.u32 %v986, 2147483648
    %v988 = vmul.f32 %v987, 1.442695
    %v989 = vpow.pop %v988
    %v990 = vadd.f32 %v989, 1.0
    %v991 = vrcp.pop %v990
    %v992 = vmul.f32 1.0, %v991
    %v993 = vmul.f32 %v985, %v976
    %v994 = vadd.f32 %v654, %v993
    %v995 = vtanh.pop %v994
    %v996 = vsub.f32 1.0, %v992
    %v997 = vmul.f32 %v996, %v995
    %v998 = vmul.f32 %v992, 0.0
    %v999 = vadd.f32 %v997, %v998
    %v1001 = vsel %vm753, %v999, 0
    %1003 = vmatprep.subr.mxu0 0.0
    %1004 = vmatpush1.msra.mxu0 %v732
    %1005 = vmatprep.subr.mxu0 0.0
    %1006 = vmatpush1.msra.mxu0 %v733
    %1007 = vmatprep.subr.mxu0 0.0
    %1008 = vmatpush1.msra.mxu0 %v734
    %1009 = vmatprep.subr.mxu0 0.0
    %1010 = vmatpush1.msra.mxu0 %v735
    %1011 = vmatprep.subr.mxu0 0.0
    %1012 = vmatpush1.msra.mxu0 0.0
    %1013 = vmatprep.subr.mxu0 0.0
    %1014 = vmatpush1.msra.mxu0 0.0
    %1015 = vmatprep.subr.mxu0 0.0
    %1016 = vmatpush1.msra.mxu0 0.0
    %1017 = vmatprep.subr.mxu0 0.0
    %1018 = vmatpush1.msra.mxu0 0.0
    %1019 = vmatprep.subr.mxu0 0.0
    %1020 = vmatpush1.msra.mxu0 0.0
    %1021 = vmatprep.subr.mxu0 0.0
    %1022 = vmatpush1.msra.mxu0 0.0
    %1023 = vmatprep.subr.mxu0 0.0
    %1024 = vmatpush1.msra.mxu0 0.0
    %1025 = vmatprep.subr.mxu0 0.0
    %1026 = vmatpush1.msra.mxu0 0.0
    %1027 = vmatprep.subr.mxu0 0.0
    %1028 = vmatpush1.msra.mxu0 0.0
    %1029 = vmatprep.subr.mxu0 0.0
    %1030 = vmatpush1.msra.mxu0 0.0
    %1031 = vmatprep.subr.mxu0 0.0
    %1032 = vmatpush1.msra.mxu0 0.0
    %1033 = vmatprep.subr.mxu0 0.0
    %1034 = vmatpush1.msra.mxu0 0.0
    %1035 = vmatprep.subr.mxu0 0.0
    %1036 = vmatpush1.msra.mxu0 0.0
    %1037 = vmatprep.subr.mxu0 0.0
    %1038 = vmatpush1.msra.mxu0 0.0
    %1039 = vmatprep.subr.mxu0 0.0
    %1040 = vmatpush1.msra.mxu0 0.0
    %1041 = vmatprep.subr.mxu0 0.0
    %1042 = vmatpush1.msra.mxu0 0.0
    %1043 = vmatprep.subr.mxu0 0.0
    %1044 = vmatpush1.msra.mxu0 0.0
    %1045 = vmatprep.subr.mxu0 0.0
    %1046 = vmatpush1.msra.mxu0 0.0
    %1047 = vmatprep.subr.mxu0 0.0
    %1048 = vmatpush1.msra.mxu0 0.0
    %1049 = vmatprep.subr.mxu0 0.0
    %1050 = vmatpush1.msra.mxu0 0.0
    %1051 = vmatprep.subr.mxu0 0.0
    %1052 = vmatpush1.msra.mxu0 0.0
    %1053 = vmatprep.subr.mxu0 0.0
    %1054 = vmatpush1.msra.mxu0 0.0
    %1055 = vmatprep.subr.mxu0 0.0
    %1056 = vmatpush1.msra.mxu0 0.0
    %1057 = vmatprep.subr.mxu0 0.0
    %1058 = vmatpush1.msra.mxu0 0.0
    %1059 = vmatprep.subr.mxu0 0.0
    %1060 = vmatpush1.msra.mxu0 0.0
    %1061 = vmatprep.subr.mxu0 0.0
    %1062 = vmatpush1.msra.mxu0 0.0
    %1063 = vmatprep.subr.mxu0 0.0
    %1064 = vmatpush1.msra.mxu0 0.0
    %1065 = vmatprep.subr.mxu0 0.0
    %1066 = vmatpush1.msra.mxu0 0.0
    %1067 = vmatprep.mubr.f32.mxu0 0.0
    %1068 = vmatmul.mubr.f32.gmra.mrb[0].mxu0 %v1001
    %v1069 = vpop.f32.mrb[0].mxu0
    %v1070 = vadd.f32 %v751, %v1069
    %v1071 = vpop.f32.mrb[0].mxu0
    %1072 = vdwg.mxu0
    %1073 = vmatprep.subr.mxu0 0.0
    %1074 = vmatpush1.msra.mxu0 %v736
    %1075 = vmatprep.subr.mxu0 0.0
    %1076 = vmatpush1.msra.mxu0 %v737
    %1077 = vmatprep.subr.mxu0 0.0
    %1078 = vmatpush1.msra.mxu0 %v738
    %1079 = vmatprep.subr.mxu0 0.0
    %1080 = vmatpush1.msra.mxu0 %v739
    %1081 = vmatprep.subr.mxu0 0.0
    %1082 = vmatpush1.msra.mxu0 0.0
    %1083 = vmatprep.subr.mxu0 0.0
    %1084 = vmatpush1.msra.mxu0 0.0
    %1085 = vmatprep.subr.mxu0 0.0
    %1086 = vmatpush1.msra.mxu0 0.0
    %1087 = vmatprep.subr.mxu0 0.0
    %1088 = vmatpush1.msra.mxu0 0.0
    %1089 = vmatprep.subr.mxu0 0.0
    %1090 = vmatpush1.msra.mxu0 0.0
    %1091 = vmatprep.subr.mxu0 0.0
    %1092 = vmatpush1.msra.mxu0 0.0
    %1093 = vmatprep.subr.mxu0 0.0
    %1094 = vmatpush1.msra.mxu0 0.0
    %1095 = vmatprep.subr.mxu0 0.0
    %1096 = vmatpush1.msra.mxu0 0.0
    %1097 = vmatprep.subr.mxu0 0.0
    %1098 = vmatpush1.msra.mxu0 0.0
    %1099 = vmatprep.subr.mxu0 0.0
    %1100 = vmatpush1.msra.mxu0 0.0
    %1101 = vmatprep.subr.mxu0 0.0
    %1102 = vmatpush1.msra.mxu0 0.0
    %1103 = vmatprep.subr.mxu0 0.0
    %1104 = vmatpush1.msra.mxu0 0.0
    %1105 = vmatprep.subr.mxu0 0.0
    %1106 = vmatpush1.msra.mxu0 0.0
    %1107 = vmatprep.subr.mxu0 0.0
    %1108 = vmatpush1.msra.mxu0 0.0
    %1109 = vmatprep.subr.mxu0 0.0
    %1110 = vmatpush1.msra.mxu0 0.0
    %1111 = vmatprep.subr.mxu0 0.0
    %1112 = vmatpush1.msra.mxu0 0.0
    %1113 = vmatprep.subr.mxu0 0.0
    %1114 = vmatpush1.msra.mxu0 0.0
    %1115 = vmatprep.subr.mxu0 0.0
    %1116 = vmatpush1.msra.mxu0 0.0
    %1117 = vmatprep.subr.mxu0 0.0
    %1118 = vmatpush1.msra.mxu0 0.0
    %1119 = vmatprep.subr.mxu0 0.0
    %1120 = vmatpush1.msra.mxu0 0.0
    %1121 = vmatprep.subr.mxu0 0.0
    %1122 = vmatpush1.msra.mxu0 0.0
    %1123 = vmatprep.subr.mxu0 0.0
    %1124 = vmatpush1.msra.mxu0 0.0
    %1125 = vmatprep.subr.mxu0 0.0
    %1126 = vmatpush1.msra.mxu0 0.0
    %1127 = vmatprep.subr.mxu0 0.0
    %1128 = vmatpush1.msra.mxu0 0.0
    %1129 = vmatprep.subr.mxu0 0.0
    %1130 = vmatpush1.msra.mxu0 0.0
    %1131 = vmatprep.subr.mxu0 0.0
    %1132 = vmatpush1.msra.mxu0 0.0
    %1133 = vmatprep.subr.mxu0 0.0
    %1134 = vmatpush1.msra.mxu0 0.0
    %1135 = vmatprep.subr.mxu0 0.0
    %1136 = vmatpush1.msra.mxu0 0.0
    %1137 = vmatprep.mubr.f32.mxu0 0.0
    %1138 = vmatmul.mubr.f32.gmra.mrb[0].mxu0 %v1001
    %v1139 = vpop.f32.mrb[0].mxu0
    %v1140 = vadd.f32 %v831, %v1139
    %v1141 = vpop.f32.mrb[0].mxu0
    %1142 = vdwg.mxu0
    %1143 = vmatprep.subr.mxu0 0.0
    %1144 = vmatpush1.msra.mxu0 %v740
    %1145 = vmatprep.subr.mxu0 0.0
    %1146 = vmatpush1.msra.mxu0 %v741
    %1147 = vmatprep.subr.mxu0 0.0
    %1148 = vmatpush1.msra.mxu0 %v742
    %1149 = vmatprep.subr.mxu0 0.0
    %1150 = vmatpush1.msra.mxu0 %v743
    %1151 = vmatprep.subr.mxu0 0.0
    %1152 = vmatpush1.msra.mxu0 0.0
    %1153 = vmatprep.subr.mxu0 0.0
    %1154 = vmatpush1.msra.mxu0 0.0
    %1155 = vmatprep.subr.mxu0 0.0
    %1156 = vmatpush1.msra.mxu0 0.0
    %1157 = vmatprep.subr.mxu0 0.0
    %1158 = vmatpush1.msra.mxu0 0.0
    %1159 = vmatprep.subr.mxu0 0.0
    %1160 = vmatpush1.msra.mxu0 0.0
    %1161 = vmatprep.subr.mxu0 0.0
    %1162 = vmatpush1.msra.mxu0 0.0
    %1163 = vmatprep.subr.mxu0 0.0
    %1164 = vmatpush1.msra.mxu0 0.0
    %1165 = vmatprep.subr.mxu0 0.0
    %1166 = vmatpush1.msra.mxu0 0.0
    %1167 = vmatprep.subr.mxu0 0.0
    %1168 = vmatpush1.msra.mxu0 0.0
    %1169 = vmatprep.subr.mxu0 0.0
    %1170 = vmatpush1.msra.mxu0 0.0
    %1171 = vmatprep.subr.mxu0 0.0
    %1172 = vmatpush1.msra.mxu0 0.0
    %1173 = vmatprep.subr.mxu0 0.0
    %1174 = vmatpush1.msra.mxu0 0.0
    %1175 = vmatprep.subr.mxu0 0.0
    %1176 = vmatpush1.msra.mxu0 0.0
    %1177 = vmatprep.subr.mxu0 0.0
    %1178 = vmatpush1.msra.mxu0 0.0
    %1179 = vmatprep.subr.mxu0 0.0
    %1180 = vmatpush1.msra.mxu0 0.0
    %1181 = vmatprep.subr.mxu0 0.0
    %1182 = vmatpush1.msra.mxu0 0.0
    %1183 = vmatprep.subr.mxu0 0.0
    %1184 = vmatpush1.msra.mxu0 0.0
    %1185 = vmatprep.subr.mxu0 0.0
    %1186 = vmatpush1.msra.mxu0 0.0
    %1187 = vmatprep.subr.mxu0 0.0
    %1188 = vmatpush1.msra.mxu0 0.0
    %1189 = vmatprep.subr.mxu0 0.0
    %1190 = vmatpush1.msra.mxu0 0.0
    %1191 = vmatprep.subr.mxu0 0.0
    %1192 = vmatpush1.msra.mxu0 0.0
    %1193 = vmatprep.subr.mxu0 0.0
    %1194 = vmatpush1.msra.mxu0 0.0
    %1195 = vmatprep.subr.mxu0 0.0
    %1196 = vmatpush1.msra.mxu0 0.0
    %1197 = vmatprep.subr.mxu0 0.0
    %1198 = vmatpush1.msra.mxu0 0.0
    %1199 = vmatprep.subr.mxu0 0.0
    %1200 = vmatpush1.msra.mxu0 0.0
    %1201 = vmatprep.subr.mxu0 0.0
    %1202 = vmatpush1.msra.mxu0 0.0
    %1203 = vmatprep.subr.mxu0 0.0
    %1204 = vmatpush1.msra.mxu0 0.0
    %1205 = vmatprep.subr.mxu0 0.0
    %1206 = vmatpush1.msra.mxu0 0.0
    %1207 = vmatprep.mubr.f32.mxu0 0.0
    %1208 = vmatmul.mubr.f32.gmra.mrb[0].mxu0 %v1001
    %v1209 = vpop.f32.mrb[0].mxu0
    %v1210 = vadd.f32 %v907, %v1209
    %v1211 = vpop.f32.mrb[0].mxu0
    %1212 = vdwg.mxu0
    %v1213 = vadd.f32 %v353, %v1070
    %v1214 = vxor.u32 %v1213, 2147483648
    %v1215 = vmul.f32 %v1214, 1.442695
    %v1216 = vpow.pop %v1215
    %v1217 = vadd.f32 %v1216, 1.0
    %v1218 = vrcp.pop %v1217
    %v1219 = vmul.f32 1.0, %v1218
    %v1220 = vadd.f32 %v506, %v1140
    %v1221 = vxor.u32 %v1220, 2147483648
    %v1222 = vmul.f32 %v1221, 1.442695
    %v1223 = vpow.pop %v1222
    %v1224 = vadd.f32 %v1223, 1.0
    %v1225 = vrcp.pop %v1224
    %v1226 = vmul.f32 1.0, %v1225
    %v1227 = vmul.f32 %v1219, %v1210
    %v1228 = vadd.f32 %v659, %v1227
    %v1229 = vtanh.pop %v1228
    %v1230 = vsub.f32 1.0, %v1226
    %v1231 = vmul.f32 %v1230, %v1229
    %v1232 = vmul.f32 %v1226, %v999
    %v1233 = vadd.f32 %v1231, %v1232
    %v1235 = vsel %vm753, %v1233, 0
    %1237 = vmatprep.subr.mxu0 0.0
    %1238 = vmatpush1.msra.mxu0 %v732
    %1239 = vmatprep.subr.mxu0 0.0
    %1240 = vmatpush1.msra.mxu0 %v733
    %1241 = vmatprep.subr.mxu0 0.0
    %1242 = vmatpush1.msra.mxu0 %v734
    %1243 = vmatprep.subr.mxu0 0.0
    %1244 = vmatpush1.msra.mxu0 %v735
    %1245 = vmatprep.subr.mxu0 0.0
    %1246 = vmatpush1.msra.mxu0 0.0
    %1247 = vmatprep.subr.mxu0 0.0
    %1248 = vmatpush1.msra.mxu0 0.0
    %1249 = vmatprep.subr.mxu0 0.0
    %1250 = vmatpush1.msra.mxu0 0.0
    %1251 = vmatprep.subr.mxu0 0.0
    %1252 = vmatpush1.msra.mxu0 0.0
    %1253 = vmatprep.subr.mxu0 0.0
    %1254 = vmatpush1.msra.mxu0 0.0
    %1255 = vmatprep.subr.mxu0 0.0
    %1256 = vmatpush1.msra.mxu0 0.0
    %1257 = vmatprep.subr.mxu0 0.0
    %1258 = vmatpush1.msra.mxu0 0.0
    %1259 = vmatprep.subr.mxu0 0.0
    %1260 = vmatpush1.msra.mxu0 0.0
    %1261 = vmatprep.subr.mxu0 0.0
    %1262 = vmatpush1.msra.mxu0 0.0
    %1263 = vmatprep.subr.mxu0 0.0
    %1264 = vmatpush1.msra.mxu0 0.0
    %1265 = vmatprep.subr.mxu0 0.0
    %1266 = vmatpush1.msra.mxu0 0.0
    %1267 = vmatprep.subr.mxu0 0.0
    %1268 = vmatpush1.msra.mxu0 0.0
    %1269 = vmatprep.subr.mxu0 0.0
    %1270 = vmatpush1.msra.mxu0 0.0
    %1271 = vmatprep.subr.mxu0 0.0
    %1272 = vmatpush1.msra.mxu0 0.0
    %1273 = vmatprep.subr.mxu0 0.0
    %1274 = vmatpush1.msra.mxu0 0.0
    %1275 = vmatprep.subr.mxu0 0.0
    %1276 = vmatpush1.msra.mxu0 0.0
    %1277 = vmatprep.subr.mxu0 0.0
    %1278 = vmatpush1.msra.mxu0 0.0
    %1279 = vmatprep.subr.mxu0 0.0
    %1280 = vmatpush1.msra.mxu0 0.0
    %1281 = vmatprep.subr.mxu0 0.0
    %1282 = vmatpush1.msra.mxu0 0.0
    %1283 = vmatprep.subr.mxu0 0.0
    %1284 = vmatpush1.msra.mxu0 0.0
    %1285 = vmatprep.subr.mxu0 0.0
    %1286 = vmatpush1.msra.mxu0 0.0
    %1287 = vmatprep.subr.mxu0 0.0
    %1288 = vmatpush1.msra.mxu0 0.0
    %1289 = vmatprep.subr.mxu0 0.0
    %1290 = vmatpush1.msra.mxu0 0.0
    %1291 = vmatprep.subr.mxu0 0.0
    %1292 = vmatpush1.msra.mxu0 0.0
    %1293 = vmatprep.subr.mxu0 0.0
    %1294 = vmatpush1.msra.mxu0 0.0
    %1295 = vmatprep.subr.mxu0 0.0
    %1296 = vmatpush1.msra.mxu0 0.0
    %1297 = vmatprep.subr.mxu0 0.0
    %1298 = vmatpush1.msra.mxu0 0.0
    %1299 = vmatprep.subr.mxu0 0.0
    %1300 = vmatpush1.msra.mxu0 0.0
    %1301 = vmatprep.mubr.f32.mxu0 0.0
    %1302 = vmatmul.mubr.f32.gmra.mrb[0].mxu0 %v1235
    %v1303 = vpop.f32.mrb[0].mxu0
    %v1304 = vadd.f32 %v751, %v1303
    %v1305 = vpop.f32.mrb[0].mxu0
    %1306 = vdwg.mxu0
    %1307 = vmatprep.subr.mxu0 0.0
    %1308 = vmatpush1.msra.mxu0 %v736
    %1309 = vmatprep.subr.mxu0 0.0
    %1310 = vmatpush1.msra.mxu0 %v737
    %1311 = vmatprep.subr.mxu0 0.0
    %1312 = vmatpush1.msra.mxu0 %v738
    %1313 = vmatprep.subr.mxu0 0.0
    %1314 = vmatpush1.msra.mxu0 %v739
    %1315 = vmatprep.subr.mxu0 0.0
    %1316 = vmatpush1.msra.mxu0 0.0
    %1317 = vmatprep.subr.mxu0 0.0
    %1318 = vmatpush1.msra.mxu0 0.0
    %1319 = vmatprep.subr.mxu0 0.0
    %1320 = vmatpush1.msra.mxu0 0.0
    %1321 = vmatprep.subr.mxu0 0.0
    %1322 = vmatpush1.msra.mxu0 0.0
    %1323 = vmatprep.subr.mxu0 0.0
    %1324 = vmatpush1.msra.mxu0 0.0
    %1325 = vmatprep.subr.mxu0 0.0
    %1326 = vmatpush1.msra.mxu0 0.0
    %1327 = vmatprep.subr.mxu0 0.0
    %1328 = vmatpush1.msra.mxu0 0.0
    %1329 = vmatprep.subr.mxu0 0.0
    %1330 = vmatpush1.msra.mxu0 0.0
    %1331 = vmatprep.subr.mxu0 0.0
    %1332 = vmatpush1.msra.mxu0 0.0
    %1333 = vmatprep.subr.mxu0 0.0
    %1334 = vmatpush1.msra.mxu0 0.0
    %1335 = vmatprep.subr.mxu0 0.0
    %1336 = vmatpush1.msra.mxu0 0.0
    %1337 = vmatprep.subr.mxu0 0.0
    %1338 = vmatpush1.msra.mxu0 0.0
    %1339 = vmatprep.subr.mxu0 0.0
    %1340 = vmatpush1.msra.mxu0 0.0
    %1341 = vmatprep.subr.mxu0 0.0
    %1342 = vmatpush1.msra.mxu0 0.0
    %1343 = vmatprep.subr.mxu0 0.0
    %1344 = vmatpush1.msra.mxu0 0.0
    %1345 = vmatprep.subr.mxu0 0.0
    %1346 = vmatpush1.msra.mxu0 0.0
    %1347 = vmatprep.subr.mxu0 0.0
    %1348 = vmatpush1.msra.mxu0 0.0
    %1349 = vmatprep.subr.mxu0 0.0
    %1350 = vmatpush1.msra.mxu0 0.0
    %1351 = vmatprep.subr.mxu0 0.0
    %1352 = vmatpush1.msra.mxu0 0.0
    %1353 = vmatprep.subr.mxu0 0.0
    %1354 = vmatpush1.msra.mxu0 0.0
    %1355 = vmatprep.subr.mxu0 0.0
    %1356 = vmatpush1.msra.mxu0 0.0
    %1357 = vmatprep.subr.mxu0 0.0
    %1358 = vmatpush1.msra.mxu0 0.0
    %1359 = vmatprep.subr.mxu0 0.0
    %1360 = vmatpush1.msra.mxu0 0.0
    %1361 = vmatprep.subr.mxu0 0.0
    %1362 = vmatpush1.msra.mxu0 0.0
    %1363 = vmatprep.subr.mxu0 0.0
    %1364 = vmatpush1.msra.mxu0 0.0
    %1365 = vmatprep.subr.mxu0 0.0
    %1366 = vmatpush1.msra.mxu0 0.0
    %1367 = vmatprep.subr.mxu0 0.0
    %1368 = vmatpush1.msra.mxu0 0.0
    %1369 = vmatprep.subr.mxu0 0.0
    %1370 = vmatpush1.msra.mxu0 0.0
    %1371 = vmatprep.mubr.f32.mxu0 0.0
    %1372 = vmatmul.mubr.f32.gmra.mrb[0].mxu0 %v1235
    %v1373 = vpop.f32.mrb[0].mxu0
    %v1374 = vadd.f32 %v831, %v1373
    %v1375 = vpop.f32.mrb[0].mxu0
    %1376 = vdwg.mxu0
    %1377 = vmatprep.subr.mxu0 0.0
    %1378 = vmatpush1.msra.mxu0 %v740
    %1379 = vmatprep.subr.mxu0 0.0
    %1380 = vmatpush1.msra.mxu0 %v741
    %1381 = vmatprep.subr.mxu0 0.0
    %1382 = vmatpush1.msra.mxu0 %v742
    %1383 = vmatprep.subr.mxu0 0.0
    %1384 = vmatpush1.msra.mxu0 %v743
    %1385 = vmatprep.subr.mxu0 0.0
    %1386 = vmatpush1.msra.mxu0 0.0
    %1387 = vmatprep.subr.mxu0 0.0
    %1388 = vmatpush1.msra.mxu0 0.0
    %1389 = vmatprep.subr.mxu0 0.0
    %1390 = vmatpush1.msra.mxu0 0.0
    %1391 = vmatprep.subr.mxu0 0.0
    %1392 = vmatpush1.msra.mxu0 0.0
    %1393 = vmatprep.subr.mxu0 0.0
    %1394 = vmatpush1.msra.mxu0 0.0
    %1395 = vmatprep.subr.mxu0 0.0
    %1396 = vmatpush1.msra.mxu0 0.0
    %1397 = vmatprep.subr.mxu0 0.0
    %1398 = vmatpush1.msra.mxu0 0.0
    %1399 = vmatprep.subr.mxu0 0.0
    %1400 = vmatpush1.msra.mxu0 0.0
    %1401 = vmatprep.subr.mxu0 0.0
    %1402 = vmatpush1.msra.mxu0 0.0
    %1403 = vmatprep.subr.mxu0 0.0
    %1404 = vmatpush1.msra.mxu0 0.0
    %1405 = vmatprep.subr.mxu0 0.0
    %1406 = vmatpush1.msra.mxu0 0.0
    %1407 = vmatprep.subr.mxu0 0.0
    %1408 = vmatpush1.msra.mxu0 0.0
    %1409 = vmatprep.subr.mxu0 0.0
    %1410 = vmatpush1.msra.mxu0 0.0
    %1411 = vmatprep.subr.mxu0 0.0
    %1412 = vmatpush1.msra.mxu0 0.0
    %1413 = vmatprep.subr.mxu0 0.0
    %1414 = vmatpush1.msra.mxu0 0.0
    %1415 = vmatprep.subr.mxu0 0.0
    %1416 = vmatpush1.msra.mxu0 0.0
    %1417 = vmatprep.subr.mxu0 0.0
    %1418 = vmatpush1.msra.mxu0 0.0
    %1419 = vmatprep.subr.mxu0 0.0
    %1420 = vmatpush1.msra.mxu0 0.0
    %1421 = vmatprep.subr.mxu0 0.0
    %1422 = vmatpush1.msra.mxu0 0.0
    %1423 = vmatprep.subr.mxu0 0.0
    %1424 = vmatpush1.msra.mxu0 0.0
    %1425 = vmatprep.subr.mxu0 0.0
    %1426 = vmatpush1.msra.mxu0 0.0
    %1427 = vmatprep.subr.mxu0 0.0
    %1428 = vmatpush1.msra.mxu0 0.0
    %1429 = vmatprep.subr.mxu0 0.0
    %1430 = vmatpush1.msra.mxu0 0.0
    %1431 = vmatprep.subr.mxu0 0.0
    %1432 = vmatpush1.msra.mxu0 0.0
    %1433 = vmatprep.subr.mxu0 0.0
    %1434 = vmatpush1.msra.mxu0 0.0
    %1435 = vmatprep.subr.mxu0 0.0
    %1436 = vmatpush1.msra.mxu0 0.0
    %1437 = vmatprep.subr.mxu0 0.0
    %1438 = vmatpush1.msra.mxu0 0.0
    %1439 = vmatprep.subr.mxu0 0.0
    %1440 = vmatpush1.msra.mxu0 0.0
    %1441 = vmatprep.mubr.f32.mxu0 0.0
    %1442 = vmatmul.mubr.f32.gmra.mrb[0].mxu0 %v1235
    %v1443 = vpop.f32.mrb[0].mxu0
    %v1444 = vadd.f32 %v907, %v1443
    %v1445 = vpop.f32.mrb[0].mxu0
    %1446 = vdwg.mxu0
    %v1447 = vadd.f32 %v358, %v1304
    %v1448 = vxor.u32 %v1447, 2147483648
    %v1449 = vmul.f32 %v1448, 1.442695
    %v1450 = vpow.pop %v1449
    %v1451 = vadd.f32 %v1450, 1.0
    %v1452 = vrcp.pop %v1451
    %v1453 = vmul.f32 1.0, %v1452
    %v1454 = vadd.f32 %v511, %v1374
    %v1455 = vxor.u32 %v1454, 2147483648
    %v1456 = vmul.f32 %v1455, 1.442695
    %v1457 = vpow.pop %v1456
    %v1458 = vadd.f32 %v1457, 1.0
    %v1459 = vrcp.pop %v1458
    %v1460 = vmul.f32 1.0, %v1459
    %v1461 = vmul.f32 %v1453, %v1444
    %v1462 = vadd.f32 %v664, %v1461
    %v1463 = vtanh.pop %v1462
    %v1464 = vsub.f32 1.0, %v1460
    %v1465 = vmul.f32 %v1464, %v1463
    %v1466 = vmul.f32 %v1460, %v1233
    %v1467 = vadd.f32 %v1465, %v1466
    %v1469 = vsel %vm753, %v1467, 0
    %1471 = vmatprep.subr.mxu0 0.0
    %1472 = vmatpush1.msra.mxu0 %v732
    %1473 = vmatprep.subr.mxu0 0.0
    %1474 = vmatpush1.msra.mxu0 %v733
    %1475 = vmatprep.subr.mxu0 0.0
    %1476 = vmatpush1.msra.mxu0 %v734
    %1477 = vmatprep.subr.mxu0 0.0
    %1478 = vmatpush1.msra.mxu0 %v735
    %1479 = vmatprep.subr.mxu0 0.0
    %1480 = vmatpush1.msra.mxu0 0.0
    %1481 = vmatprep.subr.mxu0 0.0
    %1482 = vmatpush1.msra.mxu0 0.0
    %1483 = vmatprep.subr.mxu0 0.0
    %1484 = vmatpush1.msra.mxu0 0.0
    %1485 = vmatprep.subr.mxu0 0.0
    %1486 = vmatpush1.msra.mxu0 0.0
    %1487 = vmatprep.subr.mxu0 0.0
    %1488 = vmatpush1.msra.mxu0 0.0
    %1489 = vmatprep.subr.mxu0 0.0
    %1490 = vmatpush1.msra.mxu0 0.0
    %1491 = vmatprep.subr.mxu0 0.0
    %1492 = vmatpush1.msra.mxu0 0.0
    %1493 = vmatprep.subr.mxu0 0.0
    %1494 = vmatpush1.msra.mxu0 0.0
    %1495 = vmatprep.subr.mxu0 0.0
    %1496 = vmatpush1.msra.mxu0 0.0
    %1497 = vmatprep.subr.mxu0 0.0
    %1498 = vmatpush1.msra.mxu0 0.0
    %1499 = vmatprep.subr.mxu0 0.0
    %1500 = vmatpush1.msra.mxu0 0.0
    %1501 = vmatprep.subr.mxu0 0.0
    %1502 = vmatpush1.msra.mxu0 0.0
    %1503 = vmatprep.subr.mxu0 0.0
    %1504 = vmatpush1.msra.mxu0 0.0
    %1505 = vmatprep.subr.mxu0 0.0
    %1506 = vmatpush1.msra.mxu0 0.0
    %1507 = vmatprep.subr.mxu0 0.0
    %1508 = vmatpush1.msra.mxu0 0.0
    %1509 = vmatprep.subr.mxu0 0.0
    %1510 = vmatpush1.msra.mxu0 0.0
    %1511 = vmatprep.subr.mxu0 0.0
    %1512 = vmatpush1.msra.mxu0 0.0
    %1513 = vmatprep.subr.mxu0 0.0
    %1514 = vmatpush1.msra.mxu0 0.0
    %1515 = vmatprep.subr.mxu0 0.0
    %1516 = vmatpush1.msra.mxu0 0.0
    %1517 = vmatprep.subr.mxu0 0.0
    %1518 = vmatpush1.msra.mxu0 0.0
    %1519 = vmatprep.subr.mxu0 0.0
    %1520 = vmatpush1.msra.mxu0 0.0
    %1521 = vmatprep.subr.mxu0 0.0
    %1522 = vmatpush1.msra.mxu0 0.0
    %1523 = vmatprep.subr.mxu0 0.0
    %1524 = vmatpush1.msra.mxu0 0.0
    %1525 = vmatprep.subr.mxu0 0.0
    %1526 = vmatpush1.msra.mxu0 0.0
    %1527 = vmatprep.subr.mxu0 0.0
    %1528 = vmatpush1.msra.mxu0 0.0
    %1529 = vmatprep.subr.mxu0 0.0
    %1530 = vmatpush1.msra.mxu0 0.0
    %1531 = vmatprep.subr.mxu0 0.0
    %1532 = vmatpush1.msra.mxu0 0.0
    %1533 = vmatprep.subr.mxu0 0.0
    %1534 = vmatpush1.msra.mxu0 0.0
    %1535 = vmatprep.mubr.f32.mxu0 0.0
    %1536 = vmatmul.mubr.f32.gmra.mrb[0].mxu0 %v1469
    %v1537 = vpop.f32.mrb[0].mxu0
    %v1538 = vadd.f32 %v751, %v1537
    %v1539 = vpop.f32.mrb[0].mxu0
    %1540 = vdwg.mxu0
    %1541 = vmatprep.subr.mxu0 0.0
    %1542 = vmatpush1.msra.mxu0 %v736
    %1543 = vmatprep.subr.mxu0 0.0
    %1544 = vmatpush1.msra.mxu0 %v737
    %1545 = vmatprep.subr.mxu0 0.0
    %1546 = vmatpush1.msra.mxu0 %v738
    %1547 = vmatprep.subr.mxu0 0.0
    %1548 = vmatpush1.msra.mxu0 %v739
    %1549 = vmatprep.subr.mxu0 0.0
    %1550 = vmatpush1.msra.mxu0 0.0
    %1551 = vmatprep.subr.mxu0 0.0
    %1552 = vmatpush1.msra.mxu0 0.0
    %1553 = vmatprep.subr.mxu0 0.0
    %1554 = vmatpush1.msra.mxu0 0.0
    %1555 = vmatprep.subr.mxu0 0.0
    %1556 = vmatpush1.msra.mxu0 0.0
    %1557 = vmatprep.subr.mxu0 0.0
    %1558 = vmatpush1.msra.mxu0 0.0
    %1559 = vmatprep.subr.mxu0 0.0
    %1560 = vmatpush1.msra.mxu0 0.0
    %1561 = vmatprep.subr.mxu0 0.0
    %1562 = vmatpush1.msra.mxu0 0.0
    %1563 = vmatprep.subr.mxu0 0.0
    %1564 = vmatpush1.msra.mxu0 0.0
    %1565 = vmatprep.subr.mxu0 0.0
    %1566 = vmatpush1.msra.mxu0 0.0
    %1567 = vmatprep.subr.mxu0 0.0
    %1568 = vmatpush1.msra.mxu0 0.0
    %1569 = vmatprep.subr.mxu0 0.0
    %1570 = vmatpush1.msra.mxu0 0.0
    %1571 = vmatprep.subr.mxu0 0.0
    %1572 = vmatpush1.msra.mxu0 0.0
    %1573 = vmatprep.subr.mxu0 0.0
    %1574 = vmatpush1.msra.mxu0 0.0
    %1575 = vmatprep.subr.mxu0 0.0
    %1576 = vmatpush1.msra.mxu0 0.0
    %1577 = vmatprep.subr.mxu0 0.0
    %1578 = vmatpush1.msra.mxu0 0.0
    %1579 = vmatprep.subr.mxu0 0.0
    %1580 = vmatpush1.msra.mxu0 0.0
    %1581 = vmatprep.subr.mxu0 0.0
    %1582 = vmatpush1.msra.mxu0 0.0
    %1583 = vmatprep.subr.mxu0 0.0
    %1584 = vmatpush1.msra.mxu0 0.0
    %1585 = vmatprep.subr.mxu0 0.0
    %1586 = vmatpush1.msra.mxu0 0.0
    %1587 = vmatprep.subr.mxu0 0.0
    %1588 = vmatpush1.msra.mxu0 0.0
    %1589 = vmatprep.subr.mxu0 0.0
    %1590 = vmatpush1.msra.mxu0 0.0
    %1591 = vmatprep.subr.mxu0 0.0
    %1592 = vmatpush1.msra.mxu0 0.0
    %1593 = vmatprep.subr.mxu0 0.0
    %1594 = vmatpush1.msra.mxu0 0.0
    %1595 = vmatprep.subr.mxu0 0.0
    %1596 = vmatpush1.msra.mxu0 0.0
    %1597 = vmatprep.subr.mxu0 0.0
    %1598 = vmatpush1.msra.mxu0 0.0
    %1599 = vmatprep.subr.mxu0 0.0
    %1600 = vmatpush1.msra.mxu0 0.0
    %1601 = vmatprep.subr.mxu0 0.0
    %1602 = vmatpush1.msra.mxu0 0.0
    %1603 = vmatprep.subr.mxu0 0.0
    %1604 = vmatpush1.msra.mxu0 0.0
    %1605 = vmatprep.mubr.f32.mxu0 0.0
    %1606 = vmatmul.mubr.f32.gmra.mrb[0].mxu0 %v1469
    %v1607 = vpop.f32.mrb[0].mxu0
    %v1608 = vadd.f32 %v831, %v1607
    %v1609 = vpop.f32.mrb[0].mxu0
    %1610 = vdwg.mxu0
    %1611 = vmatprep.subr.mxu0 0.0
    %1612 = vmatpush1.msra.mxu0 %v740
    %1613 = vmatprep.subr.mxu0 0.0
    %1614 = vmatpush1.msra.mxu0 %v741
    %1615 = vmatprep.subr.mxu0 0.0
    %1616 = vmatpush1.msra.mxu0 %v742
    %1617 = vmatprep.subr.mxu0 0.0
    %1618 = vmatpush1.msra.mxu0 %v743
    %1619 = vmatprep.subr.mxu0 0.0
    %1620 = vmatpush1.msra.mxu0 0.0
    %1621 = vmatprep.subr.mxu0 0.0
    %1622 = vmatpush1.msra.mxu0 0.0
    %1623 = vmatprep.subr.mxu0 0.0
    %1624 = vmatpush1.msra.mxu0 0.0
    %1625 = vmatprep.subr.mxu0 0.0
    %1626 = vmatpush1.msra.mxu0 0.0
    %1627 = vmatprep.subr.mxu0 0.0
    %1628 = vmatpush1.msra.mxu0 0.0
    %1629 = vmatprep.subr.mxu0 0.0
    %1630 = vmatpush1.msra.mxu0 0.0
    %1631 = vmatprep.subr.mxu0 0.0
    %1632 = vmatpush1.msra.mxu0 0.0
    %1633 = vmatprep.subr.mxu0 0.0
    %1634 = vmatpush1.msra.mxu0 0.0
    %1635 = vmatprep.subr.mxu0 0.0
    %1636 = vmatpush1.msra.mxu0 0.0
    %1637 = vmatprep.subr.mxu0 0.0
    %1638 = vmatpush1.msra.mxu0 0.0
    %1639 = vmatprep.subr.mxu0 0.0
    %1640 = vmatpush1.msra.mxu0 0.0
    %1641 = vmatprep.subr.mxu0 0.0
    %1642 = vmatpush1.msra.mxu0 0.0
    %1643 = vmatprep.subr.mxu0 0.0
    %1644 = vmatpush1.msra.mxu0 0.0
    %1645 = vmatprep.subr.mxu0 0.0
    %1646 = vmatpush1.msra.mxu0 0.0
    %1647 = vmatprep.subr.mxu0 0.0
    %1648 = vmatpush1.msra.mxu0 0.0
    %1649 = vmatprep.subr.mxu0 0.0
    %1650 = vmatpush1.msra.mxu0 0.0
    %1651 = vmatprep.subr.mxu0 0.0
    %1652 = vmatpush1.msra.mxu0 0.0
    %1653 = vmatprep.subr.mxu0 0.0
    %1654 = vmatpush1.msra.mxu0 0.0
    %1655 = vmatprep.subr.mxu0 0.0
    %1656 = vmatpush1.msra.mxu0 0.0
    %1657 = vmatprep.subr.mxu0 0.0
    %1658 = vmatpush1.msra.mxu0 0.0
    %1659 = vmatprep.subr.mxu0 0.0
    %1660 = vmatpush1.msra.mxu0 0.0
    %1661 = vmatprep.subr.mxu0 0.0
    %1662 = vmatpush1.msra.mxu0 0.0
    %1663 = vmatprep.subr.mxu0 0.0
    %1664 = vmatpush1.msra.mxu0 0.0
    %1665 = vmatprep.subr.mxu0 0.0
    %1666 = vmatpush1.msra.mxu0 0.0
    %1667 = vmatprep.subr.mxu0 0.0
    %1668 = vmatpush1.msra.mxu0 0.0
    %1669 = vmatprep.subr.mxu0 0.0
    %1670 = vmatpush1.msra.mxu0 0.0
    %1671 = vmatprep.subr.mxu0 0.0
    %1672 = vmatpush1.msra.mxu0 0.0
    %1673 = vmatprep.subr.mxu0 0.0
    %1674 = vmatpush1.msra.mxu0 0.0
    %1675 = vmatprep.mubr.f32.mxu0 0.0
    %1676 = vmatmul.mubr.f32.gmra.mrb[0].mxu0 %v1469
    %v1677 = vpop.f32.mrb[0].mxu0
    %v1678 = vadd.f32 %v907, %v1677
    %v1679 = vpop.f32.mrb[0].mxu0
    %1680 = vdwg.mxu0
    %v1681 = vadd.f32 %v363, %v1538
    %v1682 = vxor.u32 %v1681, 2147483648
    %v1683 = vmul.f32 %v1682, 1.442695
    %v1684 = vpow.pop %v1683
    %v1685 = vadd.f32 %v1684, 1.0
    %v1686 = vrcp.pop %v1685
    %v1687 = vmul.f32 1.0, %v1686
    %v1688 = vadd.f32 %v516, %v1608
    %v1689 = vxor.u32 %v1688, 2147483648
    %v1690 = vmul.f32 %v1689, 1.442695
    %v1691 = vpow.pop %v1690
    %v1692 = vadd.f32 %v1691, 1.0
    %v1693 = vrcp.pop %v1692
    %v1694 = vmul.f32 1.0, %v1693
    %v1695 = vmul.f32 %v1687, %v1678
    %v1696 = vadd.f32 %v669, %v1695
    %v1697 = vtanh.pop %v1696
    %v1698 = vsub.f32 1.0, %v1694
    %v1699 = vmul.f32 %v1698, %v1697
    %v1700 = vmul.f32 %v1694, %v1467
    %v1701 = vadd.f32 %v1699, %v1700
    %v1703 = vsel %vm753, %v1701, 0
    %1705 = vmatprep.subr.mxu0 0.0
    %1706 = vmatpush1.msra.mxu0 %v732
    %1707 = vmatprep.subr.mxu0 0.0
    %1708 = vmatpush1.msra.mxu0 %v733
    %1709 = vmatprep.subr.mxu0 0.0
    %1710 = vmatpush1.msra.mxu0 %v734
    %1711 = vmatprep.subr.mxu0 0.0
    %1712 = vmatpush1.msra.mxu0 %v735
    %1713 = vmatprep.subr.mxu0 0.0
    %1714 = vmatpush1.msra.mxu0 0.0
    %1715 = vmatprep.subr.mxu0 0.0
    %1716 = vmatpush1.msra.mxu0 0.0
    %1717 = vmatprep.subr.mxu0 0.0
    %1718 = vmatpush1.msra.mxu0 0.0
    %1719 = vmatprep.subr.mxu0 0.0
    %1720 = vmatpush1.msra.mxu0 0.0
    %1721 = vmatprep.subr.mxu0 0.0
    %1722 = vmatpush1.msra.mxu0 0.0
    %1723 = vmatprep.subr.mxu0 0.0
    %1724 = vmatpush1.msra.mxu0 0.0
    %1725 = vmatprep.subr.mxu0 0.0
    %1726 = vmatpush1.msra.mxu0 0.0
    %1727 = vmatprep.subr.mxu0 0.0
    %1728 = vmatpush1.msra.mxu0 0.0
    %1729 = vmatprep.subr.mxu0 0.0
    %1730 = vmatpush1.msra.mxu0 0.0
    %1731 = vmatprep.subr.mxu0 0.0
    %1732 = vmatpush1.msra.mxu0 0.0
    %1733 = vmatprep.subr.mxu0 0.0
    %1734 = vmatpush1.msra.mxu0 0.0
    %1735 = vmatprep.subr.mxu0 0.0
    %1736 = vmatpush1.msra.mxu0 0.0
    %1737 = vmatprep.subr.mxu0 0.0
    %1738 = vmatpush1.msra.mxu0 0.0
    %1739 = vmatprep.subr.mxu0 0.0
    %1740 = vmatpush1.msra.mxu0 0.0
    %1741 = vmatprep.subr.mxu0 0.0
    %1742 = vmatpush1.msra.mxu0 0.0
    %1743 = vmatprep.subr.mxu0 0.0
    %1744 = vmatpush1.msra.mxu0 0.0
    %1745 = vmatprep.subr.mxu0 0.0
    %1746 = vmatpush1.msra.mxu0 0.0
    %1747 = vmatprep.subr.mxu0 0.0
    %1748 = vmatpush1.msra.mxu0 0.0
    %1749 = vmatprep.subr.mxu0 0.0
    %1750 = vmatpush1.msra.mxu0 0.0
    %1751 = vmatprep.subr.mxu0 0.0
    %1752 = vmatpush1.msra.mxu0 0.0
    %1753 = vmatprep.subr.mxu0 0.0
    %1754 = vmatpush1.msra.mxu0 0.0
    %1755 = vmatprep.subr.mxu0 0.0
    %1756 = vmatpush1.msra.mxu0 0.0
    %1757 = vmatprep.subr.mxu0 0.0
    %1758 = vmatpush1.msra.mxu0 0.0
    %1759 = vmatprep.subr.mxu0 0.0
    %1760 = vmatpush1.msra.mxu0 0.0
    %1761 = vmatprep.subr.mxu0 0.0
    %1762 = vmatpush1.msra.mxu0 0.0
    %1763 = vmatprep.subr.mxu0 0.0
    %1764 = vmatpush1.msra.mxu0 0.0
    %1765 = vmatprep.subr.mxu0 0.0
    %1766 = vmatpush1.msra.mxu0 0.0
    %1767 = vmatprep.subr.mxu0 0.0
    %1768 = vmatpush1.msra.mxu0 0.0
    %1769 = vmatprep.mubr.f32.mxu0 0.0
    %1770 = vmatmul.mubr.f32.gmra.mrb[0].mxu0 %v1703
    %v1771 = vpop.f32.mrb[0].mxu0
    %v1772 = vadd.f32 %v751, %v1771
    %v1773 = vpop.f32.mrb[0].mxu0
    %1774 = vdwg.mxu0
    %1775 = vmatprep.subr.mxu0 0.0
    %1776 = vmatpush1.msra.mxu0 %v736
    %1777 = vmatprep.subr.mxu0 0.0
    %1778 = vmatpush1.msra.mxu0 %v737
    %1779 = vmatprep.subr.mxu0 0.0
    %1780 = vmatpush1.msra.mxu0 %v738
    %1781 = vmatprep.subr.mxu0 0.0
    %1782 = vmatpush1.msra.mxu0 %v739
    %1783 = vmatprep.subr.mxu0 0.0
    %1784 = vmatpush1.msra.mxu0 0.0
    %1785 = vmatprep.subr.mxu0 0.0
    %1786 = vmatpush1.msra.mxu0 0.0
    %1787 = vmatprep.subr.mxu0 0.0
    %1788 = vmatpush1.msra.mxu0 0.0
    %1789 = vmatprep.subr.mxu0 0.0
    %1790 = vmatpush1.msra.mxu0 0.0
    %1791 = vmatprep.subr.mxu0 0.0
    %1792 = vmatpush1.msra.mxu0 0.0
    %1793 = vmatprep.subr.mxu0 0.0
    %1794 = vmatpush1.msra.mxu0 0.0
    %1795 = vmatprep.subr.mxu0 0.0
    %1796 = vmatpush1.msra.mxu0 0.0
    %1797 = vmatprep.subr.mxu0 0.0
    %1798 = vmatpush1.msra.mxu0 0.0
    %1799 = vmatprep.subr.mxu0 0.0
    %1800 = vmatpush1.msra.mxu0 0.0
    %1801 = vmatprep.subr.mxu0 0.0
    %1802 = vmatpush1.msra.mxu0 0.0
    %1803 = vmatprep.subr.mxu0 0.0
    %1804 = vmatpush1.msra.mxu0 0.0
    %1805 = vmatprep.subr.mxu0 0.0
    %1806 = vmatpush1.msra.mxu0 0.0
    %1807 = vmatprep.subr.mxu0 0.0
    %1808 = vmatpush1.msra.mxu0 0.0
    %1809 = vmatprep.subr.mxu0 0.0
    %1810 = vmatpush1.msra.mxu0 0.0
    %1811 = vmatprep.subr.mxu0 0.0
    %1812 = vmatpush1.msra.mxu0 0.0
    %1813 = vmatprep.subr.mxu0 0.0
    %1814 = vmatpush1.msra.mxu0 0.0
    %1815 = vmatprep.subr.mxu0 0.0
    %1816 = vmatpush1.msra.mxu0 0.0
    %1817 = vmatprep.subr.mxu0 0.0
    %1818 = vmatpush1.msra.mxu0 0.0
    %1819 = vmatprep.subr.mxu0 0.0
    %1820 = vmatpush1.msra.mxu0 0.0
    %1821 = vmatprep.subr.mxu0 0.0
    %1822 = vmatpush1.msra.mxu0 0.0
    %1823 = vmatprep.subr.mxu0 0.0
    %1824 = vmatpush1.msra.mxu0 0.0
    %1825 = vmatprep.subr.mxu0 0.0
    %1826 = vmatpush1.msra.mxu0 0.0
    %1827 = vmatprep.subr.mxu0 0.0
    %1828 = vmatpush1.msra.mxu0 0.0
    %1829 = vmatprep.subr.mxu0 0.0
    %1830 = vmatpush1.msra.mxu0 0.0
    %1831 = vmatprep.subr.mxu0 0.0
    %1832 = vmatpush1.msra.mxu0 0.0
    %1833 = vmatprep.subr.mxu0 0.0
    %1834 = vmatpush1.msra.mxu0 0.0
    %1835 = vmatprep.subr.mxu0 0.0
    %1836 = vmatpush1.msra.mxu0 0.0
    %1837 = vmatprep.subr.mxu0 0.0
    %1838 = vmatpush1.msra.mxu0 0.0
    %1839 = vmatprep.mubr.f32.mxu0 0.0
    %1840 = vmatmul.mubr.f32.gmra.mrb[0].mxu0 %v1703
    %v1841 = vpop.f32.mrb[0].mxu0
    %v1842 = vadd.f32 %v831, %v1841
    %v1843 = vpop.f32.mrb[0].mxu0
    %1844 = vdwg.mxu0
    %1845 = vmatprep.subr.mxu0 0.0
    %1846 = vmatpush1.msra.mxu0 %v740
    %1847 = vmatprep.subr.mxu0 0.0
    %1848 = vmatpush1.msra.mxu0 %v741
    %1849 = vmatprep.subr.mxu0 0.0
    %1850 = vmatpush1.msra.mxu0 %v742
    %1851 = vmatprep.subr.mxu0 0.0
    %1852 = vmatpush1.msra.mxu0 %v743
    %1853 = vmatprep.subr.mxu0 0.0
    %1854 = vmatpush1.msra.mxu0 0.0
    %1855 = vmatprep.subr.mxu0 0.0
    %1856 = vmatpush1.msra.mxu0 0.0
    %1857 = vmatprep.subr.mxu0 0.0
    %1858 = vmatpush1.msra.mxu0 0.0
    %1859 = vmatprep.subr.mxu0 0.0
    %1860 = vmatpush1.msra.mxu0 0.0
    %1861 = vmatprep.subr.mxu0 0.0
    %1862 = vmatpush1.msra.mxu0 0.0
    %1863 = vmatprep.subr.mxu0 0.0
    %1864 = vmatpush1.msra.mxu0 0.0
    %1865 = vmatprep.subr.mxu0 0.0
    %1866 = vmatpush1.msra.mxu0 0.0
    %1867 = vmatprep.subr.mxu0 0.0
    %1868 = vmatpush1.msra.mxu0 0.0
    %1869 = vmatprep.subr.mxu0 0.0
    %1870 = vmatpush1.msra.mxu0 0.0
    %1871 = vmatprep.subr.mxu0 0.0
    %1872 = vmatpush1.msra.mxu0 0.0
    %1873 = vmatprep.subr.mxu0 0.0
    %1874 = vmatpush1.msra.mxu0 0.0
    %1875 = vmatprep.subr.mxu0 0.0
    %1876 = vmatpush1.msra.mxu0 0.0
    %1877 = vmatprep.subr.mxu0 0.0
    %1878 = vmatpush1.msra.mxu0 0.0
    %1879 = vmatprep.subr.mxu0 0.0
    %1880 = vmatpush1.msra.mxu0 0.0
    %1881 = vmatprep.subr.mxu0 0.0
    %1882 = vmatpush1.msra.mxu0 0.0
    %1883 = vmatprep.subr.mxu0 0.0
    %1884 = vmatpush1.msra.mxu0 0.0
    %1885 = vmatprep.subr.mxu0 0.0
    %1886 = vmatpush1.msra.mxu0 0.0
    %1887 = vmatprep.subr.mxu0 0.0
    %1888 = vmatpush1.msra.mxu0 0.0
    %1889 = vmatprep.subr.mxu0 0.0
    %1890 = vmatpush1.msra.mxu0 0.0
    %1891 = vmatprep.subr.mxu0 0.0
    %1892 = vmatpush1.msra.mxu0 0.0
    %1893 = vmatprep.subr.mxu0 0.0
    %1894 = vmatpush1.msra.mxu0 0.0
    %1895 = vmatprep.subr.mxu0 0.0
    %1896 = vmatpush1.msra.mxu0 0.0
    %1897 = vmatprep.subr.mxu0 0.0
    %1898 = vmatpush1.msra.mxu0 0.0
    %1899 = vmatprep.subr.mxu0 0.0
    %1900 = vmatpush1.msra.mxu0 0.0
    %1901 = vmatprep.subr.mxu0 0.0
    %1902 = vmatpush1.msra.mxu0 0.0
    %1903 = vmatprep.subr.mxu0 0.0
    %1904 = vmatpush1.msra.mxu0 0.0
    %1905 = vmatprep.subr.mxu0 0.0
    %1906 = vmatpush1.msra.mxu0 0.0
    %1907 = vmatprep.subr.mxu0 0.0
    %1908 = vmatpush1.msra.mxu0 0.0
    %1909 = vmatprep.mubr.f32.mxu0 0.0
    %1910 = vmatmul.mubr.f32.gmra.mrb[0].mxu0 %v1703
    %v1911 = vpop.f32.mrb[0].mxu0
    %v1912 = vadd.f32 %v907, %v1911
    %v1913 = vpop.f32.mrb[0].mxu0
    %1914 = vdwg.mxu0
    %v1915 = vadd.f32 %v368, %v1772
    %v1916 = vxor.u32 %v1915, 2147483648
    %v1917 = vmul.f32 %v1916, 1.442695
    %v1918 = vpow.pop %v1917
    %v1919 = vadd.f32 %v1918, 1.0
    %v1920 = vrcp.pop %v1919
    %v1921 = vmul.f32 1.0, %v1920
    %v1922 = vadd.f32 %v521, %v1842
    %v1923 = vxor.u32 %v1922, 2147483648
    %v1924 = vmul.f32 %v1923, 1.442695
    %v1925 = vpow.pop %v1924
    %v1926 = vadd.f32 %v1925, 1.0
    %v1927 = vrcp.pop %v1926
    %v1928 = vmul.f32 1.0, %v1927
    %v1929 = vmul.f32 %v1921, %v1912
    %v1930 = vadd.f32 %v674, %v1929
    %v1931 = vtanh.pop %v1930
    %v1932 = vsub.f32 1.0, %v1928
    %v1933 = vmul.f32 %v1932, %v1931
    %v1934 = vmul.f32 %v1928, %v1701
    %v1935 = vadd.f32 %v1933, %v1934
    %v1937 = vsel %vm753, %v1935, 0
    %1939 = vmatprep.subr.mxu0 0.0
    %1940 = vmatpush1.msra.mxu0 %v732
    %1941 = vmatprep.subr.mxu0 0.0
    %1942 = vmatpush1.msra.mxu0 %v733
    %1943 = vmatprep.subr.mxu0 0.0
    %1944 = vmatpush1.msra.mxu0 %v734
    %1945 = vmatprep.subr.mxu0 0.0
    %1946 = vmatpush1.msra.mxu0 %v735
    %1947 = vmatprep.subr.mxu0 0.0
    %1948 = vmatpush1.msra.mxu0 0.0
    %1949 = vmatprep.subr.mxu0 0.0
    %1950 = vmatpush1.msra.mxu0 0.0
    %1951 = vmatprep.subr.mxu0 0.0
    %1952 = vmatpush1.msra.mxu0 0.0
    %1953 = vmatprep.subr.mxu0 0.0
    %1954 = vmatpush1.msra.mxu0 0.0
    %1955 = vmatprep.subr.mxu0 0.0
    %1956 = vmatpush1.msra.mxu0 0.0
    %1957 = vmatprep.subr.mxu0 0.0
    %1958 = vmatpush1.msra.mxu0 0.0
    %1959 = vmatprep.subr.mxu0 0.0
    %1960 = vmatpush1.msra.mxu0 0.0
    %1961 = vmatprep.subr.mxu0 0.0
    %1962 = vmatpush1.msra.mxu0 0.0
    %1963 = vmatprep.subr.mxu0 0.0
    %1964 = vmatpush1.msra.mxu0 0.0
    %1965 = vmatprep.subr.mxu0 0.0
    %1966 = vmatpush1.msra.mxu0 0.0
    %1967 = vmatprep.subr.mxu0 0.0
    %1968 = vmatpush1.msra.mxu0 0.0
    %1969 = vmatprep.subr.mxu0 0.0
    %1970 = vmatpush1.msra.mxu0 0.0
    %1971 = vmatprep.subr.mxu0 0.0
    %1972 = vmatpush1.msra.mxu0 0.0
    %1973 = vmatprep.subr.mxu0 0.0
    %1974 = vmatpush1.msra.mxu0 0.0
    %1975 = vmatprep.subr.mxu0 0.0
    %1976 = vmatpush1.msra.mxu0 0.0
    %1977 = vmatprep.subr.mxu0 0.0
    %1978 = vmatpush1.msra.mxu0 0.0
    %1979 = vmatprep.subr.mxu0 0.0
    %1980 = vmatpush1.msra.mxu0 0.0
    %1981 = vmatprep.subr.mxu0 0.0
    %1982 = vmatpush1.msra.mxu0 0.0
    %1983 = vmatprep.subr.mxu0 0.0
    %1984 = vmatpush1.msra.mxu0 0.0
    %1985 = vmatprep.subr.mxu0 0.0
    %1986 = vmatpush1.msra.mxu0 0.0
    %1987 = vmatprep.subr.mxu0 0.0
    %1988 = vmatpush1.msra.mxu0 0.0
    %1989 = vmatprep.subr.mxu0 0.0
    %1990 = vmatpush1.msra.mxu0 0.0
    %1991 = vmatprep.subr.mxu0 0.0
    %1992 = vmatpush1.msra.mxu0 0.0
    %1993 = vmatprep.subr.mxu0 0.0
    %1994 = vmatpush1.msra.mxu0 0.0
    %1995 = vmatprep.subr.mxu0 0.0
    %1996 = vmatpush1.msra.mxu0 0.0
    %1997 = vmatprep.subr.mxu0 0.0
    %1998 = vmatpush1.msra.mxu0 0.0
    %1999 = vmatprep.subr.mxu0 0.0
    %2000 = vmatpush1.msra.mxu0 0.0
    %2001 = vmatprep.subr.mxu0 0.0
    %2002 = vmatpush1.msra.mxu0 0.0
    %2003 = vmatprep.mubr.f32.mxu0 0.0
    %2004 = vmatmul.mubr.f32.gmra.mrb[0].mxu0 %v1937
    %v2005 = vpop.f32.mrb[0].mxu0
    %v2006 = vadd.f32 %v751, %v2005
    %v2007 = vpop.f32.mrb[0].mxu0
    %2008 = vdwg.mxu0
    %2009 = vmatprep.subr.mxu0 0.0
    %2010 = vmatpush1.msra.mxu0 %v736
    %2011 = vmatprep.subr.mxu0 0.0
    %2012 = vmatpush1.msra.mxu0 %v737
    %2013 = vmatprep.subr.mxu0 0.0
    %2014 = vmatpush1.msra.mxu0 %v738
    %2015 = vmatprep.subr.mxu0 0.0
    %2016 = vmatpush1.msra.mxu0 %v739
    %2017 = vmatprep.subr.mxu0 0.0
    %2018 = vmatpush1.msra.mxu0 0.0
    %2019 = vmatprep.subr.mxu0 0.0
    %2020 = vmatpush1.msra.mxu0 0.0
    %2021 = vmatprep.subr.mxu0 0.0
    %2022 = vmatpush1.msra.mxu0 0.0
    %2023 = vmatprep.subr.mxu0 0.0
    %2024 = vmatpush1.msra.mxu0 0.0
    %2025 = vmatprep.subr.mxu0 0.0
    %2026 = vmatpush1.msra.mxu0 0.0
    %2027 = vmatprep.subr.mxu0 0.0
    %2028 = vmatpush1.msra.mxu0 0.0
    %2029 = vmatprep.subr.mxu0 0.0
    %2030 = vmatpush1.msra.mxu0 0.0
    %2031 = vmatprep.subr.mxu0 0.0
    %2032 = vmatpush1.msra.mxu0 0.0
    %2033 = vmatprep.subr.mxu0 0.0
    %2034 = vmatpush1.msra.mxu0 0.0
    %2035 = vmatprep.subr.mxu0 0.0
    %2036 = vmatpush1.msra.mxu0 0.0
    %2037 = vmatprep.subr.mxu0 0.0
    %2038 = vmatpush1.msra.mxu0 0.0
    %2039 = vmatprep.subr.mxu0 0.0
    %2040 = vmatpush1.msra.mxu0 0.0
    %2041 = vmatprep.subr.mxu0 0.0
    %2042 = vmatpush1.msra.mxu0 0.0
    %2043 = vmatprep.subr.mxu0 0.0
    %2044 = vmatpush1.msra.mxu0 0.0
    %2045 = vmatprep.subr.mxu0 0.0
    %2046 = vmatpush1.msra.mxu0 0.0
    %2047 = vmatprep.subr.mxu0 0.0
    %2048 = vmatpush1.msra.mxu0 0.0
    %2049 = vmatprep.subr.mxu0 0.0
    %2050 = vmatpush1.msra.mxu0 0.0
    %2051 = vmatprep.subr.mxu0 0.0
    %2052 = vmatpush1.msra.mxu0 0.0
    %2053 = vmatprep.subr.mxu0 0.0
    %2054 = vmatpush1.msra.mxu0 0.0
    %2055 = vmatprep.subr.mxu0 0.0
    %2056 = vmatpush1.msra.mxu0 0.0
    %2057 = vmatprep.subr.mxu0 0.0
    %2058 = vmatpush1.msra.mxu0 0.0
    %2059 = vmatprep.subr.mxu0 0.0
    %2060 = vmatpush1.msra.mxu0 0.0
    %2061 = vmatprep.subr.mxu0 0.0
    %2062 = vmatpush1.msra.mxu0 0.0
    %2063 = vmatprep.subr.mxu0 0.0
    %2064 = vmatpush1.msra.mxu0 0.0
    %2065 = vmatprep.subr.mxu0 0.0
    %2066 = vmatpush1.msra.mxu0 0.0
    %2067 = vmatprep.subr.mxu0 0.0
    %2068 = vmatpush1.msra.mxu0 0.0
    %2069 = vmatprep.subr.mxu0 0.0
    %2070 = vmatpush1.msra.mxu0 0.0
    %2071 = vmatprep.subr.mxu0 0.0
    %2072 = vmatpush1.msra.mxu0 0.0
    %2073 = vmatprep.mubr.f32.mxu0 0.0
    %2074 = vmatmul.mubr.f32.gmra.mrb[0].mxu0 %v1937
    %v2075 = vpop.f32.mrb[0].mxu0
    %v2076 = vadd.f32 %v831, %v2075
    %v2077 = vpop.f32.mrb[0].mxu0
    %2078 = vdwg.mxu0
    %2079 = vmatprep.subr.mxu0 0.0
    %2080 = vmatpush1.msra.mxu0 %v740
    %2081 = vmatprep.subr.mxu0 0.0
    %2082 = vmatpush1.msra.mxu0 %v741
    %2083 = vmatprep.subr.mxu0 0.0
    %2084 = vmatpush1.msra.mxu0 %v742
    %2085 = vmatprep.subr.mxu0 0.0
    %2086 = vmatpush1.msra.mxu0 %v743
    %2087 = vmatprep.subr.mxu0 0.0
    %2088 = vmatpush1.msra.mxu0 0.0
    %2089 = vmatprep.subr.mxu0 0.0
    %2090 = vmatpush1.msra.mxu0 0.0
    %2091 = vmatprep.subr.mxu0 0.0
    %2092 = vmatpush1.msra.mxu0 0.0
    %2093 = vmatprep.subr.mxu0 0.0
    %2094 = vmatpush1.msra.mxu0 0.0
    %2095 = vmatprep.subr.mxu0 0.0
    %2096 = vmatpush1.msra.mxu0 0.0
    %2097 = vmatprep.subr.mxu0 0.0
    %2098 = vmatpush1.msra.mxu0 0.0
    %2099 = vmatprep.subr.mxu0 0.0
    %2100 = vmatpush1.msra.mxu0 0.0
    %2101 = vmatprep.subr.mxu0 0.0
    %2102 = vmatpush1.msra.mxu0 0.0
    %2103 = vmatprep.subr.mxu0 0.0
    %2104 = vmatpush1.msra.mxu0 0.0
    %2105 = vmatprep.subr.mxu0 0.0
    %2106 = vmatpush1.msra.mxu0 0.0
    %2107 = vmatprep.subr.mxu0 0.0
    %2108 = vmatpush1.msra.mxu0 0.0
    %2109 = vmatprep.subr.mxu0 0.0
    %2110 = vmatpush1.msra.mxu0 0.0
    %2111 = vmatprep.subr.mxu0 0.0
    %2112 = vmatpush1.msra.mxu0 0.0
    %2113 = vmatprep.subr.mxu0 0.0
    %2114 = vmatpush1.msra.mxu0 0.0
    %2115 = vmatprep.subr.mxu0 0.0
    %2116 = vmatpush1.msra.mxu0 0.0
    %2117 = vmatprep.subr.mxu0 0.0
    %2118 = vmatpush1.msra.mxu0 0.0
    %2119 = vmatprep.subr.mxu0 0.0
    %2120 = vmatpush1.msra.mxu0 0.0
    %2121 = vmatprep.subr.mxu0 0.0
    %2122 = vmatpush1.msra.mxu0 0.0
    %2123 = vmatprep.subr.mxu0 0.0
    %2124 = vmatpush1.msra.mxu0 0.0
    %2125 = vmatprep.subr.mxu0 0.0
    %2126 = vmatpush1.msra.mxu0 0.0
    %2127 = vmatprep.subr.mxu0 0.0
    %2128 = vmatpush1.msra.mxu0 0.0
    %2129 = vmatprep.subr.mxu0 0.0
    %2130 = vmatpush1.msra.mxu0 0.0
    %2131 = vmatprep.subr.mxu0 0.0
    %2132 = vmatpush1.msra.mxu0 0.0
    %2133 = vmatprep.subr.mxu0 0.0
    %2134 = vmatpush1.msra.mxu0 0.0
    %2135 = vmatprep.subr.mxu0 0.0
    %2136 = vmatpush1.msra.mxu0 0.0
    %2137 = vmatprep.subr.mxu0 0.0
    %2138 = vmatpush1.msra.mxu0 0.0
    %2139 = vmatprep.subr.mxu0 0.0
    %2140 = vmatpush1.msra.mxu0 0.0
    %2141 = vmatprep.subr.mxu0 0.0
    %2142 = vmatpush1.msra.mxu0 0.0
    %2143 = vmatprep.mubr.f32.mxu0 0.0
    %2144 = vmatmul.mubr.f32.gmra.mrb[0].mxu0 %v1937
    %v2145 = vpop.f32.mrb[0].mxu0
    %v2146 = vadd.f32 %v907, %v2145
    %v2147 = vpop.f32.mrb[0].mxu0
    %2148 = vdwg.mxu0
    %v2149 = vadd.f32 %v373, %v2006
    %v2150 = vxor.u32 %v2149, 2147483648
    %v2151 = vmul.f32 %v2150, 1.442695
    %v2152 = vpow.pop %v2151
    %v2153 = vadd.f32 %v2152, 1.0
    %v2154 = vrcp.pop %v2153
    %v2155 = vmul.f32 1.0, %v2154
    %v2156 = vadd.f32 %v526, %v2076
    %v2157 = vxor.u32 %v2156, 2147483648
    %v2158 = vmul.f32 %v2157, 1.442695
    %v2159 = vpow.pop %v2158
    %v2160 = vadd.f32 %v2159, 1.0
    %v2161 = vrcp.pop %v2160
    %v2162 = vmul.f32 1.0, %v2161
    %v2163 = vmul.f32 %v2155, %v2146
    %v2164 = vadd.f32 %v679, %v2163
    %v2165 = vtanh.pop %v2164
    %v2166 = vsub.f32 1.0, %v2162
    %v2167 = vmul.f32 %v2166, %v2165
    %v2168 = vmul.f32 %v2162, %v1935
    %v2169 = vadd.f32 %v2167, %v2168
    %v2171 = vsel %vm753, %v2169, 0
    %2173 = vmatprep.subr.mxu0 0.0
    %2174 = vmatpush1.msra.mxu0 %v732
    %2175 = vmatprep.subr.mxu0 0.0
    %2176 = vmatpush1.msra.mxu0 %v733
    %2177 = vmatprep.subr.mxu0 0.0
    %2178 = vmatpush1.msra.mxu0 %v734
    %2179 = vmatprep.subr.mxu0 0.0
    %2180 = vmatpush1.msra.mxu0 %v735
    %2181 = vmatprep.subr.mxu0 0.0
    %2182 = vmatpush1.msra.mxu0 0.0
    %2183 = vmatprep.subr.mxu0 0.0
    %2184 = vmatpush1.msra.mxu0 0.0
    %2185 = vmatprep.subr.mxu0 0.0
    %2186 = vmatpush1.msra.mxu0 0.0
    %2187 = vmatprep.subr.mxu0 0.0
    %2188 = vmatpush1.msra.mxu0 0.0
    %2189 = vmatprep.subr.mxu0 0.0
    %2190 = vmatpush1.msra.mxu0 0.0
    %2191 = vmatprep.subr.mxu0 0.0
    %2192 = vmatpush1.msra.mxu0 0.0
    %2193 = vmatprep.subr.mxu0 0.0
    %2194 = vmatpush1.msra.mxu0 0.0
    %2195 = vmatprep.subr.mxu0 0.0
    %2196 = vmatpush1.msra.mxu0 0.0
    %2197 = vmatprep.subr.mxu0 0.0
    %2198 = vmatpush1.msra.mxu0 0.0
    %2199 = vmatprep.subr.mxu0 0.0
    %2200 = vmatpush1.msra.mxu0 0.0
    %2201 = vmatprep.subr.mxu0 0.0
    %2202 = vmatpush1.msra.mxu0 0.0
    %2203 = vmatprep.subr.mxu0 0.0
    %2204 = vmatpush1.msra.mxu0 0.0
    %2205 = vmatprep.subr.mxu0 0.0
    %2206 = vmatpush1.msra.mxu0 0.0
    %2207 = vmatprep.subr.mxu0 0.0
    %2208 = vmatpush1.msra.mxu0 0.0
    %2209 = vmatprep.subr.mxu0 0.0
    %2210 = vmatpush1.msra.mxu0 0.0
    %2211 = vmatprep.subr.mxu0 0.0
    %2212 = vmatpush1.msra.mxu0 0.0
    %2213 = vmatprep.subr.mxu0 0.0
    %2214 = vmatpush1.msra.mxu0 0.0
    %2215 = vmatprep.subr.mxu0 0.0
    %2216 = vmatpush1.msra.mxu0 0.0
    %2217 = vmatprep.subr.mxu0 0.0
    %2218 = vmatpush1.msra.mxu0 0.0
    %2219 = vmatprep.subr.mxu0 0.0
    %2220 = vmatpush1.msra.mxu0 0.0
    %2221 = vmatprep.subr.mxu0 0.0
    %2222 = vmatpush1.msra.mxu0 0.0
    %2223 = vmatprep.subr.mxu0 0.0
    %2224 = vmatpush1.msra.mxu0 0.0
    %2225 = vmatprep.subr.mxu0 0.0
    %2226 = vmatpush1.msra.mxu0 0.0
    %2227 = vmatprep.subr.mxu0 0.0
    %2228 = vmatpush1.msra.mxu0 0.0
    %2229 = vmatprep.subr.mxu0 0.0
    %2230 = vmatpush1.msra.mxu0 0.0
    %2231 = vmatprep.subr.mxu0 0.0
    %2232 = vmatpush1.msra.mxu0 0.0
    %2233 = vmatprep.subr.mxu0 0.0
    %2234 = vmatpush1.msra.mxu0 0.0
    %2235 = vmatprep.subr.mxu0 0.0
    %2236 = vmatpush1.msra.mxu0 0.0
    %2237 = vmatprep.mubr.f32.mxu0 0.0
    %2238 = vmatmul.mubr.f32.gmra.mrb[0].mxu0 %v2171
    %v2239 = vpop.f32.mrb[0].mxu0
    %v2240 = vadd.f32 %v751, %v2239
    %v2241 = vpop.f32.mrb[0].mxu0
    %2242 = vdwg.mxu0
    %2243 = vmatprep.subr.mxu0 0.0
    %2244 = vmatpush1.msra.mxu0 %v736
    %2245 = vmatprep.subr.mxu0 0.0
    %2246 = vmatpush1.msra.mxu0 %v737
    %2247 = vmatprep.subr.mxu0 0.0
    %2248 = vmatpush1.msra.mxu0 %v738
    %2249 = vmatprep.subr.mxu0 0.0
    %2250 = vmatpush1.msra.mxu0 %v739
    %2251 = vmatprep.subr.mxu0 0.0
    %2252 = vmatpush1.msra.mxu0 0.0
    %2253 = vmatprep.subr.mxu0 0.0
    %2254 = vmatpush1.msra.mxu0 0.0
    %2255 = vmatprep.subr.mxu0 0.0
    %2256 = vmatpush1.msra.mxu0 0.0
    %2257 = vmatprep.subr.mxu0 0.0
    %2258 = vmatpush1.msra.mxu0 0.0
    %2259 = vmatprep.subr.mxu0 0.0
    %2260 = vmatpush1.msra.mxu0 0.0
    %2261 = vmatprep.subr.mxu0 0.0
    %2262 = vmatpush1.msra.mxu0 0.0
    %2263 = vmatprep.subr.mxu0 0.0
    %2264 = vmatpush1.msra.mxu0 0.0
    %2265 = vmatprep.subr.mxu0 0.0
    %2266 = vmatpush1.msra.mxu0 0.0
    %2267 = vmatprep.subr.mxu0 0.0
    %2268 = vmatpush1.msra.mxu0 0.0
    %2269 = vmatprep.subr.mxu0 0.0
    %2270 = vmatpush1.msra.mxu0 0.0
    %2271 = vmatprep.subr.mxu0 0.0
    %2272 = vmatpush1.msra.mxu0 0.0
    %2273 = vmatprep.subr.mxu0 0.0
    %2274 = vmatpush1.msra.mxu0 0.0
    %2275 = vmatprep.subr.mxu0 0.0
    %2276 = vmatpush1.msra.mxu0 0.0
    %2277 = vmatprep.subr.mxu0 0.0
    %2278 = vmatpush1.msra.mxu0 0.0
    %2279 = vmatprep.subr.mxu0 0.0
    %2280 = vmatpush1.msra.mxu0 0.0
    %2281 = vmatprep.subr.mxu0 0.0
    %2282 = vmatpush1.msra.mxu0 0.0
    %2283 = vmatprep.subr.mxu0 0.0
    %2284 = vmatpush1.msra.mxu0 0.0
    %2285 = vmatprep.subr.mxu0 0.0
    %2286 = vmatpush1.msra.mxu0 0.0
    %2287 = vmatprep.subr.mxu0 0.0
    %2288 = vmatpush1.msra.mxu0 0.0
    %2289 = vmatprep.subr.mxu0 0.0
    %2290 = vmatpush1.msra.mxu0 0.0
    %2291 = vmatprep.subr.mxu0 0.0
    %2292 = vmatpush1.msra.mxu0 0.0
    %2293 = vmatprep.subr.mxu0 0.0
    %2294 = vmatpush1.msra.mxu0 0.0
    %2295 = vmatprep.subr.mxu0 0.0
    %2296 = vmatpush1.msra.mxu0 0.0
    %2297 = vmatprep.subr.mxu0 0.0
    %2298 = vmatpush1.msra.mxu0 0.0
    %2299 = vmatprep.subr.mxu0 0.0
    %2300 = vmatpush1.msra.mxu0 0.0
    %2301 = vmatprep.subr.mxu0 0.0
    %2302 = vmatpush1.msra.mxu0 0.0
    %2303 = vmatprep.subr.mxu0 0.0
    %2304 = vmatpush1.msra.mxu0 0.0
    %2305 = vmatprep.subr.mxu0 0.0
    %2306 = vmatpush1.msra.mxu0 0.0
    %2307 = vmatprep.mubr.f32.mxu0 0.0
    %2308 = vmatmul.mubr.f32.gmra.mrb[0].mxu0 %v2171
    %v2309 = vpop.f32.mrb[0].mxu0
    %v2310 = vadd.f32 %v831, %v2309
    %v2311 = vpop.f32.mrb[0].mxu0
    %2312 = vdwg.mxu0
    %2313 = vmatprep.subr.mxu0 0.0
    %2314 = vmatpush1.msra.mxu0 %v740
    %2315 = vmatprep.subr.mxu0 0.0
    %2316 = vmatpush1.msra.mxu0 %v741
    %2317 = vmatprep.subr.mxu0 0.0
    %2318 = vmatpush1.msra.mxu0 %v742
    %2319 = vmatprep.subr.mxu0 0.0
    %2320 = vmatpush1.msra.mxu0 %v743
    %2321 = vmatprep.subr.mxu0 0.0
    %2322 = vmatpush1.msra.mxu0 0.0
    %2323 = vmatprep.subr.mxu0 0.0
    %2324 = vmatpush1.msra.mxu0 0.0
    %2325 = vmatprep.subr.mxu0 0.0
    %2326 = vmatpush1.msra.mxu0 0.0
    %2327 = vmatprep.subr.mxu0 0.0
    %2328 = vmatpush1.msra.mxu0 0.0
    %2329 = vmatprep.subr.mxu0 0.0
    %2330 = vmatpush1.msra.mxu0 0.0
    %2331 = vmatprep.subr.mxu0 0.0
    %2332 = vmatpush1.msra.mxu0 0.0
    %2333 = vmatprep.subr.mxu0 0.0
    %2334 = vmatpush1.msra.mxu0 0.0
    %2335 = vmatprep.subr.mxu0 0.0
    %2336 = vmatpush1.msra.mxu0 0.0
    %2337 = vmatprep.subr.mxu0 0.0
    %2338 = vmatpush1.msra.mxu0 0.0
    %2339 = vmatprep.subr.mxu0 0.0
    %2340 = vmatpush1.msra.mxu0 0.0
    %2341 = vmatprep.subr.mxu0 0.0
    %2342 = vmatpush1.msra.mxu0 0.0
    %2343 = vmatprep.subr.mxu0 0.0
    %2344 = vmatpush1.msra.mxu0 0.0
    %2345 = vmatprep.subr.mxu0 0.0
    %2346 = vmatpush1.msra.mxu0 0.0
    %2347 = vmatprep.subr.mxu0 0.0
    %2348 = vmatpush1.msra.mxu0 0.0
    %2349 = vmatprep.subr.mxu0 0.0
    %2350 = vmatpush1.msra.mxu0 0.0
    %2351 = vmatprep.subr.mxu0 0.0
    %2352 = vmatpush1.msra.mxu0 0.0
    %2353 = vmatprep.subr.mxu0 0.0
    %2354 = vmatpush1.msra.mxu0 0.0
    %2355 = vmatprep.subr.mxu0 0.0
    %2356 = vmatpush1.msra.mxu0 0.0
    %2357 = vmatprep.subr.mxu0 0.0
    %2358 = vmatpush1.msra.mxu0 0.0
    %2359 = vmatprep.subr.mxu0 0.0
    %2360 = vmatpush1.msra.mxu0 0.0
    %2361 = vmatprep.subr.mxu0 0.0
    %2362 = vmatpush1.msra.mxu0 0.0
    %2363 = vmatprep.subr.mxu0 0.0
    %2364 = vmatpush1.msra.mxu0 0.0
    %2365 = vmatprep.subr.mxu0 0.0
    %2366 = vmatpush1.msra.mxu0 0.0
    %2367 = vmatprep.subr.mxu0 0.0
    %2368 = vmatpush1.msra.mxu0 0.0
    %2369 = vmatprep.subr.mxu0 0.0
    %2370 = vmatpush1.msra.mxu0 0.0
    %2371 = vmatprep.subr.mxu0 0.0
    %2372 = vmatpush1.msra.mxu0 0.0
    %2373 = vmatprep.subr.mxu0 0.0
    %2374 = vmatpush1.msra.mxu0 0.0
    %2375 = vmatprep.subr.mxu0 0.0
    %2376 = vmatpush1.msra.mxu0 0.0
    %2377 = vmatprep.mubr.f32.mxu0 0.0
    %2378 = vmatmul.mubr.f32.gmra.mrb[0].mxu0 %v2171
    %v2379 = vpop.f32.mrb[0].mxu0
    %v2380 = vadd.f32 %v907, %v2379
    %v2381 = vpop.f32.mrb[0].mxu0
    %2382 = vdwg.mxu0
    %v2383 = vadd.f32 %v378, %v2240
    %v2384 = vxor.u32 %v2383, 2147483648
    %v2385 = vmul.f32 %v2384, 1.442695
    %v2386 = vpow.pop %v2385
    %v2387 = vadd.f32 %v2386, 1.0
    %v2388 = vrcp.pop %v2387
    %v2389 = vmul.f32 1.0, %v2388
    %v2390 = vadd.f32 %v531, %v2310
    %v2391 = vxor.u32 %v2390, 2147483648
    %v2392 = vmul.f32 %v2391, 1.442695
    %v2393 = vpow.pop %v2392
    %v2394 = vadd.f32 %v2393, 1.0
    %v2395 = vrcp.pop %v2394
    %v2396 = vmul.f32 1.0, %v2395
    %v2397 = vmul.f32 %v2389, %v2380
    %v2398 = vadd.f32 %v684, %v2397
    %v2399 = vtanh.pop %v2398
    %v2400 = vsub.f32 1.0, %v2396
    %v2401 = vmul.f32 %v2400, %v2399
    %v2402 = vmul.f32 %v2396, %v2169
    %v2403 = vadd.f32 %v2401, %v2402
    %v2405 = vsel %vm753, %v2403, 0
    %2407 = vmatprep.subr.mxu0 0.0
    %2408 = vmatpush1.msra.mxu0 %v732
    %2409 = vmatprep.subr.mxu0 0.0
    %2410 = vmatpush1.msra.mxu0 %v733
    %2411 = vmatprep.subr.mxu0 0.0
    %2412 = vmatpush1.msra.mxu0 %v734
    %2413 = vmatprep.subr.mxu0 0.0
    %2414 = vmatpush1.msra.mxu0 %v735
    %2415 = vmatprep.subr.mxu0 0.0
    %2416 = vmatpush1.msra.mxu0 0.0
    %2417 = vmatprep.subr.mxu0 0.0
    %2418 = vmatpush1.msra.mxu0 0.0
    %2419 = vmatprep.subr.mxu0 0.0
    %2420 = vmatpush1.msra.mxu0 0.0
    %2421 = vmatprep.subr.mxu0 0.0
    %2422 = vmatpush1.msra.mxu0 0.0
    %2423 = vmatprep.subr.mxu0 0.0
    %2424 = vmatpush1.msra.mxu0 0.0
    %2425 = vmatprep.subr.mxu0 0.0
    %2426 = vmatpush1.msra.mxu0 0.0
    %2427 = vmatprep.subr.mxu0 0.0
    %2428 = vmatpush1.msra.mxu0 0.0
    %2429 = vmatprep.subr.mxu0 0.0
    %2430 = vmatpush1.msra.mxu0 0.0
    %2431 = vmatprep.subr.mxu0 0.0
    %2432 = vmatpush1.msra.mxu0 0.0
    %2433 = vmatprep.subr.mxu0 0.0
    %2434 = vmatpush1.msra.mxu0 0.0
    %2435 = vmatprep.subr.mxu0 0.0
    %2436 = vmatpush1.msra.mxu0 0.0
    %2437 = vmatprep.subr.mxu0 0.0
    %2438 = vmatpush1.msra.mxu0 0.0
    %2439 = vmatprep.subr.mxu0 0.0
    %2440 = vmatpush1.msra.mxu0 0.0
    %2441 = vmatprep.subr.mxu0 0.0
    %2442 = vmatpush1.msra.mxu0 0.0
    %2443 = vmatprep.subr.mxu0 0.0
    %2444 = vmatpush1.msra.mxu0 0.0
    %2445 = vmatprep.subr.mxu0 0.0
    %2446 = vmatpush1.msra.mxu0 0.0
    %2447 = vmatprep.subr.mxu0 0.0
    %2448 = vmatpush1.msra.mxu0 0.0
    %2449 = vmatprep.subr.mxu0 0.0
    %2450 = vmatpush1.msra.mxu0 0.0
    %2451 = vmatprep.subr.mxu0 0.0
    %2452 = vmatpush1.msra.mxu0 0.0
    %2453 = vmatprep.subr.mxu0 0.0
    %2454 = vmatpush1.msra.mxu0 0.0
    %2455 = vmatprep.subr.mxu0 0.0
    %2456 = vmatpush1.msra.mxu0 0.0
    %2457 = vmatprep.subr.mxu0 0.0
    %2458 = vmatpush1.msra.mxu0 0.0
    %2459 = vmatprep.subr.mxu0 0.0
    %2460 = vmatpush1.msra.mxu0 0.0
    %2461 = vmatprep.subr.mxu0 0.0
    %2462 = vmatpush1.msra.mxu0 0.0
    %2463 = vmatprep.subr.mxu0 0.0
    %2464 = vmatpush1.msra.mxu0 0.0
    %2465 = vmatprep.subr.mxu0 0.0
    %2466 = vmatpush1.msra.mxu0 0.0
    %2467 = vmatprep.subr.mxu0 0.0
    %2468 = vmatpush1.msra.mxu0 0.0
    %2469 = vmatprep.subr.mxu0 0.0
    %2470 = vmatpush1.msra.mxu0 0.0
    %2471 = vmatprep.mubr.f32.mxu0 0.0
    %2472 = vmatmul.mubr.f32.gmra.mrb[0].mxu0 %v2405
    %v2473 = vpop.f32.mrb[0].mxu0
    %v2474 = vadd.f32 %v751, %v2473
    %v2475 = vpop.f32.mrb[0].mxu0
    %2476 = vdwg.mxu0
    %2477 = vmatprep.subr.mxu0 0.0
    %2478 = vmatpush1.msra.mxu0 %v736
    %2479 = vmatprep.subr.mxu0 0.0
    %2480 = vmatpush1.msra.mxu0 %v737
    %2481 = vmatprep.subr.mxu0 0.0
    %2482 = vmatpush1.msra.mxu0 %v738
    %2483 = vmatprep.subr.mxu0 0.0
    %2484 = vmatpush1.msra.mxu0 %v739
    %2485 = vmatprep.subr.mxu0 0.0
    %2486 = vmatpush1.msra.mxu0 0.0
    %2487 = vmatprep.subr.mxu0 0.0
    %2488 = vmatpush1.msra.mxu0 0.0
    %2489 = vmatprep.subr.mxu0 0.0
    %2490 = vmatpush1.msra.mxu0 0.0
    %2491 = vmatprep.subr.mxu0 0.0
    %2492 = vmatpush1.msra.mxu0 0.0
    %2493 = vmatprep.subr.mxu0 0.0
    %2494 = vmatpush1.msra.mxu0 0.0
    %2495 = vmatprep.subr.mxu0 0.0
    %2496 = vmatpush1.msra.mxu0 0.0
    %2497 = vmatprep.subr.mxu0 0.0
    %2498 = vmatpush1.msra.mxu0 0.0
    %2499 = vmatprep.subr.mxu0 0.0
    %2500 = vmatpush1.msra.mxu0 0.0
    %2501 = vmatprep.subr.mxu0 0.0
    %2502 = vmatpush1.msra.mxu0 0.0
    %2503 = vmatprep.subr.mxu0 0.0
    %2504 = vmatpush1.msra.mxu0 0.0
    %2505 = vmatprep.subr.mxu0 0.0
    %2506 = vmatpush1.msra.mxu0 0.0
    %2507 = vmatprep.subr.mxu0 0.0
    %2508 = vmatpush1.msra.mxu0 0.0
    %2509 = vmatprep.subr.mxu0 0.0
    %2510 = vmatpush1.msra.mxu0 0.0
    %2511 = vmatprep.subr.mxu0 0.0
    %2512 = vmatpush1.msra.mxu0 0.0
    %2513 = vmatprep.subr.mxu0 0.0
    %2514 = vmatpush1.msra.mxu0 0.0
    %2515 = vmatprep.subr.mxu0 0.0
    %2516 = vmatpush1.msra.mxu0 0.0
    %2517 = vmatprep.subr.mxu0 0.0
    %2518 = vmatpush1.msra.mxu0 0.0
    %2519 = vmatprep.subr.mxu0 0.0
    %2520 = vmatpush1.msra.mxu0 0.0
    %2521 = vmatprep.subr.mxu0 0.0
    %2522 = vmatpush1.msra.mxu0 0.0
    %2523 = vmatprep.subr.mxu0 0.0
    %2524 = vmatpush1.msra.mxu0 0.0
    %2525 = vmatprep.subr.mxu0 0.0
    %2526 = vmatpush1.msra.mxu0 0.0
    %2527 = vmatprep.subr.mxu0 0.0
    %2528 = vmatpush1.msra.mxu0 0.0
    %2529 = vmatprep.subr.mxu0 0.0
    %2530 = vmatpush1.msra.mxu0 0.0
    %2531 = vmatprep.subr.mxu0 0.0
    %2532 = vmatpush1.msra.mxu0 0.0
    %2533 = vmatprep.subr.mxu0 0.0
    %2534 = vmatpush1.msra.mxu0 0.0
    %2535 = vmatprep.subr.mxu0 0.0
    %2536 = vmatpush1.msra.mxu0 0.0
    %2537 = vmatprep.subr.mxu0 0.0
    %2538 = vmatpush1.msra.mxu0 0.0
    %2539 = vmatprep.subr.mxu0 0.0
    %2540 = vmatpush1.msra.mxu0 0.0
    %2541 = vmatprep.mubr.f32.mxu0 0.0
    %2542 = vmatmul.mubr.f32.gmra.mrb[0].mxu0 %v2405
    %v2543 = vpop.f32.mrb[0].mxu0
    %v2544 = vadd.f32 %v831, %v2543
    %v2545 = vpop.f32.mrb[0].mxu0
    %2546 = vdwg.mxu0
    %2547 = vmatprep.subr.mxu0 0.0
    %2548 = vmatpush1.msra.mxu0 %v740
    %2549 = vmatprep.subr.mxu0 0.0
    %2550 = vmatpush1.msra.mxu0 %v741
    %2551 = vmatprep.subr.mxu0 0.0
    %2552 = vmatpush1.msra.mxu0 %v742
    %2553 = vmatprep.subr.mxu0 0.0
    %2554 = vmatpush1.msra.mxu0 %v743
    %2555 = vmatprep.subr.mxu0 0.0
    %2556 = vmatpush1.msra.mxu0 0.0
    %2557 = vmatprep.subr.mxu0 0.0
    %2558 = vmatpush1.msra.mxu0 0.0
    %2559 = vmatprep.subr.mxu0 0.0
    %2560 = vmatpush1.msra.mxu0 0.0
    %2561 = vmatprep.subr.mxu0 0.0
    %2562 = vmatpush1.msra.mxu0 0.0
    %2563 = vmatprep.subr.mxu0 0.0
    %2564 = vmatpush1.msra.mxu0 0.0
    %2565 = vmatprep.subr.mxu0 0.0
    %2566 = vmatpush1.msra.mxu0 0.0
    %2567 = vmatprep.subr.mxu0 0.0
    %2568 = vmatpush1.msra.mxu0 0.0
    %2569 = vmatprep.subr.mxu0 0.0
    %2570 = vmatpush1.msra.mxu0 0.0
    %2571 = vmatprep.subr.mxu0 0.0
    %2572 = vmatpush1.msra.mxu0 0.0
    %2573 = vmatprep.subr.mxu0 0.0
    %2574 = vmatpush1.msra.mxu0 0.0
    %2575 = vmatprep.subr.mxu0 0.0
    %2576 = vmatpush1.msra.mxu0 0.0
    %2577 = vmatprep.subr.mxu0 0.0
    %2578 = vmatpush1.msra.mxu0 0.0
    %2579 = vmatprep.subr.mxu0 0.0
    %2580 = vmatpush1.msra.mxu0 0.0
    %2581 = vmatprep.subr.mxu0 0.0
    %2582 = vmatpush1.msra.mxu0 0.0
    %2583 = vmatprep.subr.mxu0 0.0
    %2584 = vmatpush1.msra.mxu0 0.0
    %2585 = vmatprep.subr.mxu0 0.0
    %2586 = vmatpush1.msra.mxu0 0.0
    %2587 = vmatprep.subr.mxu0 0.0
    %2588 = vmatpush1.msra.mxu0 0.0
    %2589 = vmatprep.subr.mxu0 0.0
    %2590 = vmatpush1.msra.mxu0 0.0
    %2591 = vmatprep.subr.mxu0 0.0
    %2592 = vmatpush1.msra.mxu0 0.0
    %2593 = vmatprep.subr.mxu0 0.0
    %2594 = vmatpush1.msra.mxu0 0.0
    %2595 = vmatprep.subr.mxu0 0.0
    %2596 = vmatpush1.msra.mxu0 0.0
    %2597 = vmatprep.subr.mxu0 0.0
    %2598 = vmatpush1.msra.mxu0 0.0
    %2599 = vmatprep.subr.mxu0 0.0
    %2600 = vmatpush1.msra.mxu0 0.0
    %2601 = vmatprep.subr.mxu0 0.0
    %2602 = vmatpush1.msra.mxu0 0.0
    %2603 = vmatprep.subr.mxu0 0.0
    %2604 = vmatpush1.msra.mxu0 0.0
    %2605 = vmatprep.subr.mxu0 0.0
    %2606 = vmatpush1.msra.mxu0 0.0
    %2607 = vmatprep.subr.mxu0 0.0
    %2608 = vmatpush1.msra.mxu0 0.0
    %2609 = vmatprep.subr.mxu0 0.0
    %2610 = vmatpush1.msra.mxu0 0.0
    %2611 = vmatprep.mubr.f32.mxu0 0.0
    %2612 = vmatmul.mubr.f32.gmra.mrb[0].mxu0 %v2405
    %v2613 = vpop.f32.mrb[0].mxu0
    %v2614 = vadd.f32 %v907, %v2613
    %v2615 = vpop.f32.mrb[0].mxu0
    %2616 = vdwg.mxu0
    %v2617 = vadd.f32 %v383, %v2474
    %v2618 = vxor.u32 %v2617, 2147483648
    %v2619 = vmul.f32 %v2618, 1.442695
    %v2620 = vpow.pop %v2619
    %v2621 = vadd.f32 %v2620, 1.0
    %v2622 = vrcp.pop %v2621
    %v2623 = vmul.f32 1.0, %v2622
    %v2624 = vadd.f32 %v536, %v2544
    %v2625 = vxor.u32 %v2624, 2147483648
    %v2626 = vmul.f32 %v2625, 1.442695
    %v2627 = vpow.pop %v2626
    %v2628 = vadd.f32 %v2627, 1.0
    %v2629 = vrcp.pop %v2628
    %v2630 = vmul.f32 1.0, %v2629
    %v2631 = vmul.f32 %v2623, %v2614
    %v2632 = vadd.f32 %v689, %v2631
    %v2633 = vtanh.pop %v2632
    %v2634 = vsub.f32 1.0, %v2630
    %v2635 = vmul.f32 %v2634, %v2633
    %v2636 = vmul.f32 %v2630, %v2403
    %v2637 = vadd.f32 %v2635, %v2636
    %v2639 = vsel %vm753, %v2637, 0
    %2641 = vmatprep.subr.mxu0 0.0
    %2642 = vmatpush1.msra.mxu0 %v732
    %2643 = vmatprep.subr.mxu0 0.0
    %2644 = vmatpush1.msra.mxu0 %v733
    %2645 = vmatprep.subr.mxu0 0.0
    %2646 = vmatpush1.msra.mxu0 %v734
    %2647 = vmatprep.subr.mxu0 0.0
    %2648 = vmatpush1.msra.mxu0 %v735
    %2649 = vmatprep.subr.mxu0 0.0
    %2650 = vmatpush1.msra.mxu0 0.0
    %2651 = vmatprep.subr.mxu0 0.0
    %2652 = vmatpush1.msra.mxu0 0.0
    %2653 = vmatprep.subr.mxu0 0.0
    %2654 = vmatpush1.msra.mxu0 0.0
    %2655 = vmatprep.subr.mxu0 0.0
    %2656 = vmatpush1.msra.mxu0 0.0
    %2657 = vmatprep.subr.mxu0 0.0
    %2658 = vmatpush1.msra.mxu0 0.0
    %2659 = vmatprep.subr.mxu0 0.0
    %2660 = vmatpush1.msra.mxu0 0.0
    %2661 = vmatprep.subr.mxu0 0.0
    %2662 = vmatpush1.msra.mxu0 0.0
    %2663 = vmatprep.subr.mxu0 0.0
    %2664 = vmatpush1.msra.mxu0 0.0
    %2665 = vmatprep.subr.mxu0 0.0
    %2666 = vmatpush1.msra.mxu0 0.0
    %2667 = vmatprep.subr.mxu0 0.0
    %2668 = vmatpush1.msra.mxu0 0.0
    %2669 = vmatprep.subr.mxu0 0.0
    %2670 = vmatpush1.msra.mxu0 0.0
    %2671 = vmatprep.subr.mxu0 0.0
    %2672 = vmatpush1.msra.mxu0 0.0
    %2673 = vmatprep.subr.mxu0 0.0
    %2674 = vmatpush1.msra.mxu0 0.0
    %2675 = vmatprep.subr.mxu0 0.0
    %2676 = vmatpush1.msra.mxu0 0.0
    %2677 = vmatprep.subr.mxu0 0.0
    %2678 = vmatpush1.msra.mxu0 0.0
    %2679 = vmatprep.subr.mxu0 0.0
    %2680 = vmatpush1.msra.mxu0 0.0
    %2681 = vmatprep.subr.mxu0 0.0
    %2682 = vmatpush1.msra.mxu0 0.0
    %2683 = vmatprep.subr.mxu0 0.0
    %2684 = vmatpush1.msra.mxu0 0.0
    %2685 = vmatprep.subr.mxu0 0.0
    %2686 = vmatpush1.msra.mxu0 0.0
    %2687 = vmatprep.subr.mxu0 0.0
    %2688 = vmatpush1.msra.mxu0 0.0
    %2689 = vmatprep.subr.mxu0 0.0
    %2690 = vmatpush1.msra.mxu0 0.0
    %2691 = vmatprep.subr.mxu0 0.0
    %2692 = vmatpush1.msra.mxu0 0.0
    %2693 = vmatprep.subr.mxu0 0.0
    %2694 = vmatpush1.msra.mxu0 0.0
    %2695 = vmatprep.subr.mxu0 0.0
    %2696 = vmatpush1.msra.mxu0 0.0
    %2697 = vmatprep.subr.mxu0 0.0
    %2698 = vmatpush1.msra.mxu0 0.0
    %2699 = vmatprep.subr.mxu0 0.0
    %2700 = vmatpush1.msra.mxu0 0.0
    %2701 = vmatprep.subr.mxu0 0.0
    %2702 = vmatpush1.msra.mxu0 0.0
    %2703 = vmatprep.subr.mxu0 0.0
    %2704 = vmatpush1.msra.mxu0 0.0
    %2705 = vmatprep.mubr.f32.mxu0 0.0
    %2706 = vmatmul.mubr.f32.gmra.mrb[0].mxu0 %v2639
    %v2707 = vpop.f32.mrb[0].mxu0
    %v2708 = vadd.f32 %v751, %v2707
    %v2709 = vpop.f32.mrb[0].mxu0
    %2710 = vdwg.mxu0
    %2711 = vmatprep.subr.mxu0 0.0
    %2712 = vmatpush1.msra.mxu0 %v736
    %2713 = vmatprep.subr.mxu0 0.0
    %2714 = vmatpush1.msra.mxu0 %v737
    %2715 = vmatprep.subr.mxu0 0.0
    %2716 = vmatpush1.msra.mxu0 %v738
    %2717 = vmatprep.subr.mxu0 0.0
    %2718 = vmatpush1.msra.mxu0 %v739
    %2719 = vmatprep.subr.mxu0 0.0
    %2720 = vmatpush1.msra.mxu0 0.0
    %2721 = vmatprep.subr.mxu0 0.0
    %2722 = vmatpush1.msra.mxu0 0.0
    %2723 = vmatprep.subr.mxu0 0.0
    %2724 = vmatpush1.msra.mxu0 0.0
    %2725 = vmatprep.subr.mxu0 0.0
    %2726 = vmatpush1.msra.mxu0 0.0
    %2727 = vmatprep.subr.mxu0 0.0
    %2728 = vmatpush1.msra.mxu0 0.0
    %2729 = vmatprep.subr.mxu0 0.0
    %2730 = vmatpush1.msra.mxu0 0.0
    %2731 = vmatprep.subr.mxu0 0.0
    %2732 = vmatpush1.msra.mxu0 0.0
    %2733 = vmatprep.subr.mxu0 0.0
    %2734 = vmatpush1.msra.mxu0 0.0
    %2735 = vmatprep.subr.mxu0 0.0
    %2736 = vmatpush1.msra.mxu0 0.0
    %2737 = vmatprep.subr.mxu0 0.0
    %2738 = vmatpush1.msra.mxu0 0.0
    %2739 = vmatprep.subr.mxu0 0.0
    %2740 = vmatpush1.msra.mxu0 0.0
    %2741 = vmatprep.subr.mxu0 0.0
    %2742 = vmatpush1.msra.mxu0 0.0
    %2743 = vmatprep.subr.mxu0 0.0
    %2744 = vmatpush1.msra.mxu0 0.0
    %2745 = vmatprep.subr.mxu0 0.0
    %2746 = vmatpush1.msra.mxu0 0.0
    %2747 = vmatprep.subr.mxu0 0.0
    %2748 = vmatpush1.msra.mxu0 0.0
    %2749 = vmatprep.subr.mxu0 0.0
    %2750 = vmatpush1.msra.mxu0 0.0
    %2751 = vmatprep.subr.mxu0 0.0
    %2752 = vmatpush1.msra.mxu0 0.0
    %2753 = vmatprep.subr.mxu0 0.0
    %2754 = vmatpush1.msra.mxu0 0.0
    %2755 = vmatprep.subr.mxu0 0.0
    %2756 = vmatpush1.msra.mxu0 0.0
    %2757 = vmatprep.subr.mxu0 0.0
    %2758 = vmatpush1.msra.mxu0 0.0
    %2759 = vmatprep.subr.mxu0 0.0
    %2760 = vmatpush1.msra.mxu0 0.0
    %2761 = vmatprep.subr.mxu0 0.0
    %2762 = vmatpush1.msra.mxu0 0.0
    %2763 = vmatprep.subr.mxu0 0.0
    %2764 = vmatpush1.msra.mxu0 0.0
    %2765 = vmatprep.subr.mxu0 0.0
    %2766 = vmatpush1.msra.mxu0 0.0
    %2767 = vmatprep.subr.mxu0 0.0
    %2768 = vmatpush1.msra.mxu0 0.0
    %2769 = vmatprep.subr.mxu0 0.0
    %2770 = vmatpush1.msra.mxu0 0.0
    %2771 = vmatprep.subr.mxu0 0.0
    %2772 = vmatpush1.msra.mxu0 0.0
    %2773 = vmatprep.subr.mxu0 0.0
    %2774 = vmatpush1.msra.mxu0 0.0
    %2775 = vmatprep.mubr.f32.mxu0 0.0
    %2776 = vmatmul.mubr.f32.gmra.mrb[0].mxu0 %v2639
    %v2777 = vpop.f32.mrb[0].mxu0
    %v2778 = vadd.f32 %v831, %v2777
    %v2779 = vpop.f32.mrb[0].mxu0
    %2780 = vdwg.mxu0
    %2781 = vmatprep.subr.mxu0 0.0
    %2782 = vmatpush1.msra.mxu0 %v740
    %2783 = vmatprep.subr.mxu0 0.0
    %2784 = vmatpush1.msra.mxu0 %v741
    %2785 = vmatprep.subr.mxu0 0.0
    %2786 = vmatpush1.msra.mxu0 %v742
    %2787 = vmatprep.subr.mxu0 0.0
    %2788 = vmatpush1.msra.mxu0 %v743
    %2789 = vmatprep.subr.mxu0 0.0
    %2790 = vmatpush1.msra.mxu0 0.0
    %2791 = vmatprep.subr.mxu0 0.0
    %2792 = vmatpush1.msra.mxu0 0.0
    %2793 = vmatprep.subr.mxu0 0.0
    %2794 = vmatpush1.msra.mxu0 0.0
    %2795 = vmatprep.subr.mxu0 0.0
    %2796 = vmatpush1.msra.mxu0 0.0
    %2797 = vmatprep.subr.mxu0 0.0
    %2798 = vmatpush1.msra.mxu0 0.0
    %2799 = vmatprep.subr.mxu0 0.0
    %2800 = vmatpush1.msra.mxu0 0.0
    %2801 = vmatprep.subr.mxu0 0.0
    %2802 = vmatpush1.msra.mxu0 0.0
    %2803 = vmatprep.subr.mxu0 0.0
    %2804 = vmatpush1.msra.mxu0 0.0
    %2805 = vmatprep.subr.mxu0 0.0
    %2806 = vmatpush1.msra.mxu0 0.0
    %2807 = vmatprep.subr.mxu0 0.0
    %2808 = vmatpush1.msra.mxu0 0.0
    %2809 = vmatprep.subr.mxu0 0.0
    %2810 = vmatpush1.msra.mxu0 0.0
    %2811 = vmatprep.subr.mxu0 0.0
    %2812 = vmatpush1.msra.mxu0 0.0
    %2813 = vmatprep.subr.mxu0 0.0
    %2814 = vmatpush1.msra.mxu0 0.0
    %2815 = vmatprep.subr.mxu0 0.0
    %2816 = vmatpush1.msra.mxu0 0.0
    %2817 = vmatprep.subr.mxu0 0.0
    %2818 = vmatpush1.msra.mxu0 0.0
    %2819 = vmatprep.subr.mxu0 0.0
    %2820 = vmatpush1.msra.mxu0 0.0
    %2821 = vmatprep.subr.mxu0 0.0
    %2822 = vmatpush1.msra.mxu0 0.0
    %2823 = vmatprep.subr.mxu0 0.0
    %2824 = vmatpush1.msra.mxu0 0.0
    %2825 = vmatprep.subr.mxu0 0.0
    %2826 = vmatpush1.msra.mxu0 0.0
    %2827 = vmatprep.subr.mxu0 0.0
    %2828 = vmatpush1.msra.mxu0 0.0
    %2829 = vmatprep.subr.mxu0 0.0
    %2830 = vmatpush1.msra.mxu0 0.0
    %2831 = vmatprep.subr.mxu0 0.0
    %2832 = vmatpush1.msra.mxu0 0.0
    %2833 = vmatprep.subr.mxu0 0.0
    %2834 = vmatpush1.msra.mxu0 0.0
    %2835 = vmatprep.subr.mxu0 0.0
    %2836 = vmatpush1.msra.mxu0 0.0
    %2837 = vmatprep.subr.mxu0 0.0
    %2838 = vmatpush1.msra.mxu0 0.0
    %2839 = vmatprep.subr.mxu0 0.0
    %2840 = vmatpush1.msra.mxu0 0.0
    %2841 = vmatprep.subr.mxu0 0.0
    %2842 = vmatpush1.msra.mxu0 0.0
    %2843 = vmatprep.subr.mxu0 0.0
    %2844 = vmatpush1.msra.mxu0 0.0
    %2845 = vmatprep.mubr.f32.mxu0 0.0
    %2846 = vmatmul.mubr.f32.gmra.mrb[0].mxu0 %v2639
    %v2847 = vpop.f32.mrb[0].mxu0
    %v2848 = vadd.f32 %v907, %v2847
    %v2849 = vpop.f32.mrb[0].mxu0
    %2850 = vdwg.mxu0
    %v2851 = vadd.f32 %v388, %v2708
    %v2852 = vxor.u32 %v2851, 2147483648
    %v2853 = vmul.f32 %v2852, 1.442695
    %v2854 = vpow.pop %v2853
    %v2855 = vadd.f32 %v2854, 1.0
    %v2856 = vrcp.pop %v2855
    %v2857 = vmul.f32 1.0, %v2856
    %v2858 = vadd.f32 %v541, %v2778
    %v2859 = vxor.u32 %v2858, 2147483648
    %v2860 = vmul.f32 %v2859, 1.442695
    %v2861 = vpow.pop %v2860
    %v2862 = vadd.f32 %v2861, 1.0
    %v2863 = vrcp.pop %v2862
    %v2864 = vmul.f32 1.0, %v2863
    %v2865 = vmul.f32 %v2857, %v2848
    %v2866 = vadd.f32 %v694, %v2865
    %v2867 = vtanh.pop %v2866
    %v2868 = vsub.f32 1.0, %v2864
    %v2869 = vmul.f32 %v2868, %v2867
    %v2870 = vmul.f32 %v2864, %v2637
    %v2871 = vadd.f32 %v2869, %v2870
    %v2873 = vsel %vm753, %v2871, 0
    %2875 = vmatprep.subr.mxu0 0.0
    %2876 = vmatpush1.msra.mxu0 %v732
    %2877 = vmatprep.subr.mxu0 0.0
    %2878 = vmatpush1.msra.mxu0 %v733
    %2879 = vmatprep.subr.mxu0 0.0
    %2880 = vmatpush1.msra.mxu0 %v734
    %2881 = vmatprep.subr.mxu0 0.0
    %2882 = vmatpush1.msra.mxu0 %v735
    %2883 = vmatprep.subr.mxu0 0.0
    %2884 = vmatpush1.msra.mxu0 0.0
    %2885 = vmatprep.subr.mxu0 0.0
    %2886 = vmatpush1.msra.mxu0 0.0
    %2887 = vmatprep.subr.mxu0 0.0
    %2888 = vmatpush1.msra.mxu0 0.0
    %2889 = vmatprep.subr.mxu0 0.0
    %2890 = vmatpush1.msra.mxu0 0.0
    %2891 = vmatprep.subr.mxu0 0.0
    %2892 = vmatpush1.msra.mxu0 0.0
    %2893 = vmatprep.subr.mxu0 0.0
    %2894 = vmatpush1.msra.mxu0 0.0
    %2895 = vmatprep.subr.mxu0 0.0
    %2896 = vmatpush1.msra.mxu0 0.0
    %2897 = vmatprep.subr.mxu0 0.0
    %2898 = vmatpush1.msra.mxu0 0.0
    %2899 = vmatprep.subr.mxu0 0.0
    %2900 = vmatpush1.msra.mxu0 0.0
    %2901 = vmatprep.subr.mxu0 0.0
    %2902 = vmatpush1.msra.mxu0 0.0
    %2903 = vmatprep.subr.mxu0 0.0
    %2904 = vmatpush1.msra.mxu0 0.0
    %2905 = vmatprep.subr.mxu0 0.0
    %2906 = vmatpush1.msra.mxu0 0.0
    %2907 = vmatprep.subr.mxu0 0.0
    %2908 = vmatpush1.msra.mxu0 0.0
    %2909 = vmatprep.subr.mxu0 0.0
    %2910 = vmatpush1.msra.mxu0 0.0
    %2911 = vmatprep.subr.mxu0 0.0
    %2912 = vmatpush1.msra.mxu0 0.0
    %2913 = vmatprep.subr.mxu0 0.0
    %2914 = vmatpush1.msra.mxu0 0.0
    %2915 = vmatprep.subr.mxu0 0.0
    %2916 = vmatpush1.msra.mxu0 0.0
    %2917 = vmatprep.subr.mxu0 0.0
    %2918 = vmatpush1.msra.mxu0 0.0
    %2919 = vmatprep.subr.mxu0 0.0
    %2920 = vmatpush1.msra.mxu0 0.0
    %2921 = vmatprep.subr.mxu0 0.0
    %2922 = vmatpush1.msra.mxu0 0.0
    %2923 = vmatprep.subr.mxu0 0.0
    %2924 = vmatpush1.msra.mxu0 0.0
    %2925 = vmatprep.subr.mxu0 0.0
    %2926 = vmatpush1.msra.mxu0 0.0
    %2927 = vmatprep.subr.mxu0 0.0
    %2928 = vmatpush1.msra.mxu0 0.0
    %2929 = vmatprep.subr.mxu0 0.0
    %2930 = vmatpush1.msra.mxu0 0.0
    %2931 = vmatprep.subr.mxu0 0.0
    %2932 = vmatpush1.msra.mxu0 0.0
    %2933 = vmatprep.subr.mxu0 0.0
    %2934 = vmatpush1.msra.mxu0 0.0
    %2935 = vmatprep.subr.mxu0 0.0
    %2936 = vmatpush1.msra.mxu0 0.0
    %2937 = vmatprep.subr.mxu0 0.0
    %2938 = vmatpush1.msra.mxu0 0.0
    %2939 = vmatprep.mubr.f32.mxu0 0.0
    %2940 = vmatmul.mubr.f32.gmra.mrb[0].mxu0 %v2873
    %v2941 = vpop.f32.mrb[0].mxu0
    %v2942 = vadd.f32 %v751, %v2941
    %v2943 = vpop.f32.mrb[0].mxu0
    %2944 = vdwg.mxu0
    %2945 = vmatprep.subr.mxu0 0.0
    %2946 = vmatpush1.msra.mxu0 %v736
    %2947 = vmatprep.subr.mxu0 0.0
    %2948 = vmatpush1.msra.mxu0 %v737
    %2949 = vmatprep.subr.mxu0 0.0
    %2950 = vmatpush1.msra.mxu0 %v738
    %2951 = vmatprep.subr.mxu0 0.0
    %2952 = vmatpush1.msra.mxu0 %v739
    %2953 = vmatprep.subr.mxu0 0.0
    %2954 = vmatpush1.msra.mxu0 0.0
    %2955 = vmatprep.subr.mxu0 0.0
    %2956 = vmatpush1.msra.mxu0 0.0
    %2957 = vmatprep.subr.mxu0 0.0
    %2958 = vmatpush1.msra.mxu0 0.0
    %2959 = vmatprep.subr.mxu0 0.0
    %2960 = vmatpush1.msra.mxu0 0.0
    %2961 = vmatprep.subr.mxu0 0.0
    %2962 = vmatpush1.msra.mxu0 0.0
    %2963 = vmatprep.subr.mxu0 0.0
    %2964 = vmatpush1.msra.mxu0 0.0
    %2965 = vmatprep.subr.mxu0 0.0
    %2966 = vmatpush1.msra.mxu0 0.0
    %2967 = vmatprep.subr.mxu0 0.0
    %2968 = vmatpush1.msra.mxu0 0.0
    %2969 = vmatprep.subr.mxu0 0.0
    %2970 = vmatpush1.msra.mxu0 0.0
    %2971 = vmatprep.subr.mxu0 0.0
    %2972 = vmatpush1.msra.mxu0 0.0
    %2973 = vmatprep.subr.mxu0 0.0
    %2974 = vmatpush1.msra.mxu0 0.0
    %2975 = vmatprep.subr.mxu0 0.0
    %2976 = vmatpush1.msra.mxu0 0.0
    %2977 = vmatprep.subr.mxu0 0.0
    %2978 = vmatpush1.msra.mxu0 0.0
    %2979 = vmatprep.subr.mxu0 0.0
    %2980 = vmatpush1.msra.mxu0 0.0
    %2981 = vmatprep.subr.mxu0 0.0
    %2982 = vmatpush1.msra.mxu0 0.0
    %2983 = vmatprep.subr.mxu0 0.0
    %2984 = vmatpush1.msra.mxu0 0.0
    %2985 = vmatprep.subr.mxu0 0.0
    %2986 = vmatpush1.msra.mxu0 0.0
    %2987 = vmatprep.subr.mxu0 0.0
    %2988 = vmatpush1.msra.mxu0 0.0
    %2989 = vmatprep.subr.mxu0 0.0
    %2990 = vmatpush1.msra.mxu0 0.0
    %2991 = vmatprep.subr.mxu0 0.0
    %2992 = vmatpush1.msra.mxu0 0.0
    %2993 = vmatprep.subr.mxu0 0.0
    %2994 = vmatpush1.msra.mxu0 0.0
    %2995 = vmatprep.subr.mxu0 0.0
    %2996 = vmatpush1.msra.mxu0 0.0
    %2997 = vmatprep.subr.mxu0 0.0
    %2998 = vmatpush1.msra.mxu0 0.0
    %2999 = vmatprep.subr.mxu0 0.0
    %3000 = vmatpush1.msra.mxu0 0.0
    %3001 = vmatprep.subr.mxu0 0.0
    %3002 = vmatpush1.msra.mxu0 0.0
    %3003 = vmatprep.subr.mxu0 0.0
    %3004 = vmatpush1.msra.mxu0 0.0
    %3005 = vmatprep.subr.mxu0 0.0
    %3006 = vmatpush1.msra.mxu0 0.0
    %3007 = vmatprep.subr.mxu0 0.0
    %3008 = vmatpush1.msra.mxu0 0.0
    %3009 = vmatprep.mubr.f32.mxu0 0.0
    %3010 = vmatmul.mubr.f32.gmra.mrb[0].mxu0 %v2873
    %v3011 = vpop.f32.mrb[0].mxu0
    %v3012 = vadd.f32 %v831, %v3011
    %v3013 = vpop.f32.mrb[0].mxu0
    %3014 = vdwg.mxu0
    %3015 = vmatprep.subr.mxu0 0.0
    %3016 = vmatpush1.msra.mxu0 %v740
    %3017 = vmatprep.subr.mxu0 0.0
    %3018 = vmatpush1.msra.mxu0 %v741
    %3019 = vmatprep.subr.mxu0 0.0
    %3020 = vmatpush1.msra.mxu0 %v742
    %3021 = vmatprep.subr.mxu0 0.0
    %3022 = vmatpush1.msra.mxu0 %v743
    %3023 = vmatprep.subr.mxu0 0.0
    %3024 = vmatpush1.msra.mxu0 0.0
    %3025 = vmatprep.subr.mxu0 0.0
    %3026 = vmatpush1.msra.mxu0 0.0
    %3027 = vmatprep.subr.mxu0 0.0
    %3028 = vmatpush1.msra.mxu0 0.0
    %3029 = vmatprep.subr.mxu0 0.0
    %3030 = vmatpush1.msra.mxu0 0.0
    %3031 = vmatprep.subr.mxu0 0.0
    %3032 = vmatpush1.msra.mxu0 0.0
    %3033 = vmatprep.subr.mxu0 0.0
    %3034 = vmatpush1.msra.mxu0 0.0
    %3035 = vmatprep.subr.mxu0 0.0
    %3036 = vmatpush1.msra.mxu0 0.0
    %3037 = vmatprep.subr.mxu0 0.0
    %3038 = vmatpush1.msra.mxu0 0.0
    %3039 = vmatprep.subr.mxu0 0.0
    %3040 = vmatpush1.msra.mxu0 0.0
    %3041 = vmatprep.subr.mxu0 0.0
    %3042 = vmatpush1.msra.mxu0 0.0
    %3043 = vmatprep.subr.mxu0 0.0
    %3044 = vmatpush1.msra.mxu0 0.0
    %3045 = vmatprep.subr.mxu0 0.0
    %3046 = vmatpush1.msra.mxu0 0.0
    %3047 = vmatprep.subr.mxu0 0.0
    %3048 = vmatpush1.msra.mxu0 0.0
    %3049 = vmatprep.subr.mxu0 0.0
    %3050 = vmatpush1.msra.mxu0 0.0
    %3051 = vmatprep.subr.mxu0 0.0
    %3052 = vmatpush1.msra.mxu0 0.0
    %3053 = vmatprep.subr.mxu0 0.0
    %3054 = vmatpush1.msra.mxu0 0.0
    %3055 = vmatprep.subr.mxu0 0.0
    %3056 = vmatpush1.msra.mxu0 0.0
    %3057 = vmatprep.subr.mxu0 0.0
    %3058 = vmatpush1.msra.mxu0 0.0
    %3059 = vmatprep.subr.mxu0 0.0
    %3060 = vmatpush1.msra.mxu0 0.0
    %3061 = vmatprep.subr.mxu0 0.0
    %3062 = vmatpush1.msra.mxu0 0.0
    %3063 = vmatprep.subr.mxu0 0.0
    %3064 = vmatpush1.msra.mxu0 0.0
    %3065 = vmatprep.subr.mxu0 0.0
    %3066 = vmatpush1.msra.mxu0 0.0
    %3067 = vmatprep.subr.mxu0 0.0
    %3068 = vmatpush1.msra.mxu0 0.0
    %3069 = vmatprep.subr.mxu0 0.0
    %3070 = vmatpush1.msra.mxu0 0.0
    %3071 = vmatprep.subr.mxu0 0.0
    %3072 = vmatpush1.msra.mxu0 0.0
    %3073 = vmatprep.subr.mxu0 0.0
    %3074 = vmatpush1.msra.mxu0 0.0
    %3075 = vmatprep.subr.mxu0 0.0
    %3076 = vmatpush1.msra.mxu0 0.0
    %3077 = vmatprep.subr.mxu0 0.0
    %3078 = vmatpush1.msra.mxu0 0.0
    %3079 = vmatprep.mubr.f32.mxu0 0.0
    %3080 = vmatmul.mubr.f32.gmra.mrb[0].mxu0 %v2873
    %v3081 = vpop.f32.mrb[0].mxu0
    %v3082 = vadd.f32 %v907, %v3081
    %v3083 = vpop.f32.mrb[0].mxu0
    %3084 = vdwg.mxu0
    %v3085 = vadd.f32 %v393, %v2942
    %v3086 = vxor.u32 %v3085, 2147483648
    %v3087 = vmul.f32 %v3086, 1.442695
    %v3088 = vpow.pop %v3087
    %v3089 = vadd.f32 %v3088, 1.0
    %v3090 = vrcp.pop %v3089
    %v3091 = vmul.f32 1.0, %v3090
    %v3092 = vadd.f32 %v546, %v3012
    %v3093 = vxor.u32 %v3092, 2147483648
    %v3094 = vmul.f32 %v3093, 1.442695
    %v3095 = vpow.pop %v3094
    %v3096 = vadd.f32 %v3095, 1.0
    %v3097 = vrcp.pop %v3096
    %v3098 = vmul.f32 1.0, %v3097
    %v3099 = vmul.f32 %v3091, %v3082
    %v3100 = vadd.f32 %v699, %v3099
    %v3101 = vtanh.pop %v3100
    %v3102 = vsub.f32 1.0, %v3098
    %v3103 = vmul.f32 %v3102, %v3101
    %v3104 = vmul.f32 %v3098, %v2871
    %v3105 = vadd.f32 %v3103, %v3104
    %v3107 = vsel %vm753, %v3105, 0
    %3109 = vmatprep.subr.mxu0 0.0
    %3110 = vmatpush1.msra.mxu0 %v732
    %3111 = vmatprep.subr.mxu0 0.0
    %3112 = vmatpush1.msra.mxu0 %v733
    %3113 = vmatprep.subr.mxu0 0.0
    %3114 = vmatpush1.msra.mxu0 %v734
    %3115 = vmatprep.subr.mxu0 0.0
    %3116 = vmatpush1.msra.mxu0 %v735
    %3117 = vmatprep.subr.mxu0 0.0
    %3118 = vmatpush1.msra.mxu0 0.0
    %3119 = vmatprep.subr.mxu0 0.0
    %3120 = vmatpush1.msra.mxu0 0.0
    %3121 = vmatprep.subr.mxu0 0.0
    %3122 = vmatpush1.msra.mxu0 0.0
    %3123 = vmatprep.subr.mxu0 0.0
    %3124 = vmatpush1.msra.mxu0 0.0
    %3125 = vmatprep.subr.mxu0 0.0
    %3126 = vmatpush1.msra.mxu0 0.0
    %3127 = vmatprep.subr.mxu0 0.0
    %3128 = vmatpush1.msra.mxu0 0.0
    %3129 = vmatprep.subr.mxu0 0.0
    %3130 = vmatpush1.msra.mxu0 0.0
    %3131 = vmatprep.subr.mxu0 0.0
    %3132 = vmatpush1.msra.mxu0 0.0
    %3133 = vmatprep.subr.mxu0 0.0
    %3134 = vmatpush1.msra.mxu0 0.0
    %3135 = vmatprep.subr.mxu0 0.0
    %3136 = vmatpush1.msra.mxu0 0.0
    %3137 = vmatprep.subr.mxu0 0.0
    %3138 = vmatpush1.msra.mxu0 0.0
    %3139 = vmatprep.subr.mxu0 0.0
    %3140 = vmatpush1.msra.mxu0 0.0
    %3141 = vmatprep.subr.mxu0 0.0
    %3142 = vmatpush1.msra.mxu0 0.0
    %3143 = vmatprep.subr.mxu0 0.0
    %3144 = vmatpush1.msra.mxu0 0.0
    %3145 = vmatprep.subr.mxu0 0.0
    %3146 = vmatpush1.msra.mxu0 0.0
    %3147 = vmatprep.subr.mxu0 0.0
    %3148 = vmatpush1.msra.mxu0 0.0
    %3149 = vmatprep.subr.mxu0 0.0
    %3150 = vmatpush1.msra.mxu0 0.0
    %3151 = vmatprep.subr.mxu0 0.0
    %3152 = vmatpush1.msra.mxu0 0.0
    %3153 = vmatprep.subr.mxu0 0.0
    %3154 = vmatpush1.msra.mxu0 0.0
    %3155 = vmatprep.subr.mxu0 0.0
    %3156 = vmatpush1.msra.mxu0 0.0
    %3157 = vmatprep.subr.mxu0 0.0
    %3158 = vmatpush1.msra.mxu0 0.0
    %3159 = vmatprep.subr.mxu0 0.0
    %3160 = vmatpush1.msra.mxu0 0.0
    %3161 = vmatprep.subr.mxu0 0.0
    %3162 = vmatpush1.msra.mxu0 0.0
    %3163 = vmatprep.subr.mxu0 0.0
    %3164 = vmatpush1.msra.mxu0 0.0
    %3165 = vmatprep.subr.mxu0 0.0
    %3166 = vmatpush1.msra.mxu0 0.0
    %3167 = vmatprep.subr.mxu0 0.0
    %3168 = vmatpush1.msra.mxu0 0.0
    %3169 = vmatprep.subr.mxu0 0.0
    %3170 = vmatpush1.msra.mxu0 0.0
    %3171 = vmatprep.subr.mxu0 0.0
    %3172 = vmatpush1.msra.mxu0 0.0
    %3173 = vmatprep.mubr.f32.mxu0 0.0
    %3174 = vmatmul.mubr.f32.gmra.mrb[0].mxu0 %v3107
    %v3175 = vpop.f32.mrb[0].mxu0
    %v3176 = vadd.f32 %v751, %v3175
    %v3177 = vpop.f32.mrb[0].mxu0
    %3178 = vdwg.mxu0
    %3179 = vmatprep.subr.mxu0 0.0
    %3180 = vmatpush1.msra.mxu0 %v736
    %3181 = vmatprep.subr.mxu0 0.0
    %3182 = vmatpush1.msra.mxu0 %v737
    %3183 = vmatprep.subr.mxu0 0.0
    %3184 = vmatpush1.msra.mxu0 %v738
    %3185 = vmatprep.subr.mxu0 0.0
    %3186 = vmatpush1.msra.mxu0 %v739
    %3187 = vmatprep.subr.mxu0 0.0
    %3188 = vmatpush1.msra.mxu0 0.0
    %3189 = vmatprep.subr.mxu0 0.0
    %3190 = vmatpush1.msra.mxu0 0.0
    %3191 = vmatprep.subr.mxu0 0.0
    %3192 = vmatpush1.msra.mxu0 0.0
    %3193 = vmatprep.subr.mxu0 0.0
    %3194 = vmatpush1.msra.mxu0 0.0
    %3195 = vmatprep.subr.mxu0 0.0
    %3196 = vmatpush1.msra.mxu0 0.0
    %3197 = vmatprep.subr.mxu0 0.0
    %3198 = vmatpush1.msra.mxu0 0.0
    %3199 = vmatprep.subr.mxu0 0.0
    %3200 = vmatpush1.msra.mxu0 0.0
    %3201 = vmatprep.subr.mxu0 0.0
    %3202 = vmatpush1.msra.mxu0 0.0
    %3203 = vmatprep.subr.mxu0 0.0
    %3204 = vmatpush1.msra.mxu0 0.0
    %3205 = vmatprep.subr.mxu0 0.0
    %3206 = vmatpush1.msra.mxu0 0.0
    %3207 = vmatprep.subr.mxu0 0.0
    %3208 = vmatpush1.msra.mxu0 0.0
    %3209 = vmatprep.subr.mxu0 0.0
    %3210 = vmatpush1.msra.mxu0 0.0
    %3211 = vmatprep.subr.mxu0 0.0
    %3212 = vmatpush1.msra.mxu0 0.0
    %3213 = vmatprep.subr.mxu0 0.0
    %3214 = vmatpush1.msra.mxu0 0.0
    %3215 = vmatprep.subr.mxu0 0.0
    %3216 = vmatpush1.msra.mxu0 0.0
    %3217 = vmatprep.subr.mxu0 0.0
    %3218 = vmatpush1.msra.mxu0 0.0
    %3219 = vmatprep.subr.mxu0 0.0
    %3220 = vmatpush1.msra.mxu0 0.0
    %3221 = vmatprep.subr.mxu0 0.0
    %3222 = vmatpush1.msra.mxu0 0.0
    %3223 = vmatprep.subr.mxu0 0.0
    %3224 = vmatpush1.msra.mxu0 0.0
    %3225 = vmatprep.subr.mxu0 0.0
    %3226 = vmatpush1.msra.mxu0 0.0
    %3227 = vmatprep.subr.mxu0 0.0
    %3228 = vmatpush1.msra.mxu0 0.0
    %3229 = vmatprep.subr.mxu0 0.0
    %3230 = vmatpush1.msra.mxu0 0.0
    %3231 = vmatprep.subr.mxu0 0.0
    %3232 = vmatpush1.msra.mxu0 0.0
    %3233 = vmatprep.subr.mxu0 0.0
    %3234 = vmatpush1.msra.mxu0 0.0
    %3235 = vmatprep.subr.mxu0 0.0
    %3236 = vmatpush1.msra.mxu0 0.0
    %3237 = vmatprep.subr.mxu0 0.0
    %3238 = vmatpush1.msra.mxu0 0.0
    %3239 = vmatprep.subr.mxu0 0.0
    %3240 = vmatpush1.msra.mxu0 0.0
    %3241 = vmatprep.subr.mxu0 0.0
    %3242 = vmatpush1.msra.mxu0 0.0
    %3243 = vmatprep.mubr.f32.mxu0 0.0
    %3244 = vmatmul.mubr.f32.gmra.mrb[0].mxu0 %v3107
    %v3245 = vpop.f32.mrb[0].mxu0
    %v3246 = vadd.f32 %v831, %v3245
    %v3247 = vpop.f32.mrb[0].mxu0
    %3248 = vdwg.mxu0
    %3249 = vmatprep.subr.mxu0 0.0
    %3250 = vmatpush1.msra.mxu0 %v740
    %3251 = vmatprep.subr.mxu0 0.0
    %3252 = vmatpush1.msra.mxu0 %v741
    %3253 = vmatprep.subr.mxu0 0.0
    %3254 = vmatpush1.msra.mxu0 %v742
    %3255 = vmatprep.subr.mxu0 0.0
    %3256 = vmatpush1.msra.mxu0 %v743
    %3257 = vmatprep.subr.mxu0 0.0
    %3258 = vmatpush1.msra.mxu0 0.0
    %3259 = vmatprep.subr.mxu0 0.0
    %3260 = vmatpush1.msra.mxu0 0.0
    %3261 = vmatprep.subr.mxu0 0.0
    %3262 = vmatpush1.msra.mxu0 0.0
    %3263 = vmatprep.subr.mxu0 0.0
    %3264 = vmatpush1.msra.mxu0 0.0
    %3265 = vmatprep.subr.mxu0 0.0
    %3266 = vmatpush1.msra.mxu0 0.0
    %3267 = vmatprep.subr.mxu0 0.0
    %3268 = vmatpush1.msra.mxu0 0.0
    %3269 = vmatprep.subr.mxu0 0.0
    %3270 = vmatpush1.msra.mxu0 0.0
    %3271 = vmatprep.subr.mxu0 0.0
    %3272 = vmatpush1.msra.mxu0 0.0
    %3273 = vmatprep.subr.mxu0 0.0
    %3274 = vmatpush1.msra.mxu0 0.0
    %3275 = vmatprep.subr.mxu0 0.0
    %3276 = vmatpush1.msra.mxu0 0.0
    %3277 = vmatprep.subr.mxu0 0.0
    %3278 = vmatpush1.msra.mxu0 0.0
    %3279 = vmatprep.subr.mxu0 0.0
    %3280 = vmatpush1.msra.mxu0 0.0
    %3281 = vmatprep.subr.mxu0 0.0
    %3282 = vmatpush1.msra.mxu0 0.0
    %3283 = vmatprep.subr.mxu0 0.0
    %3284 = vmatpush1.msra.mxu0 0.0
    %3285 = vmatprep.subr.mxu0 0.0
    %3286 = vmatpush1.msra.mxu0 0.0
    %3287 = vmatprep.subr.mxu0 0.0
    %3288 = vmatpush1.msra.mxu0 0.0
    %3289 = vmatprep.subr.mxu0 0.0
    %3290 = vmatpush1.msra.mxu0 0.0
    %3291 = vmatprep.subr.mxu0 0.0
    %3292 = vmatpush1.msra.mxu0 0.0
    %3293 = vmatprep.subr.mxu0 0.0
    %3294 = vmatpush1.msra.mxu0 0.0
    %3295 = vmatprep.subr.mxu0 0.0
    %3296 = vmatpush1.msra.mxu0 0.0
    %3297 = vmatprep.subr.mxu0 0.0
    %3298 = vmatpush1.msra.mxu0 0.0
    %3299 = vmatprep.subr.mxu0 0.0
    %3300 = vmatpush1.msra.mxu0 0.0
    %3301 = vmatprep.subr.mxu0 0.0
    %3302 = vmatpush1.msra.mxu0 0.0
    %3303 = vmatprep.subr.mxu0 0.0
    %3304 = vmatpush1.msra.mxu0 0.0
    %3305 = vmatprep.subr.mxu0 0.0
    %3306 = vmatpush1.msra.mxu0 0.0
    %3307 = vmatprep.subr.mxu0 0.0
    %3308 = vmatpush1.msra.mxu0 0.0
    %3309 = vmatprep.subr.mxu0 0.0
    %3310 = vmatpush1.msra.mxu0 0.0
    %3311 = vmatprep.subr.mxu0 0.0
    %3312 = vmatpush1.msra.mxu0 0.0
    %3313 = vmatprep.mubr.f32.mxu0 0.0
    %3314 = vmatmul.mubr.f32.gmra.mrb[0].mxu0 %v3107
    %v3315 = vpop.f32.mrb[0].mxu0
    %v3316 = vadd.f32 %v907, %v3315
    %v3317 = vpop.f32.mrb[0].mxu0
    %3318 = vdwg.mxu0
    %v3319 = vadd.f32 %v398, %v3176
    %v3320 = vxor.u32 %v3319, 2147483648
    %v3321 = vmul.f32 %v3320, 1.442695
    %v3322 = vpow.pop %v3321
    %v3323 = vadd.f32 %v3322, 1.0
    %v3324 = vrcp.pop %v3323
    %v3325 = vmul.f32 1.0, %v3324
    %v3326 = vadd.f32 %v551, %v3246
    %v3327 = vxor.u32 %v3326, 2147483648
    %v3328 = vmul.f32 %v3327, 1.442695
    %v3329 = vpow.pop %v3328
    %v3330 = vadd.f32 %v3329, 1.0
    %v3331 = vrcp.pop %v3330
    %v3332 = vmul.f32 1.0, %v3331
    %v3333 = vmul.f32 %v3325, %v3316
    %v3334 = vadd.f32 %v704, %v3333
    %v3335 = vtanh.pop %v3334
    %v3336 = vsub.f32 1.0, %v3332
    %v3337 = vmul.f32 %v3336, %v3335
    %v3338 = vmul.f32 %v3332, %v3105
    %v3339 = vadd.f32 %v3337, %v3338
    %v3341 = vsel %vm753, %v3339, 0
    %3343 = vmatprep.subr.mxu0 0.0
    %3344 = vmatpush1.msra.mxu0 %v732
    %3345 = vmatprep.subr.mxu0 0.0
    %3346 = vmatpush1.msra.mxu0 %v733
    %3347 = vmatprep.subr.mxu0 0.0
    %3348 = vmatpush1.msra.mxu0 %v734
    %3349 = vmatprep.subr.mxu0 0.0
    %3350 = vmatpush1.msra.mxu0 %v735
    %3351 = vmatprep.subr.mxu0 0.0
    %3352 = vmatpush1.msra.mxu0 0.0
    %3353 = vmatprep.subr.mxu0 0.0
    %3354 = vmatpush1.msra.mxu0 0.0
    %3355 = vmatprep.subr.mxu0 0.0
    %3356 = vmatpush1.msra.mxu0 0.0
    %3357 = vmatprep.subr.mxu0 0.0
    %3358 = vmatpush1.msra.mxu0 0.0
    %3359 = vmatprep.subr.mxu0 0.0
    %3360 = vmatpush1.msra.mxu0 0.0
    %3361 = vmatprep.subr.mxu0 0.0
    %3362 = vmatpush1.msra.mxu0 0.0
    %3363 = vmatprep.subr.mxu0 0.0
    %3364 = vmatpush1.msra.mxu0 0.0
    %3365 = vmatprep.subr.mxu0 0.0
    %3366 = vmatpush1.msra.mxu0 0.0
    %3367 = vmatprep.subr.mxu0 0.0
    %3368 = vmatpush1.msra.mxu0 0.0
    %3369 = vmatprep.subr.mxu0 0.0
    %3370 = vmatpush1.msra.mxu0 0.0
    %3371 = vmatprep.subr.mxu0 0.0
    %3372 = vmatpush1.msra.mxu0 0.0
    %3373 = vmatprep.subr.mxu0 0.0
    %3374 = vmatpush1.msra.mxu0 0.0
    %3375 = vmatprep.subr.mxu0 0.0
    %3376 = vmatpush1.msra.mxu0 0.0
    %3377 = vmatprep.subr.mxu0 0.0
    %3378 = vmatpush1.msra.mxu0 0.0
    %3379 = vmatprep.subr.mxu0 0.0
    %3380 = vmatpush1.msra.mxu0 0.0
    %3381 = vmatprep.subr.mxu0 0.0
    %3382 = vmatpush1.msra.mxu0 0.0
    %3383 = vmatprep.subr.mxu0 0.0
    %3384 = vmatpush1.msra.mxu0 0.0
    %3385 = vmatprep.subr.mxu0 0.0
    %3386 = vmatpush1.msra.mxu0 0.0
    %3387 = vmatprep.subr.mxu0 0.0
    %3388 = vmatpush1.msra.mxu0 0.0
    %3389 = vmatprep.subr.mxu0 0.0
    %3390 = vmatpush1.msra.mxu0 0.0
    %3391 = vmatprep.subr.mxu0 0.0
    %3392 = vmatpush1.msra.mxu0 0.0
    %3393 = vmatprep.subr.mxu0 0.0
    %3394 = vmatpush1.msra.mxu0 0.0
    %3395 = vmatprep.subr.mxu0 0.0
    %3396 = vmatpush1.msra.mxu0 0.0
    %3397 = vmatprep.subr.mxu0 0.0
    %3398 = vmatpush1.msra.mxu0 0.0
    %3399 = vmatprep.subr.mxu0 0.0
    %3400 = vmatpush1.msra.mxu0 0.0
    %3401 = vmatprep.subr.mxu0 0.0
    %3402 = vmatpush1.msra.mxu0 0.0
    %3403 = vmatprep.subr.mxu0 0.0
    %3404 = vmatpush1.msra.mxu0 0.0
    %3405 = vmatprep.subr.mxu0 0.0
    %3406 = vmatpush1.msra.mxu0 0.0
    %3407 = vmatprep.mubr.f32.mxu0 0.0
    %3408 = vmatmul.mubr.f32.gmra.mrb[0].mxu0 %v3341
    %v3409 = vpop.f32.mrb[0].mxu0
    %v3410 = vadd.f32 %v751, %v3409
    %v3411 = vpop.f32.mrb[0].mxu0
    %3412 = vdwg.mxu0
    %3413 = vmatprep.subr.mxu0 0.0
    %3414 = vmatpush1.msra.mxu0 %v736
    %3415 = vmatprep.subr.mxu0 0.0
    %3416 = vmatpush1.msra.mxu0 %v737
    %3417 = vmatprep.subr.mxu0 0.0
    %3418 = vmatpush1.msra.mxu0 %v738
    %3419 = vmatprep.subr.mxu0 0.0
    %3420 = vmatpush1.msra.mxu0 %v739
    %3421 = vmatprep.subr.mxu0 0.0
    %3422 = vmatpush1.msra.mxu0 0.0
    %3423 = vmatprep.subr.mxu0 0.0
    %3424 = vmatpush1.msra.mxu0 0.0
    %3425 = vmatprep.subr.mxu0 0.0
    %3426 = vmatpush1.msra.mxu0 0.0
    %3427 = vmatprep.subr.mxu0 0.0
    %3428 = vmatpush1.msra.mxu0 0.0
    %3429 = vmatprep.subr.mxu0 0.0
    %3430 = vmatpush1.msra.mxu0 0.0
    %3431 = vmatprep.subr.mxu0 0.0
    %3432 = vmatpush1.msra.mxu0 0.0
    %3433 = vmatprep.subr.mxu0 0.0
    %3434 = vmatpush1.msra.mxu0 0.0
    %3435 = vmatprep.subr.mxu0 0.0
    %3436 = vmatpush1.msra.mxu0 0.0
    %3437 = vmatprep.subr.mxu0 0.0
    %3438 = vmatpush1.msra.mxu0 0.0
    %3439 = vmatprep.subr.mxu0 0.0
    %3440 = vmatpush1.msra.mxu0 0.0
    %3441 = vmatprep.subr.mxu0 0.0
    %3442 = vmatpush1.msra.mxu0 0.0
    %3443 = vmatprep.subr.mxu0 0.0
    %3444 = vmatpush1.msra.mxu0 0.0
    %3445 = vmatprep.subr.mxu0 0.0
    %3446 = vmatpush1.msra.mxu0 0.0
    %3447 = vmatprep.subr.mxu0 0.0
    %3448 = vmatpush1.msra.mxu0 0.0
    %3449 = vmatprep.subr.mxu0 0.0
    %3450 = vmatpush1.msra.mxu0 0.0
    %3451 = vmatprep.subr.mxu0 0.0
    %3452 = vmatpush1.msra.mxu0 0.0
    %3453 = vmatprep.subr.mxu0 0.0
    %3454 = vmatpush1.msra.mxu0 0.0
    %3455 = vmatprep.subr.mxu0 0.0
    %3456 = vmatpush1.msra.mxu0 0.0
    %3457 = vmatprep.subr.mxu0 0.0
    %3458 = vmatpush1.msra.mxu0 0.0
    %3459 = vmatprep.subr.mxu0 0.0
    %3460 = vmatpush1.msra.mxu0 0.0
    %3461 = vmatprep.subr.mxu0 0.0
    %3462 = vmatpush1.msra.mxu0 0.0
    %3463 = vmatprep.subr.mxu0 0.0
    %3464 = vmatpush1.msra.mxu0 0.0
    %3465 = vmatprep.subr.mxu0 0.0
    %3466 = vmatpush1.msra.mxu0 0.0
    %3467 = vmatprep.subr.mxu0 0.0
    %3468 = vmatpush1.msra.mxu0 0.0
    %3469 = vmatprep.subr.mxu0 0.0
    %3470 = vmatpush1.msra.mxu0 0.0
    %3471 = vmatprep.subr.mxu0 0.0
    %3472 = vmatpush1.msra.mxu0 0.0
    %3473 = vmatprep.subr.mxu0 0.0
    %3474 = vmatpush1.msra.mxu0 0.0
    %3475 = vmatprep.subr.mxu0 0.0
    %3476 = vmatpush1.msra.mxu0 0.0
    %3477 = vmatprep.mubr.f32.mxu0 0.0
    %3478 = vmatmul.mubr.f32.gmra.mrb[0].mxu0 %v3341
    %v3479 = vpop.f32.mrb[0].mxu0
    %v3480 = vadd.f32 %v831, %v3479
    %v3481 = vpop.f32.mrb[0].mxu0
    %3482 = vdwg.mxu0
    %3483 = vmatprep.subr.mxu0 0.0
    %3484 = vmatpush1.msra.mxu0 %v740
    %3485 = vmatprep.subr.mxu0 0.0
    %3486 = vmatpush1.msra.mxu0 %v741
    %3487 = vmatprep.subr.mxu0 0.0
    %3488 = vmatpush1.msra.mxu0 %v742
    %3489 = vmatprep.subr.mxu0 0.0
    %3490 = vmatpush1.msra.mxu0 %v743
    %3491 = vmatprep.subr.mxu0 0.0
    %3492 = vmatpush1.msra.mxu0 0.0
    %3493 = vmatprep.subr.mxu0 0.0
    %3494 = vmatpush1.msra.mxu0 0.0
    %3495 = vmatprep.subr.mxu0 0.0
    %3496 = vmatpush1.msra.mxu0 0.0
    %3497 = vmatprep.subr.mxu0 0.0
    %3498 = vmatpush1.msra.mxu0 0.0
    %3499 = vmatprep.subr.mxu0 0.0
    %3500 = vmatpush1.msra.mxu0 0.0
    %3501 = vmatprep.subr.mxu0 0.0
    %3502 = vmatpush1.msra.mxu0 0.0
    %3503 = vmatprep.subr.mxu0 0.0
    %3504 = vmatpush1.msra.mxu0 0.0
    %3505 = vmatprep.subr.mxu0 0.0
    %3506 = vmatpush1.msra.mxu0 0.0
    %3507 = vmatprep.subr.mxu0 0.0
    %3508 = vmatpush1.msra.mxu0 0.0
    %3509 = vmatprep.subr.mxu0 0.0
    %3510 = vmatpush1.msra.mxu0 0.0
    %3511 = vmatprep.subr.mxu0 0.0
    %3512 = vmatpush1.msra.mxu0 0.0
    %3513 = vmatprep.subr.mxu0 0.0
    %3514 = vmatpush1.msra.mxu0 0.0
    %3515 = vmatprep.subr.mxu0 0.0
    %3516 = vmatpush1.msra.mxu0 0.0
    %3517 = vmatprep.subr.mxu0 0.0
    %3518 = vmatpush1.msra.mxu0 0.0
    %3519 = vmatprep.subr.mxu0 0.0
    %3520 = vmatpush1.msra.mxu0 0.0
    %3521 = vmatprep.subr.mxu0 0.0
    %3522 = vmatpush1.msra.mxu0 0.0
    %3523 = vmatprep.subr.mxu0 0.0
    %3524 = vmatpush1.msra.mxu0 0.0
    %3525 = vmatprep.subr.mxu0 0.0
    %3526 = vmatpush1.msra.mxu0 0.0
    %3527 = vmatprep.subr.mxu0 0.0
    %3528 = vmatpush1.msra.mxu0 0.0
    %3529 = vmatprep.subr.mxu0 0.0
    %3530 = vmatpush1.msra.mxu0 0.0
    %3531 = vmatprep.subr.mxu0 0.0
    %3532 = vmatpush1.msra.mxu0 0.0
    %3533 = vmatprep.subr.mxu0 0.0
    %3534 = vmatpush1.msra.mxu0 0.0
    %3535 = vmatprep.subr.mxu0 0.0
    %3536 = vmatpush1.msra.mxu0 0.0
    %3537 = vmatprep.subr.mxu0 0.0
    %3538 = vmatpush1.msra.mxu0 0.0
    %3539 = vmatprep.subr.mxu0 0.0
    %3540 = vmatpush1.msra.mxu0 0.0
    %3541 = vmatprep.subr.mxu0 0.0
    %3542 = vmatpush1.msra.mxu0 0.0
    %3543 = vmatprep.subr.mxu0 0.0
    %3544 = vmatpush1.msra.mxu0 0.0
    %3545 = vmatprep.subr.mxu0 0.0
    %3546 = vmatpush1.msra.mxu0 0.0
    %3547 = vmatprep.mubr.f32.mxu0 0.0
    %3548 = vmatmul.mubr.f32.gmra.mrb[0].mxu0 %v3341
    %v3549 = vpop.f32.mrb[0].mxu0
    %v3550 = vadd.f32 %v907, %v3549
    %v3551 = vpop.f32.mrb[0].mxu0
    %3552 = vdwg.mxu0
    %v3553 = vadd.f32 %v403, %v3410
    %v3554 = vxor.u32 %v3553, 2147483648
    %v3555 = vmul.f32 %v3554, 1.442695
    %v3556 = vpow.pop %v3555
    %v3557 = vadd.f32 %v3556, 1.0
    %v3558 = vrcp.pop %v3557
    %v3559 = vmul.f32 1.0, %v3558
    %v3560 = vadd.f32 %v556, %v3480
    %v3561 = vxor.u32 %v3560, 2147483648
    %v3562 = vmul.f32 %v3561, 1.442695
    %v3563 = vpow.pop %v3562
    %v3564 = vadd.f32 %v3563, 1.0
    %v3565 = vrcp.pop %v3564
    %v3566 = vmul.f32 1.0, %v3565
    %v3567 = vmul.f32 %v3559, %v3550
    %v3568 = vadd.f32 %v709, %v3567
    %v3569 = vtanh.pop %v3568
    %v3570 = vsub.f32 1.0, %v3566
    %v3571 = vmul.f32 %v3570, %v3569
    %v3572 = vmul.f32 %v3566, %v3339
    %v3573 = vadd.f32 %v3571, %v3572
    %v3575 = vsel %vm753, %v3573, 0
    %3577 = vmatprep.subr.mxu0 0.0
    %3578 = vmatpush1.msra.mxu0 %v732
    %3579 = vmatprep.subr.mxu0 0.0
    %3580 = vmatpush1.msra.mxu0 %v733
    %3581 = vmatprep.subr.mxu0 0.0
    %3582 = vmatpush1.msra.mxu0 %v734
    %3583 = vmatprep.subr.mxu0 0.0
    %3584 = vmatpush1.msra.mxu0 %v735
    %3585 = vmatprep.subr.mxu0 0.0
    %3586 = vmatpush1.msra.mxu0 0.0
    %3587 = vmatprep.subr.mxu0 0.0
    %3588 = vmatpush1.msra.mxu0 0.0
    %3589 = vmatprep.subr.mxu0 0.0
    %3590 = vmatpush1.msra.mxu0 0.0
    %3591 = vmatprep.subr.mxu0 0.0
    %3592 = vmatpush1.msra.mxu0 0.0
    %3593 = vmatprep.subr.mxu0 0.0
    %3594 = vmatpush1.msra.mxu0 0.0
    %3595 = vmatprep.subr.mxu0 0.0
    %3596 = vmatpush1.msra.mxu0 0.0
    %3597 = vmatprep.subr.mxu0 0.0
    %3598 = vmatpush1.msra.mxu0 0.0
    %3599 = vmatprep.subr.mxu0 0.0
    %3600 = vmatpush1.msra.mxu0 0.0
    %3601 = vmatprep.subr.mxu0 0.0
    %3602 = vmatpush1.msra.mxu0 0.0
    %3603 = vmatprep.subr.mxu0 0.0
    %3604 = vmatpush1.msra.mxu0 0.0
    %3605 = vmatprep.subr.mxu0 0.0
    %3606 = vmatpush1.msra.mxu0 0.0
    %3607 = vmatprep.subr.mxu0 0.0
    %3608 = vmatpush1.msra.mxu0 0.0
    %3609 = vmatprep.subr.mxu0 0.0
    %3610 = vmatpush1.msra.mxu0 0.0
    %3611 = vmatprep.subr.mxu0 0.0
    %3612 = vmatpush1.msra.mxu0 0.0
    %3613 = vmatprep.subr.mxu0 0.0
    %3614 = vmatpush1.msra.mxu0 0.0
    %3615 = vmatprep.subr.mxu0 0.0
    %3616 = vmatpush1.msra.mxu0 0.0
    %3617 = vmatprep.subr.mxu0 0.0
    %3618 = vmatpush1.msra.mxu0 0.0
    %3619 = vmatprep.subr.mxu0 0.0
    %3620 = vmatpush1.msra.mxu0 0.0
    %3621 = vmatprep.subr.mxu0 0.0
    %3622 = vmatpush1.msra.mxu0 0.0
    %3623 = vmatprep.subr.mxu0 0.0
    %3624 = vmatpush1.msra.mxu0 0.0
    %3625 = vmatprep.subr.mxu0 0.0
    %3626 = vmatpush1.msra.mxu0 0.0
    %3627 = vmatprep.subr.mxu0 0.0
    %3628 = vmatpush1.msra.mxu0 0.0
    %3629 = vmatprep.subr.mxu0 0.0
    %3630 = vmatpush1.msra.mxu0 0.0
    %3631 = vmatprep.subr.mxu0 0.0
    %3632 = vmatpush1.msra.mxu0 0.0
    %3633 = vmatprep.subr.mxu0 0.0
    %3634 = vmatpush1.msra.mxu0 0.0
    %3635 = vmatprep.subr.mxu0 0.0
    %3636 = vmatpush1.msra.mxu0 0.0
    %3637 = vmatprep.subr.mxu0 0.0
    %3638 = vmatpush1.msra.mxu0 0.0
    %3639 = vmatprep.subr.mxu0 0.0
    %3640 = vmatpush1.msra.mxu0 0.0
    %3641 = vmatprep.mubr.f32.mxu0 0.0
    %3642 = vmatmul.mubr.f32.gmra.mrb[0].mxu0 %v3575
    %v3643 = vpop.f32.mrb[0].mxu0
    %v3644 = vadd.f32 %v751, %v3643
    %v3645 = vpop.f32.mrb[0].mxu0
    %3646 = vdwg.mxu0
    %3647 = vmatprep.subr.mxu0 0.0
    %3648 = vmatpush1.msra.mxu0 %v736
    %3649 = vmatprep.subr.mxu0 0.0
    %3650 = vmatpush1.msra.mxu0 %v737
    %3651 = vmatprep.subr.mxu0 0.0
    %3652 = vmatpush1.msra.mxu0 %v738
    %3653 = vmatprep.subr.mxu0 0.0
    %3654 = vmatpush1.msra.mxu0 %v739
    %3655 = vmatprep.subr.mxu0 0.0
    %3656 = vmatpush1.msra.mxu0 0.0
    %3657 = vmatprep.subr.mxu0 0.0
    %3658 = vmatpush1.msra.mxu0 0.0
    %3659 = vmatprep.subr.mxu0 0.0
    %3660 = vmatpush1.msra.mxu0 0.0
    %3661 = vmatprep.subr.mxu0 0.0
    %3662 = vmatpush1.msra.mxu0 0.0
    %3663 = vmatprep.subr.mxu0 0.0
    %3664 = vmatpush1.msra.mxu0 0.0
    %3665 = vmatprep.subr.mxu0 0.0
    %3666 = vmatpush1.msra.mxu0 0.0
    %3667 = vmatprep.subr.mxu0 0.0
    %3668 = vmatpush1.msra.mxu0 0.0
    %3669 = vmatprep.subr.mxu0 0.0
    %3670 = vmatpush1.msra.mxu0 0.0
    %3671 = vmatprep.subr.mxu0 0.0
    %3672 = vmatpush1.msra.mxu0 0.0
    %3673 = vmatprep.subr.mxu0 0.0
    %3674 = vmatpush1.msra.mxu0 0.0
    %3675 = vmatprep.subr.mxu0 0.0
    %3676 = vmatpush1.msra.mxu0 0.0
    %3677 = vmatprep.subr.mxu0 0.0
    %3678 = vmatpush1.msra.mxu0 0.0
    %3679 = vmatprep.subr.mxu0 0.0
    %3680 = vmatpush1.msra.mxu0 0.0
    %3681 = vmatprep.subr.mxu0 0.0
    %3682 = vmatpush1.msra.mxu0 0.0
    %3683 = vmatprep.subr.mxu0 0.0
    %3684 = vmatpush1.msra.mxu0 0.0
    %3685 = vmatprep.subr.mxu0 0.0
    %3686 = vmatpush1.msra.mxu0 0.0
    %3687 = vmatprep.subr.mxu0 0.0
    %3688 = vmatpush1.msra.mxu0 0.0
    %3689 = vmatprep.subr.mxu0 0.0
    %3690 = vmatpush1.msra.mxu0 0.0
    %3691 = vmatprep.subr.mxu0 0.0
    %3692 = vmatpush1.msra.mxu0 0.0
    %3693 = vmatprep.subr.mxu0 0.0
    %3694 = vmatpush1.msra.mxu0 0.0
    %3695 = vmatprep.subr.mxu0 0.0
    %3696 = vmatpush1.msra.mxu0 0.0
    %3697 = vmatprep.subr.mxu0 0.0
    %3698 = vmatpush1.msra.mxu0 0.0
    %3699 = vmatprep.subr.mxu0 0.0
    %3700 = vmatpush1.msra.mxu0 0.0
    %3701 = vmatprep.subr.mxu0 0.0
    %3702 = vmatpush1.msra.mxu0 0.0
    %3703 = vmatprep.subr.mxu0 0.0
    %3704 = vmatpush1.msra.mxu0 0.0
    %3705 = vmatprep.subr.mxu0 0.0
    %3706 = vmatpush1.msra.mxu0 0.0
    %3707 = vmatprep.subr.mxu0 0.0
    %3708 = vmatpush1.msra.mxu0 0.0
    %3709 = vmatprep.subr.mxu0 0.0
    %3710 = vmatpush1.msra.mxu0 0.0
    %3711 = vmatprep.mubr.f32.mxu0 0.0
    %3712 = vmatmul.mubr.f32.gmra.mrb[0].mxu0 %v3575
    %v3713 = vpop.f32.mrb[0].mxu0
    %v3714 = vadd.f32 %v831, %v3713
    %v3715 = vpop.f32.mrb[0].mxu0
    %3716 = vdwg.mxu0
    %3717 = vmatprep.subr.mxu0 0.0
    %3718 = vmatpush1.msra.mxu0 %v740
    %3719 = vmatprep.subr.mxu0 0.0
    %3720 = vmatpush1.msra.mxu0 %v741
    %3721 = vmatprep.subr.mxu0 0.0
    %3722 = vmatpush1.msra.mxu0 %v742
    %3723 = vmatprep.subr.mxu0 0.0
    %3724 = vmatpush1.msra.mxu0 %v743
    %3725 = vmatprep.subr.mxu0 0.0
    %3726 = vmatpush1.msra.mxu0 0.0
    %3727 = vmatprep.subr.mxu0 0.0
    %3728 = vmatpush1.msra.mxu0 0.0
    %3729 = vmatprep.subr.mxu0 0.0
    %3730 = vmatpush1.msra.mxu0 0.0
    %3731 = vmatprep.subr.mxu0 0.0
    %3732 = vmatpush1.msra.mxu0 0.0
    %3733 = vmatprep.subr.mxu0 0.0
    %3734 = vmatpush1.msra.mxu0 0.0
    %3735 = vmatprep.subr.mxu0 0.0
    %3736 = vmatpush1.msra.mxu0 0.0
    %3737 = vmatprep.subr.mxu0 0.0
    %3738 = vmatpush1.msra.mxu0 0.0
    %3739 = vmatprep.subr.mxu0 0.0
    %3740 = vmatpush1.msra.mxu0 0.0
    %3741 = vmatprep.subr.mxu0 0.0
    %3742 = vmatpush1.msra.mxu0 0.0
    %3743 = vmatprep.subr.mxu0 0.0
    %3744 = vmatpush1.msra.mxu0 0.0
    %3745 = vmatprep.subr.mxu0 0.0
    %3746 = vmatpush1.msra.mxu0 0.0
    %3747 = vmatprep.subr.mxu0 0.0
    %3748 = vmatpush1.msra.mxu0 0.0
    %3749 = vmatprep.subr.mxu0 0.0
    %3750 = vmatpush1.msra.mxu0 0.0
    %3751 = vmatprep.subr.mxu0 0.0
    %3752 = vmatpush1.msra.mxu0 0.0
    %3753 = vmatprep.subr.mxu0 0.0
    %3754 = vmatpush1.msra.mxu0 0.0
    %3755 = vmatprep.subr.mxu0 0.0
    %3756 = vmatpush1.msra.mxu0 0.0
    %3757 = vmatprep.subr.mxu0 0.0
    %3758 = vmatpush1.msra.mxu0 0.0
    %3759 = vmatprep.subr.mxu0 0.0
    %3760 = vmatpush1.msra.mxu0 0.0
    %3761 = vmatprep.subr.mxu0 0.0
    %3762 = vmatpush1.msra.mxu0 0.0
    %3763 = vmatprep.subr.mxu0 0.0
    %3764 = vmatpush1.msra.mxu0 0.0
    %3765 = vmatprep.subr.mxu0 0.0
    %3766 = vmatpush1.msra.mxu0 0.0
    %3767 = vmatprep.subr.mxu0 0.0
    %3768 = vmatpush1.msra.mxu0 0.0
    %3769 = vmatprep.subr.mxu0 0.0
    %3770 = vmatpush1.msra.mxu0 0.0
    %3771 = vmatprep.subr.mxu0 0.0
    %3772 = vmatpush1.msra.mxu0 0.0
    %3773 = vmatprep.subr.mxu0 0.0
    %3774 = vmatpush1.msra.mxu0 0.0
    %3775 = vmatprep.subr.mxu0 0.0
    %3776 = vmatpush1.msra.mxu0 0.0
    %3777 = vmatprep.subr.mxu0 0.0
    %3778 = vmatpush1.msra.mxu0 0.0
    %3779 = vmatprep.subr.mxu0 0.0
    %3780 = vmatpush1.msra.mxu0 0.0
    %3781 = vmatprep.mubr.f32.mxu0 0.0
    %3782 = vmatmul.mubr.f32.gmra.mrb[0].mxu0 %v3575
    %v3783 = vpop.f32.mrb[0].mxu0
    %v3784 = vadd.f32 %v907, %v3783
    %v3785 = vpop.f32.mrb[0].mxu0
    %3786 = vdwg.mxu0
    %v3787 = vadd.f32 %v408, %v3644
    %v3788 = vxor.u32 %v3787, 2147483648
    %v3789 = vmul.f32 %v3788, 1.442695
    %v3790 = vpow.pop %v3789
    %v3791 = vadd.f32 %v3790, 1.0
    %v3792 = vrcp.pop %v3791
    %v3793 = vmul.f32 1.0, %v3792
    %v3794 = vadd.f32 %v561, %v3714
    %v3795 = vxor.u32 %v3794, 2147483648
    %v3796 = vmul.f32 %v3795, 1.442695
    %v3797 = vpow.pop %v3796
    %v3798 = vadd.f32 %v3797, 1.0
    %v3799 = vrcp.pop %v3798
    %v3800 = vmul.f32 1.0, %v3799
    %v3801 = vmul.f32 %v3793, %v3784
    %v3802 = vadd.f32 %v714, %v3801
    %v3803 = vtanh.pop %v3802
    %v3804 = vsub.f32 1.0, %v3800
    %v3805 = vmul.f32 %v3804, %v3803
    %v3806 = vmul.f32 %v3800, %v3573
    %v3807 = vadd.f32 %v3805, %v3806
    %v3809 = vsel %vm753, %v3807, 0
    %3811 = vmatprep.subr.mxu0 0.0
    %3812 = vmatpush1.msra.mxu0 %v732
    %3813 = vmatprep.subr.mxu0 0.0
    %3814 = vmatpush1.msra.mxu0 %v733
    %3815 = vmatprep.subr.mxu0 0.0
    %3816 = vmatpush1.msra.mxu0 %v734
    %3817 = vmatprep.subr.mxu0 0.0
    %3818 = vmatpush1.msra.mxu0 %v735
    %3819 = vmatprep.subr.mxu0 0.0
    %3820 = vmatpush1.msra.mxu0 0.0
    %3821 = vmatprep.subr.mxu0 0.0
    %3822 = vmatpush1.msra.mxu0 0.0
    %3823 = vmatprep.subr.mxu0 0.0
    %3824 = vmatpush1.msra.mxu0 0.0
    %3825 = vmatprep.subr.mxu0 0.0
    %3826 = vmatpush1.msra.mxu0 0.0
    %3827 = vmatprep.subr.mxu0 0.0
    %3828 = vmatpush1.msra.mxu0 0.0
    %3829 = vmatprep.subr.mxu0 0.0
    %3830 = vmatpush1.msra.mxu0 0.0
    %3831 = vmatprep.subr.mxu0 0.0
    %3832 = vmatpush1.msra.mxu0 0.0
    %3833 = vmatprep.subr.mxu0 0.0
    %3834 = vmatpush1.msra.mxu0 0.0
    %3835 = vmatprep.subr.mxu0 0.0
    %3836 = vmatpush1.msra.mxu0 0.0
    %3837 = vmatprep.subr.mxu0 0.0
    %3838 = vmatpush1.msra.mxu0 0.0
    %3839 = vmatprep.subr.mxu0 0.0
    %3840 = vmatpush1.msra.mxu0 0.0
    %3841 = vmatprep.subr.mxu0 0.0
    %3842 = vmatpush1.msra.mxu0 0.0
    %3843 = vmatprep.subr.mxu0 0.0
    %3844 = vmatpush1.msra.mxu0 0.0
    %3845 = vmatprep.subr.mxu0 0.0
    %3846 = vmatpush1.msra.mxu0 0.0
    %3847 = vmatprep.subr.mxu0 0.0
    %3848 = vmatpush1.msra.mxu0 0.0
    %3849 = vmatprep.subr.mxu0 0.0
    %3850 = vmatpush1.msra.mxu0 0.0
    %3851 = vmatprep.subr.mxu0 0.0
    %3852 = vmatpush1.msra.mxu0 0.0
    %3853 = vmatprep.subr.mxu0 0.0
    %3854 = vmatpush1.msra.mxu0 0.0
    %3855 = vmatprep.subr.mxu0 0.0
    %3856 = vmatpush1.msra.mxu0 0.0
    %3857 = vmatprep.subr.mxu0 0.0
    %3858 = vmatpush1.msra.mxu0 0.0
    %3859 = vmatprep.subr.mxu0 0.0
    %3860 = vmatpush1.msra.mxu0 0.0
    %3861 = vmatprep.subr.mxu0 0.0
    %3862 = vmatpush1.msra.mxu0 0.0
    %3863 = vmatprep.subr.mxu0 0.0
    %3864 = vmatpush1.msra.mxu0 0.0
    %3865 = vmatprep.subr.mxu0 0.0
    %3866 = vmatpush1.msra.mxu0 0.0
    %3867 = vmatprep.subr.mxu0 0.0
    %3868 = vmatpush1.msra.mxu0 0.0
    %3869 = vmatprep.subr.mxu0 0.0
    %3870 = vmatpush1.msra.mxu0 0.0
    %3871 = vmatprep.subr.mxu0 0.0
    %3872 = vmatpush1.msra.mxu0 0.0
    %3873 = vmatprep.subr.mxu0 0.0
    %3874 = vmatpush1.msra.mxu0 0.0
    %3875 = vmatprep.mubr.f32.mxu0 0.0
    %3876 = vmatmul.mubr.f32.gmra.mrb[0].mxu0 %v3809
    %v3877 = vpop.f32.mrb[0].mxu0
    %v3878 = vadd.f32 %v751, %v3877
    %v3879 = vpop.f32.mrb[0].mxu0
    %3880 = vdwg.mxu0
    %3881 = vmatprep.subr.mxu0 0.0
    %3882 = vmatpush1.msra.mxu0 %v736
    %3883 = vmatprep.subr.mxu0 0.0
    %3884 = vmatpush1.msra.mxu0 %v737
    %3885 = vmatprep.subr.mxu0 0.0
    %3886 = vmatpush1.msra.mxu0 %v738
    %3887 = vmatprep.subr.mxu0 0.0
    %3888 = vmatpush1.msra.mxu0 %v739
    %3889 = vmatprep.subr.mxu0 0.0
    %3890 = vmatpush1.msra.mxu0 0.0
    %3891 = vmatprep.subr.mxu0 0.0
    %3892 = vmatpush1.msra.mxu0 0.0
    %3893 = vmatprep.subr.mxu0 0.0
    %3894 = vmatpush1.msra.mxu0 0.0
    %3895 = vmatprep.subr.mxu0 0.0
    %3896 = vmatpush1.msra.mxu0 0.0
    %3897 = vmatprep.subr.mxu0 0.0
    %3898 = vmatpush1.msra.mxu0 0.0
    %3899 = vmatprep.subr.mxu0 0.0
    %3900 = vmatpush1.msra.mxu0 0.0
    %3901 = vmatprep.subr.mxu0 0.0
    %3902 = vmatpush1.msra.mxu0 0.0
    %3903 = vmatprep.subr.mxu0 0.0
    %3904 = vmatpush1.msra.mxu0 0.0
    %3905 = vmatprep.subr.mxu0 0.0
    %3906 = vmatpush1.msra.mxu0 0.0
    %3907 = vmatprep.subr.mxu0 0.0
    %3908 = vmatpush1.msra.mxu0 0.0
    %3909 = vmatprep.subr.mxu0 0.0
    %3910 = vmatpush1.msra.mxu0 0.0
    %3911 = vmatprep.subr.mxu0 0.0
    %3912 = vmatpush1.msra.mxu0 0.0
    %3913 = vmatprep.subr.mxu0 0.0
    %3914 = vmatpush1.msra.mxu0 0.0
    %3915 = vmatprep.subr.mxu0 0.0
    %3916 = vmatpush1.msra.mxu0 0.0
    %3917 = vmatprep.subr.mxu0 0.0
    %3918 = vmatpush1.msra.mxu0 0.0
    %3919 = vmatprep.subr.mxu0 0.0
    %3920 = vmatpush1.msra.mxu0 0.0
    %3921 = vmatprep.subr.mxu0 0.0
    %3922 = vmatpush1.msra.mxu0 0.0
    %3923 = vmatprep.subr.mxu0 0.0
    %3924 = vmatpush1.msra.mxu0 0.0
    %3925 = vmatprep.subr.mxu0 0.0
    %3926 = vmatpush1.msra.mxu0 0.0
    %3927 = vmatprep.subr.mxu0 0.0
    %3928 = vmatpush1.msra.mxu0 0.0
    %3929 = vmatprep.subr.mxu0 0.0
    %3930 = vmatpush1.msra.mxu0 0.0
    %3931 = vmatprep.subr.mxu0 0.0
    %3932 = vmatpush1.msra.mxu0 0.0
    %3933 = vmatprep.subr.mxu0 0.0
    %3934 = vmatpush1.msra.mxu0 0.0
    %3935 = vmatprep.subr.mxu0 0.0
    %3936 = vmatpush1.msra.mxu0 0.0
    %3937 = vmatprep.subr.mxu0 0.0
    %3938 = vmatpush1.msra.mxu0 0.0
    %3939 = vmatprep.subr.mxu0 0.0
    %3940 = vmatpush1.msra.mxu0 0.0
    %3941 = vmatprep.subr.mxu0 0.0
    %3942 = vmatpush1.msra.mxu0 0.0
    %3943 = vmatprep.subr.mxu0 0.0
    %3944 = vmatpush1.msra.mxu0 0.0
    %3945 = vmatprep.mubr.f32.mxu0 0.0
    %3946 = vmatmul.mubr.f32.gmra.mrb[0].mxu0 %v3809
    %v3947 = vpop.f32.mrb[0].mxu0
    %v3948 = vadd.f32 %v831, %v3947
    %v3949 = vpop.f32.mrb[0].mxu0
    %3950 = vdwg.mxu0
    %3951 = vmatprep.subr.mxu0 0.0
    %3952 = vmatpush1.msra.mxu0 %v740
    %3953 = vmatprep.subr.mxu0 0.0
    %3954 = vmatpush1.msra.mxu0 %v741
    %3955 = vmatprep.subr.mxu0 0.0
    %3956 = vmatpush1.msra.mxu0 %v742
    %3957 = vmatprep.subr.mxu0 0.0
    %3958 = vmatpush1.msra.mxu0 %v743
    %3959 = vmatprep.subr.mxu0 0.0
    %3960 = vmatpush1.msra.mxu0 0.0
    %3961 = vmatprep.subr.mxu0 0.0
    %3962 = vmatpush1.msra.mxu0 0.0
    %3963 = vmatprep.subr.mxu0 0.0
    %3964 = vmatpush1.msra.mxu0 0.0
    %3965 = vmatprep.subr.mxu0 0.0
    %3966 = vmatpush1.msra.mxu0 0.0
    %3967 = vmatprep.subr.mxu0 0.0
    %3968 = vmatpush1.msra.mxu0 0.0
    %3969 = vmatprep.subr.mxu0 0.0
    %3970 = vmatpush1.msra.mxu0 0.0
    %3971 = vmatprep.subr.mxu0 0.0
    %3972 = vmatpush1.msra.mxu0 0.0
    %3973 = vmatprep.subr.mxu0 0.0
    %3974 = vmatpush1.msra.mxu0 0.0
    %3975 = vmatprep.subr.mxu0 0.0
    %3976 = vmatpush1.msra.mxu0 0.0
    %3977 = vmatprep.subr.mxu0 0.0
    %3978 = vmatpush1.msra.mxu0 0.0
    %3979 = vmatprep.subr.mxu0 0.0
    %3980 = vmatpush1.msra.mxu0 0.0
    %3981 = vmatprep.subr.mxu0 0.0
    %3982 = vmatpush1.msra.mxu0 0.0
    %3983 = vmatprep.subr.mxu0 0.0
    %3984 = vmatpush1.msra.mxu0 0.0
    %3985 = vmatprep.subr.mxu0 0.0
    %3986 = vmatpush1.msra.mxu0 0.0
    %3987 = vmatprep.subr.mxu0 0.0
    %3988 = vmatpush1.msra.mxu0 0.0
    %3989 = vmatprep.subr.mxu0 0.0
    %3990 = vmatpush1.msra.mxu0 0.0
    %3991 = vmatprep.subr.mxu0 0.0
    %3992 = vmatpush1.msra.mxu0 0.0
    %3993 = vmatprep.subr.mxu0 0.0
    %3994 = vmatpush1.msra.mxu0 0.0
    %3995 = vmatprep.subr.mxu0 0.0
    %3996 = vmatpush1.msra.mxu0 0.0
    %3997 = vmatprep.subr.mxu0 0.0
    %3998 = vmatpush1.msra.mxu0 0.0
    %3999 = vmatprep.subr.mxu0 0.0
    %4000 = vmatpush1.msra.mxu0 0.0
    %4001 = vmatprep.subr.mxu0 0.0
    %4002 = vmatpush1.msra.mxu0 0.0
    %4003 = vmatprep.subr.mxu0 0.0
    %4004 = vmatpush1.msra.mxu0 0.0
    %4005 = vmatprep.subr.mxu0 0.0
    %4006 = vmatpush1.msra.mxu0 0.0
    %4007 = vmatprep.subr.mxu0 0.0
    %4008 = vmatpush1.msra.mxu0 0.0
    %4009 = vmatprep.subr.mxu0 0.0
    %4010 = vmatpush1.msra.mxu0 0.0
    %4011 = vmatprep.subr.mxu0 0.0
    %4012 = vmatpush1.msra.mxu0 0.0
    %4013 = vmatprep.subr.mxu0 0.0
    %4014 = vmatpush1.msra.mxu0 0.0
    %4015 = vmatprep.mubr.f32.mxu0 0.0
    %4016 = vmatmul.mubr.f32.gmra.mrb[0].mxu0 %v3809
    %v4017 = vpop.f32.mrb[0].mxu0
    %v4018 = vadd.f32 %v907, %v4017
    %v4019 = vpop.f32.mrb[0].mxu0
    %4020 = vdwg.mxu0
    %v4021 = vadd.f32 %v413, %v3878
    %v4022 = vxor.u32 %v4021, 2147483648
    %v4023 = vmul.f32 %v4022, 1.442695
    %v4024 = vpow.pop %v4023
    %v4025 = vadd.f32 %v4024, 1.0
    %v4026 = vrcp.pop %v4025
    %v4027 = vmul.f32 1.0, %v4026
    %v4028 = vadd.f32 %v566, %v3948
    %v4029 = vxor.u32 %v4028, 2147483648
    %v4030 = vmul.f32 %v4029, 1.442695
    %v4031 = vpow.pop %v4030
    %v4032 = vadd.f32 %v4031, 1.0
    %v4033 = vrcp.pop %v4032
    %v4034 = vmul.f32 1.0, %v4033
    %v4035 = vmul.f32 %v4027, %v4018
    %v4036 = vadd.f32 %v719, %v4035
    %v4037 = vtanh.pop %v4036
    %v4038 = vsub.f32 1.0, %v4034
    %v4039 = vmul.f32 %v4038, %v4037
    %v4040 = vmul.f32 %v4034, %v3807
    %v4041 = vadd.f32 %v4039, %v4040
    %v4043 = vsel %vm753, %v4041, 0
    %4045 = vmatprep.subr.mxu0 0.0
    %4046 = vmatpush1.msra.mxu0 %v732
    %4047 = vmatprep.subr.mxu0 0.0
    %4048 = vmatpush1.msra.mxu0 %v733
    %4049 = vmatprep.subr.mxu0 0.0
    %4050 = vmatpush1.msra.mxu0 %v734
    %4051 = vmatprep.subr.mxu0 0.0
    %4052 = vmatpush1.msra.mxu0 %v735
    %4053 = vmatprep.subr.mxu0 0.0
    %4054 = vmatpush1.msra.mxu0 0.0
    %4055 = vmatprep.subr.mxu0 0.0
    %4056 = vmatpush1.msra.mxu0 0.0
    %4057 = vmatprep.subr.mxu0 0.0
    %4058 = vmatpush1.msra.mxu0 0.0
    %4059 = vmatprep.subr.mxu0 0.0
    %4060 = vmatpush1.msra.mxu0 0.0
    %4061 = vmatprep.subr.mxu0 0.0
    %4062 = vmatpush1.msra.mxu0 0.0
    %4063 = vmatprep.subr.mxu0 0.0
    %4064 = vmatpush1.msra.mxu0 0.0
    %4065 = vmatprep.subr.mxu0 0.0
    %4066 = vmatpush1.msra.mxu0 0.0
    %4067 = vmatprep.subr.mxu0 0.0
    %4068 = vmatpush1.msra.mxu0 0.0
    %4069 = vmatprep.subr.mxu0 0.0
    %4070 = vmatpush1.msra.mxu0 0.0
    %4071 = vmatprep.subr.mxu0 0.0
    %4072 = vmatpush1.msra.mxu0 0.0
    %4073 = vmatprep.subr.mxu0 0.0
    %4074 = vmatpush1.msra.mxu0 0.0
    %4075 = vmatprep.subr.mxu0 0.0
    %4076 = vmatpush1.msra.mxu0 0.0
    %4077 = vmatprep.subr.mxu0 0.0
    %4078 = vmatpush1.msra.mxu0 0.0
    %4079 = vmatprep.subr.mxu0 0.0
    %4080 = vmatpush1.msra.mxu0 0.0
    %4081 = vmatprep.subr.mxu0 0.0
    %4082 = vmatpush1.msra.mxu0 0.0
    %4083 = vmatprep.subr.mxu0 0.0
    %4084 = vmatpush1.msra.mxu0 0.0
    %4085 = vmatprep.subr.mxu0 0.0
    %4086 = vmatpush1.msra.mxu0 0.0
    %4087 = vmatprep.subr.mxu0 0.0
    %4088 = vmatpush1.msra.mxu0 0.0
    %4089 = vmatprep.subr.mxu0 0.0
    %4090 = vmatpush1.msra.mxu0 0.0
    %4091 = vmatprep.subr.mxu0 0.0
    %4092 = vmatpush1.msra.mxu0 0.0
    %4093 = vmatprep.subr.mxu0 0.0
    %4094 = vmatpush1.msra.mxu0 0.0
    %4095 = vmatprep.subr.mxu0 0.0
    %4096 = vmatpush1.msra.mxu0 0.0
    %4097 = vmatprep.subr.mxu0 0.0
    %4098 = vmatpush1.msra.mxu0 0.0
    %4099 = vmatprep.subr.mxu0 0.0
    %4100 = vmatpush1.msra.mxu0 0.0
    %4101 = vmatprep.subr.mxu0 0.0
    %4102 = vmatpush1.msra.mxu0 0.0
    %4103 = vmatprep.subr.mxu0 0.0
    %4104 = vmatpush1.msra.mxu0 0.0
    %4105 = vmatprep.subr.mxu0 0.0
    %4106 = vmatpush1.msra.mxu0 0.0
    %4107 = vmatprep.subr.mxu0 0.0
    %4108 = vmatpush1.msra.mxu0 0.0
    %4109 = vmatprep.mubr.f32.mxu0 0.0
    %4110 = vmatmul.mubr.f32.gmra.mrb[0].mxu0 %v4043
    %v4111 = vpop.f32.mrb[0].mxu0
    %v4112 = vadd.f32 %v751, %v4111
    %v4113 = vpop.f32.mrb[0].mxu0
    %4114 = vdwg.mxu0
    %4115 = vmatprep.subr.mxu0 0.0
    %4116 = vmatpush1.msra.mxu0 %v736
    %4117 = vmatprep.subr.mxu0 0.0
    %4118 = vmatpush1.msra.mxu0 %v737
    %4119 = vmatprep.subr.mxu0 0.0
    %4120 = vmatpush1.msra.mxu0 %v738
    %4121 = vmatprep.subr.mxu0 0.0
    %4122 = vmatpush1.msra.mxu0 %v739
    %4123 = vmatprep.subr.mxu0 0.0
    %4124 = vmatpush1.msra.mxu0 0.0
    %4125 = vmatprep.subr.mxu0 0.0
    %4126 = vmatpush1.msra.mxu0 0.0
    %4127 = vmatprep.subr.mxu0 0.0
    %4128 = vmatpush1.msra.mxu0 0.0
    %4129 = vmatprep.subr.mxu0 0.0
    %4130 = vmatpush1.msra.mxu0 0.0
    %4131 = vmatprep.subr.mxu0 0.0
    %4132 = vmatpush1.msra.mxu0 0.0
    %4133 = vmatprep.subr.mxu0 0.0
    %4134 = vmatpush1.msra.mxu0 0.0
    %4135 = vmatprep.subr.mxu0 0.0
    %4136 = vmatpush1.msra.mxu0 0.0
    %4137 = vmatprep.subr.mxu0 0.0
    %4138 = vmatpush1.msra.mxu0 0.0
    %4139 = vmatprep.subr.mxu0 0.0
    %4140 = vmatpush1.msra.mxu0 0.0
    %4141 = vmatprep.subr.mxu0 0.0
    %4142 = vmatpush1.msra.mxu0 0.0
    %4143 = vmatprep.subr.mxu0 0.0
    %4144 = vmatpush1.msra.mxu0 0.0
    %4145 = vmatprep.subr.mxu0 0.0
    %4146 = vmatpush1.msra.mxu0 0.0
    %4147 = vmatprep.subr.mxu0 0.0
    %4148 = vmatpush1.msra.mxu0 0.0
    %4149 = vmatprep.subr.mxu0 0.0
    %4150 = vmatpush1.msra.mxu0 0.0
    %4151 = vmatprep.subr.mxu0 0.0
    %4152 = vmatpush1.msra.mxu0 0.0
    %4153 = vmatprep.subr.mxu0 0.0
    %4154 = vmatpush1.msra.mxu0 0.0
    %4155 = vmatprep.subr.mxu0 0.0
    %4156 = vmatpush1.msra.mxu0 0.0
    %4157 = vmatprep.subr.mxu0 0.0
    %4158 = vmatpush1.msra.mxu0 0.0
    %4159 = vmatprep.subr.mxu0 0.0
    %4160 = vmatpush1.msra.mxu0 0.0
    %4161 = vmatprep.subr.mxu0 0.0
    %4162 = vmatpush1.msra.mxu0 0.0
    %4163 = vmatprep.subr.mxu0 0.0
    %4164 = vmatpush1.msra.mxu0 0.0
    %4165 = vmatprep.subr.mxu0 0.0
    %4166 = vmatpush1.msra.mxu0 0.0
    %4167 = vmatprep.subr.mxu0 0.0
    %4168 = vmatpush1.msra.mxu0 0.0
    %4169 = vmatprep.subr.mxu0 0.0
    %4170 = vmatpush1.msra.mxu0 0.0
    %4171 = vmatprep.subr.mxu0 0.0
    %4172 = vmatpush1.msra.mxu0 0.0
    %4173 = vmatprep.subr.mxu0 0.0
    %4174 = vmatpush1.msra.mxu0 0.0
    %4175 = vmatprep.subr.mxu0 0.0
    %4176 = vmatpush1.msra.mxu0 0.0
    %4177 = vmatprep.subr.mxu0 0.0
    %4178 = vmatpush1.msra.mxu0 0.0
    %4179 = vmatprep.mubr.f32.mxu0 0.0
    %4180 = vmatmul.mubr.f32.gmra.mrb[0].mxu0 %v4043
    %v4181 = vpop.f32.mrb[0].mxu0
    %v4182 = vadd.f32 %v831, %v4181
    %v4183 = vpop.f32.mrb[0].mxu0
    %4184 = vdwg.mxu0
    %4185 = vmatprep.subr.mxu0 0.0
    %4186 = vmatpush1.msra.mxu0 %v740
    %4187 = vmatprep.subr.mxu0 0.0
    %4188 = vmatpush1.msra.mxu0 %v741
    %4189 = vmatprep.subr.mxu0 0.0
    %4190 = vmatpush1.msra.mxu0 %v742
    %4191 = vmatprep.subr.mxu0 0.0
    %4192 = vmatpush1.msra.mxu0 %v743
    %4193 = vmatprep.subr.mxu0 0.0
    %4194 = vmatpush1.msra.mxu0 0.0
    %4195 = vmatprep.subr.mxu0 0.0
    %4196 = vmatpush1.msra.mxu0 0.0
    %4197 = vmatprep.subr.mxu0 0.0
    %4198 = vmatpush1.msra.mxu0 0.0
    %4199 = vmatprep.subr.mxu0 0.0
    %4200 = vmatpush1.msra.mxu0 0.0
    %4201 = vmatprep.subr.mxu0 0.0
    %4202 = vmatpush1.msra.mxu0 0.0
    %4203 = vmatprep.subr.mxu0 0.0
    %4204 = vmatpush1.msra.mxu0 0.0
    %4205 = vmatprep.subr.mxu0 0.0
    %4206 = vmatpush1.msra.mxu0 0.0
    %4207 = vmatprep.subr.mxu0 0.0
    %4208 = vmatpush1.msra.mxu0 0.0
    %4209 = vmatprep.subr.mxu0 0.0
    %4210 = vmatpush1.msra.mxu0 0.0
    %4211 = vmatprep.subr.mxu0 0.0
    %4212 = vmatpush1.msra.mxu0 0.0
    %4213 = vmatprep.subr.mxu0 0.0
    %4214 = vmatpush1.msra.mxu0 0.0
    %4215 = vmatprep.subr.mxu0 0.0
    %4216 = vmatpush1.msra.mxu0 0.0
    %4217 = vmatprep.subr.mxu0 0.0
    %4218 = vmatpush1.msra.mxu0 0.0
    %4219 = vmatprep.subr.mxu0 0.0
    %4220 = vmatpush1.msra.mxu0 0.0
    %4221 = vmatprep.subr.mxu0 0.0
    %4222 = vmatpush1.msra.mxu0 0.0
    %4223 = vmatprep.subr.mxu0 0.0
    %4224 = vmatpush1.msra.mxu0 0.0
    %4225 = vmatprep.subr.mxu0 0.0
    %4226 = vmatpush1.msra.mxu0 0.0
    %4227 = vmatprep.subr.mxu0 0.0
    %4228 = vmatpush1.msra.mxu0 0.0
    %4229 = vmatprep.subr.mxu0 0.0
    %4230 = vmatpush1.msra.mxu0 0.0
    %4231 = vmatprep.subr.mxu0 0.0
    %4232 = vmatpush1.msra.mxu0 0.0
    %4233 = vmatprep.subr.mxu0 0.0
    %4234 = vmatpush1.msra.mxu0 0.0
    %4235 = vmatprep.subr.mxu0 0.0
    %4236 = vmatpush1.msra.mxu0 0.0
    %4237 = vmatprep.subr.mxu0 0.0
    %4238 = vmatpush1.msra.mxu0 0.0
    %4239 = vmatprep.subr.mxu0 0.0
    %4240 = vmatpush1.msra.mxu0 0.0
    %4241 = vmatprep.subr.mxu0 0.0
    %4242 = vmatpush1.msra.mxu0 0.0
    %4243 = vmatprep.subr.mxu0 0.0
    %4244 = vmatpush1.msra.mxu0 0.0
    %4245 = vmatprep.subr.mxu0 0.0
    %4246 = vmatpush1.msra.mxu0 0.0
    %4247 = vmatprep.subr.mxu0 0.0
    %4248 = vmatpush1.msra.mxu0 0.0
    %4249 = vmatprep.mubr.f32.mxu0 0.0
    %4250 = vmatmul.mubr.f32.gmra.mrb[0].mxu0 %v4043
    %v4251 = vpop.f32.mrb[0].mxu0
    %v4252 = vadd.f32 %v907, %v4251
    %v4253 = vpop.f32.mrb[0].mxu0
    %4254 = vdwg.mxu0
    %v4255 = vadd.f32 %v418, %v4112
    %v4256 = vxor.u32 %v4255, 2147483648
    %v4257 = vmul.f32 %v4256, 1.442695
    %v4258 = vpow.pop %v4257
    %v4259 = vadd.f32 %v4258, 1.0
    %v4260 = vrcp.pop %v4259
    %v4261 = vmul.f32 1.0, %v4260
    %v4262 = vadd.f32 %v571, %v4182
    %v4263 = vxor.u32 %v4262, 2147483648
    %v4264 = vmul.f32 %v4263, 1.442695
    %v4265 = vpow.pop %v4264
    %v4266 = vadd.f32 %v4265, 1.0
    %v4267 = vrcp.pop %v4266
    %v4268 = vmul.f32 1.0, %v4267
    %v4269 = vmul.f32 %v4261, %v4252
    %v4270 = vadd.f32 %v724, %v4269
    %v4271 = vtanh.pop %v4270
    %v4272 = vsub.f32 1.0, %v4268
    %v4273 = vmul.f32 %v4272, %v4271
    %v4274 = vmul.f32 %v4268, %v4041
    %v4275 = vadd.f32 %v4273, %v4274
    %v4277 = vsel %vm753, %v4275, 0
    %4279 = vmatprep.subr.mxu0 0.0
    %4280 = vmatpush1.msra.mxu0 %v732
    %4281 = vmatprep.subr.mxu0 0.0
    %4282 = vmatpush1.msra.mxu0 %v733
    %4283 = vmatprep.subr.mxu0 0.0
    %4284 = vmatpush1.msra.mxu0 %v734
    %4285 = vmatprep.subr.mxu0 0.0
    %4286 = vmatpush1.msra.mxu0 %v735
    %4287 = vmatprep.subr.mxu0 0.0
    %4288 = vmatpush1.msra.mxu0 0.0
    %4289 = vmatprep.subr.mxu0 0.0
    %4290 = vmatpush1.msra.mxu0 0.0
    %4291 = vmatprep.subr.mxu0 0.0
    %4292 = vmatpush1.msra.mxu0 0.0
    %4293 = vmatprep.subr.mxu0 0.0
    %4294 = vmatpush1.msra.mxu0 0.0
    %4295 = vmatprep.subr.mxu0 0.0
    %4296 = vmatpush1.msra.mxu0 0.0
    %4297 = vmatprep.subr.mxu0 0.0
    %4298 = vmatpush1.msra.mxu0 0.0
    %4299 = vmatprep.subr.mxu0 0.0
    %4300 = vmatpush1.msra.mxu0 0.0
    %4301 = vmatprep.subr.mxu0 0.0
    %4302 = vmatpush1.msra.mxu0 0.0
    %4303 = vmatprep.subr.mxu0 0.0
    %4304 = vmatpush1.msra.mxu0 0.0
    %4305 = vmatprep.subr.mxu0 0.0
    %4306 = vmatpush1.msra.mxu0 0.0
    %4307 = vmatprep.subr.mxu0 0.0
    %4308 = vmatpush1.msra.mxu0 0.0
    %4309 = vmatprep.subr.mxu0 0.0
    %4310 = vmatpush1.msra.mxu0 0.0
    %4311 = vmatprep.subr.mxu0 0.0
    %4312 = vmatpush1.msra.mxu0 0.0
    %4313 = vmatprep.subr.mxu0 0.0
    %4314 = vmatpush1.msra.mxu0 0.0
    %4315 = vmatprep.subr.mxu0 0.0
    %4316 = vmatpush1.msra.mxu0 0.0
    %4317 = vmatprep.subr.mxu0 0.0
    %4318 = vmatpush1.msra.mxu0 0.0
    %4319 = vmatprep.subr.mxu0 0.0
    %4320 = vmatpush1.msra.mxu0 0.0
    %4321 = vmatprep.subr.mxu0 0.0
    %4322 = vmatpush1.msra.mxu0 0.0
    %4323 = vmatprep.subr.mxu0 0.0
    %4324 = vmatpush1.msra.mxu0 0.0
    %4325 = vmatprep.subr.mxu0 0.0
    %4326 = vmatpush1.msra.mxu0 0.0
    %4327 = vmatprep.subr.mxu0 0.0
    %4328 = vmatpush1.msra.mxu0 0.0
    %4329 = vmatprep.subr.mxu0 0.0
    %4330 = vmatpush1.msra.mxu0 0.0
    %4331 = vmatprep.subr.mxu0 0.0
    %4332 = vmatpush1.msra.mxu0 0.0
    %4333 = vmatprep.subr.mxu0 0.0
    %4334 = vmatpush1.msra.mxu0 0.0
    %4335 = vmatprep.subr.mxu0 0.0
    %4336 = vmatpush1.msra.mxu0 0.0
    %4337 = vmatprep.subr.mxu0 0.0
    %4338 = vmatpush1.msra.mxu0 0.0
    %4339 = vmatprep.subr.mxu0 0.0
    %4340 = vmatpush1.msra.mxu0 0.0
    %4341 = vmatprep.subr.mxu0 0.0
    %4342 = vmatpush1.msra.mxu0 0.0
    %4343 = vmatprep.mubr.f32.mxu0 0.0
    %4344 = vmatmul.mubr.f32.gmra.mrb[0].mxu0 %v4277
    %v4345 = vpop.f32.mrb[0].mxu0
    %v4346 = vadd.f32 %v751, %v4345
    %v4347 = vpop.f32.mrb[0].mxu0
    %4348 = vdwg.mxu0
    %4349 = vmatprep.subr.mxu0 0.0
    %4350 = vmatpush1.msra.mxu0 %v736
    %4351 = vmatprep.subr.mxu0 0.0
    %4352 = vmatpush1.msra.mxu0 %v737
    %4353 = vmatprep.subr.mxu0 0.0
    %4354 = vmatpush1.msra.mxu0 %v738
    %4355 = vmatprep.subr.mxu0 0.0
    %4356 = vmatpush1.msra.mxu0 %v739
    %4357 = vmatprep.subr.mxu0 0.0
    %4358 = vmatpush1.msra.mxu0 0.0
    %4359 = vmatprep.subr.mxu0 0.0
    %4360 = vmatpush1.msra.mxu0 0.0
    %4361 = vmatprep.subr.mxu0 0.0
    %4362 = vmatpush1.msra.mxu0 0.0
    %4363 = vmatprep.subr.mxu0 0.0
    %4364 = vmatpush1.msra.mxu0 0.0
    %4365 = vmatprep.subr.mxu0 0.0
    %4366 = vmatpush1.msra.mxu0 0.0
    %4367 = vmatprep.subr.mxu0 0.0
    %4368 = vmatpush1.msra.mxu0 0.0
    %4369 = vmatprep.subr.mxu0 0.0
    %4370 = vmatpush1.msra.mxu0 0.0
    %4371 = vmatprep.subr.mxu0 0.0
    %4372 = vmatpush1.msra.mxu0 0.0
    %4373 = vmatprep.subr.mxu0 0.0
    %4374 = vmatpush1.msra.mxu0 0.0
    %4375 = vmatprep.subr.mxu0 0.0
    %4376 = vmatpush1.msra.mxu0 0.0
    %4377 = vmatprep.subr.mxu0 0.0
    %4378 = vmatpush1.msra.mxu0 0.0
    %4379 = vmatprep.subr.mxu0 0.0
    %4380 = vmatpush1.msra.mxu0 0.0
    %4381 = vmatprep.subr.mxu0 0.0
    %4382 = vmatpush1.msra.mxu0 0.0
    %4383 = vmatprep.subr.mxu0 0.0
    %4384 = vmatpush1.msra.mxu0 0.0
    %4385 = vmatprep.subr.mxu0 0.0
    %4386 = vmatpush1.msra.mxu0 0.0
    %4387 = vmatprep.subr.mxu0 0.0
    %4388 = vmatpush1.msra.mxu0 0.0
    %4389 = vmatprep.subr.mxu0 0.0
    %4390 = vmatpush1.msra.mxu0 0.0
    %4391 = vmatprep.subr.mxu0 0.0
    %4392 = vmatpush1.msra.mxu0 0.0
    %4393 = vmatprep.subr.mxu0 0.0
    %4394 = vmatpush1.msra.mxu0 0.0
    %4395 = vmatprep.subr.mxu0 0.0
    %4396 = vmatpush1.msra.mxu0 0.0
    %4397 = vmatprep.subr.mxu0 0.0
    %4398 = vmatpush1.msra.mxu0 0.0
    %4399 = vmatprep.subr.mxu0 0.0
    %4400 = vmatpush1.msra.mxu0 0.0
    %4401 = vmatprep.subr.mxu0 0.0
    %4402 = vmatpush1.msra.mxu0 0.0
    %4403 = vmatprep.subr.mxu0 0.0
    %4404 = vmatpush1.msra.mxu0 0.0
    %4405 = vmatprep.subr.mxu0 0.0
    %4406 = vmatpush1.msra.mxu0 0.0
    %4407 = vmatprep.subr.mxu0 0.0
    %4408 = vmatpush1.msra.mxu0 0.0
    %4409 = vmatprep.subr.mxu0 0.0
    %4410 = vmatpush1.msra.mxu0 0.0
    %4411 = vmatprep.subr.mxu0 0.0
    %4412 = vmatpush1.msra.mxu0 0.0
    %4413 = vmatprep.mubr.f32.mxu0 0.0
    %4414 = vmatmul.mubr.f32.gmra.mrb[0].mxu0 %v4277
    %v4415 = vpop.f32.mrb[0].mxu0
    %v4416 = vadd.f32 %v831, %v4415
    %v4417 = vpop.f32.mrb[0].mxu0
    %4418 = vdwg.mxu0
    %4419 = vmatprep.subr.mxu0 0.0
    %4420 = vmatpush1.msra.mxu0 %v740
    %4421 = vmatprep.subr.mxu0 0.0
    %4422 = vmatpush1.msra.mxu0 %v741
    %4423 = vmatprep.subr.mxu0 0.0
    %4424 = vmatpush1.msra.mxu0 %v742
    %4425 = vmatprep.subr.mxu0 0.0
    %4426 = vmatpush1.msra.mxu0 %v743
    %4427 = vmatprep.subr.mxu0 0.0
    %4428 = vmatpush1.msra.mxu0 0.0
    %4429 = vmatprep.subr.mxu0 0.0
    %4430 = vmatpush1.msra.mxu0 0.0
    %4431 = vmatprep.subr.mxu0 0.0
    %4432 = vmatpush1.msra.mxu0 0.0
    %4433 = vmatprep.subr.mxu0 0.0
    %4434 = vmatpush1.msra.mxu0 0.0
    %4435 = vmatprep.subr.mxu0 0.0
    %4436 = vmatpush1.msra.mxu0 0.0
    %4437 = vmatprep.subr.mxu0 0.0
    %4438 = vmatpush1.msra.mxu0 0.0
    %4439 = vmatprep.subr.mxu0 0.0
    %4440 = vmatpush1.msra.mxu0 0.0
    %4441 = vmatprep.subr.mxu0 0.0
    %4442 = vmatpush1.msra.mxu0 0.0
    %4443 = vmatprep.subr.mxu0 0.0
    %4444 = vmatpush1.msra.mxu0 0.0
    %4445 = vmatprep.subr.mxu0 0.0
    %4446 = vmatpush1.msra.mxu0 0.0
    %4447 = vmatprep.subr.mxu0 0.0
    %4448 = vmatpush1.msra.mxu0 0.0
    %4449 = vmatprep.subr.mxu0 0.0
    %4450 = vmatpush1.msra.mxu0 0.0
    %4451 = vmatprep.subr.mxu0 0.0
    %4452 = vmatpush1.msra.mxu0 0.0
    %4453 = vmatprep.subr.mxu0 0.0
    %4454 = vmatpush1.msra.mxu0 0.0
    %4455 = vmatprep.subr.mxu0 0.0
    %4456 = vmatpush1.msra.mxu0 0.0
    %4457 = vmatprep.subr.mxu0 0.0
    %4458 = vmatpush1.msra.mxu0 0.0
    %4459 = vmatprep.subr.mxu0 0.0
    %4460 = vmatpush1.msra.mxu0 0.0
    %4461 = vmatprep.subr.mxu0 0.0
    %4462 = vmatpush1.msra.mxu0 0.0
    %4463 = vmatprep.subr.mxu0 0.0
    %4464 = vmatpush1.msra.mxu0 0.0
    %4465 = vmatprep.subr.mxu0 0.0
    %4466 = vmatpush1.msra.mxu0 0.0
    %4467 = vmatprep.subr.mxu0 0.0
    %4468 = vmatpush1.msra.mxu0 0.0
    %4469 = vmatprep.subr.mxu0 0.0
    %4470 = vmatpush1.msra.mxu0 0.0
    %4471 = vmatprep.subr.mxu0 0.0
    %4472 = vmatpush1.msra.mxu0 0.0
    %4473 = vmatprep.subr.mxu0 0.0
    %4474 = vmatpush1.msra.mxu0 0.0
    %4475 = vmatprep.subr.mxu0 0.0
    %4476 = vmatpush1.msra.mxu0 0.0
    %4477 = vmatprep.subr.mxu0 0.0
    %4478 = vmatpush1.msra.mxu0 0.0
    %4479 = vmatprep.subr.mxu0 0.0
    %4480 = vmatpush1.msra.mxu0 0.0
    %4481 = vmatprep.subr.mxu0 0.0
    %4482 = vmatpush1.msra.mxu0 0.0
    %4483 = vmatprep.mubr.f32.mxu0 0.0
    %4484 = vmatmul.mubr.f32.gmra.mrb[0].mxu0 %v4277
    %v4485 = vpop.f32.mrb[0].mxu0
    %v4486 = vadd.f32 %v907, %v4485
    %v4487 = vpop.f32.mrb[0].mxu0
    %4488 = vdwg.mxu0
    %v4489 = vadd.f32 %v423, %v4346
    %v4490 = vxor.u32 %v4489, 2147483648
    %v4491 = vmul.f32 %v4490, 1.442695
    %v4492 = vpow.pop %v4491
    %v4493 = vadd.f32 %v4492, 1.0
    %v4494 = vrcp.pop %v4493
    %v4495 = vmul.f32 1.0, %v4494
    %v4496 = vadd.f32 %v576, %v4416
    %v4497 = vxor.u32 %v4496, 2147483648
    %v4498 = vmul.f32 %v4497, 1.442695
    %v4499 = vpow.pop %v4498
    %v4500 = vadd.f32 %v4499, 1.0
    %v4501 = vrcp.pop %v4500
    %v4502 = vmul.f32 1.0, %v4501
    %v4503 = vmul.f32 %v4495, %v4486
    %v4504 = vadd.f32 %v729, %v4503
    %v4505 = vtanh.pop %v4504
    %v4506 = vsub.f32 1.0, %v4502
    %v4507 = vmul.f32 %v4506, %v4505
    %v4508 = vmul.f32 %v4502, %v4275
    %v4509 = vadd.f32 %v4507, %v4508
    %v4510 = vld [vmem:[%s13] sm:$0xff]
    %v4511 = vld [vmem:[%s13 + $0x8] sm:$0xff]
    %v4512 = vld [vmem:[%s13 + $0x10] sm:$0xff]
    %v4513 = vld [vmem:[%s13 + $0x18] sm:$0xff]
    %v4514 = vld [vmem:[%s16] sm:$0x1]
    %v4516 = vlaneseq
    %v4517 = vshrl.u32 %v4516, 7
    %v4518 = vsub.s32 0, %v4517
    %v4519 = vrot.slane %v4514, %v4518
    %v4522 = vsel %vm753, %v4509, 0
    %4524 = vmatprep.subr.mxu0 0.0
    %4525 = vmatpush1.msra.mxu0 %v4510
    %4526 = vmatprep.subr.mxu0 0.0
    %4527 = vmatpush1.msra.mxu0 %v4511
    %4528 = vmatprep.subr.mxu0 0.0
    %4529 = vmatpush1.msra.mxu0 %v4512
    %4530 = vmatprep.subr.mxu0 0.0
    %4531 = vmatpush1.msra.mxu0 %v4513
    %4532 = vmatprep.subr.mxu0 0.0
    %4533 = vmatpush1.msra.mxu0 0.0
    %4534 = vmatprep.subr.mxu0 0.0
    %4535 = vmatpush1.msra.mxu0 0.0
    %4536 = vmatprep.subr.mxu0 0.0
    %4537 = vmatpush1.msra.mxu0 0.0
    %4538 = vmatprep.subr.mxu0 0.0
    %4539 = vmatpush1.msra.mxu0 0.0
    %4540 = vmatprep.subr.mxu0 0.0
    %4541 = vmatpush1.msra.mxu0 0.0
    %4542 = vmatprep.subr.mxu0 0.0
    %4543 = vmatpush1.msra.mxu0 0.0
    %4544 = vmatprep.subr.mxu0 0.0
    %4545 = vmatpush1.msra.mxu0 0.0
    %4546 = vmatprep.subr.mxu0 0.0
    %4547 = vmatpush1.msra.mxu0 0.0
    %4548 = vmatprep.subr.mxu0 0.0
    %4549 = vmatpush1.msra.mxu0 0.0
    %4550 = vmatprep.subr.mxu0 0.0
    %4551 = vmatpush1.msra.mxu0 0.0
    %4552 = vmatprep.subr.mxu0 0.0
    %4553 = vmatpush1.msra.mxu0 0.0
    %4554 = vmatprep.subr.mxu0 0.0
    %4555 = vmatpush1.msra.mxu0 0.0
    %4556 = vmatprep.subr.mxu0 0.0
    %4557 = vmatpush1.msra.mxu0 0.0
    %4558 = vmatprep.subr.mxu0 0.0
    %4559 = vmatpush1.msra.mxu0 0.0
    %4560 = vmatprep.subr.mxu0 0.0
    %4561 = vmatpush1.msra.mxu0 0.0
    %4562 = vmatprep.subr.mxu0 0.0
    %4563 = vmatpush1.msra.mxu0 0.0
    %4564 = vmatprep.subr.mxu0 0.0
    %4565 = vmatpush1.msra.mxu0 0.0
    %4566 = vmatprep.subr.mxu0 0.0
    %4567 = vmatpush1.msra.mxu0 0.0
    %4568 = vmatprep.subr.mxu0 0.0
    %4569 = vmatpush1.msra.mxu0 0.0
    %4570 = vmatprep.subr.mxu0 0.0
    %4571 = vmatpush1.msra.mxu0 0.0
    %4572 = vmatprep.subr.mxu0 0.0
    %4573 = vmatpush1.msra.mxu0 0.0
    %4574 = vmatprep.subr.mxu0 0.0
    %4575 = vmatpush1.msra.mxu0 0.0
    %4576 = vmatprep.subr.mxu0 0.0
    %4577 = vmatpush1.msra.mxu0 0.0
    %4578 = vmatprep.subr.mxu0 0.0
    %4579 = vmatpush1.msra.mxu0 0.0
    %4580 = vmatprep.subr.mxu0 0.0
    %4581 = vmatpush1.msra.mxu0 0.0
    %4582 = vmatprep.subr.mxu0 0.0
    %4583 = vmatpush1.msra.mxu0 0.0
    %4584 = vmatprep.subr.mxu0 0.0
    %4585 = vmatpush1.msra.mxu0 0.0
    %4586 = vmatprep.subr.mxu0 0.0
    %4587 = vmatpush1.msra.mxu0 0.0
    %4588 = vmatprep.mubr.f32.mxu0 0.0
    %4589 = vmatmul.mubr.f32.gmra.mrb[0].mxu0 %v1001
    %v4590 = vpop.f32.mrb[0].mxu0
    %v4591 = vadd.f32 %v4519, %v4590
    %v4592 = vpop.f32.mrb[0].mxu0
    %4593 = vmatprep.mubr.f32.mxu0 0.0
    %4594 = vmatmul.mubr.f32.gmra.mrb[0].mxu0 %v1235
    %v4595 = vpop.f32.mrb[0].mxu0
    %v4596 = vadd.f32 %v4519, %v4595
    %v4597 = vpop.f32.mrb[0].mxu0
    %4598 = vmatprep.mubr.f32.mxu0 0.0
    %4599 = vmatmul.mubr.f32.gmra.mrb[0].mxu0 %v1469
    %v4600 = vpop.f32.mrb[0].mxu0
    %v4601 = vadd.f32 %v4519, %v4600
    %v4602 = vpop.f32.mrb[0].mxu0
    %4603 = vmatprep.mubr.f32.mxu0 0.0
    %4604 = vmatmul.mubr.f32.gmra.mrb[0].mxu0 %v1703
    %v4605 = vpop.f32.mrb[0].mxu0
    %v4606 = vadd.f32 %v4519, %v4605
    %v4607 = vpop.f32.mrb[0].mxu0
    %4608 = vmatprep.mubr.f32.mxu0 0.0
    %4609 = vmatmul.mubr.f32.gmra.mrb[0].mxu0 %v1937
    %v4610 = vpop.f32.mrb[0].mxu0
    %v4611 = vadd.f32 %v4519, %v4610
    %v4612 = vpop.f32.mrb[0].mxu0
    %4613 = vmatprep.mubr.f32.mxu0 0.0
    %4614 = vmatmul.mubr.f32.gmra.mrb[0].mxu0 %v2171
    %v4615 = vpop.f32.mrb[0].mxu0
    %v4616 = vadd.f32 %v4519, %v4615
    %v4617 = vpop.f32.mrb[0].mxu0
    %4618 = vmatprep.mubr.f32.mxu0 0.0
    %4619 = vmatmul.mubr.f32.gmra.mrb[0].mxu0 %v2405
    %v4620 = vpop.f32.mrb[0].mxu0
    %v4621 = vadd.f32 %v4519, %v4620
    %v4622 = vpop.f32.mrb[0].mxu0
    %4623 = vmatprep.mubr.f32.mxu0 0.0
    %4624 = vmatmul.mubr.f32.gmra.mrb[0].mxu0 %v2639
    %v4625 = vpop.f32.mrb[0].mxu0
    %v4626 = vadd.f32 %v4519, %v4625
    %v4627 = vpop.f32.mrb[0].mxu0
    %4628 = vmatprep.mubr.f32.mxu0 0.0
    %4629 = vmatmul.mubr.f32.gmra.mrb[0].mxu0 %v2873
    %v4630 = vpop.f32.mrb[0].mxu0
    %v4631 = vadd.f32 %v4519, %v4630
    %v4632 = vpop.f32.mrb[0].mxu0
    %4633 = vmatprep.mubr.f32.mxu0 0.0
    %4634 = vmatmul.mubr.f32.gmra.mrb[0].mxu0 %v3107
    %v4635 = vpop.f32.mrb[0].mxu0
    %v4636 = vadd.f32 %v4519, %v4635
    %v4637 = vpop.f32.mrb[0].mxu0
    %4638 = vmatprep.mubr.f32.mxu0 0.0
    %4639 = vmatmul.mubr.f32.gmra.mrb[0].mxu0 %v3341
    %v4640 = vpop.f32.mrb[0].mxu0
    %v4641 = vadd.f32 %v4519, %v4640
    %v4642 = vpop.f32.mrb[0].mxu0
    %4643 = vmatprep.mubr.f32.mxu0 0.0
    %4644 = vmatmul.mubr.f32.gmra.mrb[0].mxu0 %v3575
    %v4645 = vpop.f32.mrb[0].mxu0
    %v4646 = vadd.f32 %v4519, %v4645
    %v4647 = vpop.f32.mrb[0].mxu0
    %4648 = vmatprep.mubr.f32.mxu0 0.0
    %4649 = vmatmul.mubr.f32.gmra.mrb[0].mxu0 %v3809
    %v4650 = vpop.f32.mrb[0].mxu0
    %v4651 = vadd.f32 %v4519, %v4650
    %v4652 = vpop.f32.mrb[0].mxu0
    %4653 = vmatprep.mubr.f32.mxu0 0.0
    %4654 = vmatmul.mubr.f32.gmra.mrb[0].mxu0 %v4043
    %v4655 = vpop.f32.mrb[0].mxu0
    %v4656 = vadd.f32 %v4519, %v4655
    %v4657 = vpop.f32.mrb[0].mxu0
    %4658 = vmatprep.mubr.f32.mxu0 0.0
    %4659 = vmatmul.mubr.f32.gmra.mrb[0].mxu0 %v4277
    %v4660 = vpop.f32.mrb[0].mxu0
    %v4661 = vadd.f32 %v4519, %v4660
    %v4662 = vpop.f32.mrb[0].mxu0
    %4663 = vmatprep.mubr.f32.mxu0 0.0
    %4664 = vmatmul.mubr.f32.gmra.mrb[0].mxu0 %v4522
    %v4665 = vpop.f32.mrb[0].mxu0
    %v4666 = vadd.f32 %v4519, %v4665
    %v4667 = vpop.f32.mrb[0].mxu0
    %4668 = vdwg.mxu0
    %v4669 = vld [vmem:[%s14] sm:$0xff]
    %v4670 = vld [vmem:[%s14 + $0x8] sm:$0xff]
    %v4671 = vld [vmem:[%s14 + $0x10] sm:$0xff]
    %v4672 = vld [vmem:[%s14 + $0x18] sm:$0xff]
    %v4673 = vld [vmem:[%s17] sm:$0x1]
    %v4675 = vlaneseq
    %v4676 = vshrl.u32 %v4675, 7
    %v4677 = vsub.s32 0, %v4676
    %v4678 = vrot.slane %v4673, %v4677
    %4680 = vmatprep.subr.mxu0 0.0
    %4681 = vmatpush1.msra.mxu0 %v4669
    %4682 = vmatprep.subr.mxu0 0.0
    %4683 = vmatpush1.msra.mxu0 %v4670
    %4684 = vmatprep.subr.mxu0 0.0
    %4685 = vmatpush1.msra.mxu0 %v4671
    %4686 = vmatprep.subr.mxu0 0.0
    %4687 = vmatpush1.msra.mxu0 %v4672
    %4688 = vmatprep.subr.mxu0 0.0
    %4689 = vmatpush1.msra.mxu0 0.0
    %4690 = vmatprep.subr.mxu0 0.0
    %4691 = vmatpush1.msra.mxu0 0.0
    %4692 = vmatprep.subr.mxu0 0.0
    %4693 = vmatpush1.msra.mxu0 0.0
    %4694 = vmatprep.subr.mxu0 0.0
    %4695 = vmatpush1.msra.mxu0 0.0
    %4696 = vmatprep.subr.mxu0 0.0
    %4697 = vmatpush1.msra.mxu0 0.0
    %4698 = vmatprep.subr.mxu0 0.0
    %4699 = vmatpush1.msra.mxu0 0.0
    %4700 = vmatprep.subr.mxu0 0.0
    %4701 = vmatpush1.msra.mxu0 0.0
    %4702 = vmatprep.subr.mxu0 0.0
    %4703 = vmatpush1.msra.mxu0 0.0
    %4704 = vmatprep.subr.mxu0 0.0
    %4705 = vmatpush1.msra.mxu0 0.0
    %4706 = vmatprep.subr.mxu0 0.0
    %4707 = vmatpush1.msra.mxu0 0.0
    %4708 = vmatprep.subr.mxu0 0.0
    %4709 = vmatpush1.msra.mxu0 0.0
    %4710 = vmatprep.subr.mxu0 0.0
    %4711 = vmatpush1.msra.mxu0 0.0
    %4712 = vmatprep.subr.mxu0 0.0
    %4713 = vmatpush1.msra.mxu0 0.0
    %4714 = vmatprep.subr.mxu0 0.0
    %4715 = vmatpush1.msra.mxu0 0.0
    %4716 = vmatprep.subr.mxu0 0.0
    %4717 = vmatpush1.msra.mxu0 0.0
    %4718 = vmatprep.subr.mxu0 0.0
    %4719 = vmatpush1.msra.mxu0 0.0
    %4720 = vmatprep.subr.mxu0 0.0
    %4721 = vmatpush1.msra.mxu0 0.0
    %4722 = vmatprep.subr.mxu0 0.0
    %4723 = vmatpush1.msra.mxu0 0.0
    %4724 = vmatprep.subr.mxu0 0.0
    %4725 = vmatpush1.msra.mxu0 0.0
    %4726 = vmatprep.subr.mxu0 0.0
    %4727 = vmatpush1.msra.mxu0 0.0
    %4728 = vmatprep.subr.mxu0 0.0
    %4729 = vmatpush1.msra.mxu0 0.0
    %4730 = vmatprep.subr.mxu0 0.0
    %4731 = vmatpush1.msra.mxu0 0.0
    %4732 = vmatprep.subr.mxu0 0.0
    %4733 = vmatpush1.msra.mxu0 0.0
    %4734 = vmatprep.subr.mxu0 0.0
    %4735 = vmatpush1.msra.mxu0 0.0
    %4736 = vmatprep.subr.mxu0 0.0
    %4737 = vmatpush1.msra.mxu0 0.0
    %4738 = vmatprep.subr.mxu0 0.0
    %4739 = vmatpush1.msra.mxu0 0.0
    %4740 = vmatprep.subr.mxu0 0.0
    %4741 = vmatpush1.msra.mxu0 0.0
    %4742 = vmatprep.subr.mxu0 0.0
    %4743 = vmatpush1.msra.mxu0 0.0
    %4744 = vmatprep.mubr.f32.mxu0 0.0
    %4745 = vmatmul.mubr.f32.gmra.mrb[0].mxu0 %v1001
    %v4746 = vpop.f32.mrb[0].mxu0
    %v4747 = vadd.f32 %v4678, %v4746
    %v4748 = vpop.f32.mrb[0].mxu0
    %4749 = vmatprep.mubr.f32.mxu0 0.0
    %4750 = vmatmul.mubr.f32.gmra.mrb[0].mxu0 %v1235
    %v4751 = vpop.f32.mrb[0].mxu0
    %v4752 = vadd.f32 %v4678, %v4751
    %v4753 = vpop.f32.mrb[0].mxu0
    %4754 = vmatprep.mubr.f32.mxu0 0.0
    %4755 = vmatmul.mubr.f32.gmra.mrb[0].mxu0 %v1469
    %v4756 = vpop.f32.mrb[0].mxu0
    %v4757 = vadd.f32 %v4678, %v4756
    %v4758 = vpop.f32.mrb[0].mxu0
    %4759 = vmatprep.mubr.f32.mxu0 0.0
    %4760 = vmatmul.mubr.f32.gmra.mrb[0].mxu0 %v1703
    %v4761 = vpop.f32.mrb[0].mxu0
    %v4762 = vadd.f32 %v4678, %v4761
    %v4763 = vpop.f32.mrb[0].mxu0
    %4764 = vmatprep.mubr.f32.mxu0 0.0
    %4765 = vmatmul.mubr.f32.gmra.mrb[0].mxu0 %v1937
    %v4766 = vpop.f32.mrb[0].mxu0
    %v4767 = vadd.f32 %v4678, %v4766
    %v4768 = vpop.f32.mrb[0].mxu0
    %4769 = vmatprep.mubr.f32.mxu0 0.0
    %4770 = vmatmul.mubr.f32.gmra.mrb[0].mxu0 %v2171
    %v4771 = vpop.f32.mrb[0].mxu0
    %v4772 = vadd.f32 %v4678, %v4771
    %v4773 = vpop.f32.mrb[0].mxu0
    %4774 = vmatprep.mubr.f32.mxu0 0.0
    %4775 = vmatmul.mubr.f32.gmra.mrb[0].mxu0 %v2405
    %v4776 = vpop.f32.mrb[0].mxu0
    %v4777 = vadd.f32 %v4678, %v4776
    %v4778 = vpop.f32.mrb[0].mxu0
    %4779 = vmatprep.mubr.f32.mxu0 0.0
    %4780 = vmatmul.mubr.f32.gmra.mrb[0].mxu0 %v2639
    %v4781 = vpop.f32.mrb[0].mxu0
    %v4782 = vadd.f32 %v4678, %v4781
    %v4783 = vpop.f32.mrb[0].mxu0
    %4784 = vmatprep.mubr.f32.mxu0 0.0
    %4785 = vmatmul.mubr.f32.gmra.mrb[0].mxu0 %v2873
    %v4786 = vpop.f32.mrb[0].mxu0
    %v4787 = vadd.f32 %v4678, %v4786
    %v4788 = vpop.f32.mrb[0].mxu0
    %4789 = vmatprep.mubr.f32.mxu0 0.0
    %4790 = vmatmul.mubr.f32.gmra.mrb[0].mxu0 %v3107
    %v4791 = vpop.f32.mrb[0].mxu0
    %v4792 = vadd.f32 %v4678, %v4791
    %v4793 = vpop.f32.mrb[0].mxu0
    %4794 = vmatprep.mubr.f32.mxu0 0.0
    %4795 = vmatmul.mubr.f32.gmra.mrb[0].mxu0 %v3341
    %v4796 = vpop.f32.mrb[0].mxu0
    %v4797 = vadd.f32 %v4678, %v4796
    %v4798 = vpop.f32.mrb[0].mxu0
    %4799 = vmatprep.mubr.f32.mxu0 0.0
    %4800 = vmatmul.mubr.f32.gmra.mrb[0].mxu0 %v3575
    %v4801 = vpop.f32.mrb[0].mxu0
    %v4802 = vadd.f32 %v4678, %v4801
    %v4803 = vpop.f32.mrb[0].mxu0
    %4804 = vmatprep.mubr.f32.mxu0 0.0
    %4805 = vmatmul.mubr.f32.gmra.mrb[0].mxu0 %v3809
    %v4806 = vpop.f32.mrb[0].mxu0
    %v4807 = vadd.f32 %v4678, %v4806
    %v4808 = vpop.f32.mrb[0].mxu0
    %4809 = vmatprep.mubr.f32.mxu0 0.0
    %4810 = vmatmul.mubr.f32.gmra.mrb[0].mxu0 %v4043
    %v4811 = vpop.f32.mrb[0].mxu0
    %v4812 = vadd.f32 %v4678, %v4811
    %v4813 = vpop.f32.mrb[0].mxu0
    %4814 = vmatprep.mubr.f32.mxu0 0.0
    %4815 = vmatmul.mubr.f32.gmra.mrb[0].mxu0 %v4277
    %v4816 = vpop.f32.mrb[0].mxu0
    %v4817 = vadd.f32 %v4678, %v4816
    %v4818 = vpop.f32.mrb[0].mxu0
    %4819 = vmatprep.mubr.f32.mxu0 0.0
    %4820 = vmatmul.mubr.f32.gmra.mrb[0].mxu0 %v4522
    %v4821 = vpop.f32.mrb[0].mxu0
    %v4822 = vadd.f32 %v4678, %v4821
    %v4823 = vpop.f32.mrb[0].mxu0
    %4824 = vdwg.mxu0
    %v4825 = vld [vmem:[%s15] sm:$0xff]
    %v4826 = vld [vmem:[%s15 + $0x8] sm:$0xff]
    %v4827 = vld [vmem:[%s15 + $0x10] sm:$0xff]
    %v4828 = vld [vmem:[%s15 + $0x18] sm:$0xff]
    %v4829 = vld [vmem:[%s18] sm:$0x1]
    %v4831 = vlaneseq
    %v4832 = vshrl.u32 %v4831, 7
    %v4833 = vsub.s32 0, %v4832
    %v4834 = vrot.slane %v4829, %v4833
    %4836 = vmatprep.subr.mxu0 0.0
    %4837 = vmatpush1.msra.mxu0 %v4825
    %4838 = vmatprep.subr.mxu0 0.0
    %4839 = vmatpush1.msra.mxu0 %v4826
    %4840 = vmatprep.subr.mxu0 0.0
    %4841 = vmatpush1.msra.mxu0 %v4827
    %4842 = vmatprep.subr.mxu0 0.0
    %4843 = vmatpush1.msra.mxu0 %v4828
    %4844 = vmatprep.subr.mxu0 0.0
    %4845 = vmatpush1.msra.mxu0 0.0
    %4846 = vmatprep.subr.mxu0 0.0
    %4847 = vmatpush1.msra.mxu0 0.0
    %4848 = vmatprep.subr.mxu0 0.0
    %4849 = vmatpush1.msra.mxu0 0.0
    %4850 = vmatprep.subr.mxu0 0.0
    %4851 = vmatpush1.msra.mxu0 0.0
    %4852 = vmatprep.subr.mxu0 0.0
    %4853 = vmatpush1.msra.mxu0 0.0
    %4854 = vmatprep.subr.mxu0 0.0
    %4855 = vmatpush1.msra.mxu0 0.0
    %4856 = vmatprep.subr.mxu0 0.0
    %4857 = vmatpush1.msra.mxu0 0.0
    %4858 = vmatprep.subr.mxu0 0.0
    %4859 = vmatpush1.msra.mxu0 0.0
    %4860 = vmatprep.subr.mxu0 0.0
    %4861 = vmatpush1.msra.mxu0 0.0
    %4862 = vmatprep.subr.mxu0 0.0
    %4863 = vmatpush1.msra.mxu0 0.0
    %4864 = vmatprep.subr.mxu0 0.0
    %4865 = vmatpush1.msra.mxu0 0.0
    %4866 = vmatprep.subr.mxu0 0.0
    %4867 = vmatpush1.msra.mxu0 0.0
    %4868 = vmatprep.subr.mxu0 0.0
    %4869 = vmatpush1.msra.mxu0 0.0
    %4870 = vmatprep.subr.mxu0 0.0
    %4871 = vmatpush1.msra.mxu0 0.0
    %4872 = vmatprep.subr.mxu0 0.0
    %4873 = vmatpush1.msra.mxu0 0.0
    %4874 = vmatprep.subr.mxu0 0.0
    %4875 = vmatpush1.msra.mxu0 0.0
    %4876 = vmatprep.subr.mxu0 0.0
    %4877 = vmatpush1.msra.mxu0 0.0
    %4878 = vmatprep.subr.mxu0 0.0
    %4879 = vmatpush1.msra.mxu0 0.0
    %4880 = vmatprep.subr.mxu0 0.0
    %4881 = vmatpush1.msra.mxu0 0.0
    %4882 = vmatprep.subr.mxu0 0.0
    %4883 = vmatpush1.msra.mxu0 0.0
    %4884 = vmatprep.subr.mxu0 0.0
    %4885 = vmatpush1.msra.mxu0 0.0
    %4886 = vmatprep.subr.mxu0 0.0
    %4887 = vmatpush1.msra.mxu0 0.0
    %4888 = vmatprep.subr.mxu0 0.0
    %4889 = vmatpush1.msra.mxu0 0.0
    %4890 = vmatprep.subr.mxu0 0.0
    %4891 = vmatpush1.msra.mxu0 0.0
    %4892 = vmatprep.subr.mxu0 0.0
    %4893 = vmatpush1.msra.mxu0 0.0
    %4894 = vmatprep.subr.mxu0 0.0
    %4895 = vmatpush1.msra.mxu0 0.0
    %4896 = vmatprep.subr.mxu0 0.0
    %4897 = vmatpush1.msra.mxu0 0.0
    %4898 = vmatprep.subr.mxu0 0.0
    %4899 = vmatpush1.msra.mxu0 0.0
    %4900 = vmatprep.mubr.f32.mxu0 0.0
    %4901 = vmatmul.mubr.f32.gmra.mrb[0].mxu0 %v1001
    %v4902 = vpop.f32.mrb[0].mxu0
    %v4903 = vadd.f32 %v4834, %v4902
    %v4904 = vpop.f32.mrb[0].mxu0
    %4905 = vmatprep.mubr.f32.mxu0 0.0
    %4906 = vmatmul.mubr.f32.gmra.mrb[0].mxu0 %v1235
    %v4907 = vpop.f32.mrb[0].mxu0
    %v4908 = vadd.f32 %v4834, %v4907
    %v4909 = vpop.f32.mrb[0].mxu0
    %4910 = vmatprep.mubr.f32.mxu0 0.0
    %4911 = vmatmul.mubr.f32.gmra.mrb[0].mxu0 %v1469
    %v4912 = vpop.f32.mrb[0].mxu0
    %v4913 = vadd.f32 %v4834, %v4912
    %v4914 = vpop.f32.mrb[0].mxu0
    %4915 = vmatprep.mubr.f32.mxu0 0.0
    %4916 = vmatmul.mubr.f32.gmra.mrb[0].mxu0 %v1703
    %v4917 = vpop.f32.mrb[0].mxu0
    %v4918 = vadd.f32 %v4834, %v4917
    %v4919 = vpop.f32.mrb[0].mxu0
    %4920 = vmatprep.mubr.f32.mxu0 0.0
    %4921 = vmatmul.mubr.f32.gmra.mrb[0].mxu0 %v1937
    %v4922 = vpop.f32.mrb[0].mxu0
    %v4923 = vadd.f32 %v4834, %v4922
    %v4924 = vpop.f32.mrb[0].mxu0
    %4925 = vmatprep.mubr.f32.mxu0 0.0
    %4926 = vmatmul.mubr.f32.gmra.mrb[0].mxu0 %v2171
    %v4927 = vpop.f32.mrb[0].mxu0
    %v4928 = vadd.f32 %v4834, %v4927
    %v4929 = vpop.f32.mrb[0].mxu0
    %4930 = vmatprep.mubr.f32.mxu0 0.0
    %4931 = vmatmul.mubr.f32.gmra.mrb[0].mxu0 %v2405
    %v4932 = vpop.f32.mrb[0].mxu0
    %v4933 = vadd.f32 %v4834, %v4932
    %v4934 = vpop.f32.mrb[0].mxu0
    %4935 = vmatprep.mubr.f32.mxu0 0.0
    %4936 = vmatmul.mubr.f32.gmra.mrb[0].mxu0 %v2639
    %v4937 = vpop.f32.mrb[0].mxu0
    %v4938 = vadd.f32 %v4834, %v4937
    %v4939 = vpop.f32.mrb[0].mxu0
    %4940 = vmatprep.mubr.f32.mxu0 0.0
    %4941 = vmatmul.mubr.f32.gmra.mrb[0].mxu0 %v2873
    %v4942 = vpop.f32.mrb[0].mxu0
    %v4943 = vadd.f32 %v4834, %v4942
    %v4944 = vpop.f32.mrb[0].mxu0
    %4945 = vmatprep.mubr.f32.mxu0 0.0
    %4946 = vmatmul.mubr.f32.gmra.mrb[0].mxu0 %v3107
    %v4947 = vpop.f32.mrb[0].mxu0
    %v4948 = vadd.f32 %v4834, %v4947
    %v4949 = vpop.f32.mrb[0].mxu0
    %4950 = vmatprep.mubr.f32.mxu0 0.0
    %4951 = vmatmul.mubr.f32.gmra.mrb[0].mxu0 %v3341
    %v4952 = vpop.f32.mrb[0].mxu0
    %v4953 = vadd.f32 %v4834, %v4952
    %v4954 = vpop.f32.mrb[0].mxu0
    %4955 = vmatprep.mubr.f32.mxu0 0.0
    %4956 = vmatmul.mubr.f32.gmra.mrb[0].mxu0 %v3575
    %v4957 = vpop.f32.mrb[0].mxu0
    %v4958 = vadd.f32 %v4834, %v4957
    %v4959 = vpop.f32.mrb[0].mxu0
    %4960 = vmatprep.mubr.f32.mxu0 0.0
    %4961 = vmatmul.mubr.f32.gmra.mrb[0].mxu0 %v3809
    %v4962 = vpop.f32.mrb[0].mxu0
    %v4963 = vadd.f32 %v4834, %v4962
    %v4964 = vpop.f32.mrb[0].mxu0
    %4965 = vmatprep.mubr.f32.mxu0 0.0
    %4966 = vmatmul.mubr.f32.gmra.mrb[0].mxu0 %v4043
    %v4967 = vpop.f32.mrb[0].mxu0
    %v4968 = vadd.f32 %v4834, %v4967
    %v4969 = vpop.f32.mrb[0].mxu0
    %4970 = vmatprep.mubr.f32.mxu0 0.0
    %4971 = vmatmul.mubr.f32.gmra.mrb[0].mxu0 %v4277
    %v4972 = vpop.f32.mrb[0].mxu0
    %v4973 = vadd.f32 %v4834, %v4972
    %v4974 = vpop.f32.mrb[0].mxu0
    %4975 = vmatprep.mubr.f32.mxu0 0.0
    %4976 = vmatmul.mubr.f32.gmra.mrb[0].mxu0 %v4522
    %v4977 = vpop.f32.mrb[0].mxu0
    %v4978 = vadd.f32 %v4834, %v4977
    %v4979 = vpop.f32.mrb[0].mxu0
    %4980 = vdwg.mxu0
    %v4981 = vld [vmem:[%s19] sm:$0xff]
    %v4982 = vld [vmem:[%s19 + $0x8] sm:$0xff]
    %v4983 = vld [vmem:[%s19 + $0x10] sm:$0xff]
    %v4984 = vld [vmem:[%s19 + $0x18] sm:$0xff]
    %v4985 = vld [vmem:[#allocation16] sm:$0xff]
    %v4986 = vld [vmem:[#allocation16 + $0x8] sm:$0xff]
    %v4987 = vld [vmem:[#allocation16 + $0x10] sm:$0xff]
    %v4988 = vld [vmem:[#allocation16 + $0x18] sm:$0xff]
    %v4989 = vld [vmem:[#allocation17] sm:$0xff]
    %v4990 = vld [vmem:[#allocation17 + $0x8] sm:$0xff]
    %v4991 = vld [vmem:[#allocation17 + $0x10] sm:$0xff]
    %v4992 = vld [vmem:[#allocation17 + $0x18] sm:$0xff]
    %v4993 = vld [vmem:[%s22] sm:$0x1]
    %v4994 = vld [vmem:[%s23] sm:$0x1]
    %v4995 = vld [vmem:[%s24] sm:$0x1]
    %v4997 = vlaneseq
    %v4998 = vshrl.u32 %v4997, 7
    %v4999 = vsub.s32 0, %v4998
    %v5000 = vrot.slane %v4993, %v4999
    %5002 = vmatprep.subr.mxu0 0.0
    %5003 = vmatpush1.msra.mxu0 %v4981
    %5004 = vmatprep.subr.mxu0 0.0
    %5005 = vmatpush1.msra.mxu0 %v4982
    %5006 = vmatprep.subr.mxu0 0.0
    %5007 = vmatpush1.msra.mxu0 %v4983
    %5008 = vmatprep.subr.mxu0 0.0
    %5009 = vmatpush1.msra.mxu0 %v4984
    %5010 = vmatprep.subr.mxu0 0.0
    %5011 = vmatpush1.msra.mxu0 0.0
    %5012 = vmatprep.subr.mxu0 0.0
    %5013 = vmatpush1.msra.mxu0 0.0
    %5014 = vmatprep.subr.mxu0 0.0
    %5015 = vmatpush1.msra.mxu0 0.0
    %5016 = vmatprep.subr.mxu0 0.0
    %5017 = vmatpush1.msra.mxu0 0.0
    %5018 = vmatprep.subr.mxu0 0.0
    %5019 = vmatpush1.msra.mxu0 0.0
    %5020 = vmatprep.subr.mxu0 0.0
    %5021 = vmatpush1.msra.mxu0 0.0
    %5022 = vmatprep.subr.mxu0 0.0
    %5023 = vmatpush1.msra.mxu0 0.0
    %5024 = vmatprep.subr.mxu0 0.0
    %5025 = vmatpush1.msra.mxu0 0.0
    %5026 = vmatprep.subr.mxu0 0.0
    %5027 = vmatpush1.msra.mxu0 0.0
    %5028 = vmatprep.subr.mxu0 0.0
    %5029 = vmatpush1.msra.mxu0 0.0
    %5030 = vmatprep.subr.mxu0 0.0
    %5031 = vmatpush1.msra.mxu0 0.0
    %5032 = vmatprep.subr.mxu0 0.0
    %5033 = vmatpush1.msra.mxu0 0.0
    %5034 = vmatprep.subr.mxu0 0.0
    %5035 = vmatpush1.msra.mxu0 0.0
    %5036 = vmatprep.subr.mxu0 0.0
    %5037 = vmatpush1.msra.mxu0 0.0
    %5038 = vmatprep.subr.mxu0 0.0
    %5039 = vmatpush1.msra.mxu0 0.0
    %5040 = vmatprep.subr.mxu0 0.0
    %5041 = vmatpush1.msra.mxu0 0.0
    %5042 = vmatprep.subr.mxu0 0.0
    %5043 = vmatpush1.msra.mxu0 0.0
    %5044 = vmatprep.subr.mxu0 0.0
    %5045 = vmatpush1.msra.mxu0 0.0
    %5046 = vmatprep.subr.mxu0 0.0
    %5047 = vmatpush1.msra.mxu0 0.0
    %5048 = vmatprep.subr.mxu0 0.0
    %5049 = vmatpush1.msra.mxu0 0.0
    %5050 = vmatprep.subr.mxu0 0.0
    %5051 = vmatpush1.msra.mxu0 0.0
    %5052 = vmatprep.subr.mxu0 0.0
    %5053 = vmatpush1.msra.mxu0 0.0
    %5054 = vmatprep.subr.mxu0 0.0
    %5055 = vmatpush1.msra.mxu0 0.0
    %5056 = vmatprep.subr.mxu0 0.0
    %5057 = vmatpush1.msra.mxu0 0.0
    %5058 = vmatprep.subr.mxu0 0.0
    %5059 = vmatpush1.msra.mxu0 0.0
    %5060 = vmatprep.subr.mxu0 0.0
    %5061 = vmatpush1.msra.mxu0 0.0
    %5062 = vmatprep.subr.mxu0 0.0
    %5063 = vmatpush1.msra.mxu0 0.0
    %5064 = vmatprep.subr.mxu0 0.0
    %5065 = vmatpush1.msra.mxu0 0.0
    %5066 = vmatprep.mubr.f32.mxu0 0.0
    %5067 = vmatmul.mubr.f32.gmra.mrb[0].mxu0 %v755
    %v5068 = vpop.f32.mrb[0].mxu0
    %v5069 = vadd.f32 %v5000, %v5068
    %v5070 = vpop.f32.mrb[0].mxu0
    %5071 = vdwg.mxu0
    %v5073 = vlaneseq
    %v5074 = vshrl.u32 %v5073, 7
    %v5075 = vsub.s32 0, %v5074
    %v5076 = vrot.slane %v4994, %v5075
    %5078 = vmatprep.subr.mxu0 0.0
    %5079 = vmatpush1.msra.mxu0 %v4985
    %5080 = vmatprep.subr.mxu0 0.0
    %5081 = vmatpush1.msra.mxu0 %v4986
    %5082 = vmatprep.subr.mxu0 0.0
    %5083 = vmatpush1.msra.mxu0 %v4987
    %5084 = vmatprep.subr.mxu0 0.0
    %5085 = vmatpush1.msra.mxu0 %v4988
    %5086 = vmatprep.subr.mxu0 0.0
    %5087 = vmatpush1.msra.mxu0 0.0
    %5088 = vmatprep.subr.mxu0 0.0
    %5089 = vmatpush1.msra.mxu0 0.0
    %5090 = vmatprep.subr.mxu0 0.0
    %5091 = vmatpush1.msra.mxu0 0.0
    %5092 = vmatprep.subr.mxu0 0.0
    %5093 = vmatpush1.msra.mxu0 0.0
    %5094 = vmatprep.subr.mxu0 0.0
    %5095 = vmatpush1.msra.mxu0 0.0
    %5096 = vmatprep.subr.mxu0 0.0
    %5097 = vmatpush1.msra.mxu0 0.0
    %5098 = vmatprep.subr.mxu0 0.0
    %5099 = vmatpush1.msra.mxu0 0.0
    %5100 = vmatprep.subr.mxu0 0.0
    %5101 = vmatpush1.msra.mxu0 0.0
    %5102 = vmatprep.subr.mxu0 0.0
    %5103 = vmatpush1.msra.mxu0 0.0
    %5104 = vmatprep.subr.mxu0 0.0
    %5105 = vmatpush1.msra.mxu0 0.0
    %5106 = vmatprep.subr.mxu0 0.0
    %5107 = vmatpush1.msra.mxu0 0.0
    %5108 = vmatprep.subr.mxu0 0.0
    %5109 = vmatpush1.msra.mxu0 0.0
    %5110 = vmatprep.subr.mxu0 0.0
    %5111 = vmatpush1.msra.mxu0 0.0
    %5112 = vmatprep.subr.mxu0 0.0
    %5113 = vmatpush1.msra.mxu0 0.0
    %5114 = vmatprep.subr.mxu0 0.0
    %5115 = vmatpush1.msra.mxu0 0.0
    %5116 = vmatprep.subr.mxu0 0.0
    %5117 = vmatpush1.msra.mxu0 0.0
    %5118 = vmatprep.subr.mxu0 0.0
    %5119 = vmatpush1.msra.mxu0 0.0
    %5120 = vmatprep.subr.mxu0 0.0
    %5121 = vmatpush1.msra.mxu0 0.0
    %5122 = vmatprep.subr.mxu0 0.0
    %5123 = vmatpush1.msra.mxu0 0.0
    %5124 = vmatprep.subr.mxu0 0.0
    %5125 = vmatpush1.msra.mxu0 0.0
    %5126 = vmatprep.subr.mxu0 0.0
    %5127 = vmatpush1.msra.mxu0 0.0
    %5128 = vmatprep.subr.mxu0 0.0
    %5129 = vmatpush1.msra.mxu0 0.0
    %5130 = vmatprep.subr.mxu0 0.0
    %5131 = vmatpush1.msra.mxu0 0.0
    %5132 = vmatprep.subr.mxu0 0.0
    %5133 = vmatpush1.msra.mxu0 0.0
    %5134 = vmatprep.subr.mxu0 0.0
    %5135 = vmatpush1.msra.mxu0 0.0
    %5136 = vmatprep.subr.mxu0 0.0
    %5137 = vmatpush1.msra.mxu0 0.0
    %5138 = vmatprep.subr.mxu0 0.0
    %5139 = vmatpush1.msra.mxu0 0.0
    %5140 = vmatprep.subr.mxu0 0.0
    %5141 = vmatpush1.msra.mxu0 0.0
    %5142 = vmatprep.mubr.f32.mxu0 0.0
    %5143 = vmatmul.mubr.f32.gmra.mrb[0].mxu0 %v755
    %v5144 = vpop.f32.mrb[0].mxu0
    %v5145 = vadd.f32 %v5076, %v5144
    %v5146 = vpop.f32.mrb[0].mxu0
    %5147 = vdwg.mxu0
    %v5149 = vlaneseq
    %v5150 = vshrl.u32 %v5149, 7
    %v5151 = vsub.s32 0, %v5150
    %v5152 = vrot.slane %v4995, %v5151
    %5154 = vmatprep.subr.mxu0 0.0
    %5155 = vmatpush1.msra.mxu0 %v4989
    %5156 = vmatprep.subr.mxu0 0.0
    %5157 = vmatpush1.msra.mxu0 %v4990
    %5158 = vmatprep.subr.mxu0 0.0
    %5159 = vmatpush1.msra.mxu0 %v4991
    %5160 = vmatprep.subr.mxu0 0.0
    %5161 = vmatpush1.msra.mxu0 %v4992
    %5162 = vmatprep.subr.mxu0 0.0
    %5163 = vmatpush1.msra.mxu0 0.0
    %5164 = vmatprep.subr.mxu0 0.0
    %5165 = vmatpush1.msra.mxu0 0.0
    %5166 = vmatprep.subr.mxu0 0.0
    %5167 = vmatpush1.msra.mxu0 0.0
    %5168 = vmatprep.subr.mxu0 0.0
    %5169 = vmatpush1.msra.mxu0 0.0
    %5170 = vmatprep.subr.mxu0 0.0
    %5171 = vmatpush1.msra.mxu0 0.0
    %5172 = vmatprep.subr.mxu0 0.0
    %5173 = vmatpush1.msra.mxu0 0.0
    %5174 = vmatprep.subr.mxu0 0.0
    %5175 = vmatpush1.msra.mxu0 0.0
    %5176 = vmatprep.subr.mxu0 0.0
    %5177 = vmatpush1.msra.mxu0 0.0
    %5178 = vmatprep.subr.mxu0 0.0
    %5179 = vmatpush1.msra.mxu0 0.0
    %5180 = vmatprep.subr.mxu0 0.0
    %5181 = vmatpush1.msra.mxu0 0.0
    %5182 = vmatprep.subr.mxu0 0.0
    %5183 = vmatpush1.msra.mxu0 0.0
    %5184 = vmatprep.subr.mxu0 0.0
    %5185 = vmatpush1.msra.mxu0 0.0
    %5186 = vmatprep.subr.mxu0 0.0
    %5187 = vmatpush1.msra.mxu0 0.0
    %5188 = vmatprep.subr.mxu0 0.0
    %5189 = vmatpush1.msra.mxu0 0.0
    %5190 = vmatprep.subr.mxu0 0.0
    %5191 = vmatpush1.msra.mxu0 0.0
    %5192 = vmatprep.subr.mxu0 0.0
    %5193 = vmatpush1.msra.mxu0 0.0
    %5194 = vmatprep.subr.mxu0 0.0
    %5195 = vmatpush1.msra.mxu0 0.0
    %5196 = vmatprep.subr.mxu0 0.0
    %5197 = vmatpush1.msra.mxu0 0.0
    %5198 = vmatprep.subr.mxu0 0.0
    %5199 = vmatpush1.msra.mxu0 0.0
    %5200 = vmatprep.subr.mxu0 0.0
    %5201 = vmatpush1.msra.mxu0 0.0
    %5202 = vmatprep.subr.mxu0 0.0
    %5203 = vmatpush1.msra.mxu0 0.0
    %5204 = vmatprep.subr.mxu0 0.0
    %5205 = vmatpush1.msra.mxu0 0.0
    %5206 = vmatprep.subr.mxu0 0.0
    %5207 = vmatpush1.msra.mxu0 0.0
    %5208 = vmatprep.subr.mxu0 0.0
    %5209 = vmatpush1.msra.mxu0 0.0
    %5210 = vmatprep.subr.mxu0 0.0
    %5211 = vmatpush1.msra.mxu0 0.0
    %5212 = vmatprep.subr.mxu0 0.0
    %5213 = vmatpush1.msra.mxu0 0.0
    %5214 = vmatprep.subr.mxu0 0.0
    %5215 = vmatpush1.msra.mxu0 0.0
    %5216 = vmatprep.subr.mxu0 0.0
    %5217 = vmatpush1.msra.mxu0 0.0
    %5218 = vmatprep.mubr.f32.mxu0 0.0
    %5219 = vmatmul.mubr.f32.gmra.mrb[0].mxu0 %v755
    %v5220 = vpop.f32.mrb[0].mxu0
    %v5221 = vadd.f32 %v5152, %v5220
    %v5222 = vpop.f32.mrb[0].mxu0
    %5223 = vdwg.mxu0
    %v5224 = vadd.f32 %v4591, %v5069
    %v5225 = vxor.u32 %v5224, 2147483648
    %v5226 = vmul.f32 %v5225, 1.442695
    %v5227 = vpow.pop %v5226
    %v5228 = vadd.f32 %v5227, 1.0
    %v5229 = vrcp.pop %v5228
    %v5230 = vmul.f32 1.0, %v5229
    %v5231 = vadd.f32 %v4747, %v5145
    %v5232 = vxor.u32 %v5231, 2147483648
    %v5233 = vmul.f32 %v5232, 1.442695
    %v5234 = vpow.pop %v5233
    %v5235 = vadd.f32 %v5234, 1.0
    %v5236 = vrcp.pop %v5235
    %v5237 = vmul.f32 1.0, %v5236
    %v5238 = vmul.f32 %v5230, %v5221
    %v5239 = vadd.f32 %v4903, %v5238
    %v5240 = vtanh.pop %v5239
    %v5241 = vsub.f32 1.0, %v5237
    %v5242 = vmul.f32 %v5241, %v5240
    %v5243 = vmul.f32 %v5237, 0.0
    %v5244 = vadd.f32 %v5242, %v5243
    %v5246 = vsel %vm753, %v5244, 0
    %5248 = vmatprep.subr.mxu0 0.0
    %5249 = vmatpush1.msra.mxu0 %v4981
    %5250 = vmatprep.subr.mxu0 0.0
    %5251 = vmatpush1.msra.mxu0 %v4982
    %5252 = vmatprep.subr.mxu0 0.0
    %5253 = vmatpush1.msra.mxu0 %v4983
    %5254 = vmatprep.subr.mxu0 0.0
    %5255 = vmatpush1.msra.mxu0 %v4984
    %5256 = vmatprep.subr.mxu0 0.0
    %5257 = vmatpush1.msra.mxu0 0.0
    %5258 = vmatprep.subr.mxu0 0.0
    %5259 = vmatpush1.msra.mxu0 0.0
    %5260 = vmatprep.subr.mxu0 0.0
    %5261 = vmatpush1.msra.mxu0 0.0
    %5262 = vmatprep.subr.mxu0 0.0
    %5263 = vmatpush1.msra.mxu0 0.0
    %5264 = vmatprep.subr.mxu0 0.0
    %5265 = vmatpush1.msra.mxu0 0.0
    %5266 = vmatprep.subr.mxu0 0.0
    %5267 = vmatpush1.msra.mxu0 0.0
    %5268 = vmatprep.subr.mxu0 0.0
    %5269 = vmatpush1.msra.mxu0 0.0
    %5270 = vmatprep.subr.mxu0 0.0
    %5271 = vmatpush1.msra.mxu0 0.0
    %5272 = vmatprep.subr.mxu0 0.0
    %5273 = vmatpush1.msra.mxu0 0.0
    %5274 = vmatprep.subr.mxu0 0.0
    %5275 = vmatpush1.msra.mxu0 0.0
    %5276 = vmatprep.subr.mxu0 0.0
    %5277 = vmatpush1.msra.mxu0 0.0
    %5278 = vmatprep.subr.mxu0 0.0
    %5279 = vmatpush1.msra.mxu0 0.0
    %5280 = vmatprep.subr.mxu0 0.0
    %5281 = vmatpush1.msra.mxu0 0.0
    %5282 = vmatprep.subr.mxu0 0.0
    %5283 = vmatpush1.msra.mxu0 0.0
    %5284 = vmatprep.subr.mxu0 0.0
    %5285 = vmatpush1.msra.mxu0 0.0
    %5286 = vmatprep.subr.mxu0 0.0
    %5287 = vmatpush1.msra.mxu0 0.0
    %5288 = vmatprep.subr.mxu0 0.0
    %5289 = vmatpush1.msra.mxu0 0.0
    %5290 = vmatprep.subr.mxu0 0.0
    %5291 = vmatpush1.msra.mxu0 0.0
    %5292 = vmatprep.subr.mxu0 0.0
    %5293 = vmatpush1.msra.mxu0 0.0
    %5294 = vmatprep.subr.mxu0 0.0
    %5295 = vmatpush1.msra.mxu0 0.0
    %5296 = vmatprep.subr.mxu0 0.0
    %5297 = vmatpush1.msra.mxu0 0.0
    %5298 = vmatprep.subr.mxu0 0.0
    %5299 = vmatpush1.msra.mxu0 0.0
    %5300 = vmatprep.subr.mxu0 0.0
    %5301 = vmatpush1.msra.mxu0 0.0
    %5302 = vmatprep.subr.mxu0 0.0
    %5303 = vmatpush1.msra.mxu0 0.0
    %5304 = vmatprep.subr.mxu0 0.0
    %5305 = vmatpush1.msra.mxu0 0.0
    %5306 = vmatprep.subr.mxu0 0.0
    %5307 = vmatpush1.msra.mxu0 0.0
    %5308 = vmatprep.subr.mxu0 0.0
    %5309 = vmatpush1.msra.mxu0 0.0
    %5310 = vmatprep.subr.mxu0 0.0
    %5311 = vmatpush1.msra.mxu0 0.0
    %5312 = vmatprep.mubr.f32.mxu0 0.0
    %5313 = vmatmul.mubr.f32.gmra.mrb[0].mxu0 %v5246
    %v5314 = vpop.f32.mrb[0].mxu0
    %v5315 = vadd.f32 %v5000, %v5314
    %v5316 = vpop.f32.mrb[0].mxu0
    %5317 = vdwg.mxu0
    %5318 = vmatprep.subr.mxu0 0.0
    %5319 = vmatpush1.msra.mxu0 %v4985
    %5320 = vmatprep.subr.mxu0 0.0
    %5321 = vmatpush1.msra.mxu0 %v4986
    %5322 = vmatprep.subr.mxu0 0.0
    %5323 = vmatpush1.msra.mxu0 %v4987
    %5324 = vmatprep.subr.mxu0 0.0
    %5325 = vmatpush1.msra.mxu0 %v4988
    %5326 = vmatprep.subr.mxu0 0.0
    %5327 = vmatpush1.msra.mxu0 0.0
    %5328 = vmatprep.subr.mxu0 0.0
    %5329 = vmatpush1.msra.mxu0 0.0
    %5330 = vmatprep.subr.mxu0 0.0
    %5331 = vmatpush1.msra.mxu0 0.0
    %5332 = vmatprep.subr.mxu0 0.0
    %5333 = vmatpush1.msra.mxu0 0.0
    %5334 = vmatprep.subr.mxu0 0.0
    %5335 = vmatpush1.msra.mxu0 0.0
    %5336 = vmatprep.subr.mxu0 0.0
    %5337 = vmatpush1.msra.mxu0 0.0
    %5338 = vmatprep.subr.mxu0 0.0
    %5339 = vmatpush1.msra.mxu0 0.0
    %5340 = vmatprep.subr.mxu0 0.0
    %5341 = vmatpush1.msra.mxu0 0.0
    %5342 = vmatprep.subr.mxu0 0.0
    %5343 = vmatpush1.msra.mxu0 0.0
    %5344 = vmatprep.subr.mxu0 0.0
    %5345 = vmatpush1.msra.mxu0 0.0
    %5346 = vmatprep.subr.mxu0 0.0
    %5347 = vmatpush1.msra.mxu0 0.0
    %5348 = vmatprep.subr.mxu0 0.0
    %5349 = vmatpush1.msra.mxu0 0.0
    %5350 = vmatprep.subr.mxu0 0.0
    %5351 = vmatpush1.msra.mxu0 0.0
    %5352 = vmatprep.subr.mxu0 0.0
    %5353 = vmatpush1.msra.mxu0 0.0
    %5354 = vmatprep.subr.mxu0 0.0
    %5355 = vmatpush1.msra.mxu0 0.0
    %5356 = vmatprep.subr.mxu0 0.0
    %5357 = vmatpush1.msra.mxu0 0.0
    %5358 = vmatprep.subr.mxu0 0.0
    %5359 = vmatpush1.msra.mxu0 0.0
    %5360 = vmatprep.subr.mxu0 0.0
    %5361 = vmatpush1.msra.mxu0 0.0
    %5362 = vmatprep.subr.mxu0 0.0
    %5363 = vmatpush1.msra.mxu0 0.0
    %5364 = vmatprep.subr.mxu0 0.0
    %5365 = vmatpush1.msra.mxu0 0.0
    %5366 = vmatprep.subr.mxu0 0.0
    %5367 = vmatpush1.msra.mxu0 0.0
    %5368 = vmatprep.subr.mxu0 0.0
    %5369 = vmatpush1.msra.mxu0 0.0
    %5370 = vmatprep.subr.mxu0 0.0
    %5371 = vmatpush1.msra.mxu0 0.0
    %5372 = vmatprep.subr.mxu0 0.0
    %5373 = vmatpush1.msra.mxu0 0.0
    %5374 = vmatprep.subr.mxu0 0.0
    %5375 = vmatpush1.msra.mxu0 0.0
    %5376 = vmatprep.subr.mxu0 0.0
    %5377 = vmatpush1.msra.mxu0 0.0
    %5378 = vmatprep.subr.mxu0 0.0
    %5379 = vmatpush1.msra.mxu0 0.0
    %5380 = vmatprep.subr.mxu0 0.0
    %5381 = vmatpush1.msra.mxu0 0.0
    %5382 = vmatprep.mubr.f32.mxu0 0.0
    %5383 = vmatmul.mubr.f32.gmra.mrb[0].mxu0 %v5246
    %v5384 = vpop.f32.mrb[0].mxu0
    %v5385 = vadd.f32 %v5076, %v5384
    %v5386 = vpop.f32.mrb[0].mxu0
    %5387 = vdwg.mxu0
    %5388 = vmatprep.subr.mxu0 0.0
    %5389 = vmatpush1.msra.mxu0 %v4989
    %5390 = vmatprep.subr.mxu0 0.0
    %5391 = vmatpush1.msra.mxu0 %v4990
    %5392 = vmatprep.subr.mxu0 0.0
    %5393 = vmatpush1.msra.mxu0 %v4991
    %5394 = vmatprep.subr.mxu0 0.0
    %5395 = vmatpush1.msra.mxu0 %v4992
    %5396 = vmatprep.subr.mxu0 0.0
    %5397 = vmatpush1.msra.mxu0 0.0
    %5398 = vmatprep.subr.mxu0 0.0
    %5399 = vmatpush1.msra.mxu0 0.0
    %5400 = vmatprep.subr.mxu0 0.0
    %5401 = vmatpush1.msra.mxu0 0.0
    %5402 = vmatprep.subr.mxu0 0.0
    %5403 = vmatpush1.msra.mxu0 0.0
    %5404 = vmatprep.subr.mxu0 0.0
    %5405 = vmatpush1.msra.mxu0 0.0
    %5406 = vmatprep.subr.mxu0 0.0
    %5407 = vmatpush1.msra.mxu0 0.0
    %5408 = vmatprep.subr.mxu0 0.0
    %5409 = vmatpush1.msra.mxu0 0.0
    %5410 = vmatprep.subr.mxu0 0.0
    %5411 = vmatpush1.msra.mxu0 0.0
    %5412 = vmatprep.subr.mxu0 0.0
    %5413 = vmatpush1.msra.mxu0 0.0
    %5414 = vmatprep.subr.mxu0 0.0
    %5415 = vmatpush1.msra.mxu0 0.0
    %5416 = vmatprep.subr.mxu0 0.0
    %5417 = vmatpush1.msra.mxu0 0.0
    %5418 = vmatprep.subr.mxu0 0.0
    %5419 = vmatpush1.msra.mxu0 0.0
    %5420 = vmatprep.subr.mxu0 0.0
    %5421 = vmatpush1.msra.mxu0 0.0
    %5422 = vmatprep.subr.mxu0 0.0
    %5423 = vmatpush1.msra.mxu0 0.0
    %5424 = vmatprep.subr.mxu0 0.0
    %5425 = vmatpush1.msra.mxu0 0.0
    %5426 = vmatprep.subr.mxu0 0.0
    %5427 = vmatpush1.msra.mxu0 0.0
    %5428 = vmatprep.subr.mxu0 0.0
    %5429 = vmatpush1.msra.mxu0 0.0
    %5430 = vmatprep.subr.mxu0 0.0
    %5431 = vmatpush1.msra.mxu0 0.0
    %5432 = vmatprep.subr.mxu0 0.0
    %5433 = vmatpush1.msra.mxu0 0.0
    %5434 = vmatprep.subr.mxu0 0.0
    %5435 = vmatpush1.msra.mxu0 0.0
    %5436 = vmatprep.subr.mxu0 0.0
    %5437 = vmatpush1.msra.mxu0 0.0
    %5438 = vmatprep.subr.mxu0 0.0
    %5439 = vmatpush1.msra.mxu0 0.0
    %5440 = vmatprep.subr.mxu0 0.0
    %5441 = vmatpush1.msra.mxu0 0.0
    %5442 = vmatprep.subr.mxu0 0.0
    %5443 = vmatpush1.msra.mxu0 0.0
    %5444 = vmatprep.subr.mxu0 0.0
    %5445 = vmatpush1.msra.mxu0 0.0
    %5446 = vmatprep.subr.mxu0 0.0
    %5447 = vmatpush1.msra.mxu0 0.0
    %5448 = vmatprep.subr.mxu0 0.0
    %5449 = vmatpush1.msra.mxu0 0.0
    %5450 = vmatprep.subr.mxu0 0.0
    %5451 = vmatpush1.msra.mxu0 0.0
    %5452 = vmatprep.mubr.f32.mxu0 0.0
    %5453 = vmatmul.mubr.f32.gmra.mrb[0].mxu0 %v5246
    %v5454 = vpop.f32.mrb[0].mxu0
    %v5455 = vadd.f32 %v5152, %v5454
    %v5456 = vpop.f32.mrb[0].mxu0
    %5457 = vdwg.mxu0
    %v5458 = vadd.f32 %v4596, %v5315
    %v5459 = vxor.u32 %v5458, 2147483648
    %v5460 = vmul.f32 %v5459, 1.442695
    %v5461 = vpow.pop %v5460
    %v5462 = vadd.f32 %v5461, 1.0
    %v5463 = vrcp.pop %v5462
    %v5464 = vmul.f32 1.0, %v5463
    %v5465 = vadd.f32 %v4752, %v5385
    %v5466 = vxor.u32 %v5465, 2147483648
    %v5467 = vmul.f32 %v5466, 1.442695
    %v5468 = vpow.pop %v5467
    %v5469 = vadd.f32 %v5468, 1.0
    %v5470 = vrcp.pop %v5469
    %v5471 = vmul.f32 1.0, %v5470
    %v5472 = vmul.f32 %v5464, %v5455
    %v5473 = vadd.f32 %v4908, %v5472
    %v5474 = vtanh.pop %v5473
    %v5475 = vsub.f32 1.0, %v5471
    %v5476 = vmul.f32 %v5475, %v5474
    %v5477 = vmul.f32 %v5471, %v5244
    %v5478 = vadd.f32 %v5476, %v5477
    %v5480 = vsel %vm753, %v5478, 0
    %5482 = vmatprep.subr.mxu0 0.0
    %5483 = vmatpush1.msra.mxu0 %v4981
    %5484 = vmatprep.subr.mxu0 0.0
    %5485 = vmatpush1.msra.mxu0 %v4982
    %5486 = vmatprep.subr.mxu0 0.0
    %5487 = vmatpush1.msra.mxu0 %v4983
    %5488 = vmatprep.subr.mxu0 0.0
    %5489 = vmatpush1.msra.mxu0 %v4984
    %5490 = vmatprep.subr.mxu0 0.0
    %5491 = vmatpush1.msra.mxu0 0.0
    %5492 = vmatprep.subr.mxu0 0.0
    %5493 = vmatpush1.msra.mxu0 0.0
    %5494 = vmatprep.subr.mxu0 0.0
    %5495 = vmatpush1.msra.mxu0 0.0
    %5496 = vmatprep.subr.mxu0 0.0
    %5497 = vmatpush1.msra.mxu0 0.0
    %5498 = vmatprep.subr.mxu0 0.0
    %5499 = vmatpush1.msra.mxu0 0.0
    %5500 = vmatprep.subr.mxu0 0.0
    %5501 = vmatpush1.msra.mxu0 0.0
    %5502 = vmatprep.subr.mxu0 0.0
    %5503 = vmatpush1.msra.mxu0 0.0
    %5504 = vmatprep.subr.mxu0 0.0
    %5505 = vmatpush1.msra.mxu0 0.0
    %5506 = vmatprep.subr.mxu0 0.0
    %5507 = vmatpush1.msra.mxu0 0.0
    %5508 = vmatprep.subr.mxu0 0.0
    %5509 = vmatpush1.msra.mxu0 0.0
    %5510 = vmatprep.subr.mxu0 0.0
    %5511 = vmatpush1.msra.mxu0 0.0
    %5512 = vmatprep.subr.mxu0 0.0
    %5513 = vmatpush1.msra.mxu0 0.0
    %5514 = vmatprep.subr.mxu0 0.0
    %5515 = vmatpush1.msra.mxu0 0.0
    %5516 = vmatprep.subr.mxu0 0.0
    %5517 = vmatpush1.msra.mxu0 0.0
    %5518 = vmatprep.subr.mxu0 0.0
    %5519 = vmatpush1.msra.mxu0 0.0
    %5520 = vmatprep.subr.mxu0 0.0
    %5521 = vmatpush1.msra.mxu0 0.0
    %5522 = vmatprep.subr.mxu0 0.0
    %5523 = vmatpush1.msra.mxu0 0.0
    %5524 = vmatprep.subr.mxu0 0.0
    %5525 = vmatpush1.msra.mxu0 0.0
    %5526 = vmatprep.subr.mxu0 0.0
    %5527 = vmatpush1.msra.mxu0 0.0
    %5528 = vmatprep.subr.mxu0 0.0
    %5529 = vmatpush1.msra.mxu0 0.0
    %5530 = vmatprep.subr.mxu0 0.0
    %5531 = vmatpush1.msra.mxu0 0.0
    %5532 = vmatprep.subr.mxu0 0.0
    %5533 = vmatpush1.msra.mxu0 0.0
    %5534 = vmatprep.subr.mxu0 0.0
    %5535 = vmatpush1.msra.mxu0 0.0
    %5536 = vmatprep.subr.mxu0 0.0
    %5537 = vmatpush1.msra.mxu0 0.0
    %5538 = vmatprep.subr.mxu0 0.0
    %5539 = vmatpush1.msra.mxu0 0.0
    %5540 = vmatprep.subr.mxu0 0.0
    %5541 = vmatpush1.msra.mxu0 0.0
    %5542 = vmatprep.subr.mxu0 0.0
    %5543 = vmatpush1.msra.mxu0 0.0
    %5544 = vmatprep.subr.mxu0 0.0
    %5545 = vmatpush1.msra.mxu0 0.0
    %5546 = vmatprep.mubr.f32.mxu0 0.0
    %5547 = vmatmul.mubr.f32.gmra.mrb[0].mxu0 %v5480
    %v5548 = vpop.f32.mrb[0].mxu0
    %v5549 = vadd.f32 %v5000, %v5548
    %v5550 = vpop.f32.mrb[0].mxu0
    %5551 = vdwg.mxu0
    %5552 = vmatprep.subr.mxu0 0.0
    %5553 = vmatpush1.msra.mxu0 %v4985
    %5554 = vmatprep.subr.mxu0 0.0
    %5555 = vmatpush1.msra.mxu0 %v4986
    %5556 = vmatprep.subr.mxu0 0.0
    %5557 = vmatpush1.msra.mxu0 %v4987
    %5558 = vmatprep.subr.mxu0 0.0
    %5559 = vmatpush1.msra.mxu0 %v4988
    %5560 = vmatprep.subr.mxu0 0.0
    %5561 = vmatpush1.msra.mxu0 0.0
    %5562 = vmatprep.subr.mxu0 0.0
    %5563 = vmatpush1.msra.mxu0 0.0
    %5564 = vmatprep.subr.mxu0 0.0
    %5565 = vmatpush1.msra.mxu0 0.0
    %5566 = vmatprep.subr.mxu0 0.0
    %5567 = vmatpush1.msra.mxu0 0.0
    %5568 = vmatprep.subr.mxu0 0.0
    %5569 = vmatpush1.msra.mxu0 0.0
    %5570 = vmatprep.subr.mxu0 0.0
    %5571 = vmatpush1.msra.mxu0 0.0
    %5572 = vmatprep.subr.mxu0 0.0
    %5573 = vmatpush1.msra.mxu0 0.0
    %5574 = vmatprep.subr.mxu0 0.0
    %5575 = vmatpush1.msra.mxu0 0.0
    %5576 = vmatprep.subr.mxu0 0.0
    %5577 = vmatpush1.msra.mxu0 0.0
    %5578 = vmatprep.subr.mxu0 0.0
    %5579 = vmatpush1.msra.mxu0 0.0
    %5580 = vmatprep.subr.mxu0 0.0
    %5581 = vmatpush1.msra.mxu0 0.0
    %5582 = vmatprep.subr.mxu0 0.0
    %5583 = vmatpush1.msra.mxu0 0.0
    %5584 = vmatprep.subr.mxu0 0.0
    %5585 = vmatpush1.msra.mxu0 0.0
    %5586 = vmatprep.subr.mxu0 0.0
    %5587 = vmatpush1.msra.mxu0 0.0
    %5588 = vmatprep.subr.mxu0 0.0
    %5589 = vmatpush1.msra.mxu0 0.0
    %5590 = vmatprep.subr.mxu0 0.0
    %5591 = vmatpush1.msra.mxu0 0.0
    %5592 = vmatprep.subr.mxu0 0.0
    %5593 = vmatpush1.msra.mxu0 0.0
    %5594 = vmatprep.subr.mxu0 0.0
    %5595 = vmatpush1.msra.mxu0 0.0
    %5596 = vmatprep.subr.mxu0 0.0
    %5597 = vmatpush1.msra.mxu0 0.0
    %5598 = vmatprep.subr.mxu0 0.0
    %5599 = vmatpush1.msra.mxu0 0.0
    %5600 = vmatprep.subr.mxu0 0.0
    %5601 = vmatpush1.msra.mxu0 0.0
    %5602 = vmatprep.subr.mxu0 0.0
    %5603 = vmatpush1.msra.mxu0 0.0
    %5604 = vmatprep.subr.mxu0 0.0
    %5605 = vmatpush1.msra.mxu0 0.0
    %5606 = vmatprep.subr.mxu0 0.0
    %5607 = vmatpush1.msra.mxu0 0.0
    %5608 = vmatprep.subr.mxu0 0.0
    %5609 = vmatpush1.msra.mxu0 0.0
    %5610 = vmatprep.subr.mxu0 0.0
    %5611 = vmatpush1.msra.mxu0 0.0
    %5612 = vmatprep.subr.mxu0 0.0
    %5613 = vmatpush1.msra.mxu0 0.0
    %5614 = vmatprep.subr.mxu0 0.0
    %5615 = vmatpush1.msra.mxu0 0.0
    %5616 = vmatprep.mubr.f32.mxu0 0.0
    %5617 = vmatmul.mubr.f32.gmra.mrb[0].mxu0 %v5480
    %v5618 = vpop.f32.mrb[0].mxu0
    %v5619 = vadd.f32 %v5076, %v5618
    %v5620 = vpop.f32.mrb[0].mxu0
    %5621 = vdwg.mxu0
    %5622 = vmatprep.subr.mxu0 0.0
    %5623 = vmatpush1.msra.mxu0 %v4989
    %5624 = vmatprep.subr.mxu0 0.0
    %5625 = vmatpush1.msra.mxu0 %v4990
    %5626 = vmatprep.subr.mxu0 0.0
    %5627 = vmatpush1.msra.mxu0 %v4991
    %5628 = vmatprep.subr.mxu0 0.0
    %5629 = vmatpush1.msra.mxu0 %v4992
    %5630 = vmatprep.subr.mxu0 0.0
    %5631 = vmatpush1.msra.mxu0 0.0
    %5632 = vmatprep.subr.mxu0 0.0
    %5633 = vmatpush1.msra.mxu0 0.0
    %5634 = vmatprep.subr.mxu0 0.0
    %5635 = vmatpush1.msra.mxu0 0.0
    %5636 = vmatprep.subr.mxu0 0.0
    %5637 = vmatpush1.msra.mxu0 0.0
    %5638 = vmatprep.subr.mxu0 0.0
    %5639 = vmatpush1.msra.mxu0 0.0
    %5640 = vmatprep.subr.mxu0 0.0
    %5641 = vmatpush1.msra.mxu0 0.0
    %5642 = vmatprep.subr.mxu0 0.0
    %5643 = vmatpush1.msra.mxu0 0.0
    %5644 = vmatprep.subr.mxu0 0.0
    %5645 = vmatpush1.msra.mxu0 0.0
    %5646 = vmatprep.subr.mxu0 0.0
    %5647 = vmatpush1.msra.mxu0 0.0
    %5648 = vmatprep.subr.mxu0 0.0
    %5649 = vmatpush1.msra.mxu0 0.0
    %5650 = vmatprep.subr.mxu0 0.0
    %5651 = vmatpush1.msra.mxu0 0.0
    %5652 = vmatprep.subr.mxu0 0.0
    %5653 = vmatpush1.msra.mxu0 0.0
    %5654 = vmatprep.subr.mxu0 0.0
    %5655 = vmatpush1.msra.mxu0 0.0
    %5656 = vmatprep.subr.mxu0 0.0
    %5657 = vmatpush1.msra.mxu0 0.0
    %5658 = vmatprep.subr.mxu0 0.0
    %5659 = vmatpush1.msra.mxu0 0.0
    %5660 = vmatprep.subr.mxu0 0.0
    %5661 = vmatpush1.msra.mxu0 0.0
    %5662 = vmatprep.subr.mxu0 0.0
    %5663 = vmatpush1.msra.mxu0 0.0
    %5664 = vmatprep.subr.mxu0 0.0
    %5665 = vmatpush1.msra.mxu0 0.0
    %5666 = vmatprep.subr.mxu0 0.0
    %5667 = vmatpush1.msra.mxu0 0.0
    %5668 = vmatprep.subr.mxu0 0.0
    %5669 = vmatpush1.msra.mxu0 0.0
    %5670 = vmatprep.subr.mxu0 0.0
    %5671 = vmatpush1.msra.mxu0 0.0
    %5672 = vmatprep.subr.mxu0 0.0
    %5673 = vmatpush1.msra.mxu0 0.0
    %5674 = vmatprep.subr.mxu0 0.0
    %5675 = vmatpush1.msra.mxu0 0.0
    %5676 = vmatprep.subr.mxu0 0.0
    %5677 = vmatpush1.msra.mxu0 0.0
    %5678 = vmatprep.subr.mxu0 0.0
    %5679 = vmatpush1.msra.mxu0 0.0
    %5680 = vmatprep.subr.mxu0 0.0
    %5681 = vmatpush1.msra.mxu0 0.0
    %5682 = vmatprep.subr.mxu0 0.0
    %5683 = vmatpush1.msra.mxu0 0.0
    %5684 = vmatprep.subr.mxu0 0.0
    %5685 = vmatpush1.msra.mxu0 0.0
    %5686 = vmatprep.mubr.f32.mxu0 0.0
    %5687 = vmatmul.mubr.f32.gmra.mrb[0].mxu0 %v5480
    %v5688 = vpop.f32.mrb[0].mxu0
    %v5689 = vadd.f32 %v5152, %v5688
    %v5690 = vpop.f32.mrb[0].mxu0
    %5691 = vdwg.mxu0
    %v5692 = vadd.f32 %v4601, %v5549
    %v5693 = vxor.u32 %v5692, 2147483648
    %v5694 = vmul.f32 %v5693, 1.442695
    %v5695 = vpow.pop %v5694
    %v5696 = vadd.f32 %v5695, 1.0
    %v5697 = vrcp.pop %v5696
    %v5698 = vmul.f32 1.0, %v5697
    %v5699 = vadd.f32 %v4757, %v5619
    %v5700 = vxor.u32 %v5699, 2147483648
    %v5701 = vmul.f32 %v5700, 1.442695
    %v5702 = vpow.pop %v5701
    %v5703 = vadd.f32 %v5702, 1.0
    %v5704 = vrcp.pop %v5703
    %v5705 = vmul.f32 1.0, %v5704
    %v5706 = vmul.f32 %v5698, %v5689
    %v5707 = vadd.f32 %v4913, %v5706
    %v5708 = vtanh.pop %v5707
    %v5709 = vsub.f32 1.0, %v5705
    %v5710 = vmul.f32 %v5709, %v5708
    %v5711 = vmul.f32 %v5705, %v5478
    %v5712 = vadd.f32 %v5710, %v5711
    %v5714 = vsel %vm753, %v5712, 0
    %5716 = vmatprep.subr.mxu0 0.0
    %5717 = vmatpush1.msra.mxu0 %v4981
    %5718 = vmatprep.subr.mxu0 0.0
    %5719 = vmatpush1.msra.mxu0 %v4982
    %5720 = vmatprep.subr.mxu0 0.0
    %5721 = vmatpush1.msra.mxu0 %v4983
    %5722 = vmatprep.subr.mxu0 0.0
    %5723 = vmatpush1.msra.mxu0 %v4984
    %5724 = vmatprep.subr.mxu0 0.0
    %5725 = vmatpush1.msra.mxu0 0.0
    %5726 = vmatprep.subr.mxu0 0.0
    %5727 = vmatpush1.msra.mxu0 0.0
    %5728 = vmatprep.subr.mxu0 0.0
    %5729 = vmatpush1.msra.mxu0 0.0
    %5730 = vmatprep.subr.mxu0 0.0
    %5731 = vmatpush1.msra.mxu0 0.0
    %5732 = vmatprep.subr.mxu0 0.0
    %5733 = vmatpush1.msra.mxu0 0.0
    %5734 = vmatprep.subr.mxu0 0.0
    %5735 = vmatpush1.msra.mxu0 0.0
    %5736 = vmatprep.subr.mxu0 0.0
    %5737 = vmatpush1.msra.mxu0 0.0
    %5738 = vmatprep.subr.mxu0 0.0
    %5739 = vmatpush1.msra.mxu0 0.0
    %5740 = vmatprep.subr.mxu0 0.0
    %5741 = vmatpush1.msra.mxu0 0.0
    %5742 = vmatprep.subr.mxu0 0.0
    %5743 = vmatpush1.msra.mxu0 0.0
    %5744 = vmatprep.subr.mxu0 0.0
    %5745 = vmatpush1.msra.mxu0 0.0
    %5746 = vmatprep.subr.mxu0 0.0
    %5747 = vmatpush1.msra.mxu0 0.0
    %5748 = vmatprep.subr.mxu0 0.0
    %5749 = vmatpush1.msra.mxu0 0.0
    %5750 = vmatprep.subr.mxu0 0.0
    %5751 = vmatpush1.msra.mxu0 0.0
    %5752 = vmatprep.subr.mxu0 0.0
    %5753 = vmatpush1.msra.mxu0 0.0
    %5754 = vmatprep.subr.mxu0 0.0
    %5755 = vmatpush1.msra.mxu0 0.0
    %5756 = vmatprep.subr.mxu0 0.0
    %5757 = vmatpush1.msra.mxu0 0.0
    %5758 = vmatprep.subr.mxu0 0.0
    %5759 = vmatpush1.msra.mxu0 0.0
    %5760 = vmatprep.subr.mxu0 0.0
    %5761 = vmatpush1.msra.mxu0 0.0
    %5762 = vmatprep.subr.mxu0 0.0
    %5763 = vmatpush1.msra.mxu0 0.0
    %5764 = vmatprep.subr.mxu0 0.0
    %5765 = vmatpush1.msra.mxu0 0.0
    %5766 = vmatprep.subr.mxu0 0.0
    %5767 = vmatpush1.msra.mxu0 0.0
    %5768 = vmatprep.subr.mxu0 0.0
    %5769 = vmatpush1.msra.mxu0 0.0
    %5770 = vmatprep.subr.mxu0 0.0
    %5771 = vmatpush1.msra.mxu0 0.0
    %5772 = vmatprep.subr.mxu0 0.0
    %5773 = vmatpush1.msra.mxu0 0.0
    %5774 = vmatprep.subr.mxu0 0.0
    %5775 = vmatpush1.msra.mxu0 0.0
    %5776 = vmatprep.subr.mxu0 0.0
    %5777 = vmatpush1.msra.mxu0 0.0
    %5778 = vmatprep.subr.mxu0 0.0
    %5779 = vmatpush1.msra.mxu0 0.0
    %5780 = vmatprep.mubr.f32.mxu0 0.0
    %5781 = vmatmul.mubr.f32.gmra.mrb[0].mxu0 %v5714
    %v5782 = vpop.f32.mrb[0].mxu0
    %v5783 = vadd.f32 %v5000, %v5782
    %v5784 = vpop.f32.mrb[0].mxu0
    %5785 = vdwg.mxu0
    %5786 = vmatprep.subr.mxu0 0.0
    %5787 = vmatpush1.msra.mxu0 %v4985
    %5788 = vmatprep.subr.mxu0 0.0
    %5789 = vmatpush1.msra.mxu0 %v4986
    %5790 = vmatprep.subr.mxu0 0.0
    %5791 = vmatpush1.msra.mxu0 %v4987
    %5792 = vmatprep.subr.mxu0 0.0
    %5793 = vmatpush1.msra.mxu0 %v4988
    %5794 = vmatprep.subr.mxu0 0.0
    %5795 = vmatpush1.msra.mxu0 0.0
    %5796 = vmatprep.subr.mxu0 0.0
    %5797 = vmatpush1.msra.mxu0 0.0
    %5798 = vmatprep.subr.mxu0 0.0
    %5799 = vmatpush1.msra.mxu0 0.0
    %5800 = vmatprep.subr.mxu0 0.0
    %5801 = vmatpush1.msra.mxu0 0.0
    %5802 = vmatprep.subr.mxu0 0.0
    %5803 = vmatpush1.msra.mxu0 0.0
    %5804 = vmatprep.subr.mxu0 0.0
    %5805 = vmatpush1.msra.mxu0 0.0
    %5806 = vmatprep.subr.mxu0 0.0
    %5807 = vmatpush1.msra.mxu0 0.0
    %5808 = vmatprep.subr.mxu0 0.0
    %5809 = vmatpush1.msra.mxu0 0.0
    %5810 = vmatprep.subr.mxu0 0.0
    %5811 = vmatpush1.msra.mxu0 0.0
    %5812 = vmatprep.subr.mxu0 0.0
    %5813 = vmatpush1.msra.mxu0 0.0
    %5814 = vmatprep.subr.mxu0 0.0
    %5815 = vmatpush1.msra.mxu0 0.0
    %5816 = vmatprep.subr.mxu0 0.0
    %5817 = vmatpush1.msra.mxu0 0.0
    %5818 = vmatprep.subr.mxu0 0.0
    %5819 = vmatpush1.msra.mxu0 0.0
    %5820 = vmatprep.subr.mxu0 0.0
    %5821 = vmatpush1.msra.mxu0 0.0
    %5822 = vmatprep.subr.mxu0 0.0
    %5823 = vmatpush1.msra.mxu0 0.0
    %5824 = vmatprep.subr.mxu0 0.0
    %5825 = vmatpush1.msra.mxu0 0.0
    %5826 = vmatprep.subr.mxu0 0.0
    %5827 = vmatpush1.msra.mxu0 0.0
    %5828 = vmatprep.subr.mxu0 0.0
    %5829 = vmatpush1.msra.mxu0 0.0
    %5830 = vmatprep.subr.mxu0 0.0
    %5831 = vmatpush1.msra.mxu0 0.0
    %5832 = vmatprep.subr.mxu0 0.0
    %5833 = vmatpush1.msra.mxu0 0.0
    %5834 = vmatprep.subr.mxu0 0.0
    %5835 = vmatpush1.msra.mxu0 0.0
    %5836 = vmatprep.subr.mxu0 0.0
    %5837 = vmatpush1.msra.mxu0 0.0
    %5838 = vmatprep.subr.mxu0 0.0
    %5839 = vmatpush1.msra.mxu0 0.0
    %5840 = vmatprep.subr.mxu0 0.0
    %5841 = vmatpush1.msra.mxu0 0.0
    %5842 = vmatprep.subr.mxu0 0.0
    %5843 = vmatpush1.msra.mxu0 0.0
    %5844 = vmatprep.subr.mxu0 0.0
    %5845 = vmatpush1.msra.mxu0 0.0
    %5846 = vmatprep.subr.mxu0 0.0
    %5847 = vmatpush1.msra.mxu0 0.0
    %5848 = vmatprep.subr.mxu0 0.0
    %5849 = vmatpush1.msra.mxu0 0.0
    %5850 = vmatprep.mubr.f32.mxu0 0.0
    %5851 = vmatmul.mubr.f32.gmra.mrb[0].mxu0 %v5714
    %v5852 = vpop.f32.mrb[0].mxu0
    %v5853 = vadd.f32 %v5076, %v5852
    %v5854 = vpop.f32.mrb[0].mxu0
    %5855 = vdwg.mxu0
    %5856 = vmatprep.subr.mxu0 0.0
    %5857 = vmatpush1.msra.mxu0 %v4989
    %5858 = vmatprep.subr.mxu0 0.0
    %5859 = vmatpush1.msra.mxu0 %v4990
    %5860 = vmatprep.subr.mxu0 0.0
    %5861 = vmatpush1.msra.mxu0 %v4991
    %5862 = vmatprep.subr.mxu0 0.0
    %5863 = vmatpush1.msra.mxu0 %v4992
    %5864 = vmatprep.subr.mxu0 0.0
    %5865 = vmatpush1.msra.mxu0 0.0
    %5866 = vmatprep.subr.mxu0 0.0
    %5867 = vmatpush1.msra.mxu0 0.0
    %5868 = vmatprep.subr.mxu0 0.0
    %5869 = vmatpush1.msra.mxu0 0.0
    %5870 = vmatprep.subr.mxu0 0.0
    %5871 = vmatpush1.msra.mxu0 0.0
    %5872 = vmatprep.subr.mxu0 0.0
    %5873 = vmatpush1.msra.mxu0 0.0
    %5874 = vmatprep.subr.mxu0 0.0
    %5875 = vmatpush1.msra.mxu0 0.0
    %5876 = vmatprep.subr.mxu0 0.0
    %5877 = vmatpush1.msra.mxu0 0.0
    %5878 = vmatprep.subr.mxu0 0.0
    %5879 = vmatpush1.msra.mxu0 0.0
    %5880 = vmatprep.subr.mxu0 0.0
    %5881 = vmatpush1.msra.mxu0 0.0
    %5882 = vmatprep.subr.mxu0 0.0
    %5883 = vmatpush1.msra.mxu0 0.0
    %5884 = vmatprep.subr.mxu0 0.0
    %5885 = vmatpush1.msra.mxu0 0.0
    %5886 = vmatprep.subr.mxu0 0.0
    %5887 = vmatpush1.msra.mxu0 0.0
    %5888 = vmatprep.subr.mxu0 0.0
    %5889 = vmatpush1.msra.mxu0 0.0
    %5890 = vmatprep.subr.mxu0 0.0
    %5891 = vmatpush1.msra.mxu0 0.0
    %5892 = vmatprep.subr.mxu0 0.0
    %5893 = vmatpush1.msra.mxu0 0.0
    %5894 = vmatprep.subr.mxu0 0.0
    %5895 = vmatpush1.msra.mxu0 0.0
    %5896 = vmatprep.subr.mxu0 0.0
    %5897 = vmatpush1.msra.mxu0 0.0
    %5898 = vmatprep.subr.mxu0 0.0
    %5899 = vmatpush1.msra.mxu0 0.0
    %5900 = vmatprep.subr.mxu0 0.0
    %5901 = vmatpush1.msra.mxu0 0.0
    %5902 = vmatprep.subr.mxu0 0.0
    %5903 = vmatpush1.msra.mxu0 0.0
    %5904 = vmatprep.subr.mxu0 0.0
    %5905 = vmatpush1.msra.mxu0 0.0
    %5906 = vmatprep.subr.mxu0 0.0
    %5907 = vmatpush1.msra.mxu0 0.0
    %5908 = vmatprep.subr.mxu0 0.0
    %5909 = vmatpush1.msra.mxu0 0.0
    %5910 = vmatprep.subr.mxu0 0.0
    %5911 = vmatpush1.msra.mxu0 0.0
    %5912 = vmatprep.subr.mxu0 0.0
    %5913 = vmatpush1.msra.mxu0 0.0
    %5914 = vmatprep.subr.mxu0 0.0
    %5915 = vmatpush1.msra.mxu0 0.0
    %5916 = vmatprep.subr.mxu0 0.0
    %5917 = vmatpush1.msra.mxu0 0.0
    %5918 = vmatprep.subr.mxu0 0.0
    %5919 = vmatpush1.msra.mxu0 0.0
    %5920 = vmatprep.mubr.f32.mxu0 0.0
    %5921 = vmatmul.mubr.f32.gmra.mrb[0].mxu0 %v5714
    %v5922 = vpop.f32.mrb[0].mxu0
    %v5923 = vadd.f32 %v5152, %v5922
    %v5924 = vpop.f32.mrb[0].mxu0
    %5925 = vdwg.mxu0
    %v5926 = vadd.f32 %v4606, %v5783
    %v5927 = vxor.u32 %v5926, 2147483648
    %v5928 = vmul.f32 %v5927, 1.442695
    %v5929 = vpow.pop %v5928
    %v5930 = vadd.f32 %v5929, 1.0
    %v5931 = vrcp.pop %v5930
    %v5932 = vmul.f32 1.0, %v5931
    %v5933 = vadd.f32 %v4762, %v5853
    %v5934 = vxor.u32 %v5933, 2147483648
    %v5935 = vmul.f32 %v5934, 1.442695
    %v5936 = vpow.pop %v5935
    %v5937 = vadd.f32 %v5936, 1.0
    %v5938 = vrcp.pop %v5937
    %v5939 = vmul.f32 1.0, %v5938
    %v5940 = vmul.f32 %v5932, %v5923
    %v5941 = vadd.f32 %v4918, %v5940
    %v5942 = vtanh.pop %v5941
    %v5943 = vsub.f32 1.0, %v5939
    %v5944 = vmul.f32 %v5943, %v5942
    %v5945 = vmul.f32 %v5939, %v5712
    %v5946 = vadd.f32 %v5944, %v5945
    %v5948 = vsel %vm753, %v5946, 0
    %5950 = vmatprep.subr.mxu0 0.0
    %5951 = vmatpush1.msra.mxu0 %v4981
    %5952 = vmatprep.subr.mxu0 0.0
    %5953 = vmatpush1.msra.mxu0 %v4982
    %5954 = vmatprep.subr.mxu0 0.0
    %5955 = vmatpush1.msra.mxu0 %v4983
    %5956 = vmatprep.subr.mxu0 0.0
    %5957 = vmatpush1.msra.mxu0 %v4984
    %5958 = vmatprep.subr.mxu0 0.0
    %5959 = vmatpush1.msra.mxu0 0.0
    %5960 = vmatprep.subr.mxu0 0.0
    %5961 = vmatpush1.msra.mxu0 0.0
    %5962 = vmatprep.subr.mxu0 0.0
    %5963 = vmatpush1.msra.mxu0 0.0
    %5964 = vmatprep.subr.mxu0 0.0
    %5965 = vmatpush1.msra.mxu0 0.0
    %5966 = vmatprep.subr.mxu0 0.0
    %5967 = vmatpush1.msra.mxu0 0.0
    %5968 = vmatprep.subr.mxu0 0.0
    %5969 = vmatpush1.msra.mxu0 0.0
    %5970 = vmatprep.subr.mxu0 0.0
    %5971 = vmatpush1.msra.mxu0 0.0
    %5972 = vmatprep.subr.mxu0 0.0
    %5973 = vmatpush1.msra.mxu0 0.0
    %5974 = vmatprep.subr.mxu0 0.0
    %5975 = vmatpush1.msra.mxu0 0.0
    %5976 = vmatprep.subr.mxu0 0.0
    %5977 = vmatpush1.msra.mxu0 0.0
    %5978 = vmatprep.subr.mxu0 0.0
    %5979 = vmatpush1.msra.mxu0 0.0
    %5980 = vmatprep.subr.mxu0 0.0
    %5981 = vmatpush1.msra.mxu0 0.0
    %5982 = vmatprep.subr.mxu0 0.0
    %5983 = vmatpush1.msra.mxu0 0.0
    %5984 = vmatprep.subr.mxu0 0.0
    %5985 = vmatpush1.msra.mxu0 0.0
    %5986 = vmatprep.subr.mxu0 0.0
    %5987 = vmatpush1.msra.mxu0 0.0
    %5988 = vmatprep.subr.mxu0 0.0
    %5989 = vmatpush1.msra.mxu0 0.0
    %5990 = vmatprep.subr.mxu0 0.0
    %5991 = vmatpush1.msra.mxu0 0.0
    %5992 = vmatprep.subr.mxu0 0.0
    %5993 = vmatpush1.msra.mxu0 0.0
    %5994 = vmatprep.subr.mxu0 0.0
    %5995 = vmatpush1.msra.mxu0 0.0
    %5996 = vmatprep.subr.mxu0 0.0
    %5997 = vmatpush1.msra.mxu0 0.0
    %5998 = vmatprep.subr.mxu0 0.0
    %5999 = vmatpush1.msra.mxu0 0.0
    %6000 = vmatprep.subr.mxu0 0.0
    %6001 = vmatpush1.msra.mxu0 0.0
    %6002 = vmatprep.subr.mxu0 0.0
    %6003 = vmatpush1.msra.mxu0 0.0
    %6004 = vmatprep.subr.mxu0 0.0
    %6005 = vmatpush1.msra.mxu0 0.0
    %6006 = vmatprep.subr.mxu0 0.0
    %6007 = vmatpush1.msra.mxu0 0.0
    %6008 = vmatprep.subr.mxu0 0.0
    %6009 = vmatpush1.msra.mxu0 0.0
    %6010 = vmatprep.subr.mxu0 0.0
    %6011 = vmatpush1.msra.mxu0 0.0
    %6012 = vmatprep.subr.mxu0 0.0
    %6013 = vmatpush1.msra.mxu0 0.0
    %6014 = vmatprep.mubr.f32.mxu0 0.0
    %6015 = vmatmul.mubr.f32.gmra.mrb[0].mxu0 %v5948
    %v6016 = vpop.f32.mrb[0].mxu0
    %v6017 = vadd.f32 %v5000, %v6016
    %v6018 = vpop.f32.mrb[0].mxu0
    %6019 = vdwg.mxu0
    %6020 = vmatprep.subr.mxu0 0.0
    %6021 = vmatpush1.msra.mxu0 %v4985
    %6022 = vmatprep.subr.mxu0 0.0
    %6023 = vmatpush1.msra.mxu0 %v4986
    %6024 = vmatprep.subr.mxu0 0.0
    %6025 = vmatpush1.msra.mxu0 %v4987
    %6026 = vmatprep.subr.mxu0 0.0
    %6027 = vmatpush1.msra.mxu0 %v4988
    %6028 = vmatprep.subr.mxu0 0.0
    %6029 = vmatpush1.msra.mxu0 0.0
    %6030 = vmatprep.subr.mxu0 0.0
    %6031 = vmatpush1.msra.mxu0 0.0
    %6032 = vmatprep.subr.mxu0 0.0
    %6033 = vmatpush1.msra.mxu0 0.0
    %6034 = vmatprep.subr.mxu0 0.0
    %6035 = vmatpush1.msra.mxu0 0.0
    %6036 = vmatprep.subr.mxu0 0.0
    %6037 = vmatpush1.msra.mxu0 0.0
    %6038 = vmatprep.subr.mxu0 0.0
    %6039 = vmatpush1.msra.mxu0 0.0
    %6040 = vmatprep.subr.mxu0 0.0
    %6041 = vmatpush1.msra.mxu0 0.0
    %6042 = vmatprep.subr.mxu0 0.0
    %6043 = vmatpush1.msra.mxu0 0.0
    %6044 = vmatprep.subr.mxu0 0.0
    %6045 = vmatpush1.msra.mxu0 0.0
    %6046 = vmatprep.subr.mxu0 0.0
    %6047 = vmatpush1.msra.mxu0 0.0
    %6048 = vmatprep.subr.mxu0 0.0
    %6049 = vmatpush1.msra.mxu0 0.0
    %6050 = vmatprep.subr.mxu0 0.0
    %6051 = vmatpush1.msra.mxu0 0.0
    %6052 = vmatprep.subr.mxu0 0.0
    %6053 = vmatpush1.msra.mxu0 0.0
    %6054 = vmatprep.subr.mxu0 0.0
    %6055 = vmatpush1.msra.mxu0 0.0
    %6056 = vmatprep.subr.mxu0 0.0
    %6057 = vmatpush1.msra.mxu0 0.0
    %6058 = vmatprep.subr.mxu0 0.0
    %6059 = vmatpush1.msra.mxu0 0.0
    %6060 = vmatprep.subr.mxu0 0.0
    %6061 = vmatpush1.msra.mxu0 0.0
    %6062 = vmatprep.subr.mxu0 0.0
    %6063 = vmatpush1.msra.mxu0 0.0
    %6064 = vmatprep.subr.mxu0 0.0
    %6065 = vmatpush1.msra.mxu0 0.0
    %6066 = vmatprep.subr.mxu0 0.0
    %6067 = vmatpush1.msra.mxu0 0.0
    %6068 = vmatprep.subr.mxu0 0.0
    %6069 = vmatpush1.msra.mxu0 0.0
    %6070 = vmatprep.subr.mxu0 0.0
    %6071 = vmatpush1.msra.mxu0 0.0
    %6072 = vmatprep.subr.mxu0 0.0
    %6073 = vmatpush1.msra.mxu0 0.0
    %6074 = vmatprep.subr.mxu0 0.0
    %6075 = vmatpush1.msra.mxu0 0.0
    %6076 = vmatprep.subr.mxu0 0.0
    %6077 = vmatpush1.msra.mxu0 0.0
    %6078 = vmatprep.subr.mxu0 0.0
    %6079 = vmatpush1.msra.mxu0 0.0
    %6080 = vmatprep.subr.mxu0 0.0
    %6081 = vmatpush1.msra.mxu0 0.0
    %6082 = vmatprep.subr.mxu0 0.0
    %6083 = vmatpush1.msra.mxu0 0.0
    %6084 = vmatprep.mubr.f32.mxu0 0.0
    %6085 = vmatmul.mubr.f32.gmra.mrb[0].mxu0 %v5948
    %v6086 = vpop.f32.mrb[0].mxu0
    %v6087 = vadd.f32 %v5076, %v6086
    %v6088 = vpop.f32.mrb[0].mxu0
    %6089 = vdwg.mxu0
    %6090 = vmatprep.subr.mxu0 0.0
    %6091 = vmatpush1.msra.mxu0 %v4989
    %6092 = vmatprep.subr.mxu0 0.0
    %6093 = vmatpush1.msra.mxu0 %v4990
    %6094 = vmatprep.subr.mxu0 0.0
    %6095 = vmatpush1.msra.mxu0 %v4991
    %6096 = vmatprep.subr.mxu0 0.0
    %6097 = vmatpush1.msra.mxu0 %v4992
    %6098 = vmatprep.subr.mxu0 0.0
    %6099 = vmatpush1.msra.mxu0 0.0
    %6100 = vmatprep.subr.mxu0 0.0
    %6101 = vmatpush1.msra.mxu0 0.0
    %6102 = vmatprep.subr.mxu0 0.0
    %6103 = vmatpush1.msra.mxu0 0.0
    %6104 = vmatprep.subr.mxu0 0.0
    %6105 = vmatpush1.msra.mxu0 0.0
    %6106 = vmatprep.subr.mxu0 0.0
    %6107 = vmatpush1.msra.mxu0 0.0
    %6108 = vmatprep.subr.mxu0 0.0
    %6109 = vmatpush1.msra.mxu0 0.0
    %6110 = vmatprep.subr.mxu0 0.0
    %6111 = vmatpush1.msra.mxu0 0.0
    %6112 = vmatprep.subr.mxu0 0.0
    %6113 = vmatpush1.msra.mxu0 0.0
    %6114 = vmatprep.subr.mxu0 0.0
    %6115 = vmatpush1.msra.mxu0 0.0
    %6116 = vmatprep.subr.mxu0 0.0
    %6117 = vmatpush1.msra.mxu0 0.0
    %6118 = vmatprep.subr.mxu0 0.0
    %6119 = vmatpush1.msra.mxu0 0.0
    %6120 = vmatprep.subr.mxu0 0.0
    %6121 = vmatpush1.msra.mxu0 0.0
    %6122 = vmatprep.subr.mxu0 0.0
    %6123 = vmatpush1.msra.mxu0 0.0
    %6124 = vmatprep.subr.mxu0 0.0
    %6125 = vmatpush1.msra.mxu0 0.0
    %6126 = vmatprep.subr.mxu0 0.0
    %6127 = vmatpush1.msra.mxu0 0.0
    %6128 = vmatprep.subr.mxu0 0.0
    %6129 = vmatpush1.msra.mxu0 0.0
    %6130 = vmatprep.subr.mxu0 0.0
    %6131 = vmatpush1.msra.mxu0 0.0
    %6132 = vmatprep.subr.mxu0 0.0
    %6133 = vmatpush1.msra.mxu0 0.0
    %6134 = vmatprep.subr.mxu0 0.0
    %6135 = vmatpush1.msra.mxu0 0.0
    %6136 = vmatprep.subr.mxu0 0.0
    %6137 = vmatpush1.msra.mxu0 0.0
    %6138 = vmatprep.subr.mxu0 0.0
    %6139 = vmatpush1.msra.mxu0 0.0
    %6140 = vmatprep.subr.mxu0 0.0
    %6141 = vmatpush1.msra.mxu0 0.0
    %6142 = vmatprep.subr.mxu0 0.0
    %6143 = vmatpush1.msra.mxu0 0.0
    %6144 = vmatprep.subr.mxu0 0.0
    %6145 = vmatpush1.msra.mxu0 0.0
    %6146 = vmatprep.subr.mxu0 0.0
    %6147 = vmatpush1.msra.mxu0 0.0
    %6148 = vmatprep.subr.mxu0 0.0
    %6149 = vmatpush1.msra.mxu0 0.0
    %6150 = vmatprep.subr.mxu0 0.0
    %6151 = vmatpush1.msra.mxu0 0.0
    %6152 = vmatprep.subr.mxu0 0.0
    %6153 = vmatpush1.msra.mxu0 0.0
    %6154 = vmatprep.mubr.f32.mxu0 0.0
    %6155 = vmatmul.mubr.f32.gmra.mrb[0].mxu0 %v5948
    %v6156 = vpop.f32.mrb[0].mxu0
    %v6157 = vadd.f32 %v5152, %v6156
    %v6158 = vpop.f32.mrb[0].mxu0
    %6159 = vdwg.mxu0
    %v6160 = vadd.f32 %v4611, %v6017
    %v6161 = vxor.u32 %v6160, 2147483648
    %v6162 = vmul.f32 %v6161, 1.442695
    %v6163 = vpow.pop %v6162
    %v6164 = vadd.f32 %v6163, 1.0
    %v6165 = vrcp.pop %v6164
    %v6166 = vmul.f32 1.0, %v6165
    %v6167 = vadd.f32 %v4767, %v6087
    %v6168 = vxor.u32 %v6167, 2147483648
    %v6169 = vmul.f32 %v6168, 1.442695
    %v6170 = vpow.pop %v6169
    %v6171 = vadd.f32 %v6170, 1.0
    %v6172 = vrcp.pop %v6171
    %v6173 = vmul.f32 1.0, %v6172
    %v6174 = vmul.f32 %v6166, %v6157
    %v6175 = vadd.f32 %v4923, %v6174
    %v6176 = vtanh.pop %v6175
    %v6177 = vsub.f32 1.0, %v6173
    %v6178 = vmul.f32 %v6177, %v6176
    %v6179 = vmul.f32 %v6173, %v5946
    %v6180 = vadd.f32 %v6178, %v6179
    %v6182 = vsel %vm753, %v6180, 0
    %6184 = vmatprep.subr.mxu0 0.0
    %6185 = vmatpush1.msra.mxu0 %v4981
    %6186 = vmatprep.subr.mxu0 0.0
    %6187 = vmatpush1.msra.mxu0 %v4982
    %6188 = vmatprep.subr.mxu0 0.0
    %6189 = vmatpush1.msra.mxu0 %v4983
    %6190 = vmatprep.subr.mxu0 0.0
    %6191 = vmatpush1.msra.mxu0 %v4984
    %6192 = vmatprep.subr.mxu0 0.0
    %6193 = vmatpush1.msra.mxu0 0.0
    %6194 = vmatprep.subr.mxu0 0.0
    %6195 = vmatpush1.msra.mxu0 0.0
    %6196 = vmatprep.subr.mxu0 0.0
    %6197 = vmatpush1.msra.mxu0 0.0
    %6198 = vmatprep.subr.mxu0 0.0
    %6199 = vmatpush1.msra.mxu0 0.0
    %6200 = vmatprep.subr.mxu0 0.0
    %6201 = vmatpush1.msra.mxu0 0.0
    %6202 = vmatprep.subr.mxu0 0.0
    %6203 = vmatpush1.msra.mxu0 0.0
    %6204 = vmatprep.subr.mxu0 0.0
    %6205 = vmatpush1.msra.mxu0 0.0
    %6206 = vmatprep.subr.mxu0 0.0
    %6207 = vmatpush1.msra.mxu0 0.0
    %6208 = vmatprep.subr.mxu0 0.0
    %6209 = vmatpush1.msra.mxu0 0.0
    %6210 = vmatprep.subr.mxu0 0.0
    %6211 = vmatpush1.msra.mxu0 0.0
    %6212 = vmatprep.subr.mxu0 0.0
    %6213 = vmatpush1.msra.mxu0 0.0
    %6214 = vmatprep.subr.mxu0 0.0
    %6215 = vmatpush1.msra.mxu0 0.0
    %6216 = vmatprep.subr.mxu0 0.0
    %6217 = vmatpush1.msra.mxu0 0.0
    %6218 = vmatprep.subr.mxu0 0.0
    %6219 = vmatpush1.msra.mxu0 0.0
    %6220 = vmatprep.subr.mxu0 0.0
    %6221 = vmatpush1.msra.mxu0 0.0
    %6222 = vmatprep.subr.mxu0 0.0
    %6223 = vmatpush1.msra.mxu0 0.0
    %6224 = vmatprep.subr.mxu0 0.0
    %6225 = vmatpush1.msra.mxu0 0.0
    %6226 = vmatprep.subr.mxu0 0.0
    %6227 = vmatpush1.msra.mxu0 0.0
    %6228 = vmatprep.subr.mxu0 0.0
    %6229 = vmatpush1.msra.mxu0 0.0
    %6230 = vmatprep.subr.mxu0 0.0
    %6231 = vmatpush1.msra.mxu0 0.0
    %6232 = vmatprep.subr.mxu0 0.0
    %6233 = vmatpush1.msra.mxu0 0.0
    %6234 = vmatprep.subr.mxu0 0.0
    %6235 = vmatpush1.msra.mxu0 0.0
    %6236 = vmatprep.subr.mxu0 0.0
    %6237 = vmatpush1.msra.mxu0 0.0
    %6238 = vmatprep.subr.mxu0 0.0
    %6239 = vmatpush1.msra.mxu0 0.0
    %6240 = vmatprep.subr.mxu0 0.0
    %6241 = vmatpush1.msra.mxu0 0.0
    %6242 = vmatprep.subr.mxu0 0.0
    %6243 = vmatpush1.msra.mxu0 0.0
    %6244 = vmatprep.subr.mxu0 0.0
    %6245 = vmatpush1.msra.mxu0 0.0
    %6246 = vmatprep.subr.mxu0 0.0
    %6247 = vmatpush1.msra.mxu0 0.0
    %6248 = vmatprep.mubr.f32.mxu0 0.0
    %6249 = vmatmul.mubr.f32.gmra.mrb[0].mxu0 %v6182
    %v6250 = vpop.f32.mrb[0].mxu0
    %v6251 = vadd.f32 %v5000, %v6250
    %v6252 = vpop.f32.mrb[0].mxu0
    %6253 = vdwg.mxu0
    %6254 = vmatprep.subr.mxu0 0.0
    %6255 = vmatpush1.msra.mxu0 %v4985
    %6256 = vmatprep.subr.mxu0 0.0
    %6257 = vmatpush1.msra.mxu0 %v4986
    %6258 = vmatprep.subr.mxu0 0.0
    %6259 = vmatpush1.msra.mxu0 %v4987
    %6260 = vmatprep.subr.mxu0 0.0
    %6261 = vmatpush1.msra.mxu0 %v4988
    %6262 = vmatprep.subr.mxu0 0.0
    %6263 = vmatpush1.msra.mxu0 0.0
    %6264 = vmatprep.subr.mxu0 0.0
    %6265 = vmatpush1.msra.mxu0 0.0
    %6266 = vmatprep.subr.mxu0 0.0
    %6267 = vmatpush1.msra.mxu0 0.0
    %6268 = vmatprep.subr.mxu0 0.0
    %6269 = vmatpush1.msra.mxu0 0.0
    %6270 = vmatprep.subr.mxu0 0.0
    %6271 = vmatpush1.msra.mxu0 0.0
    %6272 = vmatprep.subr.mxu0 0.0
    %6273 = vmatpush1.msra.mxu0 0.0
    %6274 = vmatprep.subr.mxu0 0.0
    %6275 = vmatpush1.msra.mxu0 0.0
    %6276 = vmatprep.subr.mxu0 0.0
    %6277 = vmatpush1.msra.mxu0 0.0
    %6278 = vmatprep.subr.mxu0 0.0
    %6279 = vmatpush1.msra.mxu0 0.0
    %6280 = vmatprep.subr.mxu0 0.0
    %6281 = vmatpush1.msra.mxu0 0.0
    %6282 = vmatprep.subr.mxu0 0.0
    %6283 = vmatpush1.msra.mxu0 0.0
    %6284 = vmatprep.subr.mxu0 0.0
    %6285 = vmatpush1.msra.mxu0 0.0
    %6286 = vmatprep.subr.mxu0 0.0
    %6287 = vmatpush1.msra.mxu0 0.0
    %6288 = vmatprep.subr.mxu0 0.0
    %6289 = vmatpush1.msra.mxu0 0.0
    %6290 = vmatprep.subr.mxu0 0.0
    %6291 = vmatpush1.msra.mxu0 0.0
    %6292 = vmatprep.subr.mxu0 0.0
    %6293 = vmatpush1.msra.mxu0 0.0
    %6294 = vmatprep.subr.mxu0 0.0
    %6295 = vmatpush1.msra.mxu0 0.0
    %6296 = vmatprep.subr.mxu0 0.0
    %6297 = vmatpush1.msra.mxu0 0.0
    %6298 = vmatprep.subr.mxu0 0.0
    %6299 = vmatpush1.msra.mxu0 0.0
    %6300 = vmatprep.subr.mxu0 0.0
    %6301 = vmatpush1.msra.mxu0 0.0
    %6302 = vmatprep.subr.mxu0 0.0
    %6303 = vmatpush1.msra.mxu0 0.0
    %6304 = vmatprep.subr.mxu0 0.0
    %6305 = vmatpush1.msra.mxu0 0.0
    %6306 = vmatprep.subr.mxu0 0.0
    %6307 = vmatpush1.msra.mxu0 0.0
    %6308 = vmatprep.subr.mxu0 0.0
    %6309 = vmatpush1.msra.mxu0 0.0
    %6310 = vmatprep.subr.mxu0 0.0
    %6311 = vmatpush1.msra.mxu0 0.0
    %6312 = vmatprep.subr.mxu0 0.0
    %6313 = vmatpush1.msra.mxu0 0.0
    %6314 = vmatprep.subr.mxu0 0.0
    %6315 = vmatpush1.msra.mxu0 0.0
    %6316 = vmatprep.subr.mxu0 0.0
    %6317 = vmatpush1.msra.mxu0 0.0
    %6318 = vmatprep.mubr.f32.mxu0 0.0
    %6319 = vmatmul.mubr.f32.gmra.mrb[0].mxu0 %v6182
    %v6320 = vpop.f32.mrb[0].mxu0
    %v6321 = vadd.f32 %v5076, %v6320
    %v6322 = vpop.f32.mrb[0].mxu0
    %6323 = vdwg.mxu0
    %6324 = vmatprep.subr.mxu0 0.0
    %6325 = vmatpush1.msra.mxu0 %v4989
    %6326 = vmatprep.subr.mxu0 0.0
    %6327 = vmatpush1.msra.mxu0 %v4990
    %6328 = vmatprep.subr.mxu0 0.0
    %6329 = vmatpush1.msra.mxu0 %v4991
    %6330 = vmatprep.subr.mxu0 0.0
    %6331 = vmatpush1.msra.mxu0 %v4992
    %6332 = vmatprep.subr.mxu0 0.0
    %6333 = vmatpush1.msra.mxu0 0.0
    %6334 = vmatprep.subr.mxu0 0.0
    %6335 = vmatpush1.msra.mxu0 0.0
    %6336 = vmatprep.subr.mxu0 0.0
    %6337 = vmatpush1.msra.mxu0 0.0
    %6338 = vmatprep.subr.mxu0 0.0
    %6339 = vmatpush1.msra.mxu0 0.0
    %6340 = vmatprep.subr.mxu0 0.0
    %6341 = vmatpush1.msra.mxu0 0.0
    %6342 = vmatprep.subr.mxu0 0.0
    %6343 = vmatpush1.msra.mxu0 0.0
    %6344 = vmatprep.subr.mxu0 0.0
    %6345 = vmatpush1.msra.mxu0 0.0
    %6346 = vmatprep.subr.mxu0 0.0
    %6347 = vmatpush1.msra.mxu0 0.0
    %6348 = vmatprep.subr.mxu0 0.0
    %6349 = vmatpush1.msra.mxu0 0.0
    %6350 = vmatprep.subr.mxu0 0.0
    %6351 = vmatpush1.msra.mxu0 0.0
    %6352 = vmatprep.subr.mxu0 0.0
    %6353 = vmatpush1.msra.mxu0 0.0
    %6354 = vmatprep.subr.mxu0 0.0
    %6355 = vmatpush1.msra.mxu0 0.0
    %6356 = vmatprep.subr.mxu0 0.0
    %6357 = vmatpush1.msra.mxu0 0.0
    %6358 = vmatprep.subr.mxu0 0.0
    %6359 = vmatpush1.msra.mxu0 0.0
    %6360 = vmatprep.subr.mxu0 0.0
    %6361 = vmatpush1.msra.mxu0 0.0
    %6362 = vmatprep.subr.mxu0 0.0
    %6363 = vmatpush1.msra.mxu0 0.0
    %6364 = vmatprep.subr.mxu0 0.0
    %6365 = vmatpush1.msra.mxu0 0.0
    %6366 = vmatprep.subr.mxu0 0.0
    %6367 = vmatpush1.msra.mxu0 0.0
    %6368 = vmatprep.subr.mxu0 0.0
    %6369 = vmatpush1.msra.mxu0 0.0
    %6370 = vmatprep.subr.mxu0 0.0
    %6371 = vmatpush1.msra.mxu0 0.0
    %6372 = vmatprep.subr.mxu0 0.0
    %6373 = vmatpush1.msra.mxu0 0.0
    %6374 = vmatprep.subr.mxu0 0.0
    %6375 = vmatpush1.msra.mxu0 0.0
    %6376 = vmatprep.subr.mxu0 0.0
    %6377 = vmatpush1.msra.mxu0 0.0
    %6378 = vmatprep.subr.mxu0 0.0
    %6379 = vmatpush1.msra.mxu0 0.0
    %6380 = vmatprep.subr.mxu0 0.0
    %6381 = vmatpush1.msra.mxu0 0.0
    %6382 = vmatprep.subr.mxu0 0.0
    %6383 = vmatpush1.msra.mxu0 0.0
    %6384 = vmatprep.subr.mxu0 0.0
    %6385 = vmatpush1.msra.mxu0 0.0
    %6386 = vmatprep.subr.mxu0 0.0
    %6387 = vmatpush1.msra.mxu0 0.0
    %6388 = vmatprep.mubr.f32.mxu0 0.0
    %6389 = vmatmul.mubr.f32.gmra.mrb[0].mxu0 %v6182
    %v6390 = vpop.f32.mrb[0].mxu0
    %v6391 = vadd.f32 %v5152, %v6390
    %v6392 = vpop.f32.mrb[0].mxu0
    %6393 = vdwg.mxu0
    %v6394 = vadd.f32 %v4616, %v6251
    %v6395 = vxor.u32 %v6394, 2147483648
    %v6396 = vmul.f32 %v6395, 1.442695
    %v6397 = vpow.pop %v6396
    %v6398 = vadd.f32 %v6397, 1.0
    %v6399 = vrcp.pop %v6398
    %v6400 = vmul.f32 1.0, %v6399
    %v6401 = vadd.f32 %v4772, %v6321
    %v6402 = vxor.u32 %v6401, 2147483648
    %v6403 = vmul.f32 %v6402, 1.442695
    %v6404 = vpow.pop %v6403
    %v6405 = vadd.f32 %v6404, 1.0
    %v6406 = vrcp.pop %v6405
    %v6407 = vmul.f32 1.0, %v6406
    %v6408 = vmul.f32 %v6400, %v6391
    %v6409 = vadd.f32 %v4928, %v6408
    %v6410 = vtanh.pop %v6409
    %v6411 = vsub.f32 1.0, %v6407
    %v6412 = vmul.f32 %v6411, %v6410
    %v6413 = vmul.f32 %v6407, %v6180
    %v6414 = vadd.f32 %v6412, %v6413
    %v6416 = vsel %vm753, %v6414, 0
    %6418 = vmatprep.subr.mxu0 0.0
    %6419 = vmatpush1.msra.mxu0 %v4981
    %6420 = vmatprep.subr.mxu0 0.0
    %6421 = vmatpush1.msra.mxu0 %v4982
    %6422 = vmatprep.subr.mxu0 0.0
    %6423 = vmatpush1.msra.mxu0 %v4983
    %6424 = vmatprep.subr.mxu0 0.0
    %6425 = vmatpush1.msra.mxu0 %v4984
    %6426 = vmatprep.subr.mxu0 0.0
    %6427 = vmatpush1.msra.mxu0 0.0
    %6428 = vmatprep.subr.mxu0 0.0
    %6429 = vmatpush1.msra.mxu0 0.0
    %6430 = vmatprep.subr.mxu0 0.0
    %6431 = vmatpush1.msra.mxu0 0.0
    %6432 = vmatprep.subr.mxu0 0.0
    %6433 = vmatpush1.msra.mxu0 0.0
    %6434 = vmatprep.subr.mxu0 0.0
    %6435 = vmatpush1.msra.mxu0 0.0
    %6436 = vmatprep.subr.mxu0 0.0
    %6437 = vmatpush1.msra.mxu0 0.0
    %6438 = vmatprep.subr.mxu0 0.0
    %6439 = vmatpush1.msra.mxu0 0.0
    %6440 = vmatprep.subr.mxu0 0.0
    %6441 = vmatpush1.msra.mxu0 0.0
    %6442 = vmatprep.subr.mxu0 0.0
    %6443 = vmatpush1.msra.mxu0 0.0
    %6444 = vmatprep.subr.mxu0 0.0
    %6445 = vmatpush1.msra.mxu0 0.0
    %6446 = vmatprep.subr.mxu0 0.0
    %6447 = vmatpush1.msra.mxu0 0.0
    %6448 = vmatprep.subr.mxu0 0.0
    %6449 = vmatpush1.msra.mxu0 0.0
    %6450 = vmatprep.subr.mxu0 0.0
    %6451 = vmatpush1.msra.mxu0 0.0
    %6452 = vmatprep.subr.mxu0 0.0
    %6453 = vmatpush1.msra.mxu0 0.0
    %6454 = vmatprep.subr.mxu0 0.0
    %6455 = vmatpush1.msra.mxu0 0.0
    %6456 = vmatprep.subr.mxu0 0.0
    %6457 = vmatpush1.msra.mxu0 0.0
    %6458 = vmatprep.subr.mxu0 0.0
    %6459 = vmatpush1.msra.mxu0 0.0
    %6460 = vmatprep.subr.mxu0 0.0
    %6461 = vmatpush1.msra.mxu0 0.0
    %6462 = vmatprep.subr.mxu0 0.0
    %6463 = vmatpush1.msra.mxu0 0.0
    %6464 = vmatprep.subr.mxu0 0.0
    %6465 = vmatpush1.msra.mxu0 0.0
    %6466 = vmatprep.subr.mxu0 0.0
    %6467 = vmatpush1.msra.mxu0 0.0
    %6468 = vmatprep.subr.mxu0 0.0
    %6469 = vmatpush1.msra.mxu0 0.0
    %6470 = vmatprep.subr.mxu0 0.0
    %6471 = vmatpush1.msra.mxu0 0.0
    %6472 = vmatprep.subr.mxu0 0.0
    %6473 = vmatpush1.msra.mxu0 0.0
    %6474 = vmatprep.subr.mxu0 0.0
    %6475 = vmatpush1.msra.mxu0 0.0
    %6476 = vmatprep.subr.mxu0 0.0
    %6477 = vmatpush1.msra.mxu0 0.0
    %6478 = vmatprep.subr.mxu0 0.0
    %6479 = vmatpush1.msra.mxu0 0.0
    %6480 = vmatprep.subr.mxu0 0.0
    %6481 = vmatpush1.msra.mxu0 0.0
    %6482 = vmatprep.mubr.f32.mxu0 0.0
    %6483 = vmatmul.mubr.f32.gmra.mrb[0].mxu0 %v6416
    %v6484 = vpop.f32.mrb[0].mxu0
    %v6485 = vadd.f32 %v5000, %v6484
    %v6486 = vpop.f32.mrb[0].mxu0
    %6487 = vdwg.mxu0
    %6488 = vmatprep.subr.mxu0 0.0
    %6489 = vmatpush1.msra.mxu0 %v4985
    %6490 = vmatprep.subr.mxu0 0.0
    %6491 = vmatpush1.msra.mxu0 %v4986
    %6492 = vmatprep.subr.mxu0 0.0
    %6493 = vmatpush1.msra.mxu0 %v4987
    %6494 = vmatprep.subr.mxu0 0.0
    %6495 = vmatpush1.msra.mxu0 %v4988
    %6496 = vmatprep.subr.mxu0 0.0
    %6497 = vmatpush1.msra.mxu0 0.0
    %6498 = vmatprep.subr.mxu0 0.0
    %6499 = vmatpush1.msra.mxu0 0.0
    %6500 = vmatprep.subr.mxu0 0.0
    %6501 = vmatpush1.msra.mxu0 0.0
    %6502 = vmatprep.subr.mxu0 0.0
    %6503 = vmatpush1.msra.mxu0 0.0
    %6504 = vmatprep.subr.mxu0 0.0
    %6505 = vmatpush1.msra.mxu0 0.0
    %6506 = vmatprep.subr.mxu0 0.0
    %6507 = vmatpush1.msra.mxu0 0.0
    %6508 = vmatprep.subr.mxu0 0.0
    %6509 = vmatpush1.msra.mxu0 0.0
    %6510 = vmatprep.subr.mxu0 0.0
    %6511 = vmatpush1.msra.mxu0 0.0
    %6512 = vmatprep.subr.mxu0 0.0
    %6513 = vmatpush1.msra.mxu0 0.0
    %6514 = vmatprep.subr.mxu0 0.0
    %6515 = vmatpush1.msra.mxu0 0.0
    %6516 = vmatprep.subr.mxu0 0.0
    %6517 = vmatpush1.msra.mxu0 0.0
    %6518 = vmatprep.subr.mxu0 0.0
    %6519 = vmatpush1.msra.mxu0 0.0
    %6520 = vmatprep.subr.mxu0 0.0
    %6521 = vmatpush1.msra.mxu0 0.0
    %6522 = vmatprep.subr.mxu0 0.0
    %6523 = vmatpush1.msra.mxu0 0.0
    %6524 = vmatprep.subr.mxu0 0.0
    %6525 = vmatpush1.msra.mxu0 0.0
    %6526 = vmatprep.subr.mxu0 0.0
    %6527 = vmatpush1.msra.mxu0 0.0
    %6528 = vmatprep.subr.mxu0 0.0
    %6529 = vmatpush1.msra.mxu0 0.0
    %6530 = vmatprep.subr.mxu0 0.0
    %6531 = vmatpush1.msra.mxu0 0.0
    %6532 = vmatprep.subr.mxu0 0.0
    %6533 = vmatpush1.msra.mxu0 0.0
    %6534 = vmatprep.subr.mxu0 0.0
    %6535 = vmatpush1.msra.mxu0 0.0
    %6536 = vmatprep.subr.mxu0 0.0
    %6537 = vmatpush1.msra.mxu0 0.0
    %6538 = vmatprep.subr.mxu0 0.0
    %6539 = vmatpush1.msra.mxu0 0.0
    %6540 = vmatprep.subr.mxu0 0.0
    %6541 = vmatpush1.msra.mxu0 0.0
    %6542 = vmatprep.subr.mxu0 0.0
    %6543 = vmatpush1.msra.mxu0 0.0
    %6544 = vmatprep.subr.mxu0 0.0
    %6545 = vmatpush1.msra.mxu0 0.0
    %6546 = vmatprep.subr.mxu0 0.0
    %6547 = vmatpush1.msra.mxu0 0.0
    %6548 = vmatprep.subr.mxu0 0.0
    %6549 = vmatpush1.msra.mxu0 0.0
    %6550 = vmatprep.subr.mxu0 0.0
    %6551 = vmatpush1.msra.mxu0 0.0
    %6552 = vmatprep.mubr.f32.mxu0 0.0
    %6553 = vmatmul.mubr.f32.gmra.mrb[0].mxu0 %v6416
    %v6554 = vpop.f32.mrb[0].mxu0
    %v6555 = vadd.f32 %v5076, %v6554
    %v6556 = vpop.f32.mrb[0].mxu0
    %6557 = vdwg.mxu0
    %6558 = vmatprep.subr.mxu0 0.0
    %6559 = vmatpush1.msra.mxu0 %v4989
    %6560 = vmatprep.subr.mxu0 0.0
    %6561 = vmatpush1.msra.mxu0 %v4990
    %6562 = vmatprep.subr.mxu0 0.0
    %6563 = vmatpush1.msra.mxu0 %v4991
    %6564 = vmatprep.subr.mxu0 0.0
    %6565 = vmatpush1.msra.mxu0 %v4992
    %6566 = vmatprep.subr.mxu0 0.0
    %6567 = vmatpush1.msra.mxu0 0.0
    %6568 = vmatprep.subr.mxu0 0.0
    %6569 = vmatpush1.msra.mxu0 0.0
    %6570 = vmatprep.subr.mxu0 0.0
    %6571 = vmatpush1.msra.mxu0 0.0
    %6572 = vmatprep.subr.mxu0 0.0
    %6573 = vmatpush1.msra.mxu0 0.0
    %6574 = vmatprep.subr.mxu0 0.0
    %6575 = vmatpush1.msra.mxu0 0.0
    %6576 = vmatprep.subr.mxu0 0.0
    %6577 = vmatpush1.msra.mxu0 0.0
    %6578 = vmatprep.subr.mxu0 0.0
    %6579 = vmatpush1.msra.mxu0 0.0
    %6580 = vmatprep.subr.mxu0 0.0
    %6581 = vmatpush1.msra.mxu0 0.0
    %6582 = vmatprep.subr.mxu0 0.0
    %6583 = vmatpush1.msra.mxu0 0.0
    %6584 = vmatprep.subr.mxu0 0.0
    %6585 = vmatpush1.msra.mxu0 0.0
    %6586 = vmatprep.subr.mxu0 0.0
    %6587 = vmatpush1.msra.mxu0 0.0
    %6588 = vmatprep.subr.mxu0 0.0
    %6589 = vmatpush1.msra.mxu0 0.0
    %6590 = vmatprep.subr.mxu0 0.0
    %6591 = vmatpush1.msra.mxu0 0.0
    %6592 = vmatprep.subr.mxu0 0.0
    %6593 = vmatpush1.msra.mxu0 0.0
    %6594 = vmatprep.subr.mxu0 0.0
    %6595 = vmatpush1.msra.mxu0 0.0
    %6596 = vmatprep.subr.mxu0 0.0
    %6597 = vmatpush1.msra.mxu0 0.0
    %6598 = vmatprep.subr.mxu0 0.0
    %6599 = vmatpush1.msra.mxu0 0.0
    %6600 = vmatprep.subr.mxu0 0.0
    %6601 = vmatpush1.msra.mxu0 0.0
    %6602 = vmatprep.subr.mxu0 0.0
    %6603 = vmatpush1.msra.mxu0 0.0
    %6604 = vmatprep.subr.mxu0 0.0
    %6605 = vmatpush1.msra.mxu0 0.0
    %6606 = vmatprep.subr.mxu0 0.0
    %6607 = vmatpush1.msra.mxu0 0.0
    %6608 = vmatprep.subr.mxu0 0.0
    %6609 = vmatpush1.msra.mxu0 0.0
    %6610 = vmatprep.subr.mxu0 0.0
    %6611 = vmatpush1.msra.mxu0 0.0
    %6612 = vmatprep.subr.mxu0 0.0
    %6613 = vmatpush1.msra.mxu0 0.0
    %6614 = vmatprep.subr.mxu0 0.0
    %6615 = vmatpush1.msra.mxu0 0.0
    %6616 = vmatprep.subr.mxu0 0.0
    %6617 = vmatpush1.msra.mxu0 0.0
    %6618 = vmatprep.subr.mxu0 0.0
    %6619 = vmatpush1.msra.mxu0 0.0
    %6620 = vmatprep.subr.mxu0 0.0
    %6621 = vmatpush1.msra.mxu0 0.0
    %6622 = vmatprep.mubr.f32.mxu0 0.0
    %6623 = vmatmul.mubr.f32.gmra.mrb[0].mxu0 %v6416
    %v6624 = vpop.f32.mrb[0].mxu0
    %v6625 = vadd.f32 %v5152, %v6624
    %v6626 = vpop.f32.mrb[0].mxu0
    %6627 = vdwg.mxu0
    %v6628 = vadd.f32 %v4621, %v6485
    %v6629 = vxor.u32 %v6628, 2147483648
    %v6630 = vmul.f32 %v6629, 1.442695
    %v6631 = vpow.pop %v6630
    %v6632 = vadd.f32 %v6631, 1.0
    %v6633 = vrcp.pop %v6632
    %v6634 = vmul.f32 1.0, %v6633
    %v6635 = vadd.f32 %v4777, %v6555
    %v6636 = vxor.u32 %v6635, 2147483648
    %v6637 = vmul.f32 %v6636, 1.442695
    %v6638 = vpow.pop %v6637
    %v6639 = vadd.f32 %v6638, 1.0
    %v6640 = vrcp.pop %v6639
    %v6641 = vmul.f32 1.0, %v6640
    %v6642 = vmul.f32 %v6634, %v6625
    %v6643 = vadd.f32 %v4933, %v6642
    %v6644 = vtanh.pop %v6643
    %v6645 = vsub.f32 1.0, %v6641
    %v6646 = vmul.f32 %v6645, %v6644
    %v6647 = vmul.f32 %v6641, %v6414
    %v6648 = vadd.f32 %v6646, %v6647
    %v6650 = vsel %vm753, %v6648, 0
    %6652 = vmatprep.subr.mxu0 0.0
    %6653 = vmatpush1.msra.mxu0 %v4981
    %6654 = vmatprep.subr.mxu0 0.0
    %6655 = vmatpush1.msra.mxu0 %v4982
    %6656 = vmatprep.subr.mxu0 0.0
    %6657 = vmatpush1.msra.mxu0 %v4983
    %6658 = vmatprep.subr.mxu0 0.0
    %6659 = vmatpush1.msra.mxu0 %v4984
    %6660 = vmatprep.subr.mxu0 0.0
    %6661 = vmatpush1.msra.mxu0 0.0
    %6662 = vmatprep.subr.mxu0 0.0
    %6663 = vmatpush1.msra.mxu0 0.0
    %6664 = vmatprep.subr.mxu0 0.0
    %6665 = vmatpush1.msra.mxu0 0.0
    %6666 = vmatprep.subr.mxu0 0.0
    %6667 = vmatpush1.msra.mxu0 0.0
    %6668 = vmatprep.subr.mxu0 0.0
    %6669 = vmatpush1.msra.mxu0 0.0
    %6670 = vmatprep.subr.mxu0 0.0
    %6671 = vmatpush1.msra.mxu0 0.0
    %6672 = vmatprep.subr.mxu0 0.0
    %6673 = vmatpush1.msra.mxu0 0.0
    %6674 = vmatprep.subr.mxu0 0.0
    %6675 = vmatpush1.msra.mxu0 0.0
    %6676 = vmatprep.subr.mxu0 0.0
    %6677 = vmatpush1.msra.mxu0 0.0
    %6678 = vmatprep.subr.mxu0 0.0
    %6679 = vmatpush1.msra.mxu0 0.0
    %6680 = vmatprep.subr.mxu0 0.0
    %6681 = vmatpush1.msra.mxu0 0.0
    %6682 = vmatprep.subr.mxu0 0.0
    %6683 = vmatpush1.msra.mxu0 0.0
    %6684 = vmatprep.subr.mxu0 0.0
    %6685 = vmatpush1.msra.mxu0 0.0
    %6686 = vmatprep.subr.mxu0 0.0
    %6687 = vmatpush1.msra.mxu0 0.0
    %6688 = vmatprep.subr.mxu0 0.0
    %6689 = vmatpush1.msra.mxu0 0.0
    %6690 = vmatprep.subr.mxu0 0.0
    %6691 = vmatpush1.msra.mxu0 0.0
    %6692 = vmatprep.subr.mxu0 0.0
    %6693 = vmatpush1.msra.mxu0 0.0
    %6694 = vmatprep.subr.mxu0 0.0
    %6695 = vmatpush1.msra.mxu0 0.0
    %6696 = vmatprep.subr.mxu0 0.0
    %6697 = vmatpush1.msra.mxu0 0.0
    %6698 = vmatprep.subr.mxu0 0.0
    %6699 = vmatpush1.msra.mxu0 0.0
    %6700 = vmatprep.subr.mxu0 0.0
    %6701 = vmatpush1.msra.mxu0 0.0
    %6702 = vmatprep.subr.mxu0 0.0
    %6703 = vmatpush1.msra.mxu0 0.0
    %6704 = vmatprep.subr.mxu0 0.0
    %6705 = vmatpush1.msra.mxu0 0.0
    %6706 = vmatprep.subr.mxu0 0.0
    %6707 = vmatpush1.msra.mxu0 0.0
    %6708 = vmatprep.subr.mxu0 0.0
    %6709 = vmatpush1.msra.mxu0 0.0
    %6710 = vmatprep.subr.mxu0 0.0
    %6711 = vmatpush1.msra.mxu0 0.0
    %6712 = vmatprep.subr.mxu0 0.0
    %6713 = vmatpush1.msra.mxu0 0.0
    %6714 = vmatprep.subr.mxu0 0.0
    %6715 = vmatpush1.msra.mxu0 0.0
    %6716 = vmatprep.mubr.f32.mxu0 0.0
    %6717 = vmatmul.mubr.f32.gmra.mrb[0].mxu0 %v6650
    %v6718 = vpop.f32.mrb[0].mxu0
    %v6719 = vadd.f32 %v5000, %v6718
    %v6720 = vpop.f32.mrb[0].mxu0
    %6721 = vdwg.mxu0
    %6722 = vmatprep.subr.mxu0 0.0
    %6723 = vmatpush1.msra.mxu0 %v4985
    %6724 = vmatprep.subr.mxu0 0.0
    %6725 = vmatpush1.msra.mxu0 %v4986
    %6726 = vmatprep.subr.mxu0 0.0
    %6727 = vmatpush1.msra.mxu0 %v4987
    %6728 = vmatprep.subr.mxu0 0.0
    %6729 = vmatpush1.msra.mxu0 %v4988
    %6730 = vmatprep.subr.mxu0 0.0
    %6731 = vmatpush1.msra.mxu0 0.0
    %6732 = vmatprep.subr.mxu0 0.0
    %6733 = vmatpush1.msra.mxu0 0.0
    %6734 = vmatprep.subr.mxu0 0.0
    %6735 = vmatpush1.msra.mxu0 0.0
    %6736 = vmatprep.subr.mxu0 0.0
    %6737 = vmatpush1.msra.mxu0 0.0
    %6738 = vmatprep.subr.mxu0 0.0
    %6739 = vmatpush1.msra.mxu0 0.0
    %6740 = vmatprep.subr.mxu0 0.0
    %6741 = vmatpush1.msra.mxu0 0.0
    %6742 = vmatprep.subr.mxu0 0.0
    %6743 = vmatpush1.msra.mxu0 0.0
    %6744 = vmatprep.subr.mxu0 0.0
    %6745 = vmatpush1.msra.mxu0 0.0
    %6746 = vmatprep.subr.mxu0 0.0
    %6747 = vmatpush1.msra.mxu0 0.0
    %6748 = vmatprep.subr.mxu0 0.0
    %6749 = vmatpush1.msra.mxu0 0.0
    %6750 = vmatprep.subr.mxu0 0.0
    %6751 = vmatpush1.msra.mxu0 0.0
    %6752 = vmatprep.subr.mxu0 0.0
    %6753 = vmatpush1.msra.mxu0 0.0
    %6754 = vmatprep.subr.mxu0 0.0
    %6755 = vmatpush1.msra.mxu0 0.0
    %6756 = vmatprep.subr.mxu0 0.0
    %6757 = vmatpush1.msra.mxu0 0.0
    %6758 = vmatprep.subr.mxu0 0.0
    %6759 = vmatpush1.msra.mxu0 0.0
    %6760 = vmatprep.subr.mxu0 0.0
    %6761 = vmatpush1.msra.mxu0 0.0
    %6762 = vmatprep.subr.mxu0 0.0
    %6763 = vmatpush1.msra.mxu0 0.0
    %6764 = vmatprep.subr.mxu0 0.0
    %6765 = vmatpush1.msra.mxu0 0.0
    %6766 = vmatprep.subr.mxu0 0.0
    %6767 = vmatpush1.msra.mxu0 0.0
    %6768 = vmatprep.subr.mxu0 0.0
    %6769 = vmatpush1.msra.mxu0 0.0
    %6770 = vmatprep.subr.mxu0 0.0
    %6771 = vmatpush1.msra.mxu0 0.0
    %6772 = vmatprep.subr.mxu0 0.0
    %6773 = vmatpush1.msra.mxu0 0.0
    %6774 = vmatprep.subr.mxu0 0.0
    %6775 = vmatpush1.msra.mxu0 0.0
    %6776 = vmatprep.subr.mxu0 0.0
    %6777 = vmatpush1.msra.mxu0 0.0
    %6778 = vmatprep.subr.mxu0 0.0
    %6779 = vmatpush1.msra.mxu0 0.0
    %6780 = vmatprep.subr.mxu0 0.0
    %6781 = vmatpush1.msra.mxu0 0.0
    %6782 = vmatprep.subr.mxu0 0.0
    %6783 = vmatpush1.msra.mxu0 0.0
    %6784 = vmatprep.subr.mxu0 0.0
    %6785 = vmatpush1.msra.mxu0 0.0
    %6786 = vmatprep.mubr.f32.mxu0 0.0
    %6787 = vmatmul.mubr.f32.gmra.mrb[0].mxu0 %v6650
    %v6788 = vpop.f32.mrb[0].mxu0
    %v6789 = vadd.f32 %v5076, %v6788
    %v6790 = vpop.f32.mrb[0].mxu0
    %6791 = vdwg.mxu0
    %6792 = vmatprep.subr.mxu0 0.0
    %6793 = vmatpush1.msra.mxu0 %v4989
    %6794 = vmatprep.subr.mxu0 0.0
    %6795 = vmatpush1.msra.mxu0 %v4990
    %6796 = vmatprep.subr.mxu0 0.0
    %6797 = vmatpush1.msra.mxu0 %v4991
    %6798 = vmatprep.subr.mxu0 0.0
    %6799 = vmatpush1.msra.mxu0 %v4992
    %6800 = vmatprep.subr.mxu0 0.0
    %6801 = vmatpush1.msra.mxu0 0.0
    %6802 = vmatprep.subr.mxu0 0.0
    %6803 = vmatpush1.msra.mxu0 0.0
    %6804 = vmatprep.subr.mxu0 0.0
    %6805 = vmatpush1.msra.mxu0 0.0
    %6806 = vmatprep.subr.mxu0 0.0
    %6807 = vmatpush1.msra.mxu0 0.0
    %6808 = vmatprep.subr.mxu0 0.0
    %6809 = vmatpush1.msra.mxu0 0.0
    %6810 = vmatprep.subr.mxu0 0.0
    %6811 = vmatpush1.msra.mxu0 0.0
    %6812 = vmatprep.subr.mxu0 0.0
    %6813 = vmatpush1.msra.mxu0 0.0
    %6814 = vmatprep.subr.mxu0 0.0
    %6815 = vmatpush1.msra.mxu0 0.0
    %6816 = vmatprep.subr.mxu0 0.0
    %6817 = vmatpush1.msra.mxu0 0.0
    %6818 = vmatprep.subr.mxu0 0.0
    %6819 = vmatpush1.msra.mxu0 0.0
    %6820 = vmatprep.subr.mxu0 0.0
    %6821 = vmatpush1.msra.mxu0 0.0
    %6822 = vmatprep.subr.mxu0 0.0
    %6823 = vmatpush1.msra.mxu0 0.0
    %6824 = vmatprep.subr.mxu0 0.0
    %6825 = vmatpush1.msra.mxu0 0.0
    %6826 = vmatprep.subr.mxu0 0.0
    %6827 = vmatpush1.msra.mxu0 0.0
    %6828 = vmatprep.subr.mxu0 0.0
    %6829 = vmatpush1.msra.mxu0 0.0
    %6830 = vmatprep.subr.mxu0 0.0
    %6831 = vmatpush1.msra.mxu0 0.0
    %6832 = vmatprep.subr.mxu0 0.0
    %6833 = vmatpush1.msra.mxu0 0.0
    %6834 = vmatprep.subr.mxu0 0.0
    %6835 = vmatpush1.msra.mxu0 0.0
    %6836 = vmatprep.subr.mxu0 0.0
    %6837 = vmatpush1.msra.mxu0 0.0
    %6838 = vmatprep.subr.mxu0 0.0
    %6839 = vmatpush1.msra.mxu0 0.0
    %6840 = vmatprep.subr.mxu0 0.0
    %6841 = vmatpush1.msra.mxu0 0.0
    %6842 = vmatprep.subr.mxu0 0.0
    %6843 = vmatpush1.msra.mxu0 0.0
    %6844 = vmatprep.subr.mxu0 0.0
    %6845 = vmatpush1.msra.mxu0 0.0
    %6846 = vmatprep.subr.mxu0 0.0
    %6847 = vmatpush1.msra.mxu0 0.0
    %6848 = vmatprep.subr.mxu0 0.0
    %6849 = vmatpush1.msra.mxu0 0.0
    %6850 = vmatprep.subr.mxu0 0.0
    %6851 = vmatpush1.msra.mxu0 0.0
    %6852 = vmatprep.subr.mxu0 0.0
    %6853 = vmatpush1.msra.mxu0 0.0
    %6854 = vmatprep.subr.mxu0 0.0
    %6855 = vmatpush1.msra.mxu0 0.0
    %6856 = vmatprep.mubr.f32.mxu0 0.0
    %6857 = vmatmul.mubr.f32.gmra.mrb[0].mxu0 %v6650
    %v6858 = vpop.f32.mrb[0].mxu0
    %v6859 = vadd.f32 %v5152, %v6858
    %v6860 = vpop.f32.mrb[0].mxu0
    %6861 = vdwg.mxu0
    %v6862 = vadd.f32 %v4626, %v6719
    %v6863 = vxor.u32 %v6862, 2147483648
    %v6864 = vmul.f32 %v6863, 1.442695
    %v6865 = vpow.pop %v6864
    %v6866 = vadd.f32 %v6865, 1.0
    %v6867 = vrcp.pop %v6866
    %v6868 = vmul.f32 1.0, %v6867
    %v6869 = vadd.f32 %v4782, %v6789
    %v6870 = vxor.u32 %v6869, 2147483648
    %v6871 = vmul.f32 %v6870, 1.442695
    %v6872 = vpow.pop %v6871
    %v6873 = vadd.f32 %v6872, 1.0
    %v6874 = vrcp.pop %v6873
    %v6875 = vmul.f32 1.0, %v6874
    %v6876 = vmul.f32 %v6868, %v6859
    %v6877 = vadd.f32 %v4938, %v6876
    %v6878 = vtanh.pop %v6877
    %v6879 = vsub.f32 1.0, %v6875
    %v6880 = vmul.f32 %v6879, %v6878
    %v6881 = vmul.f32 %v6875, %v6648
    %v6882 = vadd.f32 %v6880, %v6881
    %v6884 = vsel %vm753, %v6882, 0
    %6886 = vmatprep.subr.mxu0 0.0
    %6887 = vmatpush1.msra.mxu0 %v4981
    %6888 = vmatprep.subr.mxu0 0.0
    %6889 = vmatpush1.msra.mxu0 %v4982
    %6890 = vmatprep.subr.mxu0 0.0
    %6891 = vmatpush1.msra.mxu0 %v4983
    %6892 = vmatprep.subr.mxu0 0.0
    %6893 = vmatpush1.msra.mxu0 %v4984
    %6894 = vmatprep.subr.mxu0 0.0
    %6895 = vmatpush1.msra.mxu0 0.0
    %6896 = vmatprep.subr.mxu0 0.0
    %6897 = vmatpush1.msra.mxu0 0.0
    %6898 = vmatprep.subr.mxu0 0.0
    %6899 = vmatpush1.msra.mxu0 0.0
    %6900 = vmatprep.subr.mxu0 0.0
    %6901 = vmatpush1.msra.mxu0 0.0
    %6902 = vmatprep.subr.mxu0 0.0
    %6903 = vmatpush1.msra.mxu0 0.0
    %6904 = vmatprep.subr.mxu0 0.0
    %6905 = vmatpush1.msra.mxu0 0.0
    %6906 = vmatprep.subr.mxu0 0.0
    %6907 = vmatpush1.msra.mxu0 0.0
    %6908 = vmatprep.subr.mxu0 0.0
    %6909 = vmatpush1.msra.mxu0 0.0
    %6910 = vmatprep.subr.mxu0 0.0
    %6911 = vmatpush1.msra.mxu0 0.0
    %6912 = vmatprep.subr.mxu0 0.0
    %6913 = vmatpush1.msra.mxu0 0.0
    %6914 = vmatprep.subr.mxu0 0.0
    %6915 = vmatpush1.msra.mxu0 0.0
    %6916 = vmatprep.subr.mxu0 0.0
    %6917 = vmatpush1.msra.mxu0 0.0
    %6918 = vmatprep.subr.mxu0 0.0
    %6919 = vmatpush1.msra.mxu0 0.0
    %6920 = vmatprep.subr.mxu0 0.0
    %6921 = vmatpush1.msra.mxu0 0.0
    %6922 = vmatprep.subr.mxu0 0.0
    %6923 = vmatpush1.msra.mxu0 0.0
    %6924 = vmatprep.subr.mxu0 0.0
    %6925 = vmatpush1.msra.mxu0 0.0
    %6926 = vmatprep.subr.mxu0 0.0
    %6927 = vmatpush1.msra.mxu0 0.0
    %6928 = vmatprep.subr.mxu0 0.0
    %6929 = vmatpush1.msra.mxu0 0.0
    %6930 = vmatprep.subr.mxu0 0.0
    %6931 = vmatpush1.msra.mxu0 0.0
    %6932 = vmatprep.subr.mxu0 0.0
    %6933 = vmatpush1.msra.mxu0 0.0
    %6934 = vmatprep.subr.mxu0 0.0
    %6935 = vmatpush1.msra.mxu0 0.0
    %6936 = vmatprep.subr.mxu0 0.0
    %6937 = vmatpush1.msra.mxu0 0.0
    %6938 = vmatprep.subr.mxu0 0.0
    %6939 = vmatpush1.msra.mxu0 0.0
    %6940 = vmatprep.subr.mxu0 0.0
    %6941 = vmatpush1.msra.mxu0 0.0
    %6942 = vmatprep.subr.mxu0 0.0
    %6943 = vmatpush1.msra.mxu0 0.0
    %6944 = vmatprep.subr.mxu0 0.0
    %6945 = vmatpush1.msra.mxu0 0.0
    %6946 = vmatprep.subr.mxu0 0.0
    %6947 = vmatpush1.msra.mxu0 0.0
    %6948 = vmatprep.subr.mxu0 0.0
    %6949 = vmatpush1.msra.mxu0 0.0
    %6950 = vmatprep.mubr.f32.mxu0 0.0
    %6951 = vmatmul.mubr.f32.gmra.mrb[0].mxu0 %v6884
    %v6952 = vpop.f32.mrb[0].mxu0
    %v6953 = vadd.f32 %v5000, %v6952
    %v6954 = vpop.f32.mrb[0].mxu0
    %6955 = vdwg.mxu0
    %6956 = vmatprep.subr.mxu0 0.0
    %6957 = vmatpush1.msra.mxu0 %v4985
    %6958 = vmatprep.subr.mxu0 0.0
    %6959 = vmatpush1.msra.mxu0 %v4986
    %6960 = vmatprep.subr.mxu0 0.0
    %6961 = vmatpush1.msra.mxu0 %v4987
    %6962 = vmatprep.subr.mxu0 0.0
    %6963 = vmatpush1.msra.mxu0 %v4988
    %6964 = vmatprep.subr.mxu0 0.0
    %6965 = vmatpush1.msra.mxu0 0.0
    %6966 = vmatprep.subr.mxu0 0.0
    %6967 = vmatpush1.msra.mxu0 0.0
    %6968 = vmatprep.subr.mxu0 0.0
    %6969 = vmatpush1.msra.mxu0 0.0
    %6970 = vmatprep.subr.mxu0 0.0
    %6971 = vmatpush1.msra.mxu0 0.0
    %6972 = vmatprep.subr.mxu0 0.0
    %6973 = vmatpush1.msra.mxu0 0.0
    %6974 = vmatprep.subr.mxu0 0.0
    %6975 = vmatpush1.msra.mxu0 0.0
    %6976 = vmatprep.subr.mxu0 0.0
    %6977 = vmatpush1.msra.mxu0 0.0
    %6978 = vmatprep.subr.mxu0 0.0
    %6979 = vmatpush1.msra.mxu0 0.0
    %6980 = vmatprep.subr.mxu0 0.0
    %6981 = vmatpush1.msra.mxu0 0.0
    %6982 = vmatprep.subr.mxu0 0.0
    %6983 = vmatpush1.msra.mxu0 0.0
    %6984 = vmatprep.subr.mxu0 0.0
    %6985 = vmatpush1.msra.mxu0 0.0
    %6986 = vmatprep.subr.mxu0 0.0
    %6987 = vmatpush1.msra.mxu0 0.0
    %6988 = vmatprep.subr.mxu0 0.0
    %6989 = vmatpush1.msra.mxu0 0.0
    %6990 = vmatprep.subr.mxu0 0.0
    %6991 = vmatpush1.msra.mxu0 0.0
    %6992 = vmatprep.subr.mxu0 0.0
    %6993 = vmatpush1.msra.mxu0 0.0
    %6994 = vmatprep.subr.mxu0 0.0
    %6995 = vmatpush1.msra.mxu0 0.0
    %6996 = vmatprep.subr.mxu0 0.0
    %6997 = vmatpush1.msra.mxu0 0.0
    %6998 = vmatprep.subr.mxu0 0.0
    %6999 = vmatpush1.msra.mxu0 0.0
    %7000 = vmatprep.subr.mxu0 0.0
    %7001 = vmatpush1.msra.mxu0 0.0
    %7002 = vmatprep.subr.mxu0 0.0
    %7003 = vmatpush1.msra.mxu0 0.0
    %7004 = vmatprep.subr.mxu0 0.0
    %7005 = vmatpush1.msra.mxu0 0.0
    %7006 = vmatprep.subr.mxu0 0.0
    %7007 = vmatpush1.msra.mxu0 0.0
    %7008 = vmatprep.subr.mxu0 0.0
    %7009 = vmatpush1.msra.mxu0 0.0
    %7010 = vmatprep.subr.mxu0 0.0
    %7011 = vmatpush1.msra.mxu0 0.0
    %7012 = vmatprep.subr.mxu0 0.0
    %7013 = vmatpush1.msra.mxu0 0.0
    %7014 = vmatprep.subr.mxu0 0.0
    %7015 = vmatpush1.msra.mxu0 0.0
    %7016 = vmatprep.subr.mxu0 0.0
    %7017 = vmatpush1.msra.mxu0 0.0
    %7018 = vmatprep.subr.mxu0 0.0
    %7019 = vmatpush1.msra.mxu0 0.0
    %7020 = vmatprep.mubr.f32.mxu0 0.0
    %7021 = vmatmul.mubr.f32.gmra.mrb[0].mxu0 %v6884
    %v7022 = vpop.f32.mrb[0].mxu0
    %v7023 = vadd.f32 %v5076, %v7022
    %v7024 = vpop.f32.mrb[0].mxu0
    %7025 = vdwg.mxu0
    %7026 = vmatprep.subr.mxu0 0.0
    %7027 = vmatpush1.msra.mxu0 %v4989
    %7028 = vmatprep.subr.mxu0 0.0
    %7029 = vmatpush1.msra.mxu0 %v4990
    %7030 = vmatprep.subr.mxu0 0.0
    %7031 = vmatpush1.msra.mxu0 %v4991
    %7032 = vmatprep.subr.mxu0 0.0
    %7033 = vmatpush1.msra.mxu0 %v4992
    %7034 = vmatprep.subr.mxu0 0.0
    %7035 = vmatpush1.msra.mxu0 0.0
    %7036 = vmatprep.subr.mxu0 0.0
    %7037 = vmatpush1.msra.mxu0 0.0
    %7038 = vmatprep.subr.mxu0 0.0
    %7039 = vmatpush1.msra.mxu0 0.0
    %7040 = vmatprep.subr.mxu0 0.0
    %7041 = vmatpush1.msra.mxu0 0.0
    %7042 = vmatprep.subr.mxu0 0.0
    %7043 = vmatpush1.msra.mxu0 0.0
    %7044 = vmatprep.subr.mxu0 0.0
    %7045 = vmatpush1.msra.mxu0 0.0
    %7046 = vmatprep.subr.mxu0 0.0
    %7047 = vmatpush1.msra.mxu0 0.0
    %7048 = vmatprep.subr.mxu0 0.0
    %7049 = vmatpush1.msra.mxu0 0.0
    %7050 = vmatprep.subr.mxu0 0.0
    %7051 = vmatpush1.msra.mxu0 0.0
    %7052 = vmatprep.subr.mxu0 0.0
    %7053 = vmatpush1.msra.mxu0 0.0
    %7054 = vmatprep.subr.mxu0 0.0
    %7055 = vmatpush1.msra.mxu0 0.0
    %7056 = vmatprep.subr.mxu0 0.0
    %7057 = vmatpush1.msra.mxu0 0.0
    %7058 = vmatprep.subr.mxu0 0.0
    %7059 = vmatpush1.msra.mxu0 0.0
    %7060 = vmatprep.subr.mxu0 0.0
    %7061 = vmatpush1.msra.mxu0 0.0
    %7062 = vmatprep.subr.mxu0 0.0
    %7063 = vmatpush1.msra.mxu0 0.0
    %7064 = vmatprep.subr.mxu0 0.0
    %7065 = vmatpush1.msra.mxu0 0.0
    %7066 = vmatprep.subr.mxu0 0.0
    %7067 = vmatpush1.msra.mxu0 0.0
    %7068 = vmatprep.subr.mxu0 0.0
    %7069 = vmatpush1.msra.mxu0 0.0
    %7070 = vmatprep.subr.mxu0 0.0
    %7071 = vmatpush1.msra.mxu0 0.0
    %7072 = vmatprep.subr.mxu0 0.0
    %7073 = vmatpush1.msra.mxu0 0.0
    %7074 = vmatprep.subr.mxu0 0.0
    %7075 = vmatpush1.msra.mxu0 0.0
    %7076 = vmatprep.subr.mxu0 0.0
    %7077 = vmatpush1.msra.mxu0 0.0
    %7078 = vmatprep.subr.mxu0 0.0
    %7079 = vmatpush1.msra.mxu0 0.0
    %7080 = vmatprep.subr.mxu0 0.0
    %7081 = vmatpush1.msra.mxu0 0.0
    %7082 = vmatprep.subr.mxu0 0.0
    %7083 = vmatpush1.msra.mxu0 0.0
    %7084 = vmatprep.subr.mxu0 0.0
    %7085 = vmatpush1.msra.mxu0 0.0
    %7086 = vmatprep.subr.mxu0 0.0
    %7087 = vmatpush1.msra.mxu0 0.0
    %7088 = vmatprep.subr.mxu0 0.0
    %7089 = vmatpush1.msra.mxu0 0.0
    %7090 = vmatprep.mubr.f32.mxu0 0.0
    %7091 = vmatmul.mubr.f32.gmra.mrb[0].mxu0 %v6884
    %v7092 = vpop.f32.mrb[0].mxu0
    %v7093 = vadd.f32 %v5152, %v7092
    %v7094 = vpop.f32.mrb[0].mxu0
    %7095 = vdwg.mxu0
    %v7096 = vadd.f32 %v4631, %v6953
    %v7097 = vxor.u32 %v7096, 2147483648
    %v7098 = vmul.f32 %v7097, 1.442695
    %v7099 = vpow.pop %v7098
    %v7100 = vadd.f32 %v7099, 1.0
    %v7101 = vrcp.pop %v7100
    %v7102 = vmul.f32 1.0, %v7101
    %v7103 = vadd.f32 %v4787, %v7023
    %v7104 = vxor.u32 %v7103, 2147483648
    %v7105 = vmul.f32 %v7104, 1.442695
    %v7106 = vpow.pop %v7105
    %v7107 = vadd.f32 %v7106, 1.0
    %v7108 = vrcp.pop %v7107
    %v7109 = vmul.f32 1.0, %v7108
    %v7110 = vmul.f32 %v7102, %v7093
    %v7111 = vadd.f32 %v4943, %v7110
    %v7112 = vtanh.pop %v7111
    %v7113 = vsub.f32 1.0, %v7109
    %v7114 = vmul.f32 %v7113, %v7112
    %v7115 = vmul.f32 %v7109, %v6882
    %v7116 = vadd.f32 %v7114, %v7115
    %v7118 = vsel %vm753, %v7116, 0
    %7120 = vmatprep.subr.mxu0 0.0
    %7121 = vmatpush1.msra.mxu0 %v4981
    %7122 = vmatprep.subr.mxu0 0.0
    %7123 = vmatpush1.msra.mxu0 %v4982
    %7124 = vmatprep.subr.mxu0 0.0
    %7125 = vmatpush1.msra.mxu0 %v4983
    %7126 = vmatprep.subr.mxu0 0.0
    %7127 = vmatpush1.msra.mxu0 %v4984
    %7128 = vmatprep.subr.mxu0 0.0
    %7129 = vmatpush1.msra.mxu0 0.0
    %7130 = vmatprep.subr.mxu0 0.0
    %7131 = vmatpush1.msra.mxu0 0.0
    %7132 = vmatprep.subr.mxu0 0.0
    %7133 = vmatpush1.msra.mxu0 0.0
    %7134 = vmatprep.subr.mxu0 0.0
    %7135 = vmatpush1.msra.mxu0 0.0
    %7136 = vmatprep.subr.mxu0 0.0
    %7137 = vmatpush1.msra.mxu0 0.0
    %7138 = vmatprep.subr.mxu0 0.0
    %7139 = vmatpush1.msra.mxu0 0.0
    %7140 = vmatprep.subr.mxu0 0.0
    %7141 = vmatpush1.msra.mxu0 0.0
    %7142 = vmatprep.subr.mxu0 0.0
    %7143 = vmatpush1.msra.mxu0 0.0
    %7144 = vmatprep.subr.mxu0 0.0
    %7145 = vmatpush1.msra.mxu0 0.0
    %7146 = vmatprep.subr.mxu0 0.0
    %7147 = vmatpush1.msra.mxu0 0.0
    %7148 = vmatprep.subr.mxu0 0.0
    %7149 = vmatpush1.msra.mxu0 0.0
    %7150 = vmatprep.subr.mxu0 0.0
    %7151 = vmatpush1.msra.mxu0 0.0
    %7152 = vmatprep.subr.mxu0 0.0
    %7153 = vmatpush1.msra.mxu0 0.0
    %7154 = vmatprep.subr.mxu0 0.0
    %7155 = vmatpush1.msra.mxu0 0.0
    %7156 = vmatprep.subr.mxu0 0.0
    %7157 = vmatpush1.msra.mxu0 0.0
    %7158 = vmatprep.subr.mxu0 0.0
    %7159 = vmatpush1.msra.mxu0 0.0
    %7160 = vmatprep.subr.mxu0 0.0
    %7161 = vmatpush1.msra.mxu0 0.0
    %7162 = vmatprep.subr.mxu0 0.0
    %7163 = vmatpush1.msra.mxu0 0.0
    %7164 = vmatprep.subr.mxu0 0.0
    %7165 = vmatpush1.msra.mxu0 0.0
    %7166 = vmatprep.subr.mxu0 0.0
    %7167 = vmatpush1.msra.mxu0 0.0
    %7168 = vmatprep.subr.mxu0 0.0
    %7169 = vmatpush1.msra.mxu0 0.0
    %7170 = vmatprep.subr.mxu0 0.0
    %7171 = vmatpush1.msra.mxu0 0.0
    %7172 = vmatprep.subr.mxu0 0.0
    %7173 = vmatpush1.msra.mxu0 0.0
    %7174 = vmatprep.subr.mxu0 0.0
    %7175 = vmatpush1.msra.mxu0 0.0
    %7176 = vmatprep.subr.mxu0 0.0
    %7177 = vmatpush1.msra.mxu0 0.0
    %7178 = vmatprep.subr.mxu0 0.0
    %7179 = vmatpush1.msra.mxu0 0.0
    %7180 = vmatprep.subr.mxu0 0.0
    %7181 = vmatpush1.msra.mxu0 0.0
    %7182 = vmatprep.subr.mxu0 0.0
    %7183 = vmatpush1.msra.mxu0 0.0
    %7184 = vmatprep.mubr.f32.mxu0 0.0
    %7185 = vmatmul.mubr.f32.gmra.mrb[0].mxu0 %v7118
    %v7186 = vpop.f32.mrb[0].mxu0
    %v7187 = vadd.f32 %v5000, %v7186
    %v7188 = vpop.f32.mrb[0].mxu0
    %7189 = vdwg.mxu0
    %7190 = vmatprep.subr.mxu0 0.0
    %7191 = vmatpush1.msra.mxu0 %v4985
    %7192 = vmatprep.subr.mxu0 0.0
    %7193 = vmatpush1.msra.mxu0 %v4986
    %7194 = vmatprep.subr.mxu0 0.0
    %7195 = vmatpush1.msra.mxu0 %v4987
    %7196 = vmatprep.subr.mxu0 0.0
    %7197 = vmatpush1.msra.mxu0 %v4988
    %7198 = vmatprep.subr.mxu0 0.0
    %7199 = vmatpush1.msra.mxu0 0.0
    %7200 = vmatprep.subr.mxu0 0.0
    %7201 = vmatpush1.msra.mxu0 0.0
    %7202 = vmatprep.subr.mxu0 0.0
    %7203 = vmatpush1.msra.mxu0 0.0
    %7204 = vmatprep.subr.mxu0 0.0
    %7205 = vmatpush1.msra.mxu0 0.0
    %7206 = vmatprep.subr.mxu0 0.0
    %7207 = vmatpush1.msra.mxu0 0.0
    %7208 = vmatprep.subr.mxu0 0.0
    %7209 = vmatpush1.msra.mxu0 0.0
    %7210 = vmatprep.subr.mxu0 0.0
    %7211 = vmatpush1.msra.mxu0 0.0
    %7212 = vmatprep.subr.mxu0 0.0
    %7213 = vmatpush1.msra.mxu0 0.0
    %7214 = vmatprep.subr.mxu0 0.0
    %7215 = vmatpush1.msra.mxu0 0.0
    %7216 = vmatprep.subr.mxu0 0.0
    %7217 = vmatpush1.msra.mxu0 0.0
    %7218 = vmatprep.subr.mxu0 0.0
    %7219 = vmatpush1.msra.mxu0 0.0
    %7220 = vmatprep.subr.mxu0 0.0
    %7221 = vmatpush1.msra.mxu0 0.0
    %7222 = vmatprep.subr.mxu0 0.0
    %7223 = vmatpush1.msra.mxu0 0.0
    %7224 = vmatprep.subr.mxu0 0.0
    %7225 = vmatpush1.msra.mxu0 0.0
    %7226 = vmatprep.subr.mxu0 0.0
    %7227 = vmatpush1.msra.mxu0 0.0
    %7228 = vmatprep.subr.mxu0 0.0
    %7229 = vmatpush1.msra.mxu0 0.0
    %7230 = vmatprep.subr.mxu0 0.0
    %7231 = vmatpush1.msra.mxu0 0.0
    %7232 = vmatprep.subr.mxu0 0.0
    %7233 = vmatpush1.msra.mxu0 0.0
    %7234 = vmatprep.subr.mxu0 0.0
    %7235 = vmatpush1.msra.mxu0 0.0
    %7236 = vmatprep.subr.mxu0 0.0
    %7237 = vmatpush1.msra.mxu0 0.0
    %7238 = vmatprep.subr.mxu0 0.0
    %7239 = vmatpush1.msra.mxu0 0.0
    %7240 = vmatprep.subr.mxu0 0.0
    %7241 = vmatpush1.msra.mxu0 0.0
    %7242 = vmatprep.subr.mxu0 0.0
    %7243 = vmatpush1.msra.mxu0 0.0
    %7244 = vmatprep.subr.mxu0 0.0
    %7245 = vmatpush1.msra.mxu0 0.0
    %7246 = vmatprep.subr.mxu0 0.0
    %7247 = vmatpush1.msra.mxu0 0.0
    %7248 = vmatprep.subr.mxu0 0.0
    %7249 = vmatpush1.msra.mxu0 0.0
    %7250 = vmatprep.subr.mxu0 0.0
    %7251 = vmatpush1.msra.mxu0 0.0
    %7252 = vmatprep.subr.mxu0 0.0
    %7253 = vmatpush1.msra.mxu0 0.0
    %7254 = vmatprep.mubr.f32.mxu0 0.0
    %7255 = vmatmul.mubr.f32.gmra.mrb[0].mxu0 %v7118
    %v7256 = vpop.f32.mrb[0].mxu0
    %v7257 = vadd.f32 %v5076, %v7256
    %v7258 = vpop.f32.mrb[0].mxu0
    %7259 = vdwg.mxu0
    %7260 = vmatprep.subr.mxu0 0.0
    %7261 = vmatpush1.msra.mxu0 %v4989
    %7262 = vmatprep.subr.mxu0 0.0
    %7263 = vmatpush1.msra.mxu0 %v4990
    %7264 = vmatprep.subr.mxu0 0.0
    %7265 = vmatpush1.msra.mxu0 %v4991
    %7266 = vmatprep.subr.mxu0 0.0
    %7267 = vmatpush1.msra.mxu0 %v4992
    %7268 = vmatprep.subr.mxu0 0.0
    %7269 = vmatpush1.msra.mxu0 0.0
    %7270 = vmatprep.subr.mxu0 0.0
    %7271 = vmatpush1.msra.mxu0 0.0
    %7272 = vmatprep.subr.mxu0 0.0
    %7273 = vmatpush1.msra.mxu0 0.0
    %7274 = vmatprep.subr.mxu0 0.0
    %7275 = vmatpush1.msra.mxu0 0.0
    %7276 = vmatprep.subr.mxu0 0.0
    %7277 = vmatpush1.msra.mxu0 0.0
    %7278 = vmatprep.subr.mxu0 0.0
    %7279 = vmatpush1.msra.mxu0 0.0
    %7280 = vmatprep.subr.mxu0 0.0
    %7281 = vmatpush1.msra.mxu0 0.0
    %7282 = vmatprep.subr.mxu0 0.0
    %7283 = vmatpush1.msra.mxu0 0.0
    %7284 = vmatprep.subr.mxu0 0.0
    %7285 = vmatpush1.msra.mxu0 0.0
    %7286 = vmatprep.subr.mxu0 0.0
    %7287 = vmatpush1.msra.mxu0 0.0
    %7288 = vmatprep.subr.mxu0 0.0
    %7289 = vmatpush1.msra.mxu0 0.0
    %7290 = vmatprep.subr.mxu0 0.0
    %7291 = vmatpush1.msra.mxu0 0.0
    %7292 = vmatprep.subr.mxu0 0.0
    %7293 = vmatpush1.msra.mxu0 0.0
    %7294 = vmatprep.subr.mxu0 0.0
    %7295 = vmatpush1.msra.mxu0 0.0
    %7296 = vmatprep.subr.mxu0 0.0
    %7297 = vmatpush1.msra.mxu0 0.0
    %7298 = vmatprep.subr.mxu0 0.0
    %7299 = vmatpush1.msra.mxu0 0.0
    %7300 = vmatprep.subr.mxu0 0.0
    %7301 = vmatpush1.msra.mxu0 0.0
    %7302 = vmatprep.subr.mxu0 0.0
    %7303 = vmatpush1.msra.mxu0 0.0
    %7304 = vmatprep.subr.mxu0 0.0
    %7305 = vmatpush1.msra.mxu0 0.0
    %7306 = vmatprep.subr.mxu0 0.0
    %7307 = vmatpush1.msra.mxu0 0.0
    %7308 = vmatprep.subr.mxu0 0.0
    %7309 = vmatpush1.msra.mxu0 0.0
    %7310 = vmatprep.subr.mxu0 0.0
    %7311 = vmatpush1.msra.mxu0 0.0
    %7312 = vmatprep.subr.mxu0 0.0
    %7313 = vmatpush1.msra.mxu0 0.0
    %7314 = vmatprep.subr.mxu0 0.0
    %7315 = vmatpush1.msra.mxu0 0.0
    %7316 = vmatprep.subr.mxu0 0.0
    %7317 = vmatpush1.msra.mxu0 0.0
    %7318 = vmatprep.subr.mxu0 0.0
    %7319 = vmatpush1.msra.mxu0 0.0
    %7320 = vmatprep.subr.mxu0 0.0
    %7321 = vmatpush1.msra.mxu0 0.0
    %7322 = vmatprep.subr.mxu0 0.0
    %7323 = vmatpush1.msra.mxu0 0.0
    %7324 = vmatprep.mubr.f32.mxu0 0.0
    %7325 = vmatmul.mubr.f32.gmra.mrb[0].mxu0 %v7118
    %v7326 = vpop.f32.mrb[0].mxu0
    %v7327 = vadd.f32 %v5152, %v7326
    %v7328 = vpop.f32.mrb[0].mxu0
    %7329 = vdwg.mxu0
    %v7330 = vadd.f32 %v4636, %v7187
    %v7331 = vxor.u32 %v7330, 2147483648
    %v7332 = vmul.f32 %v7331, 1.442695
    %v7333 = vpow.pop %v7332
    %v7334 = vadd.f32 %v7333, 1.0
    %v7335 = vrcp.pop %v7334
    %v7336 = vmul.f32 1.0, %v7335
    %v7337 = vadd.f32 %v4792, %v7257
    %v7338 = vxor.u32 %v7337, 2147483648
    %v7339 = vmul.f32 %v7338, 1.442695
    %v7340 = vpow.pop %v7339
    %v7341 = vadd.f32 %v7340, 1.0
    %v7342 = vrcp.pop %v7341
    %v7343 = vmul.f32 1.0, %v7342
    %v7344 = vmul.f32 %v7336, %v7327
    %v7345 = vadd.f32 %v4948, %v7344
    %v7346 = vtanh.pop %v7345
    %v7347 = vsub.f32 1.0, %v7343
    %v7348 = vmul.f32 %v7347, %v7346
    %v7349 = vmul.f32 %v7343, %v7116
    %v7350 = vadd.f32 %v7348, %v7349
    %v7352 = vsel %vm753, %v7350, 0
    %7354 = vmatprep.subr.mxu0 0.0
    %7355 = vmatpush1.msra.mxu0 %v4981
    %7356 = vmatprep.subr.mxu0 0.0
    %7357 = vmatpush1.msra.mxu0 %v4982
    %7358 = vmatprep.subr.mxu0 0.0
    %7359 = vmatpush1.msra.mxu0 %v4983
    %7360 = vmatprep.subr.mxu0 0.0
    %7361 = vmatpush1.msra.mxu0 %v4984
    %7362 = vmatprep.subr.mxu0 0.0
    %7363 = vmatpush1.msra.mxu0 0.0
    %7364 = vmatprep.subr.mxu0 0.0
    %7365 = vmatpush1.msra.mxu0 0.0
    %7366 = vmatprep.subr.mxu0 0.0
    %7367 = vmatpush1.msra.mxu0 0.0
    %7368 = vmatprep.subr.mxu0 0.0
    %7369 = vmatpush1.msra.mxu0 0.0
    %7370 = vmatprep.subr.mxu0 0.0
    %7371 = vmatpush1.msra.mxu0 0.0
    %7372 = vmatprep.subr.mxu0 0.0
    %7373 = vmatpush1.msra.mxu0 0.0
    %7374 = vmatprep.subr.mxu0 0.0
    %7375 = vmatpush1.msra.mxu0 0.0
    %7376 = vmatprep.subr.mxu0 0.0
    %7377 = vmatpush1.msra.mxu0 0.0
    %7378 = vmatprep.subr.mxu0 0.0
    %7379 = vmatpush1.msra.mxu0 0.0
    %7380 = vmatprep.subr.mxu0 0.0
    %7381 = vmatpush1.msra.mxu0 0.0
    %7382 = vmatprep.subr.mxu0 0.0
    %7383 = vmatpush1.msra.mxu0 0.0
    %7384 = vmatprep.subr.mxu0 0.0
    %7385 = vmatpush1.msra.mxu0 0.0
    %7386 = vmatprep.subr.mxu0 0.0
    %7387 = vmatpush1.msra.mxu0 0.0
    %7388 = vmatprep.subr.mxu0 0.0
    %7389 = vmatpush1.msra.mxu0 0.0
    %7390 = vmatprep.subr.mxu0 0.0
    %7391 = vmatpush1.msra.mxu0 0.0
    %7392 = vmatprep.subr.mxu0 0.0
    %7393 = vmatpush1.msra.mxu0 0.0
    %7394 = vmatprep.subr.mxu0 0.0
    %7395 = vmatpush1.msra.mxu0 0.0
    %7396 = vmatprep.subr.mxu0 0.0
    %7397 = vmatpush1.msra.mxu0 0.0
    %7398 = vmatprep.subr.mxu0 0.0
    %7399 = vmatpush1.msra.mxu0 0.0
    %7400 = vmatprep.subr.mxu0 0.0
    %7401 = vmatpush1.msra.mxu0 0.0
    %7402 = vmatprep.subr.mxu0 0.0
    %7403 = vmatpush1.msra.mxu0 0.0
    %7404 = vmatprep.subr.mxu0 0.0
    %7405 = vmatpush1.msra.mxu0 0.0
    %7406 = vmatprep.subr.mxu0 0.0
    %7407 = vmatpush1.msra.mxu0 0.0
    %7408 = vmatprep.subr.mxu0 0.0
    %7409 = vmatpush1.msra.mxu0 0.0
    %7410 = vmatprep.subr.mxu0 0.0
    %7411 = vmatpush1.msra.mxu0 0.0
    %7412 = vmatprep.subr.mxu0 0.0
    %7413 = vmatpush1.msra.mxu0 0.0
    %7414 = vmatprep.subr.mxu0 0.0
    %7415 = vmatpush1.msra.mxu0 0.0
    %7416 = vmatprep.subr.mxu0 0.0
    %7417 = vmatpush1.msra.mxu0 0.0
    %7418 = vmatprep.mubr.f32.mxu0 0.0
    %7419 = vmatmul.mubr.f32.gmra.mrb[0].mxu0 %v7352
    %v7420 = vpop.f32.mrb[0].mxu0
    %v7421 = vadd.f32 %v5000, %v7420
    %v7422 = vpop.f32.mrb[0].mxu0
    %7423 = vdwg.mxu0
    %7424 = vmatprep.subr.mxu0 0.0
    %7425 = vmatpush1.msra.mxu0 %v4985
    %7426 = vmatprep.subr.mxu0 0.0
    %7427 = vmatpush1.msra.mxu0 %v4986
    %7428 = vmatprep.subr.mxu0 0.0
    %7429 = vmatpush1.msra.mxu0 %v4987
    %7430 = vmatprep.subr.mxu0 0.0
    %7431 = vmatpush1.msra.mxu0 %v4988
    %7432 = vmatprep.subr.mxu0 0.0
    %7433 = vmatpush1.msra.mxu0 0.0
    %7434 = vmatprep.subr.mxu0 0.0
    %7435 = vmatpush1.msra.mxu0 0.0
    %7436 = vmatprep.subr.mxu0 0.0
    %7437 = vmatpush1.msra.mxu0 0.0
    %7438 = vmatprep.subr.mxu0 0.0
    %7439 = vmatpush1.msra.mxu0 0.0
    %7440 = vmatprep.subr.mxu0 0.0
    %7441 = vmatpush1.msra.mxu0 0.0
    %7442 = vmatprep.subr.mxu0 0.0
    %7443 = vmatpush1.msra.mxu0 0.0
    %7444 = vmatprep.subr.mxu0 0.0
    %7445 = vmatpush1.msra.mxu0 0.0
    %7446 = vmatprep.subr.mxu0 0.0
    %7447 = vmatpush1.msra.mxu0 0.0
    %7448 = vmatprep.subr.mxu0 0.0
    %7449 = vmatpush1.msra.mxu0 0.0
    %7450 = vmatprep.subr.mxu0 0.0
    %7451 = vmatpush1.msra.mxu0 0.0
    %7452 = vmatprep.subr.mxu0 0.0
    %7453 = vmatpush1.msra.mxu0 0.0
    %7454 = vmatprep.subr.mxu0 0.0
    %7455 = vmatpush1.msra.mxu0 0.0
    %7456 = vmatprep.subr.mxu0 0.0
    %7457 = vmatpush1.msra.mxu0 0.0
    %7458 = vmatprep.subr.mxu0 0.0
    %7459 = vmatpush1.msra.mxu0 0.0
    %7460 = vmatprep.subr.mxu0 0.0
    %7461 = vmatpush1.msra.mxu0 0.0
    %7462 = vmatprep.subr.mxu0 0.0
    %7463 = vmatpush1.msra.mxu0 0.0
    %7464 = vmatprep.subr.mxu0 0.0
    %7465 = vmatpush1.msra.mxu0 0.0
    %7466 = vmatprep.subr.mxu0 0.0
    %7467 = vmatpush1.msra.mxu0 0.0
    %7468 = vmatprep.subr.mxu0 0.0
    %7469 = vmatpush1.msra.mxu0 0.0
    %7470 = vmatprep.subr.mxu0 0.0
    %7471 = vmatpush1.msra.mxu0 0.0
    %7472 = vmatprep.subr.mxu0 0.0
    %7473 = vmatpush1.msra.mxu0 0.0
    %7474 = vmatprep.subr.mxu0 0.0
    %7475 = vmatpush1.msra.mxu0 0.0
    %7476 = vmatprep.subr.mxu0 0.0
    %7477 = vmatpush1.msra.mxu0 0.0
    %7478 = vmatprep.subr.mxu0 0.0
    %7479 = vmatpush1.msra.mxu0 0.0
    %7480 = vmatprep.subr.mxu0 0.0
    %7481 = vmatpush1.msra.mxu0 0.0
    %7482 = vmatprep.subr.mxu0 0.0
    %7483 = vmatpush1.msra.mxu0 0.0
    %7484 = vmatprep.subr.mxu0 0.0
    %7485 = vmatpush1.msra.mxu0 0.0
    %7486 = vmatprep.subr.mxu0 0.0
    %7487 = vmatpush1.msra.mxu0 0.0
    %7488 = vmatprep.mubr.f32.mxu0 0.0
    %7489 = vmatmul.mubr.f32.gmra.mrb[0].mxu0 %v7352
    %v7490 = vpop.f32.mrb[0].mxu0
    %v7491 = vadd.f32 %v5076, %v7490
    %v7492 = vpop.f32.mrb[0].mxu0
    %7493 = vdwg.mxu0
    %7494 = vmatprep.subr.mxu0 0.0
    %7495 = vmatpush1.msra.mxu0 %v4989
    %7496 = vmatprep.subr.mxu0 0.0
    %7497 = vmatpush1.msra.mxu0 %v4990
    %7498 = vmatprep.subr.mxu0 0.0
    %7499 = vmatpush1.msra.mxu0 %v4991
    %7500 = vmatprep.subr.mxu0 0.0
    %7501 = vmatpush1.msra.mxu0 %v4992
    %7502 = vmatprep.subr.mxu0 0.0
    %7503 = vmatpush1.msra.mxu0 0.0
    %7504 = vmatprep.subr.mxu0 0.0
    %7505 = vmatpush1.msra.mxu0 0.0
    %7506 = vmatprep.subr.mxu0 0.0
    %7507 = vmatpush1.msra.mxu0 0.0
    %7508 = vmatprep.subr.mxu0 0.0
    %7509 = vmatpush1.msra.mxu0 0.0
    %7510 = vmatprep.subr.mxu0 0.0
    %7511 = vmatpush1.msra.mxu0 0.0
    %7512 = vmatprep.subr.mxu0 0.0
    %7513 = vmatpush1.msra.mxu0 0.0
    %7514 = vmatprep.subr.mxu0 0.0
    %7515 = vmatpush1.msra.mxu0 0.0
    %7516 = vmatprep.subr.mxu0 0.0
    %7517 = vmatpush1.msra.mxu0 0.0
    %7518 = vmatprep.subr.mxu0 0.0
    %7519 = vmatpush1.msra.mxu0 0.0
    %7520 = vmatprep.subr.mxu0 0.0
    %7521 = vmatpush1.msra.mxu0 0.0
    %7522 = vmatprep.subr.mxu0 0.0
    %7523 = vmatpush1.msra.mxu0 0.0
    %7524 = vmatprep.subr.mxu0 0.0
    %7525 = vmatpush1.msra.mxu0 0.0
    %7526 = vmatprep.subr.mxu0 0.0
    %7527 = vmatpush1.msra.mxu0 0.0
    %7528 = vmatprep.subr.mxu0 0.0
    %7529 = vmatpush1.msra.mxu0 0.0
    %7530 = vmatprep.subr.mxu0 0.0
    %7531 = vmatpush1.msra.mxu0 0.0
    %7532 = vmatprep.subr.mxu0 0.0
    %7533 = vmatpush1.msra.mxu0 0.0
    %7534 = vmatprep.subr.mxu0 0.0
    %7535 = vmatpush1.msra.mxu0 0.0
    %7536 = vmatprep.subr.mxu0 0.0
    %7537 = vmatpush1.msra.mxu0 0.0
    %7538 = vmatprep.subr.mxu0 0.0
    %7539 = vmatpush1.msra.mxu0 0.0
    %7540 = vmatprep.subr.mxu0 0.0
    %7541 = vmatpush1.msra.mxu0 0.0
    %7542 = vmatprep.subr.mxu0 0.0
    %7543 = vmatpush1.msra.mxu0 0.0
    %7544 = vmatprep.subr.mxu0 0.0
    %7545 = vmatpush1.msra.mxu0 0.0
    %7546 = vmatprep.subr.mxu0 0.0
    %7547 = vmatpush1.msra.mxu0 0.0
    %7548 = vmatprep.subr.mxu0 0.0
    %7549 = vmatpush1.msra.mxu0 0.0
    %7550 = vmatprep.subr.mxu0 0.0
    %7551 = vmatpush1.msra.mxu0 0.0
    %7552 = vmatprep.subr.mxu0 0.0
    %7553 = vmatpush1.msra.mxu0 0.0
    %7554 = vmatprep.subr.mxu0 0.0
    %7555 = vmatpush1.msra.mxu0 0.0
    %7556 = vmatprep.subr.mxu0 0.0
    %7557 = vmatpush1.msra.mxu0 0.0
    %7558 = vmatprep.mubr.f32.mxu0 0.0
    %7559 = vmatmul.mubr.f32.gmra.mrb[0].mxu0 %v7352
    %v7560 = vpop.f32.mrb[0].mxu0
    %v7561 = vadd.f32 %v5152, %v7560
    %v7562 = vpop.f32.mrb[0].mxu0
    %7563 = vdwg.mxu0
    %v7564 = vadd.f32 %v4641, %v7421
    %v7565 = vxor.u32 %v7564, 2147483648
    %v7566 = vmul.f32 %v7565, 1.442695
    %v7567 = vpow.pop %v7566
    %v7568 = vadd.f32 %v7567, 1.0
    %v7569 = vrcp.pop %v7568
    %v7570 = vmul.f32 1.0, %v7569
    %v7571 = vadd.f32 %v4797, %v7491
    %v7572 = vxor.u32 %v7571, 2147483648
    %v7573 = vmul.f32 %v7572, 1.442695
    %v7574 = vpow.pop %v7573
    %v7575 = vadd.f32 %v7574, 1.0
    %v7576 = vrcp.pop %v7575
    %v7577 = vmul.f32 1.0, %v7576
    %v7578 = vmul.f32 %v7570, %v7561
    %v7579 = vadd.f32 %v4953, %v7578
    %v7580 = vtanh.pop %v7579
    %v7581 = vsub.f32 1.0, %v7577
    %v7582 = vmul.f32 %v7581, %v7580
    %v7583 = vmul.f32 %v7577, %v7350
    %v7584 = vadd.f32 %v7582, %v7583
    %v7586 = vsel %vm753, %v7584, 0
    %7588 = vmatprep.subr.mxu0 0.0
    %7589 = vmatpush1.msra.mxu0 %v4981
    %7590 = vmatprep.subr.mxu0 0.0
    %7591 = vmatpush1.msra.mxu0 %v4982
    %7592 = vmatprep.subr.mxu0 0.0
    %7593 = vmatpush1.msra.mxu0 %v4983
    %7594 = vmatprep.subr.mxu0 0.0
    %7595 = vmatpush1.msra.mxu0 %v4984
    %7596 = vmatprep.subr.mxu0 0.0
    %7597 = vmatpush1.msra.mxu0 0.0
    %7598 = vmatprep.subr.mxu0 0.0
    %7599 = vmatpush1.msra.mxu0 0.0
    %7600 = vmatprep.subr.mxu0 0.0
    %7601 = vmatpush1.msra.mxu0 0.0
    %7602 = vmatprep.subr.mxu0 0.0
    %7603 = vmatpush1.msra.mxu0 0.0
    %7604 = vmatprep.subr.mxu0 0.0
    %7605 = vmatpush1.msra.mxu0 0.0
    %7606 = vmatprep.subr.mxu0 0.0
    %7607 = vmatpush1.msra.mxu0 0.0
    %7608 = vmatprep.subr.mxu0 0.0
    %7609 = vmatpush1.msra.mxu0 0.0
    %7610 = vmatprep.subr.mxu0 0.0
    %7611 = vmatpush1.msra.mxu0 0.0
    %7612 = vmatprep.subr.mxu0 0.0
    %7613 = vmatpush1.msra.mxu0 0.0
    %7614 = vmatprep.subr.mxu0 0.0
    %7615 = vmatpush1.msra.mxu0 0.0
    %7616 = vmatprep.subr.mxu0 0.0
    %7617 = vmatpush1.msra.mxu0 0.0
    %7618 = vmatprep.subr.mxu0 0.0
    %7619 = vmatpush1.msra.mxu0 0.0
    %7620 = vmatprep.subr.mxu0 0.0
    %7621 = vmatpush1.msra.mxu0 0.0
    %7622 = vmatprep.subr.mxu0 0.0
    %7623 = vmatpush1.msra.mxu0 0.0
    %7624 = vmatprep.subr.mxu0 0.0
    %7625 = vmatpush1.msra.mxu0 0.0
    %7626 = vmatprep.subr.mxu0 0.0
    %7627 = vmatpush1.msra.mxu0 0.0
    %7628 = vmatprep.subr.mxu0 0.0
    %7629 = vmatpush1.msra.mxu0 0.0
    %7630 = vmatprep.subr.mxu0 0.0
    %7631 = vmatpush1.msra.mxu0 0.0
    %7632 = vmatprep.subr.mxu0 0.0
    %7633 = vmatpush1.msra.mxu0 0.0
    %7634 = vmatprep.subr.mxu0 0.0
    %7635 = vmatpush1.msra.mxu0 0.0
    %7636 = vmatprep.subr.mxu0 0.0
    %7637 = vmatpush1.msra.mxu0 0.0
    %7638 = vmatprep.subr.mxu0 0.0
    %7639 = vmatpush1.msra.mxu0 0.0
    %7640 = vmatprep.subr.mxu0 0.0
    %7641 = vmatpush1.msra.mxu0 0.0
    %7642 = vmatprep.subr.mxu0 0.0
    %7643 = vmatpush1.msra.mxu0 0.0
    %7644 = vmatprep.subr.mxu0 0.0
    %7645 = vmatpush1.msra.mxu0 0.0
    %7646 = vmatprep.subr.mxu0 0.0
    %7647 = vmatpush1.msra.mxu0 0.0
    %7648 = vmatprep.subr.mxu0 0.0
    %7649 = vmatpush1.msra.mxu0 0.0
    %7650 = vmatprep.subr.mxu0 0.0
    %7651 = vmatpush1.msra.mxu0 0.0
    %7652 = vmatprep.mubr.f32.mxu0 0.0
    %7653 = vmatmul.mubr.f32.gmra.mrb[0].mxu0 %v7586
    %v7654 = vpop.f32.mrb[0].mxu0
    %v7655 = vadd.f32 %v5000, %v7654
    %v7656 = vpop.f32.mrb[0].mxu0
    %7657 = vdwg.mxu0
    %7658 = vmatprep.subr.mxu0 0.0
    %7659 = vmatpush1.msra.mxu0 %v4985
    %7660 = vmatprep.subr.mxu0 0.0
    %7661 = vmatpush1.msra.mxu0 %v4986
    %7662 = vmatprep.subr.mxu0 0.0
    %7663 = vmatpush1.msra.mxu0 %v4987
    %7664 = vmatprep.subr.mxu0 0.0
    %7665 = vmatpush1.msra.mxu0 %v4988
    %7666 = vmatprep.subr.mxu0 0.0
    %7667 = vmatpush1.msra.mxu0 0.0
    %7668 = vmatprep.subr.mxu0 0.0
    %7669 = vmatpush1.msra.mxu0 0.0
    %7670 = vmatprep.subr.mxu0 0.0
    %7671 = vmatpush1.msra.mxu0 0.0
    %7672 = vmatprep.subr.mxu0 0.0
    %7673 = vmatpush1.msra.mxu0 0.0
    %7674 = vmatprep.subr.mxu0 0.0
    %7675 = vmatpush1.msra.mxu0 0.0
    %7676 = vmatprep.subr.mxu0 0.0
    %7677 = vmatpush1.msra.mxu0 0.0
    %7678 = vmatprep.subr.mxu0 0.0
    %7679 = vmatpush1.msra.mxu0 0.0
    %7680 = vmatprep.subr.mxu0 0.0
    %7681 = vmatpush1.msra.mxu0 0.0
    %7682 = vmatprep.subr.mxu0 0.0
    %7683 = vmatpush1.msra.mxu0 0.0
    %7684 = vmatprep.subr.mxu0 0.0
    %7685 = vmatpush1.msra.mxu0 0.0
    %7686 = vmatprep.subr.mxu0 0.0
    %7687 = vmatpush1.msra.mxu0 0.0
    %7688 = vmatprep.subr.mxu0 0.0
    %7689 = vmatpush1.msra.mxu0 0.0
    %7690 = vmatprep.subr.mxu0 0.0
    %7691 = vmatpush1.msra.mxu0 0.0
    %7692 = vmatprep.subr.mxu0 0.0
    %7693 = vmatpush1.msra.mxu0 0.0
    %7694 = vmatprep.subr.mxu0 0.0
    %7695 = vmatpush1.msra.mxu0 0.0
    %7696 = vmatprep.subr.mxu0 0.0
    %7697 = vmatpush1.msra.mxu0 0.0
    %7698 = vmatprep.subr.mxu0 0.0
    %7699 = vmatpush1.msra.mxu0 0.0
    %7700 = vmatprep.subr.mxu0 0.0
    %7701 = vmatpush1.msra.mxu0 0.0
    %7702 = vmatprep.subr.mxu0 0.0
    %7703 = vmatpush1.msra.mxu0 0.0
    %7704 = vmatprep.subr.mxu0 0.0
    %7705 = vmatpush1.msra.mxu0 0.0
    %7706 = vmatprep.subr.mxu0 0.0
    %7707 = vmatpush1.msra.mxu0 0.0
    %7708 = vmatprep.subr.mxu0 0.0
    %7709 = vmatpush1.msra.mxu0 0.0
    %7710 = vmatprep.subr.mxu0 0.0
    %7711 = vmatpush1.msra.mxu0 0.0
    %7712 = vmatprep.subr.mxu0 0.0
    %7713 = vmatpush1.msra.mxu0 0.0
    %7714 = vmatprep.subr.mxu0 0.0
    %7715 = vmatpush1.msra.mxu0 0.0
    %7716 = vmatprep.subr.mxu0 0.0
    %7717 = vmatpush1.msra.mxu0 0.0
    %7718 = vmatprep.subr.mxu0 0.0
    %7719 = vmatpush1.msra.mxu0 0.0
    %7720 = vmatprep.subr.mxu0 0.0
    %7721 = vmatpush1.msra.mxu0 0.0
    %7722 = vmatprep.mubr.f32.mxu0 0.0
    %7723 = vmatmul.mubr.f32.gmra.mrb[0].mxu0 %v7586
    %v7724 = vpop.f32.mrb[0].mxu0
    %v7725 = vadd.f32 %v5076, %v7724
    %v7726 = vpop.f32.mrb[0].mxu0
    %7727 = vdwg.mxu0
    %7728 = vmatprep.subr.mxu0 0.0
    %7729 = vmatpush1.msra.mxu0 %v4989
    %7730 = vmatprep.subr.mxu0 0.0
    %7731 = vmatpush1.msra.mxu0 %v4990
    %7732 = vmatprep.subr.mxu0 0.0
    %7733 = vmatpush1.msra.mxu0 %v4991
    %7734 = vmatprep.subr.mxu0 0.0
    %7735 = vmatpush1.msra.mxu0 %v4992
    %7736 = vmatprep.subr.mxu0 0.0
    %7737 = vmatpush1.msra.mxu0 0.0
    %7738 = vmatprep.subr.mxu0 0.0
    %7739 = vmatpush1.msra.mxu0 0.0
    %7740 = vmatprep.subr.mxu0 0.0
    %7741 = vmatpush1.msra.mxu0 0.0
    %7742 = vmatprep.subr.mxu0 0.0
    %7743 = vmatpush1.msra.mxu0 0.0
    %7744 = vmatprep.subr.mxu0 0.0
    %7745 = vmatpush1.msra.mxu0 0.0
    %7746 = vmatprep.subr.mxu0 0.0
    %7747 = vmatpush1.msra.mxu0 0.0
    %7748 = vmatprep.subr.mxu0 0.0
    %7749 = vmatpush1.msra.mxu0 0.0
    %7750 = vmatprep.subr.mxu0 0.0
    %7751 = vmatpush1.msra.mxu0 0.0
    %7752 = vmatprep.subr.mxu0 0.0
    %7753 = vmatpush1.msra.mxu0 0.0
    %7754 = vmatprep.subr.mxu0 0.0
    %7755 = vmatpush1.msra.mxu0 0.0
    %7756 = vmatprep.subr.mxu0 0.0
    %7757 = vmatpush1.msra.mxu0 0.0
    %7758 = vmatprep.subr.mxu0 0.0
    %7759 = vmatpush1.msra.mxu0 0.0
    %7760 = vmatprep.subr.mxu0 0.0
    %7761 = vmatpush1.msra.mxu0 0.0
    %7762 = vmatprep.subr.mxu0 0.0
    %7763 = vmatpush1.msra.mxu0 0.0
    %7764 = vmatprep.subr.mxu0 0.0
    %7765 = vmatpush1.msra.mxu0 0.0
    %7766 = vmatprep.subr.mxu0 0.0
    %7767 = vmatpush1.msra.mxu0 0.0
    %7768 = vmatprep.subr.mxu0 0.0
    %7769 = vmatpush1.msra.mxu0 0.0
    %7770 = vmatprep.subr.mxu0 0.0
    %7771 = vmatpush1.msra.mxu0 0.0
    %7772 = vmatprep.subr.mxu0 0.0
    %7773 = vmatpush1.msra.mxu0 0.0
    %7774 = vmatprep.subr.mxu0 0.0
    %7775 = vmatpush1.msra.mxu0 0.0
    %7776 = vmatprep.subr.mxu0 0.0
    %7777 = vmatpush1.msra.mxu0 0.0
    %7778 = vmatprep.subr.mxu0 0.0
    %7779 = vmatpush1.msra.mxu0 0.0
    %7780 = vmatprep.subr.mxu0 0.0
    %7781 = vmatpush1.msra.mxu0 0.0
    %7782 = vmatprep.subr.mxu0 0.0
    %7783 = vmatpush1.msra.mxu0 0.0
    %7784 = vmatprep.subr.mxu0 0.0
    %7785 = vmatpush1.msra.mxu0 0.0
    %7786 = vmatprep.subr.mxu0 0.0
    %7787 = vmatpush1.msra.mxu0 0.0
    %7788 = vmatprep.subr.mxu0 0.0
    %7789 = vmatpush1.msra.mxu0 0.0
    %7790 = vmatprep.subr.mxu0 0.0
    %7791 = vmatpush1.msra.mxu0 0.0
    %7792 = vmatprep.mubr.f32.mxu0 0.0
    %7793 = vmatmul.mubr.f32.gmra.mrb[0].mxu0 %v7586
    %v7794 = vpop.f32.mrb[0].mxu0
    %v7795 = vadd.f32 %v5152, %v7794
    %v7796 = vpop.f32.mrb[0].mxu0
    %7797 = vdwg.mxu0
    %v7798 = vadd.f32 %v4646, %v7655
    %v7799 = vxor.u32 %v7798, 2147483648
    %v7800 = vmul.f32 %v7799, 1.442695
    %v7801 = vpow.pop %v7800
    %v7802 = vadd.f32 %v7801, 1.0
    %v7803 = vrcp.pop %v7802
    %v7804 = vmul.f32 1.0, %v7803
    %v7805 = vadd.f32 %v4802, %v7725
    %v7806 = vxor.u32 %v7805, 2147483648
    %v7807 = vmul.f32 %v7806, 1.442695
    %v7808 = vpow.pop %v7807
    %v7809 = vadd.f32 %v7808, 1.0
    %v7810 = vrcp.pop %v7809
    %v7811 = vmul.f32 1.0, %v7810
    %v7812 = vmul.f32 %v7804, %v7795
    %v7813 = vadd.f32 %v4958, %v7812
    %v7814 = vtanh.pop %v7813
    %v7815 = vsub.f32 1.0, %v7811
    %v7816 = vmul.f32 %v7815, %v7814
    %v7817 = vmul.f32 %v7811, %v7584
    %v7818 = vadd.f32 %v7816, %v7817
    %v7820 = vsel %vm753, %v7818, 0
    %7822 = vmatprep.subr.mxu0 0.0
    %7823 = vmatpush1.msra.mxu0 %v4981
    %7824 = vmatprep.subr.mxu0 0.0
    %7825 = vmatpush1.msra.mxu0 %v4982
    %7826 = vmatprep.subr.mxu0 0.0
    %7827 = vmatpush1.msra.mxu0 %v4983
    %7828 = vmatprep.subr.mxu0 0.0
    %7829 = vmatpush1.msra.mxu0 %v4984
    %7830 = vmatprep.subr.mxu0 0.0
    %7831 = vmatpush1.msra.mxu0 0.0
    %7832 = vmatprep.subr.mxu0 0.0
    %7833 = vmatpush1.msra.mxu0 0.0
    %7834 = vmatprep.subr.mxu0 0.0
    %7835 = vmatpush1.msra.mxu0 0.0
    %7836 = vmatprep.subr.mxu0 0.0
    %7837 = vmatpush1.msra.mxu0 0.0
    %7838 = vmatprep.subr.mxu0 0.0
    %7839 = vmatpush1.msra.mxu0 0.0
    %7840 = vmatprep.subr.mxu0 0.0
    %7841 = vmatpush1.msra.mxu0 0.0
    %7842 = vmatprep.subr.mxu0 0.0
    %7843 = vmatpush1.msra.mxu0 0.0
    %7844 = vmatprep.subr.mxu0 0.0
    %7845 = vmatpush1.msra.mxu0 0.0
    %7846 = vmatprep.subr.mxu0 0.0
    %7847 = vmatpush1.msra.mxu0 0.0
    %7848 = vmatprep.subr.mxu0 0.0
    %7849 = vmatpush1.msra.mxu0 0.0
    %7850 = vmatprep.subr.mxu0 0.0
    %7851 = vmatpush1.msra.mxu0 0.0
    %7852 = vmatprep.subr.mxu0 0.0
    %7853 = vmatpush1.msra.mxu0 0.0
    %7854 = vmatprep.subr.mxu0 0.0
    %7855 = vmatpush1.msra.mxu0 0.0
    %7856 = vmatprep.subr.mxu0 0.0
    %7857 = vmatpush1.msra.mxu0 0.0
    %7858 = vmatprep.subr.mxu0 0.0
    %7859 = vmatpush1.msra.mxu0 0.0
    %7860 = vmatprep.subr.mxu0 0.0
    %7861 = vmatpush1.msra.mxu0 0.0
    %7862 = vmatprep.subr.mxu0 0.0
    %7863 = vmatpush1.msra.mxu0 0.0
    %7864 = vmatprep.subr.mxu0 0.0
    %7865 = vmatpush1.msra.mxu0 0.0
    %7866 = vmatprep.subr.mxu0 0.0
    %7867 = vmatpush1.msra.mxu0 0.0
    %7868 = vmatprep.subr.mxu0 0.0
    %7869 = vmatpush1.msra.mxu0 0.0
    %7870 = vmatprep.subr.mxu0 0.0
    %7871 = vmatpush1.msra.mxu0 0.0
    %7872 = vmatprep.subr.mxu0 0.0
    %7873 = vmatpush1.msra.mxu0 0.0
    %7874 = vmatprep.subr.mxu0 0.0
    %7875 = vmatpush1.msra.mxu0 0.0
    %7876 = vmatprep.subr.mxu0 0.0
    %7877 = vmatpush1.msra.mxu0 0.0
    %7878 = vmatprep.subr.mxu0 0.0
    %7879 = vmatpush1.msra.mxu0 0.0
    %7880 = vmatprep.subr.mxu0 0.0
    %7881 = vmatpush1.msra.mxu0 0.0
    %7882 = vmatprep.subr.mxu0 0.0
    %7883 = vmatpush1.msra.mxu0 0.0
    %7884 = vmatprep.subr.mxu0 0.0
    %7885 = vmatpush1.msra.mxu0 0.0
    %7886 = vmatprep.mubr.f32.mxu0 0.0
    %7887 = vmatmul.mubr.f32.gmra.mrb[0].mxu0 %v7820
    %v7888 = vpop.f32.mrb[0].mxu0
    %v7889 = vadd.f32 %v5000, %v7888
    %v7890 = vpop.f32.mrb[0].mxu0
    %7891 = vdwg.mxu0
    %7892 = vmatprep.subr.mxu0 0.0
    %7893 = vmatpush1.msra.mxu0 %v4985
    %7894 = vmatprep.subr.mxu0 0.0
    %7895 = vmatpush1.msra.mxu0 %v4986
    %7896 = vmatprep.subr.mxu0 0.0
    %7897 = vmatpush1.msra.mxu0 %v4987
    %7898 = vmatprep.subr.mxu0 0.0
    %7899 = vmatpush1.msra.mxu0 %v4988
    %7900 = vmatprep.subr.mxu0 0.0
    %7901 = vmatpush1.msra.mxu0 0.0
    %7902 = vmatprep.subr.mxu0 0.0
    %7903 = vmatpush1.msra.mxu0 0.0
    %7904 = vmatprep.subr.mxu0 0.0
    %7905 = vmatpush1.msra.mxu0 0.0
    %7906 = vmatprep.subr.mxu0 0.0
    %7907 = vmatpush1.msra.mxu0 0.0
    %7908 = vmatprep.subr.mxu0 0.0
    %7909 = vmatpush1.msra.mxu0 0.0
    %7910 = vmatprep.subr.mxu0 0.0
    %7911 = vmatpush1.msra.mxu0 0.0
    %7912 = vmatprep.subr.mxu0 0.0
    %7913 = vmatpush1.msra.mxu0 0.0
    %7914 = vmatprep.subr.mxu0 0.0
    %7915 = vmatpush1.msra.mxu0 0.0
    %7916 = vmatprep.subr.mxu0 0.0
    %7917 = vmatpush1.msra.mxu0 0.0
    %7918 = vmatprep.subr.mxu0 0.0
    %7919 = vmatpush1.msra.mxu0 0.0
    %7920 = vmatprep.subr.mxu0 0.0
    %7921 = vmatpush1.msra.mxu0 0.0
    %7922 = vmatprep.subr.mxu0 0.0
    %7923 = vmatpush1.msra.mxu0 0.0
    %7924 = vmatprep.subr.mxu0 0.0
    %7925 = vmatpush1.msra.mxu0 0.0
    %7926 = vmatprep.subr.mxu0 0.0
    %7927 = vmatpush1.msra.mxu0 0.0
    %7928 = vmatprep.subr.mxu0 0.0
    %7929 = vmatpush1.msra.mxu0 0.0
    %7930 = vmatprep.subr.mxu0 0.0
    %7931 = vmatpush1.msra.mxu0 0.0
    %7932 = vmatprep.subr.mxu0 0.0
    %7933 = vmatpush1.msra.mxu0 0.0
    %7934 = vmatprep.subr.mxu0 0.0
    %7935 = vmatpush1.msra.mxu0 0.0
    %7936 = vmatprep.subr.mxu0 0.0
    %7937 = vmatpush1.msra.mxu0 0.0
    %7938 = vmatprep.subr.mxu0 0.0
    %7939 = vmatpush1.msra.mxu0 0.0
    %7940 = vmatprep.subr.mxu0 0.0
    %7941 = vmatpush1.msra.mxu0 0.0
    %7942 = vmatprep.subr.mxu0 0.0
    %7943 = vmatpush1.msra.mxu0 0.0
    %7944 = vmatprep.subr.mxu0 0.0
    %7945 = vmatpush1.msra.mxu0 0.0
    %7946 = vmatprep.subr.mxu0 0.0
    %7947 = vmatpush1.msra.mxu0 0.0
    %7948 = vmatprep.subr.mxu0 0.0
    %7949 = vmatpush1.msra.mxu0 0.0
    %7950 = vmatprep.subr.mxu0 0.0
    %7951 = vmatpush1.msra.mxu0 0.0
    %7952 = vmatprep.subr.mxu0 0.0
    %7953 = vmatpush1.msra.mxu0 0.0
    %7954 = vmatprep.subr.mxu0 0.0
    %7955 = vmatpush1.msra.mxu0 0.0
    %7956 = vmatprep.mubr.f32.mxu0 0.0
    %7957 = vmatmul.mubr.f32.gmra.mrb[0].mxu0 %v7820
    %v7958 = vpop.f32.mrb[0].mxu0
    %v7959 = vadd.f32 %v5076, %v7958
    %v7960 = vpop.f32.mrb[0].mxu0
    %7961 = vdwg.mxu0
    %7962 = vmatprep.subr.mxu0 0.0
    %7963 = vmatpush1.msra.mxu0 %v4989
    %7964 = vmatprep.subr.mxu0 0.0
    %7965 = vmatpush1.msra.mxu0 %v4990
    %7966 = vmatprep.subr.mxu0 0.0
    %7967 = vmatpush1.msra.mxu0 %v4991
    %7968 = vmatprep.subr.mxu0 0.0
    %7969 = vmatpush1.msra.mxu0 %v4992
    %7970 = vmatprep.subr.mxu0 0.0
    %7971 = vmatpush1.msra.mxu0 0.0
    %7972 = vmatprep.subr.mxu0 0.0
    %7973 = vmatpush1.msra.mxu0 0.0
    %7974 = vmatprep.subr.mxu0 0.0
    %7975 = vmatpush1.msra.mxu0 0.0
    %7976 = vmatprep.subr.mxu0 0.0
    %7977 = vmatpush1.msra.mxu0 0.0
    %7978 = vmatprep.subr.mxu0 0.0
    %7979 = vmatpush1.msra.mxu0 0.0
    %7980 = vmatprep.subr.mxu0 0.0
    %7981 = vmatpush1.msra.mxu0 0.0
    %7982 = vmatprep.subr.mxu0 0.0
    %7983 = vmatpush1.msra.mxu0 0.0
    %7984 = vmatprep.subr.mxu0 0.0
    %7985 = vmatpush1.msra.mxu0 0.0
    %7986 = vmatprep.subr.mxu0 0.0
    %7987 = vmatpush1.msra.mxu0 0.0
    %7988 = vmatprep.subr.mxu0 0.0
    %7989 = vmatpush1.msra.mxu0 0.0
    %7990 = vmatprep.subr.mxu0 0.0
    %7991 = vmatpush1.msra.mxu0 0.0
    %7992 = vmatprep.subr.mxu0 0.0
    %7993 = vmatpush1.msra.mxu0 0.0
    %7994 = vmatprep.subr.mxu0 0.0
    %7995 = vmatpush1.msra.mxu0 0.0
    %7996 = vmatprep.subr.mxu0 0.0
    %7997 = vmatpush1.msra.mxu0 0.0
    %7998 = vmatprep.subr.mxu0 0.0
    %7999 = vmatpush1.msra.mxu0 0.0
    %8000 = vmatprep.subr.mxu0 0.0
    %8001 = vmatpush1.msra.mxu0 0.0
    %8002 = vmatprep.subr.mxu0 0.0
    %8003 = vmatpush1.msra.mxu0 0.0
    %8004 = vmatprep.subr.mxu0 0.0
    %8005 = vmatpush1.msra.mxu0 0.0
    %8006 = vmatprep.subr.mxu0 0.0
    %8007 = vmatpush1.msra.mxu0 0.0
    %8008 = vmatprep.subr.mxu0 0.0
    %8009 = vmatpush1.msra.mxu0 0.0
    %8010 = vmatprep.subr.mxu0 0.0
    %8011 = vmatpush1.msra.mxu0 0.0
    %8012 = vmatprep.subr.mxu0 0.0
    %8013 = vmatpush1.msra.mxu0 0.0
    %8014 = vmatprep.subr.mxu0 0.0
    %8015 = vmatpush1.msra.mxu0 0.0
    %8016 = vmatprep.subr.mxu0 0.0
    %8017 = vmatpush1.msra.mxu0 0.0
    %8018 = vmatprep.subr.mxu0 0.0
    %8019 = vmatpush1.msra.mxu0 0.0
    %8020 = vmatprep.subr.mxu0 0.0
    %8021 = vmatpush1.msra.mxu0 0.0
    %8022 = vmatprep.subr.mxu0 0.0
    %8023 = vmatpush1.msra.mxu0 0.0
    %8024 = vmatprep.subr.mxu0 0.0
    %8025 = vmatpush1.msra.mxu0 0.0
    %8026 = vmatprep.mubr.f32.mxu0 0.0
    %8027 = vmatmul.mubr.f32.gmra.mrb[0].mxu0 %v7820
    %v8028 = vpop.f32.mrb[0].mxu0
    %v8029 = vadd.f32 %v5152, %v8028
    %v8030 = vpop.f32.mrb[0].mxu0
    %8031 = vdwg.mxu0
    %v8032 = vadd.f32 %v4651, %v7889
    %v8033 = vxor.u32 %v8032, 2147483648
    %v8034 = vmul.f32 %v8033, 1.442695
    %v8035 = vpow.pop %v8034
    %v8036 = vadd.f32 %v8035, 1.0
    %v8037 = vrcp.pop %v8036
    %v8038 = vmul.f32 1.0, %v8037
    %v8039 = vadd.f32 %v4807, %v7959
    %v8040 = vxor.u32 %v8039, 2147483648
    %v8041 = vmul.f32 %v8040, 1.442695
    %v8042 = vpow.pop %v8041
    %v8043 = vadd.f32 %v8042, 1.0
    %v8044 = vrcp.pop %v8043
    %v8045 = vmul.f32 1.0, %v8044
    %v8046 = vmul.f32 %v8038, %v8029
    %v8047 = vadd.f32 %v4963, %v8046
    %v8048 = vtanh.pop %v8047
    %v8049 = vsub.f32 1.0, %v8045
    %v8050 = vmul.f32 %v8049, %v8048
    %v8051 = vmul.f32 %v8045, %v7818
    %v8052 = vadd.f32 %v8050, %v8051
    %v8054 = vsel %vm753, %v8052, 0
    %8056 = vmatprep.subr.mxu0 0.0
    %8057 = vmatpush1.msra.mxu0 %v4981
    %8058 = vmatprep.subr.mxu0 0.0
    %8059 = vmatpush1.msra.mxu0 %v4982
    %8060 = vmatprep.subr.mxu0 0.0
    %8061 = vmatpush1.msra.mxu0 %v4983
    %8062 = vmatprep.subr.mxu0 0.0
    %8063 = vmatpush1.msra.mxu0 %v4984
    %8064 = vmatprep.subr.mxu0 0.0
    %8065 = vmatpush1.msra.mxu0 0.0
    %8066 = vmatprep.subr.mxu0 0.0
    %8067 = vmatpush1.msra.mxu0 0.0
    %8068 = vmatprep.subr.mxu0 0.0
    %8069 = vmatpush1.msra.mxu0 0.0
    %8070 = vmatprep.subr.mxu0 0.0
    %8071 = vmatpush1.msra.mxu0 0.0
    %8072 = vmatprep.subr.mxu0 0.0
    %8073 = vmatpush1.msra.mxu0 0.0
    %8074 = vmatprep.subr.mxu0 0.0
    %8075 = vmatpush1.msra.mxu0 0.0
    %8076 = vmatprep.subr.mxu0 0.0
    %8077 = vmatpush1.msra.mxu0 0.0
    %8078 = vmatprep.subr.mxu0 0.0
    %8079 = vmatpush1.msra.mxu0 0.0
    %8080 = vmatprep.subr.mxu0 0.0
    %8081 = vmatpush1.msra.mxu0 0.0
    %8082 = vmatprep.subr.mxu0 0.0
    %8083 = vmatpush1.msra.mxu0 0.0
    %8084 = vmatprep.subr.mxu0 0.0
    %8085 = vmatpush1.msra.mxu0 0.0
    %8086 = vmatprep.subr.mxu0 0.0
    %8087 = vmatpush1.msra.mxu0 0.0
    %8088 = vmatprep.subr.mxu0 0.0
    %8089 = vmatpush1.msra.mxu0 0.0
    %8090 = vmatprep.subr.mxu0 0.0
    %8091 = vmatpush1.msra.mxu0 0.0
    %8092 = vmatprep.subr.mxu0 0.0
    %8093 = vmatpush1.msra.mxu0 0.0
    %8094 = vmatprep.subr.mxu0 0.0
    %8095 = vmatpush1.msra.mxu0 0.0
    %8096 = vmatprep.subr.mxu0 0.0
    %8097 = vmatpush1.msra.mxu0 0.0
    %8098 = vmatprep.subr.mxu0 0.0
    %8099 = vmatpush1.msra.mxu0 0.0
    %8100 = vmatprep.subr.mxu0 0.0
    %8101 = vmatpush1.msra.mxu0 0.0
    %8102 = vmatprep.subr.mxu0 0.0
    %8103 = vmatpush1.msra.mxu0 0.0
    %8104 = vmatprep.subr.mxu0 0.0
    %8105 = vmatpush1.msra.mxu0 0.0
    %8106 = vmatprep.subr.mxu0 0.0
    %8107 = vmatpush1.msra.mxu0 0.0
    %8108 = vmatprep.subr.mxu0 0.0
    %8109 = vmatpush1.msra.mxu0 0.0
    %8110 = vmatprep.subr.mxu0 0.0
    %8111 = vmatpush1.msra.mxu0 0.0
    %8112 = vmatprep.subr.mxu0 0.0
    %8113 = vmatpush1.msra.mxu0 0.0
    %8114 = vmatprep.subr.mxu0 0.0
    %8115 = vmatpush1.msra.mxu0 0.0
    %8116 = vmatprep.subr.mxu0 0.0
    %8117 = vmatpush1.msra.mxu0 0.0
    %8118 = vmatprep.subr.mxu0 0.0
    %8119 = vmatpush1.msra.mxu0 0.0
    %8120 = vmatprep.mubr.f32.mxu0 0.0
    %8121 = vmatmul.mubr.f32.gmra.mrb[0].mxu0 %v8054
    %v8122 = vpop.f32.mrb[0].mxu0
    %v8123 = vadd.f32 %v5000, %v8122
    %v8124 = vpop.f32.mrb[0].mxu0
    %8125 = vdwg.mxu0
    %8126 = vmatprep.subr.mxu0 0.0
    %8127 = vmatpush1.msra.mxu0 %v4985
    %8128 = vmatprep.subr.mxu0 0.0
    %8129 = vmatpush1.msra.mxu0 %v4986
    %8130 = vmatprep.subr.mxu0 0.0
    %8131 = vmatpush1.msra.mxu0 %v4987
    %8132 = vmatprep.subr.mxu0 0.0
    %8133 = vmatpush1.msra.mxu0 %v4988
    %8134 = vmatprep.subr.mxu0 0.0
    %8135 = vmatpush1.msra.mxu0 0.0
    %8136 = vmatprep.subr.mxu0 0.0
    %8137 = vmatpush1.msra.mxu0 0.0
    %8138 = vmatprep.subr.mxu0 0.0
    %8139 = vmatpush1.msra.mxu0 0.0
    %8140 = vmatprep.subr.mxu0 0.0
    %8141 = vmatpush1.msra.mxu0 0.0
    %8142 = vmatprep.subr.mxu0 0.0
    %8143 = vmatpush1.msra.mxu0 0.0
    %8144 = vmatprep.subr.mxu0 0.0
    %8145 = vmatpush1.msra.mxu0 0.0
    %8146 = vmatprep.subr.mxu0 0.0
    %8147 = vmatpush1.msra.mxu0 0.0
    %8148 = vmatprep.subr.mxu0 0.0
    %8149 = vmatpush1.msra.mxu0 0.0
    %8150 = vmatprep.subr.mxu0 0.0
    %8151 = vmatpush1.msra.mxu0 0.0
    %8152 = vmatprep.subr.mxu0 0.0
    %8153 = vmatpush1.msra.mxu0 0.0
    %8154 = vmatprep.subr.mxu0 0.0
    %8155 = vmatpush1.msra.mxu0 0.0
    %8156 = vmatprep.subr.mxu0 0.0
    %8157 = vmatpush1.msra.mxu0 0.0
    %8158 = vmatprep.subr.mxu0 0.0
    %8159 = vmatpush1.msra.mxu0 0.0
    %8160 = vmatprep.subr.mxu0 0.0
    %8161 = vmatpush1.msra.mxu0 0.0
    %8162 = vmatprep.subr.mxu0 0.0
    %8163 = vmatpush1.msra.mxu0 0.0
    %8164 = vmatprep.subr.mxu0 0.0
    %8165 = vmatpush1.msra.mxu0 0.0
    %8166 = vmatprep.subr.mxu0 0.0
    %8167 = vmatpush1.msra.mxu0 0.0
    %8168 = vmatprep.subr.mxu0 0.0
    %8169 = vmatpush1.msra.mxu0 0.0
    %8170 = vmatprep.subr.mxu0 0.0
    %8171 = vmatpush1.msra.mxu0 0.0
    %8172 = vmatprep.subr.mxu0 0.0
    %8173 = vmatpush1.msra.mxu0 0.0
    %8174 = vmatprep.subr.mxu0 0.0
    %8175 = vmatpush1.msra.mxu0 0.0
    %8176 = vmatprep.subr.mxu0 0.0
    %8177 = vmatpush1.msra.mxu0 0.0
    %8178 = vmatprep.subr.mxu0 0.0
    %8179 = vmatpush1.msra.mxu0 0.0
    %8180 = vmatprep.subr.mxu0 0.0
    %8181 = vmatpush1.msra.mxu0 0.0
    %8182 = vmatprep.subr.mxu0 0.0
    %8183 = vmatpush1.msra.mxu0 0.0
    %8184 = vmatprep.subr.mxu0 0.0
    %8185 = vmatpush1.msra.mxu0 0.0
    %8186 = vmatprep.subr.mxu0 0.0
    %8187 = vmatpush1.msra.mxu0 0.0
    %8188 = vmatprep.subr.mxu0 0.0
    %8189 = vmatpush1.msra.mxu0 0.0
    %8190 = vmatprep.mubr.f32.mxu0 0.0
    %8191 = vmatmul.mubr.f32.gmra.mrb[0].mxu0 %v8054
    %v8192 = vpop.f32.mrb[0].mxu0
    %v8193 = vadd.f32 %v5076, %v8192
    %v8194 = vpop.f32.mrb[0].mxu0
    %8195 = vdwg.mxu0
    %8196 = vmatprep.subr.mxu0 0.0
    %8197 = vmatpush1.msra.mxu0 %v4989
    %8198 = vmatprep.subr.mxu0 0.0
    %8199 = vmatpush1.msra.mxu0 %v4990
    %8200 = vmatprep.subr.mxu0 0.0
    %8201 = vmatpush1.msra.mxu0 %v4991
    %8202 = vmatprep.subr.mxu0 0.0
    %8203 = vmatpush1.msra.mxu0 %v4992
    %8204 = vmatprep.subr.mxu0 0.0
    %8205 = vmatpush1.msra.mxu0 0.0
    %8206 = vmatprep.subr.mxu0 0.0
    %8207 = vmatpush1.msra.mxu0 0.0
    %8208 = vmatprep.subr.mxu0 0.0
    %8209 = vmatpush1.msra.mxu0 0.0
    %8210 = vmatprep.subr.mxu0 0.0
    %8211 = vmatpush1.msra.mxu0 0.0
    %8212 = vmatprep.subr.mxu0 0.0
    %8213 = vmatpush1.msra.mxu0 0.0
    %8214 = vmatprep.subr.mxu0 0.0
    %8215 = vmatpush1.msra.mxu0 0.0
    %8216 = vmatprep.subr.mxu0 0.0
    %8217 = vmatpush1.msra.mxu0 0.0
    %8218 = vmatprep.subr.mxu0 0.0
    %8219 = vmatpush1.msra.mxu0 0.0
    %8220 = vmatprep.subr.mxu0 0.0
    %8221 = vmatpush1.msra.mxu0 0.0
    %8222 = vmatprep.subr.mxu0 0.0
    %8223 = vmatpush1.msra.mxu0 0.0
    %8224 = vmatprep.subr.mxu0 0.0
    %8225 = vmatpush1.msra.mxu0 0.0
    %8226 = vmatprep.subr.mxu0 0.0
    %8227 = vmatpush1.msra.mxu0 0.0
    %8228 = vmatprep.subr.mxu0 0.0
    %8229 = vmatpush1.msra.mxu0 0.0
    %8230 = vmatprep.subr.mxu0 0.0
    %8231 = vmatpush1.msra.mxu0 0.0
    %8232 = vmatprep.subr.mxu0 0.0
    %8233 = vmatpush1.msra.mxu0 0.0
    %8234 = vmatprep.subr.mxu0 0.0
    %8235 = vmatpush1.msra.mxu0 0.0
    %8236 = vmatprep.subr.mxu0 0.0
    %8237 = vmatpush1.msra.mxu0 0.0
    %8238 = vmatprep.subr.mxu0 0.0
    %8239 = vmatpush1.msra.mxu0 0.0
    %8240 = vmatprep.subr.mxu0 0.0
    %8241 = vmatpush1.msra.mxu0 0.0
    %8242 = vmatprep.subr.mxu0 0.0
    %8243 = vmatpush1.msra.mxu0 0.0
    %8244 = vmatprep.subr.mxu0 0.0
    %8245 = vmatpush1.msra.mxu0 0.0
    %8246 = vmatprep.subr.mxu0 0.0
    %8247 = vmatpush1.msra.mxu0 0.0
    %8248 = vmatprep.subr.mxu0 0.0
    %8249 = vmatpush1.msra.mxu0 0.0
    %8250 = vmatprep.subr.mxu0 0.0
    %8251 = vmatpush1.msra.mxu0 0.0
    %8252 = vmatprep.subr.mxu0 0.0
    %8253 = vmatpush1.msra.mxu0 0.0
    %8254 = vmatprep.subr.mxu0 0.0
    %8255 = vmatpush1.msra.mxu0 0.0
    %8256 = vmatprep.subr.mxu0 0.0
    %8257 = vmatpush1.msra.mxu0 0.0
    %8258 = vmatprep.subr.mxu0 0.0
    %8259 = vmatpush1.msra.mxu0 0.0
    %8260 = vmatprep.mubr.f32.mxu0 0.0
    %8261 = vmatmul.mubr.f32.gmra.mrb[0].mxu0 %v8054
    %v8262 = vpop.f32.mrb[0].mxu0
    %v8263 = vadd.f32 %v5152, %v8262
    %v8264 = vpop.f32.mrb[0].mxu0
    %8265 = vdwg.mxu0
    %v8266 = vadd.f32 %v4656, %v8123
    %v8267 = vxor.u32 %v8266, 2147483648
    %v8268 = vmul.f32 %v8267, 1.442695
    %v8269 = vpow.pop %v8268
    %v8270 = vadd.f32 %v8269, 1.0
    %v8271 = vrcp.pop %v8270
    %v8272 = vmul.f32 1.0, %v8271
    %v8273 = vadd.f32 %v4812, %v8193
    %v8274 = vxor.u32 %v8273, 2147483648
    %v8275 = vmul.f32 %v8274, 1.442695
    %v8276 = vpow.pop %v8275
    %v8277 = vadd.f32 %v8276, 1.0
    %v8278 = vrcp.pop %v8277
    %v8279 = vmul.f32 1.0, %v8278
    %v8280 = vmul.f32 %v8272, %v8263
    %v8281 = vadd.f32 %v4968, %v8280
    %v8282 = vtanh.pop %v8281
    %v8283 = vsub.f32 1.0, %v8279
    %v8284 = vmul.f32 %v8283, %v8282
    %v8285 = vmul.f32 %v8279, %v8052
    %v8286 = vadd.f32 %v8284, %v8285
    %v8288 = vsel %vm753, %v8286, 0
    %8290 = vmatprep.subr.mxu0 0.0
    %8291 = vmatpush1.msra.mxu0 %v4981
    %8292 = vmatprep.subr.mxu0 0.0
    %8293 = vmatpush1.msra.mxu0 %v4982
    %8294 = vmatprep.subr.mxu0 0.0
    %8295 = vmatpush1.msra.mxu0 %v4983
    %8296 = vmatprep.subr.mxu0 0.0
    %8297 = vmatpush1.msra.mxu0 %v4984
    %8298 = vmatprep.subr.mxu0 0.0
    %8299 = vmatpush1.msra.mxu0 0.0
    %8300 = vmatprep.subr.mxu0 0.0
    %8301 = vmatpush1.msra.mxu0 0.0
    %8302 = vmatprep.subr.mxu0 0.0
    %8303 = vmatpush1.msra.mxu0 0.0
    %8304 = vmatprep.subr.mxu0 0.0
    %8305 = vmatpush1.msra.mxu0 0.0
    %8306 = vmatprep.subr.mxu0 0.0
    %8307 = vmatpush1.msra.mxu0 0.0
    %8308 = vmatprep.subr.mxu0 0.0
    %8309 = vmatpush1.msra.mxu0 0.0
    %8310 = vmatprep.subr.mxu0 0.0
    %8311 = vmatpush1.msra.mxu0 0.0
    %8312 = vmatprep.subr.mxu0 0.0
    %8313 = vmatpush1.msra.mxu0 0.0
    %8314 = vmatprep.subr.mxu0 0.0
    %8315 = vmatpush1.msra.mxu0 0.0
    %8316 = vmatprep.subr.mxu0 0.0
    %8317 = vmatpush1.msra.mxu0 0.0
    %8318 = vmatprep.subr.mxu0 0.0
    %8319 = vmatpush1.msra.mxu0 0.0
    %8320 = vmatprep.subr.mxu0 0.0
    %8321 = vmatpush1.msra.mxu0 0.0
    %8322 = vmatprep.subr.mxu0 0.0
    %8323 = vmatpush1.msra.mxu0 0.0
    %8324 = vmatprep.subr.mxu0 0.0
    %8325 = vmatpush1.msra.mxu0 0.0
    %8326 = vmatprep.subr.mxu0 0.0
    %8327 = vmatpush1.msra.mxu0 0.0
    %8328 = vmatprep.subr.mxu0 0.0
    %8329 = vmatpush1.msra.mxu0 0.0
    %8330 = vmatprep.subr.mxu0 0.0
    %8331 = vmatpush1.msra.mxu0 0.0
    %8332 = vmatprep.subr.mxu0 0.0
    %8333 = vmatpush1.msra.mxu0 0.0
    %8334 = vmatprep.subr.mxu0 0.0
    %8335 = vmatpush1.msra.mxu0 0.0
    %8336 = vmatprep.subr.mxu0 0.0
    %8337 = vmatpush1.msra.mxu0 0.0
    %8338 = vmatprep.subr.mxu0 0.0
    %8339 = vmatpush1.msra.mxu0 0.0
    %8340 = vmatprep.subr.mxu0 0.0
    %8341 = vmatpush1.msra.mxu0 0.0
    %8342 = vmatprep.subr.mxu0 0.0
    %8343 = vmatpush1.msra.mxu0 0.0
    %8344 = vmatprep.subr.mxu0 0.0
    %8345 = vmatpush1.msra.mxu0 0.0
    %8346 = vmatprep.subr.mxu0 0.0
    %8347 = vmatpush1.msra.mxu0 0.0
    %8348 = vmatprep.subr.mxu0 0.0
    %8349 = vmatpush1.msra.mxu0 0.0
    %8350 = vmatprep.subr.mxu0 0.0
    %8351 = vmatpush1.msra.mxu0 0.0
    %8352 = vmatprep.subr.mxu0 0.0
    %8353 = vmatpush1.msra.mxu0 0.0
    %8354 = vmatprep.mubr.f32.mxu0 0.0
    %8355 = vmatmul.mubr.f32.gmra.mrb[0].mxu0 %v8288
    %v8356 = vpop.f32.mrb[0].mxu0
    %v8357 = vadd.f32 %v5000, %v8356
    %v8358 = vpop.f32.mrb[0].mxu0
    %8359 = vdwg.mxu0
    %8360 = vmatprep.subr.mxu0 0.0
    %8361 = vmatpush1.msra.mxu0 %v4985
    %8362 = vmatprep.subr.mxu0 0.0
    %8363 = vmatpush1.msra.mxu0 %v4986
    %8364 = vmatprep.subr.mxu0 0.0
    %8365 = vmatpush1.msra.mxu0 %v4987
    %8366 = vmatprep.subr.mxu0 0.0
    %8367 = vmatpush1.msra.mxu0 %v4988
    %8368 = vmatprep.subr.mxu0 0.0
    %8369 = vmatpush1.msra.mxu0 0.0
    %8370 = vmatprep.subr.mxu0 0.0
    %8371 = vmatpush1.msra.mxu0 0.0
    %8372 = vmatprep.subr.mxu0 0.0
    %8373 = vmatpush1.msra.mxu0 0.0
    %8374 = vmatprep.subr.mxu0 0.0
    %8375 = vmatpush1.msra.mxu0 0.0
    %8376 = vmatprep.subr.mxu0 0.0
    %8377 = vmatpush1.msra.mxu0 0.0
    %8378 = vmatprep.subr.mxu0 0.0
    %8379 = vmatpush1.msra.mxu0 0.0
    %8380 = vmatprep.subr.mxu0 0.0
    %8381 = vmatpush1.msra.mxu0 0.0
    %8382 = vmatprep.subr.mxu0 0.0
    %8383 = vmatpush1.msra.mxu0 0.0
    %8384 = vmatprep.subr.mxu0 0.0
    %8385 = vmatpush1.msra.mxu0 0.0
    %8386 = vmatprep.subr.mxu0 0.0
    %8387 = vmatpush1.msra.mxu0 0.0
    %8388 = vmatprep.subr.mxu0 0.0
    %8389 = vmatpush1.msra.mxu0 0.0
    %8390 = vmatprep.subr.mxu0 0.0
    %8391 = vmatpush1.msra.mxu0 0.0
    %8392 = vmatprep.subr.mxu0 0.0
    %8393 = vmatpush1.msra.mxu0 0.0
    %8394 = vmatprep.subr.mxu0 0.0
    %8395 = vmatpush1.msra.mxu0 0.0
    %8396 = vmatprep.subr.mxu0 0.0
    %8397 = vmatpush1.msra.mxu0 0.0
    %8398 = vmatprep.subr.mxu0 0.0
    %8399 = vmatpush1.msra.mxu0 0.0
    %8400 = vmatprep.subr.mxu0 0.0
    %8401 = vmatpush1.msra.mxu0 0.0
    %8402 = vmatprep.subr.mxu0 0.0
    %8403 = vmatpush1.msra.mxu0 0.0
    %8404 = vmatprep.subr.mxu0 0.0
    %8405 = vmatpush1.msra.mxu0 0.0
    %8406 = vmatprep.subr.mxu0 0.0
    %8407 = vmatpush1.msra.mxu0 0.0
    %8408 = vmatprep.subr.mxu0 0.0
    %8409 = vmatpush1.msra.mxu0 0.0
    %8410 = vmatprep.subr.mxu0 0.0
    %8411 = vmatpush1.msra.mxu0 0.0
    %8412 = vmatprep.subr.mxu0 0.0
    %8413 = vmatpush1.msra.mxu0 0.0
    %8414 = vmatprep.subr.mxu0 0.0
    %8415 = vmatpush1.msra.mxu0 0.0
    %8416 = vmatprep.subr.mxu0 0.0
    %8417 = vmatpush1.msra.mxu0 0.0
    %8418 = vmatprep.subr.mxu0 0.0
    %8419 = vmatpush1.msra.mxu0 0.0
    %8420 = vmatprep.subr.mxu0 0.0
    %8421 = vmatpush1.msra.mxu0 0.0
    %8422 = vmatprep.subr.mxu0 0.0
    %8423 = vmatpush1.msra.mxu0 0.0
    %8424 = vmatprep.mubr.f32.mxu0 0.0
    %8425 = vmatmul.mubr.f32.gmra.mrb[0].mxu0 %v8288
    %v8426 = vpop.f32.mrb[0].mxu0
    %v8427 = vadd.f32 %v5076, %v8426
    %v8428 = vpop.f32.mrb[0].mxu0
    %8429 = vdwg.mxu0
    %8430 = vmatprep.subr.mxu0 0.0
    %8431 = vmatpush1.msra.mxu0 %v4989
    %8432 = vmatprep.subr.mxu0 0.0
    %8433 = vmatpush1.msra.mxu0 %v4990
    %8434 = vmatprep.subr.mxu0 0.0
    %8435 = vmatpush1.msra.mxu0 %v4991
    %8436 = vmatprep.subr.mxu0 0.0
    %8437 = vmatpush1.msra.mxu0 %v4992
    %8438 = vmatprep.subr.mxu0 0.0
    %8439 = vmatpush1.msra.mxu0 0.0
    %8440 = vmatprep.subr.mxu0 0.0
    %8441 = vmatpush1.msra.mxu0 0.0
    %8442 = vmatprep.subr.mxu0 0.0
    %8443 = vmatpush1.msra.mxu0 0.0
    %8444 = vmatprep.subr.mxu0 0.0
    %8445 = vmatpush1.msra.mxu0 0.0
    %8446 = vmatprep.subr.mxu0 0.0
    %8447 = vmatpush1.msra.mxu0 0.0
    %8448 = vmatprep.subr.mxu0 0.0
    %8449 = vmatpush1.msra.mxu0 0.0
    %8450 = vmatprep.subr.mxu0 0.0
    %8451 = vmatpush1.msra.mxu0 0.0
    %8452 = vmatprep.subr.mxu0 0.0
    %8453 = vmatpush1.msra.mxu0 0.0
    %8454 = vmatprep.subr.mxu0 0.0
    %8455 = vmatpush1.msra.mxu0 0.0
    %8456 = vmatprep.subr.mxu0 0.0
    %8457 = vmatpush1.msra.mxu0 0.0
    %8458 = vmatprep.subr.mxu0 0.0
    %8459 = vmatpush1.msra.mxu0 0.0
    %8460 = vmatprep.subr.mxu0 0.0
    %8461 = vmatpush1.msra.mxu0 0.0
    %8462 = vmatprep.subr.mxu0 0.0
    %8463 = vmatpush1.msra.mxu0 0.0
    %8464 = vmatprep.subr.mxu0 0.0
    %8465 = vmatpush1.msra.mxu0 0.0
    %8466 = vmatprep.subr.mxu0 0.0
    %8467 = vmatpush1.msra.mxu0 0.0
    %8468 = vmatprep.subr.mxu0 0.0
    %8469 = vmatpush1.msra.mxu0 0.0
    %8470 = vmatprep.subr.mxu0 0.0
    %8471 = vmatpush1.msra.mxu0 0.0
    %8472 = vmatprep.subr.mxu0 0.0
    %8473 = vmatpush1.msra.mxu0 0.0
    %8474 = vmatprep.subr.mxu0 0.0
    %8475 = vmatpush1.msra.mxu0 0.0
    %8476 = vmatprep.subr.mxu0 0.0
    %8477 = vmatpush1.msra.mxu0 0.0
    %8478 = vmatprep.subr.mxu0 0.0
    %8479 = vmatpush1.msra.mxu0 0.0
    %8480 = vmatprep.subr.mxu0 0.0
    %8481 = vmatpush1.msra.mxu0 0.0
    %8482 = vmatprep.subr.mxu0 0.0
    %8483 = vmatpush1.msra.mxu0 0.0
    %8484 = vmatprep.subr.mxu0 0.0
    %8485 = vmatpush1.msra.mxu0 0.0
    %8486 = vmatprep.subr.mxu0 0.0
    %8487 = vmatpush1.msra.mxu0 0.0
    %8488 = vmatprep.subr.mxu0 0.0
    %8489 = vmatpush1.msra.mxu0 0.0
    %8490 = vmatprep.subr.mxu0 0.0
    %8491 = vmatpush1.msra.mxu0 0.0
    %8492 = vmatprep.subr.mxu0 0.0
    %8493 = vmatpush1.msra.mxu0 0.0
    %8494 = vmatprep.mubr.f32.mxu0 0.0
    %8495 = vmatmul.mubr.f32.gmra.mrb[0].mxu0 %v8288
    %v8496 = vpop.f32.mrb[0].mxu0
    %v8497 = vadd.f32 %v5152, %v8496
    %v8498 = vpop.f32.mrb[0].mxu0
    %8499 = vdwg.mxu0
    %v8500 = vadd.f32 %v4661, %v8357
    %v8501 = vxor.u32 %v8500, 2147483648
    %v8502 = vmul.f32 %v8501, 1.442695
    %v8503 = vpow.pop %v8502
    %v8504 = vadd.f32 %v8503, 1.0
    %v8505 = vrcp.pop %v8504
    %v8506 = vmul.f32 1.0, %v8505
    %v8507 = vadd.f32 %v4817, %v8427
    %v8508 = vxor.u32 %v8507, 2147483648
    %v8509 = vmul.f32 %v8508, 1.442695
    %v8510 = vpow.pop %v8509
    %v8511 = vadd.f32 %v8510, 1.0
    %v8512 = vrcp.pop %v8511
    %v8513 = vmul.f32 1.0, %v8512
    %v8514 = vmul.f32 %v8506, %v8497
    %v8515 = vadd.f32 %v4973, %v8514
    %v8516 = vtanh.pop %v8515
    %v8517 = vsub.f32 1.0, %v8513
    %v8518 = vmul.f32 %v8517, %v8516
    %v8519 = vmul.f32 %v8513, %v8286
    %v8520 = vadd.f32 %v8518, %v8519
    %v8522 = vsel %vm753, %v8520, 0
    %8524 = vmatprep.subr.mxu0 0.0
    %8525 = vmatpush1.msra.mxu0 %v4981
    %8526 = vmatprep.subr.mxu0 0.0
    %8527 = vmatpush1.msra.mxu0 %v4982
    %8528 = vmatprep.subr.mxu0 0.0
    %8529 = vmatpush1.msra.mxu0 %v4983
    %8530 = vmatprep.subr.mxu0 0.0
    %8531 = vmatpush1.msra.mxu0 %v4984
    %8532 = vmatprep.subr.mxu0 0.0
    %8533 = vmatpush1.msra.mxu0 0.0
    %8534 = vmatprep.subr.mxu0 0.0
    %8535 = vmatpush1.msra.mxu0 0.0
    %8536 = vmatprep.subr.mxu0 0.0
    %8537 = vmatpush1.msra.mxu0 0.0
    %8538 = vmatprep.subr.mxu0 0.0
    %8539 = vmatpush1.msra.mxu0 0.0
    %8540 = vmatprep.subr.mxu0 0.0
    %8541 = vmatpush1.msra.mxu0 0.0
    %8542 = vmatprep.subr.mxu0 0.0
    %8543 = vmatpush1.msra.mxu0 0.0
    %8544 = vmatprep.subr.mxu0 0.0
    %8545 = vmatpush1.msra.mxu0 0.0
    %8546 = vmatprep.subr.mxu0 0.0
    %8547 = vmatpush1.msra.mxu0 0.0
    %8548 = vmatprep.subr.mxu0 0.0
    %8549 = vmatpush1.msra.mxu0 0.0
    %8550 = vmatprep.subr.mxu0 0.0
    %8551 = vmatpush1.msra.mxu0 0.0
    %8552 = vmatprep.subr.mxu0 0.0
    %8553 = vmatpush1.msra.mxu0 0.0
    %8554 = vmatprep.subr.mxu0 0.0
    %8555 = vmatpush1.msra.mxu0 0.0
    %8556 = vmatprep.subr.mxu0 0.0
    %8557 = vmatpush1.msra.mxu0 0.0
    %8558 = vmatprep.subr.mxu0 0.0
    %8559 = vmatpush1.msra.mxu0 0.0
    %8560 = vmatprep.subr.mxu0 0.0
    %8561 = vmatpush1.msra.mxu0 0.0
    %8562 = vmatprep.subr.mxu0 0.0
    %8563 = vmatpush1.msra.mxu0 0.0
    %8564 = vmatprep.subr.mxu0 0.0
    %8565 = vmatpush1.msra.mxu0 0.0
    %8566 = vmatprep.subr.mxu0 0.0
    %8567 = vmatpush1.msra.mxu0 0.0
    %8568 = vmatprep.subr.mxu0 0.0
    %8569 = vmatpush1.msra.mxu0 0.0
    %8570 = vmatprep.subr.mxu0 0.0
    %8571 = vmatpush1.msra.mxu0 0.0
    %8572 = vmatprep.subr.mxu0 0.0
    %8573 = vmatpush1.msra.mxu0 0.0
    %8574 = vmatprep.subr.mxu0 0.0
    %8575 = vmatpush1.msra.mxu0 0.0
    %8576 = vmatprep.subr.mxu0 0.0
    %8577 = vmatpush1.msra.mxu0 0.0
    %8578 = vmatprep.subr.mxu0 0.0
    %8579 = vmatpush1.msra.mxu0 0.0
    %8580 = vmatprep.subr.mxu0 0.0
    %8581 = vmatpush1.msra.mxu0 0.0
    %8582 = vmatprep.subr.mxu0 0.0
    %8583 = vmatpush1.msra.mxu0 0.0
    %8584 = vmatprep.subr.mxu0 0.0
    %8585 = vmatpush1.msra.mxu0 0.0
    %8586 = vmatprep.subr.mxu0 0.0
    %8587 = vmatpush1.msra.mxu0 0.0
    %8588 = vmatprep.mubr.f32.mxu0 0.0
    %8589 = vmatmul.mubr.f32.gmra.mrb[0].mxu0 %v8522
    %v8590 = vpop.f32.mrb[0].mxu0
    %v8591 = vadd.f32 %v5000, %v8590
    %v8592 = vpop.f32.mrb[0].mxu0
    %8593 = vdwg.mxu0
    %8594 = vmatprep.subr.mxu0 0.0
    %8595 = vmatpush1.msra.mxu0 %v4985
    %8596 = vmatprep.subr.mxu0 0.0
    %8597 = vmatpush1.msra.mxu0 %v4986
    %8598 = vmatprep.subr.mxu0 0.0
    %8599 = vmatpush1.msra.mxu0 %v4987
    %8600 = vmatprep.subr.mxu0 0.0
    %8601 = vmatpush1.msra.mxu0 %v4988
    %8602 = vmatprep.subr.mxu0 0.0
    %8603 = vmatpush1.msra.mxu0 0.0
    %8604 = vmatprep.subr.mxu0 0.0
    %8605 = vmatpush1.msra.mxu0 0.0
    %8606 = vmatprep.subr.mxu0 0.0
    %8607 = vmatpush1.msra.mxu0 0.0
    %8608 = vmatprep.subr.mxu0 0.0
    %8609 = vmatpush1.msra.mxu0 0.0
    %8610 = vmatprep.subr.mxu0 0.0
    %8611 = vmatpush1.msra.mxu0 0.0
    %8612 = vmatprep.subr.mxu0 0.0
    %8613 = vmatpush1.msra.mxu0 0.0
    %8614 = vmatprep.subr.mxu0 0.0
    %8615 = vmatpush1.msra.mxu0 0.0
    %8616 = vmatprep.subr.mxu0 0.0
    %8617 = vmatpush1.msra.mxu0 0.0
    %8618 = vmatprep.subr.mxu0 0.0
    %8619 = vmatpush1.msra.mxu0 0.0
    %8620 = vmatprep.subr.mxu0 0.0
    %8621 = vmatpush1.msra.mxu0 0.0
    %8622 = vmatprep.subr.mxu0 0.0
    %8623 = vmatpush1.msra.mxu0 0.0
    %8624 = vmatprep.subr.mxu0 0.0
    %8625 = vmatpush1.msra.mxu0 0.0
    %8626 = vmatprep.subr.mxu0 0.0
    %8627 = vmatpush1.msra.mxu0 0.0
    %8628 = vmatprep.subr.mxu0 0.0
    %8629 = vmatpush1.msra.mxu0 0.0
    %8630 = vmatprep.subr.mxu0 0.0
    %8631 = vmatpush1.msra.mxu0 0.0
    %8632 = vmatprep.subr.mxu0 0.0
    %8633 = vmatpush1.msra.mxu0 0.0
    %8634 = vmatprep.subr.mxu0 0.0
    %8635 = vmatpush1.msra.mxu0 0.0
    %8636 = vmatprep.subr.mxu0 0.0
    %8637 = vmatpush1.msra.mxu0 0.0
    %8638 = vmatprep.subr.mxu0 0.0
    %8639 = vmatpush1.msra.mxu0 0.0
    %8640 = vmatprep.subr.mxu0 0.0
    %8641 = vmatpush1.msra.mxu0 0.0
    %8642 = vmatprep.subr.mxu0 0.0
    %8643 = vmatpush1.msra.mxu0 0.0
    %8644 = vmatprep.subr.mxu0 0.0
    %8645 = vmatpush1.msra.mxu0 0.0
    %8646 = vmatprep.subr.mxu0 0.0
    %8647 = vmatpush1.msra.mxu0 0.0
    %8648 = vmatprep.subr.mxu0 0.0
    %8649 = vmatpush1.msra.mxu0 0.0
    %8650 = vmatprep.subr.mxu0 0.0
    %8651 = vmatpush1.msra.mxu0 0.0
    %8652 = vmatprep.subr.mxu0 0.0
    %8653 = vmatpush1.msra.mxu0 0.0
    %8654 = vmatprep.subr.mxu0 0.0
    %8655 = vmatpush1.msra.mxu0 0.0
    %8656 = vmatprep.subr.mxu0 0.0
    %8657 = vmatpush1.msra.mxu0 0.0
    %8658 = vmatprep.mubr.f32.mxu0 0.0
    %8659 = vmatmul.mubr.f32.gmra.mrb[0].mxu0 %v8522
    %v8660 = vpop.f32.mrb[0].mxu0
    %v8661 = vadd.f32 %v5076, %v8660
    %v8662 = vpop.f32.mrb[0].mxu0
    %8663 = vdwg.mxu0
    %8664 = vmatprep.subr.mxu0 0.0
    %8665 = vmatpush1.msra.mxu0 %v4989
    %8666 = vmatprep.subr.mxu0 0.0
    %8667 = vmatpush1.msra.mxu0 %v4990
    %8668 = vmatprep.subr.mxu0 0.0
    %8669 = vmatpush1.msra.mxu0 %v4991
    %8670 = vmatprep.subr.mxu0 0.0
    %8671 = vmatpush1.msra.mxu0 %v4992
    %8672 = vmatprep.subr.mxu0 0.0
    %8673 = vmatpush1.msra.mxu0 0.0
    %8674 = vmatprep.subr.mxu0 0.0
    %8675 = vmatpush1.msra.mxu0 0.0
    %8676 = vmatprep.subr.mxu0 0.0
    %8677 = vmatpush1.msra.mxu0 0.0
    %8678 = vmatprep.subr.mxu0 0.0
    %8679 = vmatpush1.msra.mxu0 0.0
    %8680 = vmatprep.subr.mxu0 0.0
    %8681 = vmatpush1.msra.mxu0 0.0
    %8682 = vmatprep.subr.mxu0 0.0
    %8683 = vmatpush1.msra.mxu0 0.0
    %8684 = vmatprep.subr.mxu0 0.0
    %8685 = vmatpush1.msra.mxu0 0.0
    %8686 = vmatprep.subr.mxu0 0.0
    %8687 = vmatpush1.msra.mxu0 0.0
    %8688 = vmatprep.subr.mxu0 0.0
    %8689 = vmatpush1.msra.mxu0 0.0
    %8690 = vmatprep.subr.mxu0 0.0
    %8691 = vmatpush1.msra.mxu0 0.0
    %8692 = vmatprep.subr.mxu0 0.0
    %8693 = vmatpush1.msra.mxu0 0.0
    %8694 = vmatprep.subr.mxu0 0.0
    %8695 = vmatpush1.msra.mxu0 0.0
    %8696 = vmatprep.subr.mxu0 0.0
    %8697 = vmatpush1.msra.mxu0 0.0
    %8698 = vmatprep.subr.mxu0 0.0
    %8699 = vmatpush1.msra.mxu0 0.0
    %8700 = vmatprep.subr.mxu0 0.0
    %8701 = vmatpush1.msra.mxu0 0.0
    %8702 = vmatprep.subr.mxu0 0.0
    %8703 = vmatpush1.msra.mxu0 0.0
    %8704 = vmatprep.subr.mxu0 0.0
    %8705 = vmatpush1.msra.mxu0 0.0
    %8706 = vmatprep.subr.mxu0 0.0
    %8707 = vmatpush1.msra.mxu0 0.0
    %8708 = vmatprep.subr.mxu0 0.0
    %8709 = vmatpush1.msra.mxu0 0.0
    %8710 = vmatprep.subr.mxu0 0.0
    %8711 = vmatpush1.msra.mxu0 0.0
    %8712 = vmatprep.subr.mxu0 0.0
    %8713 = vmatpush1.msra.mxu0 0.0
    %8714 = vmatprep.subr.mxu0 0.0
    %8715 = vmatpush1.msra.mxu0 0.0
    %8716 = vmatprep.subr.mxu0 0.0
    %8717 = vmatpush1.msra.mxu0 0.0
    %8718 = vmatprep.subr.mxu0 0.0
    %8719 = vmatpush1.msra.mxu0 0.0
    %8720 = vmatprep.subr.mxu0 0.0
    %8721 = vmatpush1.msra.mxu0 0.0
    %8722 = vmatprep.subr.mxu0 0.0
    %8723 = vmatpush1.msra.mxu0 0.0
    %8724 = vmatprep.subr.mxu0 0.0
    %8725 = vmatpush1.msra.mxu0 0.0
    %8726 = vmatprep.subr.mxu0 0.0
    %8727 = vmatpush1.msra.mxu0 0.0
    %8728 = vmatprep.mubr.f32.mxu0 0.0
    %8729 = vmatmul.mubr.f32.gmra.mrb[0].mxu0 %v8522
    %v8730 = vpop.f32.mrb[0].mxu0
    %v8731 = vadd.f32 %v5152, %v8730
    %v8732 = vpop.f32.mrb[0].mxu0
    %8733 = vdwg.mxu0
    %v8734 = vadd.f32 %v4666, %v8591
    %v8735 = vxor.u32 %v8734, 2147483648
    %v8736 = vmul.f32 %v8735, 1.442695
    %v8737 = vpow.pop %v8736
    %v8738 = vadd.f32 %v8737, 1.0
    %v8739 = vrcp.pop %v8738
    %v8740 = vmul.f32 1.0, %v8739
    %v8741 = vadd.f32 %v4822, %v8661
    %v8742 = vxor.u32 %v8741, 2147483648
    %v8743 = vmul.f32 %v8742, 1.442695
    %v8744 = vpow.pop %v8743
    %v8745 = vadd.f32 %v8744, 1.0
    %v8746 = vrcp.pop %v8745
    %v8747 = vmul.f32 1.0, %v8746
    %v8748 = vmul.f32 %v8740, %v8731
    %v8749 = vadd.f32 %v4978, %v8748
    %v8750 = vtanh.pop %v8749
    %v8751 = vsub.f32 1.0, %v8747
    %v8752 = vmul.f32 %v8751, %v8750
    %v8753 = vmul.f32 %v8747, %v8520
    %v8754 = vadd.f32 %v8752, %v8753
    %v8755 = vld [vmem:[%s25] sm:$0xff]
    %v8756 = vld [vmem:[%s25 + $0x8] sm:$0xff]
    %v8757 = vld [vmem:[%s25 + $0x10] sm:$0xff]
    %v8758 = vld [vmem:[%s25 + $0x18] sm:$0xff]
    %v8759 = vld [vmem:[#allocation2] sm:$0x1]
    %v8761 = vlaneseq
    %v8762 = vshrl.u32 %v8761, 7
    %v8763 = vsub.s32 0, %v8762
    %v8764 = vrot.slane %v8759, %v8763
    %v8767 = vsel %vm753, %v8754, 0
    %8769 = vmatprep.subr.mxu0 0.0
    %8770 = vmatpush1.msra.mxu0 %v8755
    %8771 = vmatprep.subr.mxu0 0.0
    %8772 = vmatpush1.msra.mxu0 %v8756
    %8773 = vmatprep.subr.mxu0 0.0
    %8774 = vmatpush1.msra.mxu0 %v8757
    %8775 = vmatprep.subr.mxu0 0.0
    %8776 = vmatpush1.msra.mxu0 %v8758
    %8777 = vmatprep.subr.mxu0 0.0
    %8778 = vmatpush1.msra.mxu0 0.0
    %8779 = vmatprep.subr.mxu0 0.0
    %8780 = vmatpush1.msra.mxu0 0.0
    %8781 = vmatprep.subr.mxu0 0.0
    %8782 = vmatpush1.msra.mxu0 0.0
    %8783 = vmatprep.subr.mxu0 0.0
    %8784 = vmatpush1.msra.mxu0 0.0
    %8785 = vmatprep.subr.mxu0 0.0
    %8786 = vmatpush1.msra.mxu0 0.0
    %8787 = vmatprep.subr.mxu0 0.0
    %8788 = vmatpush1.msra.mxu0 0.0
    %8789 = vmatprep.subr.mxu0 0.0
    %8790 = vmatpush1.msra.mxu0 0.0
    %8791 = vmatprep.subr.mxu0 0.0
    %8792 = vmatpush1.msra.mxu0 0.0
    %8793 = vmatprep.subr.mxu0 0.0
    %8794 = vmatpush1.msra.mxu0 0.0
    %8795 = vmatprep.subr.mxu0 0.0
    %8796 = vmatpush1.msra.mxu0 0.0
    %8797 = vmatprep.subr.mxu0 0.0
    %8798 = vmatpush1.msra.mxu0 0.0
    %8799 = vmatprep.subr.mxu0 0.0
    %8800 = vmatpush1.msra.mxu0 0.0
    %8801 = vmatprep.subr.mxu0 0.0
    %8802 = vmatpush1.msra.mxu0 0.0
    %8803 = vmatprep.subr.mxu0 0.0
    %8804 = vmatpush1.msra.mxu0 0.0
    %8805 = vmatprep.subr.mxu0 0.0
    %8806 = vmatpush1.msra.mxu0 0.0
    %8807 = vmatprep.subr.mxu0 0.0
    %8808 = vmatpush1.msra.mxu0 0.0
    %8809 = vmatprep.subr.mxu0 0.0
    %8810 = vmatpush1.msra.mxu0 0.0
    %8811 = vmatprep.subr.mxu0 0.0
    %8812 = vmatpush1.msra.mxu0 0.0
    %8813 = vmatprep.subr.mxu0 0.0
    %8814 = vmatpush1.msra.mxu0 0.0
    %8815 = vmatprep.subr.mxu0 0.0
    %8816 = vmatpush1.msra.mxu0 0.0
    %8817 = vmatprep.subr.mxu0 0.0
    %8818 = vmatpush1.msra.mxu0 0.0
    %8819 = vmatprep.subr.mxu0 0.0
    %8820 = vmatpush1.msra.mxu0 0.0
    %8821 = vmatprep.subr.mxu0 0.0
    %8822 = vmatpush1.msra.mxu0 0.0
    %8823 = vmatprep.subr.mxu0 0.0
    %8824 = vmatpush1.msra.mxu0 0.0
    %8825 = vmatprep.subr.mxu0 0.0
    %8826 = vmatpush1.msra.mxu0 0.0
    %8827 = vmatprep.subr.mxu0 0.0
    %8828 = vmatpush1.msra.mxu0 0.0
    %8829 = vmatprep.subr.mxu0 0.0
    %8830 = vmatpush1.msra.mxu0 0.0
    %8831 = vmatprep.subr.mxu0 0.0
    %8832 = vmatpush1.msra.mxu0 0.0
    %8833 = vmatprep.mubr.f32.mxu0 0.0
    %8834 = vmatmul.mubr.f32.gmra.mrb[0].mxu0 %v8767
    %v8835 = vpop.f32.mrb[0].mxu0
    %v8836 = vadd.f32 %v8764, %v8835
    %v8837 = vpop.f32.mrb[0].mxu0
    %8838 = vdwg.mxu0
    %vm8839 = vcmask 7168
    %8840 = vst.msk [vmem:[%s27] sm:$0xff] %vm8839, %v8836
    // Predicated region
    $region150: #{tpu_custom_call.1} parent=1 // pred_check
      _
    $region151: #{tpu_custom_call.1} parent=1 // pred_check_branch
      %8842 = sbr.rel (0) target = $region153
    $region152: #{tpu_custom_call.1} parent=1 // pred_region
      _
    $region153: #{tpu_custom_call.1} parent=1 // pred_fallthru
      _
    // Predicated region
    $region154: #{tpu_custom_call.1} parent=1 // pred_check
      _
    $region155: #{tpu_custom_call.1} parent=1 // pred_check_branch
      %8844 = sbr.rel (0) target = $region157
    $region156: #{tpu_custom_call.1} parent=1 // pred_region
      _
    $region157: #{tpu_custom_call.1} parent=1 // pred_fallthru
      _
    %8845 = vsyncpa [#allocation4], 1
    %8846 = vsyncpa [#allocation6], 1
    %8847 = vsyncpa [#allocation9], 1
    %8848 = vsyncpa [#allocation12], 1
    %8849 = vsyncpa [#allocation15], 1
    %8850 = vsyncpa [#allocation18], 1

</llo_original>
